<compile_context>
chip_gen: v5e
topology: v5e:2x2
jax: 0.10.0
libtpu: 0.0.40
codegen_flags: <defaults>
</compile_context>

<pallas_src>
import functools

import numpy as np
import jax
import jax.numpy as jnp
from jax.experimental import pallas as pl
from jax.experimental.pallas import tpu as pltpu

TN = 512  # rows per grid step (lane-dense blocks -> larger tiles hit HBM roofline)


def _round_up(n, m):
    return ((n + m - 1) // m) * m


# ----------------------------------------------------------------------------
# Pallas kernels
# ----------------------------------------------------------------------------
def _dense_kernel(x_ref, w_ref, b_ref, o_ref):
    # y = relu(x @ W' + b')   (BN pre-folded into W', b'; x may arrive bf16)
    x = x_ref[...].astype(jnp.float32)
    y = jnp.dot(x, w_ref[...], preferred_element_type=jnp.float32)
    o_ref[...] = jnp.maximum(y + b_ref[...], 0.0)


def _agg_dense_kernel(g_ref, a_ref, w_ref, b_ref, o_ref):
    # h[n, (m,c)] = a[n, (m,c)] * g[n, (m,c)]   (mask / 1-count folded into a)
    # y           = relu(h @ W_rep + b')         (W replicated M times along K)
    h = g_ref[...].astype(jnp.float32) * a_ref[...].astype(jnp.float32)
    y = jnp.dot(h, w_ref[...], preferred_element_type=jnp.float32)
    o_ref[...] = jnp.maximum(y + b_ref[...], 0.0)


# ----------------------------------------------------------------------------
# pallas_call wrappers
# ----------------------------------------------------------------------------
def _pallas_dense(x, w, b, n_rows):
    n_pad, k = x.shape
    cout = w.shape[1]
    out = pl.pallas_call(
        _dense_kernel,
        out_shape=jax.ShapeDtypeStruct((n_pad, cout), jnp.float32),
        grid=(n_pad // TN,),
        in_specs=[
            pl.BlockSpec((TN, k), lambda i: (i, 0)),
            pl.BlockSpec((k, cout), lambda i: (0, 0)),
            pl.BlockSpec((1, cout), lambda i: (0, 0)),
        ],
        out_specs=pl.BlockSpec((TN, cout), lambda i: (i, 0)),
        compiler_params=pltpu.CompilerParams(dimension_semantics=("parallel",)),
    )(x, w, b)
    return out[:n_rows]


def _pallas_agg_dense(g, a, w, b, n_rows):
    n_pad, k = g.shape
    cout = w.shape[1]
    out = pl.pallas_call(
        _agg_dense_kernel,
        out_shape=jax.ShapeDtypeStruct((n_pad, cout), jnp.float32),
        grid=(n_pad // TN,),
        in_specs=[
            pl.BlockSpec((TN, k), lambda i: (i, 0)),
            pl.BlockSpec((TN, k), lambda i: (i, 0)),
            pl.BlockSpec((k, cout), lambda i: (0, 0)),
            pl.BlockSpec((1, cout), lambda i: (0, 0)),
        ],
        out_specs=pl.BlockSpec((TN, cout), lambda i: (i, 0)),
        compiler_params=pltpu.CompilerParams(dimension_semantics=("parallel",)),
    )(g, a, w, b)
    return out[:n_rows]


# ----------------------------------------------------------------------------
# Layer wrappers (gathers / coefficient mixing in JAX glue, heavy math in Pallas)
# ----------------------------------------------------------------------------
def _fold_bn(p):
    """Fold inference BN into the pointwise conv (no Cout padding: native width)."""
    w = p["w"] * p["scale"][None, :]
    b = (p["b"] * p["scale"] + p["shift"]).reshape(1, -1)
    return w, b


def dense_bn_relu(x, p):
    """PerItemConv3d: per-point 1x1 conv + (folded) BN + ReLU."""
    n = x.shape[0]
    w, b = _fold_bn(p)
    n_pad = _round_up(n, TN)
    if n_pad != n:
        x = jnp.pad(x, ((0, n_pad - n), (0, 0)))
    return _pallas_dense(x, w, b, n)


def v2f_conv(x, face, p):
    """Vertex-to-facet conv: depthwise weights folded into the pointwise weight,
    corners gathered lane-dense [F, 3*Cin], one dense matmul."""
    f = face.shape[0]
    cin = x.shape[1]
    w, b = _fold_bn(p)                                          # (cin, cout)
    w2 = (p["dw"][:, :, None] * w[None, :, :]).reshape(3 * cin, -1)
    f_pad = _round_up(f, TN)
    face_p = face if f_pad == f else jnp.pad(face, ((0, f_pad - f), (0, 0)))
    g = jnp.take(x, face_p.reshape(-1), axis=0).reshape(f_pad, 3 * cin)
    return _pallas_dense(g, w2, b, f)


def f2v_conv(facefeat, full_vt_map, full_nf_count, filt_coeff, p):
    """Facet-to-vertex conv with fuzzy spherical-harmonic coefficients.
    Gathered faces and mixed coefficients are lane-dense bf16 [N, MAXF*Cin]."""
    n, maxf = full_vt_map.shape
    cin = facefeat.shape[1]
    w, b = _fold_bn(p)
    w_rep = jnp.tile(w, (maxf, 1))                              # (maxf*cin, cout)
    n_pad = _round_up(n, TN)
    if n_pad != n:
        full_vt_map = jnp.pad(full_vt_map, ((0, n_pad - n), (0, 0)))
        filt_coeff = jnp.pad(filt_coeff, ((0, n_pad - n), (0, 0), (0, 0)))
        full_nf_count = jnp.pad(full_nf_count, (0, n_pad - n))
    mask = (jnp.arange(maxf)[None, :] < full_nf_count[:, None]).astype(jnp.float32)
    inv = 1.0 / jnp.maximum(full_nf_count, 1).astype(jnp.float32)
    coeff = filt_coeff * (mask * inv[:, None])[:, :, None]      # mask & 1/count folded
    a = jnp.einsum("nmk,kc->nmc", coeff, p["dwk"]).reshape(n_pad, maxf * cin)
    g = jnp.take(facefeat, full_vt_map.reshape(-1), axis=0).reshape(n_pad, maxf * cin)
    return _pallas_agg_dense(g.astype(jnp.bfloat16), a.astype(jnp.bfloat16),
                             w_rep, b, n)


def v2v_conv(x, face, full_nf_count, full_vt_map, filt_coeff, p_v2f, p_f2v):
    """V2VConv3d = vertex->facet conv followed by facet->vertex conv."""
    f = v2f_conv(x, face, p_v2f)
    return f2v_conv(f, full_vt_map, full_nf_count, filt_coeff, p_f2v)


def pcloud_conv(x, nn_cnt, nn_idx, filt_idx, filt_coeff, p):
    """PCloudConv3d: SH-binned separable point-cloud convolution (lane-dense)."""
    n, maxnn = nn_idx.shape
    cin = x.shape[1]
    w, b = _fold_bn(p)
    w_rep = jnp.tile(w, (maxnn, 1))                             # (maxnn*cin, cout)
    n_pad = _round_up(n, TN)
    if n_pad != n:
        nn_idx = jnp.pad(nn_idx, ((0, n_pad - n), (0, 0)))
        filt_idx = jnp.pad(filt_idx, ((0, n_pad - n), (0, 0)))
        filt_coeff = jnp.pad(filt_coeff, ((0, n_pad - n), (0, 0)))
        nn_cnt = jnp.pad(nn_cnt, (0, n_pad - n))
    inv = 1.0 / jnp.maximum(nn_cnt, 1).astype(jnp.float32)
    a = (jnp.take(p["dw"], filt_idx, axis=0)
         * (filt_coeff * inv[:, None])[:, :, None]).reshape(n_pad, maxnn * cin)
    g = jnp.take(x, nn_idx.reshape(-1), axis=0).reshape(n_pad, maxnn * cin)
    return _pallas_agg_dense(g.astype(jnp.bfloat16), a.astype(jnp.bfloat16),
                             w_rep, b, n)


def build_point_graph(xyz, radius, L, max_nn):
    """Approximation of pointUtil.build_sphere_harmonics (see TODO at top).
    # TODO(synk): O(N^2) dense distance + top_k; replace with a tiled/grid-hash
    #             neighbor search for real point-cloud sizes."""
    n = xyz.shape[0]
    k_bins = (L + 1) ** 2
    diff = xyz[:, None, :] - xyz[None, :, :]
    dist = jnp.sqrt(jnp.sum(diff * diff, axis=-1) + 1e-12)
    within = (dist <= radius) & (~jnp.eye(n, dtype=bool))
    masked = jnp.where(within, dist, jnp.inf)
    neg_d, nn_idx = jax.lax.top_k(-masked, max_nn)              # nearest first
    nn_dst = -neg_d
    valid = jnp.isfinite(nn_dst)
    nn_cnt = jnp.sum(valid, axis=1).astype(jnp.int32)
    nn_idx = jnp.where(valid, nn_idx, 0).astype(jnp.int32)
    off = jnp.take(xyz, nn_idx, axis=0) - xyz[:, None, :]       # [N, MAXNN, 3]
    r = jnp.sqrt(jnp.sum(off * off, axis=-1) + 1e-12)
    theta = jnp.arccos(jnp.clip(off[..., 2] / r, -1.0, 1.0))    # [0, pi]
    phi = jnp.arctan2(off[..., 1], off[..., 0])                 # [-pi, pi]
    nb = L + 1
    tb = jnp.clip((theta / jnp.pi * nb).astype(jnp.int32), 0, nb - 1)
    pb = jnp.clip(((phi + jnp.pi) / (2 * jnp.pi) * nb).astype(jnp.int32), 0, nb - 1)
    bins = tb * nb + pb
    filt_idx = jnp.where(valid, bins, k_bins).astype(jnp.int32)  # last bin = pad/self
    filt_coeff = valid.astype(jnp.float32)
    return nn_cnt, nn_idx, filt_idx, filt_coeff


# ----------------------------------------------------------------------------
# Parameter init (deterministic, synthetic)
# ----------------------------------------------------------------------------
def init_params(key, in_channels, out_channels, growth_rate, L, max_iter):
    k_bins = (L + 1) ** 2
    factor = 4
    c4 = factor * growth_rate
    c2 = 2 * growth_rate
    eps = 1e-5

    def bn(c):
        return dict(scale=jnp.full((c,), 1.0 / np.sqrt(1.0 + eps), jnp.float32),
                    shift=jnp.zeros((c,), jnp.float32))

    def dense_p(k, cin, cout):
        k1, k2 = jax.random.split(k)
        return dict(w=0.1 * jax.random.normal(k1, (cin, cout), jnp.float32),
                    b=0.01 * jax.random.normal(k2, (cout,), jnp.float32), **bn(cout))

    def v2f_p(k, cin, cout):
        k1, k2 = jax.random.split(k)
        return dict(dw=0.3 + 0.1 * jax.random.normal(k1, (3, cin), jnp.float32),
                    **dense_p(k2, cin, cout))

    def f2v_p(k, cin, cout):
        k1, k2 = jax.random.split(k)
        return dict(dwk=0.3 + 0.1 * jax.random.normal(k1, (k_bins, cin), jnp.float32),
                    **dense_p(k2, cin, cout))

    def pcloud_p(k, cin, cout):
        k1, k2 = jax.random.split(k)
        return dict(dw=0.3 + 0.1 * jax.random.normal(k1, (k_bins + 1, cin), jnp.float32),
                    **dense_p(k2, cin, cout))

    params = {"dual": []}
    cin = in_channels
    keys = jax.random.split(key, max_iter * 6 + 1)
    ki = 0
    for _ in range(max_iter):
        params["dual"].append(dict(
            mc1_v2f=v2f_p(keys[ki + 0], cin, c4),
            mc1_f2v=f2v_p(keys[ki + 1], c4, c4),
            mc2_v2f=v2f_p(keys[ki + 2], c4, c4),
            mc2_f2v=f2v_p(keys[ki + 3], c4, c2),
            dense=dense_p(keys[ki + 4], cin, c4),
            pcloud=pcloud_p(keys[ki + 5], c4, c2),
        ))
        ki += 6
        cin += 2 * growth_rate * 2
    params["transit"] = dense_p(keys[ki], cin, out_channels)
    return params


# ----------------------------------------------------------------------------
# DualBlock forward
# ----------------------------------------------------------------------------
def dual_block_forward(params, inputs, vertex, face, full_nf_count, full_vt_map,
                       filt_coeff, nv_in, *, radius, L, max_nn, max_iter):
    del nv_in  # single stacked cloud; batching bookkeeping not needed here
    xyz = vertex[:, :3]
    nn_cnt, nn_idx, p_filt_idx, p_filt_coeff = build_point_graph(xyz, radius, L, max_nn)
    x = inputs
    for n in range(max_iter):
        pg = params["dual"][n]
        mnet = v2v_conv(x, face, full_nf_count, full_vt_map, filt_coeff,
                        pg["mc1_v2f"], pg["mc1_f2v"])
        mnet = v2v_conv(mnet, face, full_nf_count, full_vt_map, filt_coeff,
                        pg["mc2_v2f"], pg["mc2_f2v"])
        pnet = dense_bn_relu(x, pg["dense"])
        pnet = pcloud_conv(pnet, nn_cnt, nn_idx, p_filt_idx, p_filt_coeff, pg["pcloud"])
        x = jnp.concatenate([x, mnet, pnet], axis=-1)
    return dense_bn_relu(x, params["transit"])


# ----------------------------------------------------------------------------
# Main
# ----------------------------------------------------------------------------
if __name__ == "__main__":
    # Small, module-consistent shapes
    N, F = 64, 96
    IN_CH, OUT_CH, GROWTH = 4, 32, 4
    L, RADIUS, MAX_ITER, MAX_NN = 2, 1.5, 2, 8
    K_BINS = (L + 1) ** 2
    MAXF = 16

    key = jax.random.PRNGKey(0)
    k_in, k_vtx, k_face, k_coef, k_par = jax.random.split(key, 5)

    inputs = jax.random.normal(k_in, (N, IN_CH), jnp.float32)
    vertex = jax.random.normal(k_vtx, (N, 3), jnp.float32)
    face = jax.random.randint(k_face, (F, 3), 0, N, jnp.int32)

    # Build vertex <- incident-face map deterministically (setup glue).
    face_np = np.asarray(face)
    incident = [[] for _ in range(N)]
    for f in range(F):
        for k in range(3):
            incident[int(face_np[f, k])].append(f)
    full_vt_map_np = np.zeros((N, MAXF), np.int32)
    full_nf_count_np = np.zeros((N,), np.int32)
    for v in range(N):
        lst = incident[v][:MAXF]
        full_nf_count_np[v] = len(lst)
        full_vt_map_np[v, :len(lst)] = lst
    full_vt_map = jnp.asarray(full_vt_map_np)
    full_nf_count = jnp.asarray(full_nf_count_np)

    # Fuzzy SH coefficients per (vertex, incident face) pair.
    filt_coeff = jax.nn.softmax(
        jax.random.normal(k_coef, (N, MAXF, K_BINS), jnp.float32), axis=-1)
    nv_in = jnp.array([N], jnp.int32)

    params = init_params(k_par, IN_CH, OUT_CH, GROWTH, L, MAX_ITER)

    fwd = jax.jit(functools.partial(
        dual_block_forward, radius=RADIUS, L=L, max_nn=MAX_NN, max_iter=MAX_ITER))
    out = fwd(params, inputs, vertex, face, full_nf_count, full_vt_map,
              filt_coeff, nv_in)
    jax.block_until_ready(out)
    assert out.shape == (N, OUT_CH), out.shape
    assert bool(jnp.all(jnp.isfinite(out)))
    print("KERNEL_OK")
</pallas_src>

<mosaic_0001>
module attributes {stable_mosaic.version = 11 : i64} {
  func.func @_dense_kernel(%arg0: i32, %arg1: memref<512x4xf32, #tpu.memory_space<vmem>>, %arg2: memref<4x16xf32, #tpu.memory_space<vmem>>, %arg3: memref<1x16xf32, #tpu.memory_space<vmem>>, %arg4: memref<512x16xf32, #tpu.memory_space<vmem>>) attributes {dimension_semantics = [#tpu.dimension_semantics<parallel>], iteration_bounds = array<i64: 1>, scalar_prefetch = 0 : i64, scratch_operands = 0 : i64, tpu.core_type = #tpu.core_type<tc>, window_params = [{transform_indices = @transform_0, window_bounds = array<i64: 512, 4>}, {pipeline_mode = #tpu.pipeline_mode<synchronous>, transform_indices = @transform_1, window_bounds = array<i64: 4, 16>}, {pipeline_mode = #tpu.pipeline_mode<synchronous>, transform_indices = @transform_2, window_bounds = array<i64: 1, 16>}, {transform_indices = @transform_3, window_bounds = array<i64: 512, 16>}]} {
    %c0 = arith.constant 0 : index
    %c0_0 = arith.constant 0 : index
    %0 = vector.load %arg1[%c0, %c0_0] : memref<512x4xf32, #tpu.memory_space<vmem>>, vector<512x4xf32>
    %c0_1 = arith.constant 0 : index
    %c0_2 = arith.constant 0 : index
    %1 = vector.load %arg2[%c0_1, %c0_2] : memref<4x16xf32, #tpu.memory_space<vmem>>, vector<4x16xf32>
    %cst = arith.constant dense<0.000000e+00> : vector<512x16xf32>
    %2 = tpu.matmul %0, %1, %cst {dimension_numbers = #tpu.dot_dimension_numbers<[1], [0], [0], [1], [0, 0, 1, 1], [], []>} : vector<512x4xf32>, vector<4x16xf32>, vector<512x16xf32> -> vector<512x16xf32>
    %c0_3 = arith.constant 0 : index
    %c0_4 = arith.constant 0 : index
    %3 = vector.load %arg3[%c0_3, %c0_4] : memref<1x16xf32, #tpu.memory_space<vmem>>, vector<1x16xf32>
    %4 = vector.broadcast %3 : vector<1x16xf32> to vector<512x16xf32>
    %5 = arith.addf %2, %4 : vector<512x16xf32>
    %cst_5 = arith.constant 0.000000e+00 : f32
    %6 = vector.broadcast %cst_5 : f32 to vector<512x16xf32>
    %7 = arith.maximumf %5, %6 : vector<512x16xf32>
    %c0_6 = arith.constant 0 : index
    %c0_7 = arith.constant 0 : index
    %8 = vector.load %arg4[%c0_6, %c0_7] : memref<512x16xf32, #tpu.memory_space<vmem>>, vector<512x16xf32>
    tpu.vector_store %arg4[%c0_6, %c0_7], %7 {strides = array<i32>} : memref<512x16xf32, #tpu.memory_space<vmem>>, vector<512x16xf32>,
    return
  }
  func.func @transform_0(%arg0: i32) -> (i32, i32) {
    %c0_i32 = arith.constant 0 : i32
    %c0_i32_0 = arith.constant 0 : i32
    return %arg0, %c0_i32 : i32, i32
  }
  func.func @transform_1(%arg0: i32) -> (i32, i32) {
    %c0_i32 = arith.constant 0 : i32
    %c0_i32_0 = arith.constant 0 : i32
    %c0_i32_1 = arith.constant 0 : i32
    return %c0_i32, %c0_i32_0 : i32, i32
  }
  func.func @transform_2(%arg0: i32) -> (i32, i32) {
    %c0_i32 = arith.constant 0 : i32
    %c0_i32_0 = arith.constant 0 : i32
    %c0_i32_1 = arith.constant 0 : i32
    return %c0_i32, %c0_i32_0 : i32, i32
  }
  func.func @transform_3(%arg0: i32) -> (i32, i32) {
    %c0_i32 = arith.constant 0 : i32
    %c0_i32_0 = arith.constant 0 : i32
    return %arg0, %c0_i32 : i32, i32
  }
}

module attributes {stable_mosaic.version = 11 : i64} {
  func.func @_agg_dense_kernel(%arg0: i32, %arg1: memref<512x128xbf16, #tpu.memory_space<vmem>>, %arg2: memref<512x128xbf16, #tpu.memory_space<vmem>>, %arg3: memref<128x8xf32, #tpu.memory_space<vmem>>, %arg4: memref<1x8xf32, #tpu.memory_space<vmem>>, %arg5: memref<512x8xf32, #tpu.memory_space<vmem>>) attributes {dimension_semantics = [#tpu.dimension_semantics<parallel>], iteration_bounds = array<i64: 1>, scalar_prefetch = 0 : i64, scratch_operands = 0 : i64, tpu.core_type = #tpu.core_type<tc>, window_params = [{transform_indices = @transform_0, window_bounds = array<i64: 512, 128>}, {transform_indices = @transform_1, window_bounds = array<i64: 512, 128>}, {pipeline_mode = #tpu.pipeline_mode<synchronous>, transform_indices = @transform_2, window_bounds = array<i64: 128, 8>}, {pipeline_mode = #tpu.pipeline_mode<synchronous>, transform_indices = @transform_3, window_bounds = array<i64: 1, 8>}, {transform_indices = @transform_4, window_bounds = array<i64: 512, 8>}]} {
    %c0 = arith.constant 0 : index
    %c0_0 = arith.constant 0 : index
    %0 = vector.load %arg1[%c0, %c0_0] : memref<512x128xbf16, #tpu.memory_space<vmem>>, vector<512x128xbf16>
    %1 = arith.extf %0 : vector<512x128xbf16> to vector<512x128xf32>
    %c0_1 = arith.constant 0 : index
    %c0_2 = arith.constant 0 : index
    %2 = vector.load %arg2[%c0_1, %c0_2] : memref<512x128xbf16, #tpu.memory_space<vmem>>, vector<512x128xbf16>
    %3 = arith.extf %2 : vector<512x128xbf16> to vector<512x128xf32>
    %4 = arith.mulf %1, %3 : vector<512x128xf32>
    %c0_3 = arith.constant 0 : index
    %c0_4 = arith.constant 0 : index
    %5 = vector.load %arg3[%c0_3, %c0_4] : memref<128x8xf32, #tpu.memory_space<vmem>>, vector<128x8xf32>
    %cst = arith.constant dense<0.000000e+00> : vector<512x8xf32>
    %6 = tpu.matmul %4, %5, %cst {dimension_numbers = #tpu.dot_dimension_numbers<[1], [0], [0], [1], [0, 0, 1, 1], [], []>} : vector<512x128xf32>, vector<128x8xf32>, vector<512x8xf32> -> vector<512x8xf32>
    %c0_5 = arith.constant 0 : index
    %c0_6 = arith.constant 0 : index
    %7 = vector.load %arg4[%c0_5, %c0_6] : memref<1x8xf32, #tpu.memory_space<vmem>>, vector<1x8xf32>
    %8 = vector.broadcast %7 : vector<1x8xf32> to vector<512x8xf32>
    %9 = arith.addf %6, %8 : vector<512x8xf32>
    %cst_7 = arith.constant 0.000000e+00 : f32
    %10 = vector.broadcast %cst_7 : f32 to vector<512x8xf32>
    %11 = arith.maximumf %9, %10 : vector<512x8xf32>
    %c0_8 = arith.constant 0 : index
    %c0_9 = arith.constant 0 : index
    %12 = vector.load %arg5[%c0_8, %c0_9] : memref<512x8xf32, #tpu.memory_space<vmem>>, vector<512x8xf32>
    tpu.vector_store %arg5[%c0_8, %c0_9], %11 {strides = array<i32>} : memref<512x8xf32, #tpu.memory_space<vmem>>, vector<512x8xf32>,
    return
  }
  func.func @transform_0(%arg0: i32) -> (i32, i32) {
    %c0_i32 = arith.constant 0 : i32
    %c0_i32_0 = arith.constant 0 : i32
    return %arg0, %c0_i32 : i32, i32
  }
  func.func @transform_1(%arg0: i32) -> (i32, i32) {
    %c0_i32 = arith.constant 0 : i32
    %c0_i32_0 = arith.constant 0 : i32
    return %arg0, %c0_i32 : i32, i32
  }
  func.func @transform_2(%arg0: i32) -> (i32, i32) {
    %c0_i32 = arith.constant 0 : i32
    %c0_i32_0 = arith.constant 0 : i32
    %c0_i32_1 = arith.constant 0 : i32
    return %c0_i32, %c0_i32_0 : i32, i32
  }
  func.func @transform_3(%arg0: i32) -> (i32, i32) {
    %c0_i32 = arith.constant 0 : i32
    %c0_i32_0 = arith.constant 0 : i32
    %c0_i32_1 = arith.constant 0 : i32
    return %c0_i32, %c0_i32_0 : i32, i32
  }
  func.func @transform_4(%arg0: i32) -> (i32, i32) {
    %c0_i32 = arith.constant 0 : i32
    %c0_i32_0 = arith.constant 0 : i32
    return %arg0, %c0_i32 : i32, i32
  }
}

module attributes {stable_mosaic.version = 11 : i64} {
  func.func @_dense_kernel(%arg0: i32, %arg1: memref<512x12xf32, #tpu.memory_space<vmem>>, %arg2: memref<12x16xf32, #tpu.memory_space<vmem>>, %arg3: memref<1x16xf32, #tpu.memory_space<vmem>>, %arg4: memref<512x16xf32, #tpu.memory_space<vmem>>) attributes {dimension_semantics = [#tpu.dimension_semantics<parallel>], iteration_bounds = array<i64: 1>, scalar_prefetch = 0 : i64, scratch_operands = 0 : i64, tpu.core_type = #tpu.core_type<tc>, window_params = [{transform_indices = @transform_0, window_bounds = array<i64: 512, 12>}, {pipeline_mode = #tpu.pipeline_mode<synchronous>, transform_indices = @transform_1, window_bounds = array<i64: 12, 16>}, {pipeline_mode = #tpu.pipeline_mode<synchronous>, transform_indices = @transform_2, window_bounds = array<i64: 1, 16>}, {transform_indices = @transform_3, window_bounds = array<i64: 512, 16>}]} {
    %c0 = arith.constant 0 : index
    %c0_0 = arith.constant 0 : index
    %0 = vector.load %arg1[%c0, %c0_0] : memref<512x12xf32, #tpu.memory_space<vmem>>, vector<512x12xf32>
    %c0_1 = arith.constant 0 : index
    %c0_2 = arith.constant 0 : index
    %1 = vector.load %arg2[%c0_1, %c0_2] : memref<12x16xf32, #tpu.memory_space<vmem>>, vector<12x16xf32>
    %cst = arith.constant dense<0.000000e+00> : vector<512x16xf32>
    %2 = tpu.matmul %0, %1, %cst {dimension_numbers = #tpu.dot_dimension_numbers<[1], [0], [0], [1], [0, 0, 1, 1], [], []>} : vector<512x12xf32>, vector<12x16xf32>, vector<512x16xf32> -> vector<512x16xf32>
    %c0_3 = arith.constant 0 : index
    %c0_4 = arith.constant 0 : index
    %3 = vector.load %arg3[%c0_3, %c0_4] : memref<1x16xf32, #tpu.memory_space<vmem>>, vector<1x16xf32>
    %4 = vector.broadcast %3 : vector<1x16xf32> to vector<512x16xf32>
    %5 = arith.addf %2, %4 : vector<512x16xf32>
    %cst_5 = arith.constant 0.000000e+00 : f32
    %6 = vector.broadcast %cst_5 : f32 to vector<512x16xf32>
    %7 = arith.maximumf %5, %6 : vector<512x16xf32>
    %c0_6 = arith.constant 0 : index
    %c0_7 = arith.constant 0 : index
    %8 = vector.load %arg4[%c0_6, %c0_7] : memref<512x16xf32, #tpu.memory_space<vmem>>, vector<512x16xf32>
    tpu.vector_store %arg4[%c0_6, %c0_7], %7 {strides = array<i32>} : memref<512x16xf32, #tpu.memory_space<vmem>>, vector<512x16xf32>,
    return
  }
  func.func @transform_0(%arg0: i32) -> (i32, i32) {
    %c0_i32 = arith.constant 0 : i32
    %c0_i32_0 = arith.constant 0 : i32
    return %arg0, %c0_i32 : i32, i32
  }
  func.func @transform_1(%arg0: i32) -> (i32, i32) {
    %c0_i32 = arith.constant 0 : i32
    %c0_i32_0 = arith.constant 0 : i32
    %c0_i32_1 = arith.constant 0 : i32
    return %c0_i32, %c0_i32_0 : i32, i32
  }
  func.func @transform_2(%arg0: i32) -> (i32, i32) {
    %c0_i32 = arith.constant 0 : i32
    %c0_i32_0 = arith.constant 0 : i32
    %c0_i32_1 = arith.constant 0 : i32
    return %c0_i32, %c0_i32_0 : i32, i32
  }
  func.func @transform_3(%arg0: i32) -> (i32, i32) {
    %c0_i32 = arith.constant 0 : i32
    %c0_i32_0 = arith.constant 0 : i32
    return %arg0, %c0_i32 : i32, i32
  }
}

module attributes {stable_mosaic.version = 11 : i64} {
  func.func @_agg_dense_kernel(%arg0: i32, %arg1: memref<512x256xbf16, #tpu.memory_space<vmem>>, %arg2: memref<512x256xbf16, #tpu.memory_space<vmem>>, %arg3: memref<256x16xf32, #tpu.memory_space<vmem>>, %arg4: memref<1x16xf32, #tpu.memory_space<vmem>>, %arg5: memref<512x16xf32, #tpu.memory_space<vmem>>) attributes {dimension_semantics = [#tpu.dimension_semantics<parallel>], iteration_bounds = array<i64: 1>, scalar_prefetch = 0 : i64, scratch_operands = 0 : i64, tpu.core_type = #tpu.core_type<tc>, window_params = [{transform_indices = @transform_0, window_bounds = array<i64: 512, 256>}, {transform_indices = @transform_1, window_bounds = array<i64: 512, 256>}, {pipeline_mode = #tpu.pipeline_mode<synchronous>, transform_indices = @transform_2, window_bounds = array<i64: 256, 16>}, {pipeline_mode = #tpu.pipeline_mode<synchronous>, transform_indices = @transform_3, window_bounds = array<i64: 1, 16>}, {transform_indices = @transform_4, window_bounds = array<i64: 512, 16>}]} {
    %c0 = arith.constant 0 : index
    %c0_0 = arith.constant 0 : index
    %0 = vector.load %arg1[%c0, %c0_0] : memref<512x256xbf16, #tpu.memory_space<vmem>>, vector<512x256xbf16>
    %1 = arith.extf %0 : vector<512x256xbf16> to vector<512x256xf32>
    %c0_1 = arith.constant 0 : index
    %c0_2 = arith.constant 0 : index
    %2 = vector.load %arg2[%c0_1, %c0_2] : memref<512x256xbf16, #tpu.memory_space<vmem>>, vector<512x256xbf16>
    %3 = arith.extf %2 : vector<512x256xbf16> to vector<512x256xf32>
    %4 = arith.mulf %1, %3 : vector<512x256xf32>
    %c0_3 = arith.constant 0 : index
    %c0_4 = arith.constant 0 : index
    %5 = vector.load %arg3[%c0_3, %c0_4] : memref<256x16xf32, #tpu.memory_space<vmem>>, vector<256x16xf32>
    %cst = arith.constant dense<0.000000e+00> : vector<512x16xf32>
    %6 = tpu.matmul %4, %5, %cst {dimension_numbers = #tpu.dot_dimension_numbers<[1], [0], [0], [1], [0, 0, 1, 1], [], []>} : vector<512x256xf32>, vector<256x16xf32>, vector<512x16xf32> -> vector<512x16xf32>
    %c0_5 = arith.constant 0 : index
    %c0_6 = arith.constant 0 : index
    %7 = vector.load %arg4[%c0_5, %c0_6] : memref<1x16xf32, #tpu.memory_space<vmem>>, vector<1x16xf32>
    %8 = vector.broadcast %7 : vector<1x16xf32> to vector<512x16xf32>
    %9 = arith.addf %6, %8 : vector<512x16xf32>
    %cst_7 = arith.constant 0.000000e+00 : f32
    %10 = vector.broadcast %cst_7 : f32 to vector<512x16xf32>
    %11 = arith.maximumf %9, %10 : vector<512x16xf32>
    %c0_8 = arith.constant 0 : index
    %c0_9 = arith.constant 0 : index
    %12 = vector.load %arg5[%c0_8, %c0_9] : memref<512x16xf32, #tpu.memory_space<vmem>>, vector<512x16xf32>
    tpu.vector_store %arg5[%c0_8, %c0_9], %11 {strides = array<i32>} : memref<512x16xf32, #tpu.memory_space<vmem>>, vector<512x16xf32>,
    return
  }
  func.func @transform_0(%arg0: i32) -> (i32, i32) {
    %c0_i32 = arith.constant 0 : i32
    %c0_i32_0 = arith.constant 0 : i32
    return %arg0, %c0_i32 : i32, i32
  }
  func.func @transform_1(%arg0: i32) -> (i32, i32) {
    %c0_i32 = arith.constant 0 : i32
    %c0_i32_0 = arith.constant 0 : i32
    return %arg0, %c0_i32 : i32, i32
  }
  func.func @transform_2(%arg0: i32) -> (i32, i32) {
    %c0_i32 = arith.constant 0 : i32
    %c0_i32_0 = arith.constant 0 : i32
    %c0_i32_1 = arith.constant 0 : i32
    return %c0_i32, %c0_i32_0 : i32, i32
  }
  func.func @transform_3(%arg0: i32) -> (i32, i32) {
    %c0_i32 = arith.constant 0 : i32
    %c0_i32_0 = arith.constant 0 : i32
    %c0_i32_1 = arith.constant 0 : i32
    return %c0_i32, %c0_i32_0 : i32, i32
  }
  func.func @transform_4(%arg0: i32) -> (i32, i32) {
    %c0_i32 = arith.constant 0 : i32
    %c0_i32_0 = arith.constant 0 : i32
    return %arg0, %c0_i32 : i32, i32
  }
}

module attributes {stable_mosaic.version = 11 : i64} {
  func.func @_agg_dense_kernel(%arg0: i32, %arg1: memref<512x256xbf16, #tpu.memory_space<vmem>>, %arg2: memref<512x256xbf16, #tpu.memory_space<vmem>>, %arg3: memref<256x8xf32, #tpu.memory_space<vmem>>, %arg4: memref<1x8xf32, #tpu.memory_space<vmem>>, %arg5: memref<512x8xf32, #tpu.memory_space<vmem>>) attributes {dimension_semantics = [#tpu.dimension_semantics<parallel>], iteration_bounds = array<i64: 1>, scalar_prefetch = 0 : i64, scratch_operands = 0 : i64, tpu.core_type = #tpu.core_type<tc>, window_params = [{transform_indices = @transform_0, window_bounds = array<i64: 512, 256>}, {transform_indices = @transform_1, window_bounds = array<i64: 512, 256>}, {pipeline_mode = #tpu.pipeline_mode<synchronous>, transform_indices = @transform_2, window_bounds = array<i64: 256, 8>}, {pipeline_mode = #tpu.pipeline_mode<synchronous>, transform_indices = @transform_3, window_bounds = array<i64: 1, 8>}, {transform_indices = @transform_4, window_bounds = array<i64: 512, 8>}]} {
    %c0 = arith.constant 0 : index
    %c0_0 = arith.constant 0 : index
    %0 = vector.load %arg1[%c0, %c0_0] : memref<512x256xbf16, #tpu.memory_space<vmem>>, vector<512x256xbf16>
    %1 = arith.extf %0 : vector<512x256xbf16> to vector<512x256xf32>
    %c0_1 = arith.constant 0 : index
    %c0_2 = arith.constant 0 : index
    %2 = vector.load %arg2[%c0_1, %c0_2] : memref<512x256xbf16, #tpu.memory_space<vmem>>, vector<512x256xbf16>
    %3 = arith.extf %2 : vector<512x256xbf16> to vector<512x256xf32>
    %4 = arith.mulf %1, %3 : vector<512x256xf32>
    %c0_3 = arith.constant 0 : index
    %c0_4 = arith.constant 0 : index
    %5 = vector.load %arg3[%c0_3, %c0_4] : memref<256x8xf32, #tpu.memory_space<vmem>>, vector<256x8xf32>
    %cst = arith.constant dense<0.000000e+00> : vector<512x8xf32>
    %6 = tpu.matmul %4, %5, %cst {dimension_numbers = #tpu.dot_dimension_numbers<[1], [0], [0], [1], [0, 0, 1, 1], [], []>} : vector<512x256xf32>, vector<256x8xf32>, vector<512x8xf32> -> vector<512x8xf32>
    %c0_5 = arith.constant 0 : index
    %c0_6 = arith.constant 0 : index
    %7 = vector.load %arg4[%c0_5, %c0_6] : memref<1x8xf32, #tpu.memory_space<vmem>>, vector<1x8xf32>
    %8 = vector.broadcast %7 : vector<1x8xf32> to vector<512x8xf32>
    %9 = arith.addf %6, %8 : vector<512x8xf32>
    %cst_7 = arith.constant 0.000000e+00 : f32
    %10 = vector.broadcast %cst_7 : f32 to vector<512x8xf32>
    %11 = arith.maximumf %9, %10 : vector<512x8xf32>
    %c0_8 = arith.constant 0 : index
    %c0_9 = arith.constant 0 : index
    %12 = vector.load %arg5[%c0_8, %c0_9] : memref<512x8xf32, #tpu.memory_space<vmem>>, vector<512x8xf32>
    tpu.vector_store %arg5[%c0_8, %c0_9], %11 {strides = array<i32>} : memref<512x8xf32, #tpu.memory_space<vmem>>, vector<512x8xf32>,
    return
  }
  func.func @transform_0(%arg0: i32) -> (i32, i32) {
    %c0_i32 = arith.constant 0 : i32
    %c0_i32_0 = arith.constant 0 : i32
    return %arg0, %c0_i32 : i32, i32
  }
  func.func @transform_1(%arg0: i32) -> (i32, i32) {
    %c0_i32 = arith.constant 0 : i32
    %c0_i32_0 = arith.constant 0 : i32
    return %arg0, %c0_i32 : i32, i32
  }
  func.func @transform_2(%arg0: i32) -> (i32, i32) {
    %c0_i32 = arith.constant 0 : i32
    %c0_i32_0 = arith.constant 0 : i32
    %c0_i32_1 = arith.constant 0 : i32
    return %c0_i32, %c0_i32_0 : i32, i32
  }
  func.func @transform_3(%arg0: i32) -> (i32, i32) {
    %c0_i32 = arith.constant 0 : i32
    %c0_i32_0 = arith.constant 0 : i32
    %c0_i32_1 = arith.constant 0 : i32
    return %c0_i32, %c0_i32_0 : i32, i32
  }
  func.func @transform_4(%arg0: i32) -> (i32, i32) {
    %c0_i32 = arith.constant 0 : i32
    %c0_i32_0 = arith.constant 0 : i32
    return %arg0, %c0_i32 : i32, i32
  }
}

module attributes {stable_mosaic.version = 11 : i64} {
  func.func @_dense_kernel(%arg0: i32, %arg1: memref<512x48xf32, #tpu.memory_space<vmem>>, %arg2: memref<48x16xf32, #tpu.memory_space<vmem>>, %arg3: memref<1x16xf32, #tpu.memory_space<vmem>>, %arg4: memref<512x16xf32, #tpu.memory_space<vmem>>) attributes {dimension_semantics = [#tpu.dimension_semantics<parallel>], iteration_bounds = array<i64: 1>, scalar_prefetch = 0 : i64, scratch_operands = 0 : i64, tpu.core_type = #tpu.core_type<tc>, window_params = [{transform_indices = @transform_0, window_bounds = array<i64: 512, 48>}, {pipeline_mode = #tpu.pipeline_mode<synchronous>, transform_indices = @transform_1, window_bounds = array<i64: 48, 16>}, {pipeline_mode = #tpu.pipeline_mode<synchronous>, transform_indices = @transform_2, window_bounds = array<i64: 1, 16>}, {transform_indices = @transform_3, window_bounds = array<i64: 512, 16>}]} {
    %c0 = arith.constant 0 : index
    %c0_0 = arith.constant 0 : index
    %0 = vector.load %arg1[%c0, %c0_0] : memref<512x48xf32, #tpu.memory_space<vmem>>, vector<512x48xf32>
    %c0_1 = arith.constant 0 : index
    %c0_2 = arith.constant 0 : index
    %1 = vector.load %arg2[%c0_1, %c0_2] : memref<48x16xf32, #tpu.memory_space<vmem>>, vector<48x16xf32>
    %cst = arith.constant dense<0.000000e+00> : vector<512x16xf32>
    %2 = tpu.matmul %0, %1, %cst {dimension_numbers = #tpu.dot_dimension_numbers<[1], [0], [0], [1], [0, 0, 1, 1], [], []>} : vector<512x48xf32>, vector<48x16xf32>, vector<512x16xf32> -> vector<512x16xf32>
    %c0_3 = arith.constant 0 : index
    %c0_4 = arith.constant 0 : index
    %3 = vector.load %arg3[%c0_3, %c0_4] : memref<1x16xf32, #tpu.memory_space<vmem>>, vector<1x16xf32>
    %4 = vector.broadcast %3 : vector<1x16xf32> to vector<512x16xf32>
    %5 = arith.addf %2, %4 : vector<512x16xf32>
    %cst_5 = arith.constant 0.000000e+00 : f32
    %6 = vector.broadcast %cst_5 : f32 to vector<512x16xf32>
    %7 = arith.maximumf %5, %6 : vector<512x16xf32>
    %c0_6 = arith.constant 0 : index
    %c0_7 = arith.constant 0 : index
    %8 = vector.load %arg4[%c0_6, %c0_7] : memref<512x16xf32, #tpu.memory_space<vmem>>, vector<512x16xf32>
    tpu.vector_store %arg4[%c0_6, %c0_7], %7 {strides = array<i32>} : memref<512x16xf32, #tpu.memory_space<vmem>>, vector<512x16xf32>,
    return
  }
  func.func @transform_0(%arg0: i32) -> (i32, i32) {
    %c0_i32 = arith.constant 0 : i32
    %c0_i32_0 = arith.constant 0 : i32
    return %arg0, %c0_i32 : i32, i32
  }
  func.func @transform_1(%arg0: i32) -> (i32, i32) {
    %c0_i32 = arith.constant 0 : i32
    %c0_i32_0 = arith.constant 0 : i32
    %c0_i32_1 = arith.constant 0 : i32
    return %c0_i32, %c0_i32_0 : i32, i32
  }
  func.func @transform_2(%arg0: i32) -> (i32, i32) {
    %c0_i32 = arith.constant 0 : i32
    %c0_i32_0 = arith.constant 0 : i32
    %c0_i32_1 = arith.constant 0 : i32
    return %c0_i32, %c0_i32_0 : i32, i32
  }
  func.func @transform_3(%arg0: i32) -> (i32, i32) {
    %c0_i32 = arith.constant 0 : i32
    %c0_i32_0 = arith.constant 0 : i32
    return %arg0, %c0_i32 : i32, i32
  }
}

module attributes {stable_mosaic.version = 11 : i64} {
  func.func @_dense_kernel(%arg0: i32, %arg1: memref<512x20xf32, #tpu.memory_space<vmem>>, %arg2: memref<20x16xf32, #tpu.memory_space<vmem>>, %arg3: memref<1x16xf32, #tpu.memory_space<vmem>>, %arg4: memref<512x16xf32, #tpu.memory_space<vmem>>) attributes {dimension_semantics = [#tpu.dimension_semantics<parallel>], iteration_bounds = array<i64: 1>, scalar_prefetch = 0 : i64, scratch_operands = 0 : i64, tpu.core_type = #tpu.core_type<tc>, window_params = [{transform_indices = @transform_0, window_bounds = array<i64: 512, 20>}, {pipeline_mode = #tpu.pipeline_mode<synchronous>, transform_indices = @transform_1, window_bounds = array<i64: 20, 16>}, {pipeline_mode = #tpu.pipeline_mode<synchronous>, transform_indices = @transform_2, window_bounds = array<i64: 1, 16>}, {transform_indices = @transform_3, window_bounds = array<i64: 512, 16>}]} {
    %c0 = arith.constant 0 : index
    %c0_0 = arith.constant 0 : index
    %0 = vector.load %arg1[%c0, %c0_0] : memref<512x20xf32, #tpu.memory_space<vmem>>, vector<512x20xf32>
    %c0_1 = arith.constant 0 : index
    %c0_2 = arith.constant 0 : index
    %1 = vector.load %arg2[%c0_1, %c0_2] : memref<20x16xf32, #tpu.memory_space<vmem>>, vector<20x16xf32>
    %cst = arith.constant dense<0.000000e+00> : vector<512x16xf32>
    %2 = tpu.matmul %0, %1, %cst {dimension_numbers = #tpu.dot_dimension_numbers<[1], [0], [0], [1], [0, 0, 1, 1], [], []>} : vector<512x20xf32>, vector<20x16xf32>, vector<512x16xf32> -> vector<512x16xf32>
    %c0_3 = arith.constant 0 : index
    %c0_4 = arith.constant 0 : index
    %3 = vector.load %arg3[%c0_3, %c0_4] : memref<1x16xf32, #tpu.memory_space<vmem>>, vector<1x16xf32>
    %4 = vector.broadcast %3 : vector<1x16xf32> to vector<512x16xf32>
    %5 = arith.addf %2, %4 : vector<512x16xf32>
    %cst_5 = arith.constant 0.000000e+00 : f32
    %6 = vector.broadcast %cst_5 : f32 to vector<512x16xf32>
    %7 = arith.maximumf %5, %6 : vector<512x16xf32>
    %c0_6 = arith.constant 0 : index
    %c0_7 = arith.constant 0 : index
    %8 = vector.load %arg4[%c0_6, %c0_7] : memref<512x16xf32, #tpu.memory_space<vmem>>, vector<512x16xf32>
    tpu.vector_store %arg4[%c0_6, %c0_7], %7 {strides = array<i32>} : memref<512x16xf32, #tpu.memory_space<vmem>>, vector<512x16xf32>,
    return
  }
  func.func @transform_0(%arg0: i32) -> (i32, i32) {
    %c0_i32 = arith.constant 0 : i32
    %c0_i32_0 = arith.constant 0 : i32
    return %arg0, %c0_i32 : i32, i32
  }
  func.func @transform_1(%arg0: i32) -> (i32, i32) {
    %c0_i32 = arith.constant 0 : i32
    %c0_i32_0 = arith.constant 0 : i32
    %c0_i32_1 = arith.constant 0 : i32
    return %c0_i32, %c0_i32_0 : i32, i32
  }
  func.func @transform_2(%arg0: i32) -> (i32, i32) {
    %c0_i32 = arith.constant 0 : i32
    %c0_i32_0 = arith.constant 0 : i32
    %c0_i32_1 = arith.constant 0 : i32
    return %c0_i32, %c0_i32_0 : i32, i32
  }
  func.func @transform_3(%arg0: i32) -> (i32, i32) {
    %c0_i32 = arith.constant 0 : i32
    %c0_i32_0 = arith.constant 0 : i32
    return %arg0, %c0_i32 : i32, i32
  }
}

module attributes {stable_mosaic.version = 11 : i64} {
  func.func @_dense_kernel(%arg0: i32, %arg1: memref<512x36xf32, #tpu.memory_space<vmem>>, %arg2: memref<36x32xf32, #tpu.memory_space<vmem>>, %arg3: memref<1x32xf32, #tpu.memory_space<vmem>>, %arg4: memref<512x32xf32, #tpu.memory_space<vmem>>) attributes {dimension_semantics = [#tpu.dimension_semantics<parallel>], iteration_bounds = array<i64: 1>, scalar_prefetch = 0 : i64, scratch_operands = 0 : i64, tpu.core_type = #tpu.core_type<tc>, window_params = [{transform_indices = @transform_0, window_bounds = array<i64: 512, 36>}, {pipeline_mode = #tpu.pipeline_mode<synchronous>, transform_indices = @transform_1, window_bounds = array<i64: 36, 32>}, {pipeline_mode = #tpu.pipeline_mode<synchronous>, transform_indices = @transform_2, window_bounds = array<i64: 1, 32>}, {transform_indices = @transform_3, window_bounds = array<i64: 512, 32>}]} {
    %c0 = arith.constant 0 : index
    %c0_0 = arith.constant 0 : index
    %0 = vector.load %arg1[%c0, %c0_0] : memref<512x36xf32, #tpu.memory_space<vmem>>, vector<512x36xf32>
    %c0_1 = arith.constant 0 : index
    %c0_2 = arith.constant 0 : index
    %1 = vector.load %arg2[%c0_1, %c0_2] : memref<36x32xf32, #tpu.memory_space<vmem>>, vector<36x32xf32>
    %cst = arith.constant dense<0.000000e+00> : vector<512x32xf32>
    %2 = tpu.matmul %0, %1, %cst {dimension_numbers = #tpu.dot_dimension_numbers<[1], [0], [0], [1], [0, 0, 1, 1], [], []>} : vector<512x36xf32>, vector<36x32xf32>, vector<512x32xf32> -> vector<512x32xf32>
    %c0_3 = arith.constant 0 : index
    %c0_4 = arith.constant 0 : index
    %3 = vector.load %arg3[%c0_3, %c0_4] : memref<1x32xf32, #tpu.memory_space<vmem>>, vector<1x32xf32>
    %4 = vector.broadcast %3 : vector<1x32xf32> to vector<512x32xf32>
    %5 = arith.addf %2, %4 : vector<512x32xf32>
    %cst_5 = arith.constant 0.000000e+00 : f32
    %6 = vector.broadcast %cst_5 : f32 to vector<512x32xf32>
    %7 = arith.maximumf %5, %6 : vector<512x32xf32>
    %c0_6 = arith.constant 0 : index
    %c0_7 = arith.constant 0 : index
    %8 = vector.load %arg4[%c0_6, %c0_7] : memref<512x32xf32, #tpu.memory_space<vmem>>, vector<512x32xf32>
    tpu.vector_store %arg4[%c0_6, %c0_7], %7 {strides = array<i32>} : memref<512x32xf32, #tpu.memory_space<vmem>>, vector<512x32xf32>,
    return
  }
  func.func @transform_0(%arg0: i32) -> (i32, i32) {
    %c0_i32 = arith.constant 0 : i32
    %c0_i32_0 = arith.constant 0 : i32
    return %arg0, %c0_i32 : i32, i32
  }
  func.func @transform_1(%arg0: i32) -> (i32, i32) {
    %c0_i32 = arith.constant 0 : i32
    %c0_i32_0 = arith.constant 0 : i32
    %c0_i32_1 = arith.constant 0 : i32
    return %c0_i32, %c0_i32_0 : i32, i32
  }
  func.func @transform_2(%arg0: i32) -> (i32, i32) {
    %c0_i32 = arith.constant 0 : i32
    %c0_i32_0 = arith.constant 0 : i32
    %c0_i32_1 = arith.constant 0 : i32
    return %c0_i32, %c0_i32_0 : i32, i32
  }
  func.func @transform_3(%arg0: i32) -> (i32, i32) {
    %c0_i32 = arith.constant 0 : i32
    %c0_i32_0 = arith.constant 0 : i32
    return %arg0, %c0_i32 : i32, i32
  }
}

module attributes {stable_mosaic.version = 11 : i64} {
  func.func @_dense_kernel(%arg0: i32, %arg1: memref<512x60xf32, #tpu.memory_space<vmem>>, %arg2: memref<60x16xf32, #tpu.memory_space<vmem>>, %arg3: memref<1x16xf32, #tpu.memory_space<vmem>>, %arg4: memref<512x16xf32, #tpu.memory_space<vmem>>) attributes {dimension_semantics = [#tpu.dimension_semantics<parallel>], iteration_bounds = array<i64: 1>, scalar_prefetch = 0 : i64, scratch_operands = 0 : i64, tpu.core_type = #tpu.core_type<tc>, window_params = [{transform_indices = @transform_0, window_bounds = array<i64: 512, 60>}, {pipeline_mode = #tpu.pipeline_mode<synchronous>, transform_indices = @transform_1, window_bounds = array<i64: 60, 16>}, {pipeline_mode = #tpu.pipeline_mode<synchronous>, transform_indices = @transform_2, window_bounds = array<i64: 1, 16>}, {transform_indices = @transform_3, window_bounds = array<i64: 512, 16>}]} {
    %c0 = arith.constant 0 : index
    %c0_0 = arith.constant 0 : index
    %0 = vector.load %arg1[%c0, %c0_0] : memref<512x60xf32, #tpu.memory_space<vmem>>, vector<512x60xf32>
    %c0_1 = arith.constant 0 : index
    %c0_2 = arith.constant 0 : index
    %1 = vector.load %arg2[%c0_1, %c0_2] : memref<60x16xf32, #tpu.memory_space<vmem>>, vector<60x16xf32>
    %cst = arith.constant dense<0.000000e+00> : vector<512x16xf32>
    %2 = tpu.matmul %0, %1, %cst {dimension_numbers = #tpu.dot_dimension_numbers<[1], [0], [0], [1], [0, 0, 1, 1], [], []>} : vector<512x60xf32>, vector<60x16xf32>, vector<512x16xf32> -> vector<512x16xf32>
    %c0_3 = arith.constant 0 : index
    %c0_4 = arith.constant 0 : index
    %3 = vector.load %arg3[%c0_3, %c0_4] : memref<1x16xf32, #tpu.memory_space<vmem>>, vector<1x16xf32>
    %4 = vector.broadcast %3 : vector<1x16xf32> to vector<512x16xf32>
    %5 = arith.addf %2, %4 : vector<512x16xf32>
    %cst_5 = arith.constant 0.000000e+00 : f32
    %6 = vector.broadcast %cst_5 : f32 to vector<512x16xf32>
    %7 = arith.maximumf %5, %6 : vector<512x16xf32>
    %c0_6 = arith.constant 0 : index
    %c0_7 = arith.constant 0 : index
    %8 = vector.load %arg4[%c0_6, %c0_7] : memref<512x16xf32, #tpu.memory_space<vmem>>, vector<512x16xf32>
    tpu.vector_store %arg4[%c0_6, %c0_7], %7 {strides = array<i32>} : memref<512x16xf32, #tpu.memory_space<vmem>>, vector<512x16xf32>,
    return
  }
  func.func @transform_0(%arg0: i32) -> (i32, i32) {
    %c0_i32 = arith.constant 0 : i32
    %c0_i32_0 = arith.constant 0 : i32
    return %arg0, %c0_i32 : i32, i32
  }
  func.func @transform_1(%arg0: i32) -> (i32, i32) {
    %c0_i32 = arith.constant 0 : i32
    %c0_i32_0 = arith.constant 0 : i32
    %c0_i32_1 = arith.constant 0 : i32
    return %c0_i32, %c0_i32_0 : i32, i32
  }
  func.func @transform_2(%arg0: i32) -> (i32, i32) {
    %c0_i32 = arith.constant 0 : i32
    %c0_i32_0 = arith.constant 0 : i32
    %c0_i32_1 = arith.constant 0 : i32
    return %c0_i32, %c0_i32_0 : i32, i32
  }
  func.func @transform_3(%arg0: i32) -> (i32, i32) {
    %c0_i32 = arith.constant 0 : i32
    %c0_i32_0 = arith.constant 0 : i32
    return %arg0, %c0_i32 : i32, i32
  }
}

</mosaic_0001>

<llo_original>
// kernel: dual_block_forward.17
$region0: #{dual_block_forward.17}
  #allocation0 [shape = 'u32[]', space=smem, size = 0x4, offset = 0x4, fixed_abs, tag = 'smem constant byte address 0x4 - core index']
  #allocation1 [shape = 'u32[72,128]{1,0:T(1,128)}', space=vmem, size = 0x9000, scoped, tag = 'internal scratch']
  %s0 = inlined_call_operand.vmem [shape: f32[512,4], index: 0, kind: input, shape index: {}]
  %s1 = inlined_call_operand.vmem [shape: f32[4,16], index: 1, kind: input, shape index: {}]
  %s2 = inlined_call_operand.vmem [shape: f32[1,16], index: 2, kind: input, shape index: {}]
  %s3 = inlined_call_operand.vmem [shape: f32[512,16], index: 3, kind: output, shape index: {}]
  %s4 = sld [smem:[#allocation0]]
  $region22: #{dual_block_forward.17} parent=0
    _
  %s6 = ssub.s32 1, %s4
  %s7 = scalar_select 0, %s6, %s4
  // Predicated region
  $region2: #{dual_block_forward.17} parent=0 // pred_check
    _
  $region3: #{dual_block_forward.17} parent=0 // pred_check_branch
    %9 = sbr.rel (0) target = $region5
  $region4: #{dual_block_forward.17} parent=0 // pred_region
    _
  $region5: #{dual_block_forward.17} parent=0 // pred_fallthru
    _
  // Predicated region
  $region6: #{dual_block_forward.17} parent=0 // pred_check
    _
  $region7: #{dual_block_forward.17} parent=0 // pred_check_branch
    %11 = sbr.rel (0) target = $region9
  $region8: #{dual_block_forward.17} parent=0 // pred_region
    _
  $region9: #{dual_block_forward.17} parent=0 // pred_fallthru
    _
  // Predicated region
  $region10: #{dual_block_forward.17} parent=0 // pred_check
    _
  $region11: #{dual_block_forward.17} parent=0 // pred_check_branch
    %13 = sbr.rel (0) target = $region13
  $region12: #{dual_block_forward.17} parent=0 // pred_region
    _
  $region13: #{dual_block_forward.17} parent=0 // pred_fallthru
    _
  %v14 = vld [vmem:[%s0] sm:$0xff]
  %v15 = vld [vmem:[%s0 + $0x8] sm:$0xff]
  %v16 = vld [vmem:[%s0 + $0x10] sm:$0xff]
  %v17 = vld [vmem:[%s0 + $0x18] sm:$0xff]
  %v18 = vld [vmem:[%s0 + $0x20] sm:$0xff]
  %v19 = vld [vmem:[%s0 + $0x28] sm:$0xff]
  %v20 = vld [vmem:[%s0 + $0x30] sm:$0xff]
  %v21 = vld [vmem:[%s0 + $0x38] sm:$0xff]
  %v22 = vld [vmem:[%s0 + $0x40] sm:$0xff]
  %v23 = vld [vmem:[%s0 + $0x48] sm:$0xff]
  %v24 = vld [vmem:[%s0 + $0x50] sm:$0xff]
  %v25 = vld [vmem:[%s0 + $0x58] sm:$0xff]
  %v26 = vld [vmem:[%s0 + $0x60] sm:$0xff]
  %v27 = vld [vmem:[%s0 + $0x68] sm:$0xff]
  %v28 = vld [vmem:[%s0 + $0x70] sm:$0xff]
  %v29 = vld [vmem:[%s0 + $0x78] sm:$0xff]
  %v30 = vld [vmem:[%s0 + $0x80] sm:$0xff]
  %v31 = vld [vmem:[%s0 + $0x88] sm:$0xff]
  %v32 = vld [vmem:[%s0 + $0x90] sm:$0xff]
  %v33 = vld [vmem:[%s0 + $0x98] sm:$0xff]
  %v34 = vld [vmem:[%s0 + $0xa0] sm:$0xff]
  %v35 = vld [vmem:[%s0 + $0xa8] sm:$0xff]
  %v36 = vld [vmem:[%s0 + $0xb0] sm:$0xff]
  %v37 = vld [vmem:[%s0 + $0xb8] sm:$0xff]
  %v38 = vld [vmem:[%s0 + $0xc0] sm:$0xff]
  %v39 = vld [vmem:[%s0 + $0xc8] sm:$0xff]
  %v40 = vld [vmem:[%s0 + $0xd0] sm:$0xff]
  %v41 = vld [vmem:[%s0 + $0xd8] sm:$0xff]
  %v42 = vld [vmem:[%s0 + $0xe0] sm:$0xff]
  %v43 = vld [vmem:[%s0 + $0xe8] sm:$0xff]
  %v44 = vld [vmem:[%s0 + $0xf0] sm:$0xff]
  %v45 = vld [vmem:[%s0 + $0xf8] sm:$0xff]
  %v46 = vld [vmem:[%s0 + $0x100] sm:$0xff]
  %v47 = vld [vmem:[%s0 + $0x108] sm:$0xff]
  %v48 = vld [vmem:[%s0 + $0x110] sm:$0xff]
  %v49 = vld [vmem:[%s0 + $0x118] sm:$0xff]
  %v50 = vld [vmem:[%s0 + $0x120] sm:$0xff]
  %v51 = vld [vmem:[%s0 + $0x128] sm:$0xff]
  %v52 = vld [vmem:[%s0 + $0x130] sm:$0xff]
  %v53 = vld [vmem:[%s0 + $0x138] sm:$0xff]
  %v54 = vld [vmem:[%s0 + $0x140] sm:$0xff]
  %v55 = vld [vmem:[%s0 + $0x148] sm:$0xff]
  %v56 = vld [vmem:[%s0 + $0x150] sm:$0xff]
  %v57 = vld [vmem:[%s0 + $0x158] sm:$0xff]
  %v58 = vld [vmem:[%s0 + $0x160] sm:$0xff]
  %v59 = vld [vmem:[%s0 + $0x168] sm:$0xff]
  %v60 = vld [vmem:[%s0 + $0x170] sm:$0xff]
  %v61 = vld [vmem:[%s0 + $0x178] sm:$0xff]
  %v62 = vld [vmem:[%s0 + $0x180] sm:$0xff]
  %v63 = vld [vmem:[%s0 + $0x188] sm:$0xff]
  %v64 = vld [vmem:[%s0 + $0x190] sm:$0xff]
  %v65 = vld [vmem:[%s0 + $0x198] sm:$0xff]
  %v66 = vld [vmem:[%s0 + $0x1a0] sm:$0xff]
  %v67 = vld [vmem:[%s0 + $0x1a8] sm:$0xff]
  %v68 = vld [vmem:[%s0 + $0x1b0] sm:$0xff]
  %v69 = vld [vmem:[%s0 + $0x1b8] sm:$0xff]
  %v70 = vld [vmem:[%s0 + $0x1c0] sm:$0xff]
  %v71 = vld [vmem:[%s0 + $0x1c8] sm:$0xff]
  %v72 = vld [vmem:[%s0 + $0x1d0] sm:$0xff]
  %v73 = vld [vmem:[%s0 + $0x1d8] sm:$0xff]
  %v74 = vld [vmem:[%s0 + $0x1e0] sm:$0xff]
  %v75 = vld [vmem:[%s0 + $0x1e8] sm:$0xff]
  %v76 = vld [vmem:[%s0 + $0x1f0] sm:$0xff]
  %v77 = vld [vmem:[%s0 + $0x1f8] sm:$0xff]
  %v78 = vld [vmem:[%s1] sm:$0xf]
  %v79 = vld [vmem:[%s2] sm:$0x1]
  %v81 = vperm.slane %v79, 0
  %vm83 = vcmask 31744
  %v85 = vsel %vm83, %v14, 0
  %v88 = vsel %vm83, %v15, 0
  %v91 = vsel %vm83, %v16, 0
  %v94 = vsel %vm83, %v17, 0
  %v97 = vsel %vm83, %v18, 0
  %v100 = vsel %vm83, %v19, 0
  %v103 = vsel %vm83, %v20, 0
  %v106 = vsel %vm83, %v21, 0
  %v109 = vsel %vm83, %v22, 0
  %v112 = vsel %vm83, %v23, 0
  %v115 = vsel %vm83, %v24, 0
  %v118 = vsel %vm83, %v25, 0
  %v121 = vsel %vm83, %v26, 0
  %v124 = vsel %vm83, %v27, 0
  %v127 = vsel %vm83, %v28, 0
  %v130 = vsel %vm83, %v29, 0
  %v133 = vsel %vm83, %v30, 0
  %v136 = vsel %vm83, %v31, 0
  %v139 = vsel %vm83, %v32, 0
  %v142 = vsel %vm83, %v33, 0
  %v145 = vsel %vm83, %v34, 0
  %v148 = vsel %vm83, %v35, 0
  %v151 = vsel %vm83, %v36, 0
  %v154 = vsel %vm83, %v37, 0
  %v157 = vsel %vm83, %v38, 0
  %v160 = vsel %vm83, %v39, 0
  %v163 = vsel %vm83, %v40, 0
  %v166 = vsel %vm83, %v41, 0
  %v169 = vsel %vm83, %v42, 0
  %v172 = vsel %vm83, %v43, 0
  %v175 = vsel %vm83, %v44, 0
  %v178 = vsel %vm83, %v45, 0
  %v181 = vsel %vm83, %v46, 0
  %v184 = vsel %vm83, %v47, 0
  %v187 = vsel %vm83, %v48, 0
  %v190 = vsel %vm83, %v49, 0
  %v193 = vsel %vm83, %v50, 0
  %v196 = vsel %vm83, %v51, 0
  %v199 = vsel %vm83, %v52, 0
  %v202 = vsel %vm83, %v53, 0
  %v205 = vsel %vm83, %v54, 0
  %v208 = vsel %vm83, %v55, 0
  %v211 = vsel %vm83, %v56, 0
  %v214 = vsel %vm83, %v57, 0
  %v217 = vsel %vm83, %v58, 0
  %v220 = vsel %vm83, %v59, 0
  %v223 = vsel %vm83, %v60, 0
  %v226 = vsel %vm83, %v61, 0
  %v229 = vsel %vm83, %v62, 0
  %v232 = vsel %vm83, %v63, 0
  %v235 = vsel %vm83, %v64, 0
  %v238 = vsel %vm83, %v65, 0
  %v241 = vsel %vm83, %v66, 0
  %v244 = vsel %vm83, %v67, 0
  %v247 = vsel %vm83, %v68, 0
  %v250 = vsel %vm83, %v69, 0
  %v253 = vsel %vm83, %v70, 0
  %v256 = vsel %vm83, %v71, 0
  %v259 = vsel %vm83, %v72, 0
  %v262 = vsel %vm83, %v73, 0
  %v265 = vsel %vm83, %v74, 0
  %v268 = vsel %vm83, %v75, 0
  %v271 = vsel %vm83, %v76, 0
  %v274 = vsel %vm83, %v77, 0
  %vm276 = vcmask 1043456
  %v278 = vsel %vm276, %v78, 0
  %280 = vmatpush.msra.mxu0 0.0
  %281 = vmatpush.msra.mxu0 0.0
  %282 = vmatpush.msra.mxu0 0.0
  %283 = vmatpush.msra.mxu0 0.0
  %284 = vmatpush.msra.mxu0 0.0
  %285 = vmatpush.msra.mxu0 0.0
  %286 = vmatpush.msra.mxu0 0.0
  %287 = vmatpush.msra.mxu0 0.0
  %288 = vmatpush.msra.mxu0 0.0
  %289 = vmatpush.msra.mxu0 0.0
  %290 = vmatpush.msra.mxu0 0.0
  %291 = vmatpush.msra.mxu0 0.0
  %292 = vmatpush.msra.mxu0 0.0
  %293 = vmatpush.msra.mxu0 0.0
  %294 = vmatpush.msra.mxu0 0.0
  %295 = vmatpush.msra.mxu0 %v278
  %296 = vmatmul.f32.gmra.mxu0 %v85
  %v297 = vpop.f32.mrf.mxu0
  %v298 = vadd.f32 %v81, %v297
  %299 = vmatmul.f32.gmra.mxu0 %v88
  %v300 = vpop.f32.mrf.mxu0
  %v301 = vadd.f32 %v81, %v300
  %302 = vmatmul.f32.gmra.mxu0 %v91
  %v303 = vpop.f32.mrf.mxu0
  %v304 = vadd.f32 %v81, %v303
  %305 = vmatmul.f32.gmra.mxu0 %v94
  %v306 = vpop.f32.mrf.mxu0
  %v307 = vadd.f32 %v81, %v306
  %308 = vmatmul.f32.gmra.mxu0 %v97
  %v309 = vpop.f32.mrf.mxu0
  %v310 = vadd.f32 %v81, %v309
  %311 = vmatmul.f32.gmra.mxu0 %v100
  %v312 = vpop.f32.mrf.mxu0
  %v313 = vadd.f32 %v81, %v312
  %314 = vmatmul.f32.gmra.mxu0 %v103
  %v315 = vpop.f32.mrf.mxu0
  %v316 = vadd.f32 %v81, %v315
  %317 = vmatmul.f32.gmra.mxu0 %v106
  %v318 = vpop.f32.mrf.mxu0
  %v319 = vadd.f32 %v81, %v318
  %320 = vmatmul.f32.gmra.mxu0 %v109
  %v321 = vpop.f32.mrf.mxu0
  %v322 = vadd.f32 %v81, %v321
  %323 = vmatmul.f32.gmra.mxu0 %v112
  %v324 = vpop.f32.mrf.mxu0
  %v325 = vadd.f32 %v81, %v324
  %326 = vmatmul.f32.gmra.mxu0 %v115
  %v327 = vpop.f32.mrf.mxu0
  %v328 = vadd.f32 %v81, %v327
  %329 = vmatmul.f32.gmra.mxu0 %v118
  %v330 = vpop.f32.mrf.mxu0
  %v331 = vadd.f32 %v81, %v330
  %332 = vmatmul.f32.gmra.mxu0 %v121
  %v333 = vpop.f32.mrf.mxu0
  %v334 = vadd.f32 %v81, %v333
  %335 = vmatmul.f32.gmra.mxu0 %v124
  %v336 = vpop.f32.mrf.mxu0
  %v337 = vadd.f32 %v81, %v336
  %338 = vmatmul.f32.gmra.mxu0 %v127
  %v339 = vpop.f32.mrf.mxu0
  %v340 = vadd.f32 %v81, %v339
  %341 = vmatmul.f32.gmra.mxu0 %v130
  %v342 = vpop.f32.mrf.mxu0
  %v343 = vadd.f32 %v81, %v342
  %344 = vmatmul.f32.gmra.mxu0 %v133
  %v345 = vpop.f32.mrf.mxu0
  %v346 = vadd.f32 %v81, %v345
  %347 = vmatmul.f32.gmra.mxu0 %v136
  %v348 = vpop.f32.mrf.mxu0
  %v349 = vadd.f32 %v81, %v348
  %350 = vmatmul.f32.gmra.mxu0 %v139
  %v351 = vpop.f32.mrf.mxu0
  %v352 = vadd.f32 %v81, %v351
  %353 = vmatmul.f32.gmra.mxu0 %v142
  %v354 = vpop.f32.mrf.mxu0
  %v355 = vadd.f32 %v81, %v354
  %356 = vmatmul.f32.gmra.mxu0 %v145
  %v357 = vpop.f32.mrf.mxu0
  %v358 = vadd.f32 %v81, %v357
  %359 = vmatmul.f32.gmra.mxu0 %v148
  %v360 = vpop.f32.mrf.mxu0
  %v361 = vadd.f32 %v81, %v360
  %362 = vmatmul.f32.gmra.mxu0 %v151
  %v363 = vpop.f32.mrf.mxu0
  %v364 = vadd.f32 %v81, %v363
  %365 = vmatmul.f32.gmra.mxu0 %v154
  %v366 = vpop.f32.mrf.mxu0
  %v367 = vadd.f32 %v81, %v366
  %368 = vmatmul.f32.gmra.mxu0 %v157
  %v369 = vpop.f32.mrf.mxu0
  %v370 = vadd.f32 %v81, %v369
  %371 = vmatmul.f32.gmra.mxu0 %v160
  %v372 = vpop.f32.mrf.mxu0
  %v373 = vadd.f32 %v81, %v372
  %374 = vmatmul.f32.gmra.mxu0 %v163
  %v375 = vpop.f32.mrf.mxu0
  %v376 = vadd.f32 %v81, %v375
  %377 = vmatmul.f32.gmra.mxu0 %v166
  %v378 = vpop.f32.mrf.mxu0
  %v379 = vadd.f32 %v81, %v378
  %380 = vmatmul.f32.gmra.mxu0 %v169
  %v381 = vpop.f32.mrf.mxu0
  %v382 = vadd.f32 %v81, %v381
  %383 = vmatmul.f32.gmra.mxu0 %v172
  %v384 = vpop.f32.mrf.mxu0
  %v385 = vadd.f32 %v81, %v384
  %386 = vmatmul.f32.gmra.mxu0 %v175
  %v387 = vpop.f32.mrf.mxu0
  %v388 = vadd.f32 %v81, %v387
  %389 = vmatmul.f32.gmra.mxu0 %v178
  %v390 = vpop.f32.mrf.mxu0
  %v391 = vadd.f32 %v81, %v390
  %392 = vmatmul.f32.gmra.mxu0 %v181
  %v393 = vpop.f32.mrf.mxu0
  %v394 = vadd.f32 %v81, %v393
  %395 = vmatmul.f32.gmra.mxu0 %v184
  %v396 = vpop.f32.mrf.mxu0
  %v397 = vadd.f32 %v81, %v396
  %398 = vmatmul.f32.gmra.mxu0 %v187
  %v399 = vpop.f32.mrf.mxu0
  %v400 = vadd.f32 %v81, %v399
  %401 = vmatmul.f32.gmra.mxu0 %v190
  %v402 = vpop.f32.mrf.mxu0
  %v403 = vadd.f32 %v81, %v402
  %404 = vmatmul.f32.gmra.mxu0 %v193
  %v405 = vpop.f32.mrf.mxu0
  %v406 = vadd.f32 %v81, %v405
  %407 = vmatmul.f32.gmra.mxu0 %v196
  %v408 = vpop.f32.mrf.mxu0
  %v409 = vadd.f32 %v81, %v408
  %410 = vmatmul.f32.gmra.mxu0 %v199
  %v411 = vpop.f32.mrf.mxu0
  %v412 = vadd.f32 %v81, %v411
  %413 = vmatmul.f32.gmra.mxu0 %v202
  %v414 = vpop.f32.mrf.mxu0
  %v415 = vadd.f32 %v81, %v414
  %416 = vmatmul.f32.gmra.mxu0 %v205
  %v417 = vpop.f32.mrf.mxu0
  %v418 = vadd.f32 %v81, %v417
  %419 = vmatmul.f32.gmra.mxu0 %v208
  %v420 = vpop.f32.mrf.mxu0
  %v421 = vadd.f32 %v81, %v420
  %422 = vmatmul.f32.gmra.mxu0 %v211
  %v423 = vpop.f32.mrf.mxu0
  %v424 = vadd.f32 %v81, %v423
  %425 = vmatmul.f32.gmra.mxu0 %v214
  %v426 = vpop.f32.mrf.mxu0
  %v427 = vadd.f32 %v81, %v426
  %428 = vmatmul.f32.gmra.mxu0 %v217
  %v429 = vpop.f32.mrf.mxu0
  %v430 = vadd.f32 %v81, %v429
  %431 = vmatmul.f32.gmra.mxu0 %v220
  %v432 = vpop.f32.mrf.mxu0
  %v433 = vadd.f32 %v81, %v432
  %434 = vmatmul.f32.gmra.mxu0 %v223
  %v435 = vpop.f32.mrf.mxu0
  %v436 = vadd.f32 %v81, %v435
  %437 = vmatmul.f32.gmra.mxu0 %v226
  %v438 = vpop.f32.mrf.mxu0
  %v439 = vadd.f32 %v81, %v438
  %440 = vmatmul.f32.gmra.mxu0 %v229
  %v441 = vpop.f32.mrf.mxu0
  %v442 = vadd.f32 %v81, %v441
  %443 = vmatmul.f32.gmra.mxu0 %v232
  %v444 = vpop.f32.mrf.mxu0
  %v445 = vadd.f32 %v81, %v444
  %446 = vmatmul.f32.gmra.mxu0 %v235
  %v447 = vpop.f32.mrf.mxu0
  %v448 = vadd.f32 %v81, %v447
  %449 = vmatmul.f32.gmra.mxu0 %v238
  %v450 = vpop.f32.mrf.mxu0
  %v451 = vadd.f32 %v81, %v450
  %452 = vmatmul.f32.gmra.mxu0 %v241
  %v453 = vpop.f32.mrf.mxu0
  %v454 = vadd.f32 %v81, %v453
  %455 = vmatmul.f32.gmra.mxu0 %v244
  %v456 = vpop.f32.mrf.mxu0
  %v457 = vadd.f32 %v81, %v456
  %458 = vmatmul.f32.gmra.mxu0 %v247
  %v459 = vpop.f32.mrf.mxu0
  %v460 = vadd.f32 %v81, %v459
  %461 = vmatmul.f32.gmra.mxu0 %v250
  %v462 = vpop.f32.mrf.mxu0
  %v463 = vadd.f32 %v81, %v462
  %464 = vmatmul.f32.gmra.mxu0 %v253
  %v465 = vpop.f32.mrf.mxu0
  %v466 = vadd.f32 %v81, %v465
  %467 = vmatmul.f32.gmra.mxu0 %v256
  %v468 = vpop.f32.mrf.mxu0
  %v469 = vadd.f32 %v81, %v468
  %470 = vmatmul.f32.gmra.mxu0 %v259
  %v471 = vpop.f32.mrf.mxu0
  %v472 = vadd.f32 %v81, %v471
  %473 = vmatmul.f32.gmra.mxu0 %v262
  %v474 = vpop.f32.mrf.mxu0
  %v475 = vadd.f32 %v81, %v474
  %476 = vmatmul.f32.gmra.mxu0 %v265
  %v477 = vpop.f32.mrf.mxu0
  %v478 = vadd.f32 %v81, %v477
  %479 = vmatmul.f32.gmra.mxu0 %v268
  %v480 = vpop.f32.mrf.mxu0
  %v481 = vadd.f32 %v81, %v480
  %482 = vmatmul.f32.gmra.mxu0 %v271
  %v483 = vpop.f32.mrf.mxu0
  %v484 = vadd.f32 %v81, %v483
  %485 = vmatmul.f32.gmra.mxu0 %v274
  %v486 = vpop.f32.mrf.mxu0
  %v487 = vadd.f32 %v81, %v486
  %488 = vdwg.mxu0
  %v489 = vmax.f32 %v298, 0.0
  %v490 = vmax.f32 %v301, 0.0
  %v491 = vmax.f32 %v304, 0.0
  %v492 = vmax.f32 %v307, 0.0
  %v493 = vmax.f32 %v310, 0.0
  %v494 = vmax.f32 %v313, 0.0
  %v495 = vmax.f32 %v316, 0.0
  %v496 = vmax.f32 %v319, 0.0
  %v497 = vmax.f32 %v322, 0.0
  %v498 = vmax.f32 %v325, 0.0
  %v499 = vmax.f32 %v328, 0.0
  %v500 = vmax.f32 %v331, 0.0
  %v501 = vmax.f32 %v334, 0.0
  %v502 = vmax.f32 %v337, 0.0
  %v503 = vmax.f32 %v340, 0.0
  %v504 = vmax.f32 %v343, 0.0
  %v505 = vmax.f32 %v346, 0.0
  %v506 = vmax.f32 %v349, 0.0
  %v507 = vmax.f32 %v352, 0.0
  %v508 = vmax.f32 %v355, 0.0
  %v509 = vmax.f32 %v358, 0.0
  %v510 = vmax.f32 %v361, 0.0
  %v511 = vmax.f32 %v364, 0.0
  %v512 = vmax.f32 %v367, 0.0
  %v513 = vmax.f32 %v370, 0.0
  %v514 = vmax.f32 %v373, 0.0
  %v515 = vmax.f32 %v376, 0.0
  %v516 = vmax.f32 %v379, 0.0
  %v517 = vmax.f32 %v382, 0.0
  %v518 = vmax.f32 %v385, 0.0
  %v519 = vmax.f32 %v388, 0.0
  %v520 = vmax.f32 %v391, 0.0
  %v521 = vmax.f32 %v394, 0.0
  %v522 = vmax.f32 %v397, 0.0
  %v523 = vmax.f32 %v400, 0.0
  %v524 = vmax.f32 %v403, 0.0
  %v525 = vmax.f32 %v406, 0.0
  %v526 = vmax.f32 %v409, 0.0
  %v527 = vmax.f32 %v412, 0.0
  %v528 = vmax.f32 %v415, 0.0
  %v529 = vmax.f32 %v418, 0.0
  %v530 = vmax.f32 %v421, 0.0
  %v531 = vmax.f32 %v424, 0.0
  %v532 = vmax.f32 %v427, 0.0
  %v533 = vmax.f32 %v430, 0.0
  %v534 = vmax.f32 %v433, 0.0
  %v535 = vmax.f32 %v436, 0.0
  %v536 = vmax.f32 %v439, 0.0
  %v537 = vmax.f32 %v442, 0.0
  %v538 = vmax.f32 %v445, 0.0
  %v539 = vmax.f32 %v448, 0.0
  %v540 = vmax.f32 %v451, 0.0
  %v541 = vmax.f32 %v454, 0.0
  %v542 = vmax.f32 %v457, 0.0
  %v543 = vmax.f32 %v460, 0.0
  %v544 = vmax.f32 %v463, 0.0
  %v545 = vmax.f32 %v466, 0.0
  %v546 = vmax.f32 %v469, 0.0
  %v547 = vmax.f32 %v472, 0.0
  %v548 = vmax.f32 %v475, 0.0
  %v549 = vmax.f32 %v478, 0.0
  %v550 = vmax.f32 %v481, 0.0
  %v551 = vmax.f32 %v484, 0.0
  %v552 = vmax.f32 %v487, 0.0
  %vm553 = vcmask 130048
  %554 = vst.msk [vmem:[%s3] sm:$0xff] %vm553, %v489
  %555 = vst.msk [vmem:[%s3 + $0x8] sm:$0xff] %vm553, %v490
  %556 = vst.msk [vmem:[%s3 + $0x10] sm:$0xff] %vm553, %v491
  %557 = vst.msk [vmem:[%s3 + $0x18] sm:$0xff] %vm553, %v492
  %558 = vst.msk [vmem:[%s3 + $0x20] sm:$0xff] %vm553, %v493
  %559 = vst.msk [vmem:[%s3 + $0x28] sm:$0xff] %vm553, %v494
  %560 = vst.msk [vmem:[%s3 + $0x30] sm:$0xff] %vm553, %v495
  %561 = vst.msk [vmem:[%s3 + $0x38] sm:$0xff] %vm553, %v496
  %562 = vst.msk [vmem:[%s3 + $0x40] sm:$0xff] %vm553, %v497
  %563 = vst.msk [vmem:[%s3 + $0x48] sm:$0xff] %vm553, %v498
  %564 = vst.msk [vmem:[%s3 + $0x50] sm:$0xff] %vm553, %v499
  %565 = vst.msk [vmem:[%s3 + $0x58] sm:$0xff] %vm553, %v500
  %566 = vst.msk [vmem:[%s3 + $0x60] sm:$0xff] %vm553, %v501
  %567 = vst.msk [vmem:[%s3 + $0x68] sm:$0xff] %vm553, %v502
  %568 = vst.msk [vmem:[%s3 + $0x70] sm:$0xff] %vm553, %v503
  %569 = vst.msk [vmem:[%s3 + $0x78] sm:$0xff] %vm553, %v504
  %570 = vst.msk [vmem:[%s3 + $0x80] sm:$0xff] %vm553, %v505
  %571 = vst.msk [vmem:[%s3 + $0x88] sm:$0xff] %vm553, %v506
  %572 = vst.msk [vmem:[%s3 + $0x90] sm:$0xff] %vm553, %v507
  %573 = vst.msk [vmem:[%s3 + $0x98] sm:$0xff] %vm553, %v508
  %574 = vst.msk [vmem:[%s3 + $0xa0] sm:$0xff] %vm553, %v509
  %575 = vst.msk [vmem:[%s3 + $0xa8] sm:$0xff] %vm553, %v510
  %576 = vst.msk [vmem:[%s3 + $0xb0] sm:$0xff] %vm553, %v511
  %577 = vst.msk [vmem:[%s3 + $0xb8] sm:$0xff] %vm553, %v512
  %578 = vst.msk [vmem:[%s3 + $0xc0] sm:$0xff] %vm553, %v513
  %579 = vst.msk [vmem:[%s3 + $0xc8] sm:$0xff] %vm553, %v514
  %580 = vst.msk [vmem:[%s3 + $0xd0] sm:$0xff] %vm553, %v515
  %581 = vst.msk [vmem:[%s3 + $0xd8] sm:$0xff] %vm553, %v516
  %582 = vst.msk [vmem:[%s3 + $0xe0] sm:$0xff] %vm553, %v517
  %583 = vst.msk [vmem:[%s3 + $0xe8] sm:$0xff] %vm553, %v518
  %584 = vst.msk [vmem:[%s3 + $0xf0] sm:$0xff] %vm553, %v519
  %585 = vst.msk [vmem:[%s3 + $0xf8] sm:$0xff] %vm553, %v520
  %586 = vst.msk [vmem:[%s3 + $0x100] sm:$0xff] %vm553, %v521
  %587 = vst.msk [vmem:[%s3 + $0x108] sm:$0xff] %vm553, %v522
  %588 = vst.msk [vmem:[%s3 + $0x110] sm:$0xff] %vm553, %v523
  %589 = vst.msk [vmem:[%s3 + $0x118] sm:$0xff] %vm553, %v524
  %590 = vst.msk [vmem:[%s3 + $0x120] sm:$0xff] %vm553, %v525
  %591 = vst.msk [vmem:[%s3 + $0x128] sm:$0xff] %vm553, %v526
  %592 = vst.msk [vmem:[%s3 + $0x130] sm:$0xff] %vm553, %v527
  %593 = vst.msk [vmem:[%s3 + $0x138] sm:$0xff] %vm553, %v528
  %594 = vst.msk [vmem:[%s3 + $0x140] sm:$0xff] %vm553, %v529
  %595 = vst.msk [vmem:[%s3 + $0x148] sm:$0xff] %vm553, %v530
  %596 = vst.msk [vmem:[%s3 + $0x150] sm:$0xff] %vm553, %v531
  %597 = vst.msk [vmem:[%s3 + $0x158] sm:$0xff] %vm553, %v532
  %598 = vst.msk [vmem:[%s3 + $0x160] sm:$0xff] %vm553, %v533
  %599 = vst.msk [vmem:[%s3 + $0x168] sm:$0xff] %vm553, %v534
  %600 = vst.msk [vmem:[%s3 + $0x170] sm:$0xff] %vm553, %v535
  %601 = vst.msk [vmem:[%s3 + $0x178] sm:$0xff] %vm553, %v536
  %602 = vst.msk [vmem:[%s3 + $0x180] sm:$0xff] %vm553, %v537
  %603 = vst.msk [vmem:[%s3 + $0x188] sm:$0xff] %vm553, %v538
  %604 = vst.msk [vmem:[%s3 + $0x190] sm:$0xff] %vm553, %v539
  %605 = vst.msk [vmem:[%s3 + $0x198] sm:$0xff] %vm553, %v540
  %606 = vst.msk [vmem:[%s3 + $0x1a0] sm:$0xff] %vm553, %v541
  %607 = vst.msk [vmem:[%s3 + $0x1a8] sm:$0xff] %vm553, %v542
  %608 = vst.msk [vmem:[%s3 + $0x1b0] sm:$0xff] %vm553, %v543
  %609 = vst.msk [vmem:[%s3 + $0x1b8] sm:$0xff] %vm553, %v544
  %610 = vst.msk [vmem:[%s3 + $0x1c0] sm:$0xff] %vm553, %v545
  %611 = vst.msk [vmem:[%s3 + $0x1c8] sm:$0xff] %vm553, %v546
  %612 = vst.msk [vmem:[%s3 + $0x1d0] sm:$0xff] %vm553, %v547
  %613 = vst.msk [vmem:[%s3 + $0x1d8] sm:$0xff] %vm553, %v548
  %614 = vst.msk [vmem:[%s3 + $0x1e0] sm:$0xff] %vm553, %v549
  %615 = vst.msk [vmem:[%s3 + $0x1e8] sm:$0xff] %vm553, %v550
  %616 = vst.msk [vmem:[%s3 + $0x1f0] sm:$0xff] %vm553, %v551
  %617 = vst.msk [vmem:[%s3 + $0x1f8] sm:$0xff] %vm553, %v552
  // Predicated region
  $region14: #{dual_block_forward.17} parent=0 // pred_check
    _
  $region15: #{dual_block_forward.17} parent=0 // pred_check_branch
    %619 = sbr.rel (0) target = $region17
  $region16: #{dual_block_forward.17} parent=0 // pred_region
    _
  $region17: #{dual_block_forward.17} parent=0 // pred_fallthru
    _
  // Predicated region
  $region18: #{dual_block_forward.17} parent=0 // pred_check
    _
  $region19: #{dual_block_forward.17} parent=0 // pred_check_branch
    %621 = sbr.rel (0) target = $region21
  $region20: #{dual_block_forward.17} parent=0 // pred_region
    _
  $region21: #{dual_block_forward.17} parent=0 // pred_fallthru
    _

// kernel: dual_block_forward.18
$region0: #{dual_block_forward.18}
  #allocation0 [shape = 'u32[]', space=smem, size = 0x4, offset = 0x4, fixed_abs, tag = 'smem constant byte address 0x4 - core index']
  #allocation1 [shape = 'u32[72,128]{1,0:T(1,128)}', space=vmem, size = 0x9000, scoped, tag = 'internal scratch']
  %s0 = inlined_call_operand.vmem [shape: bf16[512,128], index: 0, kind: input, shape index: {}]
  %s1 = inlined_call_operand.vmem [shape: bf16[512,128], index: 1, kind: input, shape index: {}]
  %s2 = inlined_call_operand.vmem [shape: f32[128,8], index: 2, kind: input, shape index: {}]
  %s3 = inlined_call_operand.vmem [shape: f32[1,8], index: 3, kind: input, shape index: {}]
  %s4 = inlined_call_operand.vmem [shape: f32[512,8], index: 4, kind: output, shape index: {}]
  %s5 = sld [smem:[#allocation0]]
  $region26: #{dual_block_forward.18} parent=0
    _
  %s7 = ssub.s32 1, %s5
  %s8 = scalar_select 0, %s7, %s5
  // Predicated region
  $region2: #{dual_block_forward.18} parent=0 // pred_check
    _
  $region3: #{dual_block_forward.18} parent=0 // pred_check_branch
    %10 = sbr.rel (0) target = $region5
  $region4: #{dual_block_forward.18} parent=0 // pred_region
    _
  $region5: #{dual_block_forward.18} parent=0 // pred_fallthru
    _
  // Predicated region
  $region6: #{dual_block_forward.18} parent=0 // pred_check
    _
  $region7: #{dual_block_forward.18} parent=0 // pred_check_branch
    %12 = sbr.rel (0) target = $region9
  $region8: #{dual_block_forward.18} parent=0 // pred_region
    _
  $region9: #{dual_block_forward.18} parent=0 // pred_fallthru
    _
  // Predicated region
  $region10: #{dual_block_forward.18} parent=0 // pred_check
    _
  $region11: #{dual_block_forward.18} parent=0 // pred_check_branch
    %14 = sbr.rel (0) target = $region13
  $region12: #{dual_block_forward.18} parent=0 // pred_region
    _
  $region13: #{dual_block_forward.18} parent=0 // pred_fallthru
    _
  // Predicated region
  $region14: #{dual_block_forward.18} parent=0 // pred_check
    _
  $region15: #{dual_block_forward.18} parent=0 // pred_check_branch
    %16 = sbr.rel (0) target = $region17
  $region16: #{dual_block_forward.18} parent=0 // pred_region
    _
  $region17: #{dual_block_forward.18} parent=0 // pred_fallthru
    _
  %v17 = vld [vmem:[%s0] sm:$0xf]
  %v18 = vld [vmem:[%s0 + $0x4] sm:$0xf]
  %v19 = vld [vmem:[%s0 + $0x8] sm:$0xf]
  %v20 = vld [vmem:[%s0 + $0xc] sm:$0xf]
  %v21 = vld [vmem:[%s0 + $0x10] sm:$0xf]
  %v22 = vld [vmem:[%s0 + $0x14] sm:$0xf]
  %v23 = vld [vmem:[%s0 + $0x18] sm:$0xf]
  %v24 = vld [vmem:[%s0 + $0x1c] sm:$0xf]
  %v25 = vld [vmem:[%s0 + $0x20] sm:$0xf]
  %v26 = vld [vmem:[%s0 + $0x24] sm:$0xf]
  %v27 = vld [vmem:[%s0 + $0x28] sm:$0xf]
  %v28 = vld [vmem:[%s0 + $0x2c] sm:$0xf]
  %v29 = vld [vmem:[%s0 + $0x30] sm:$0xf]
  %v30 = vld [vmem:[%s0 + $0x34] sm:$0xf]
  %v31 = vld [vmem:[%s0 + $0x38] sm:$0xf]
  %v32 = vld [vmem:[%s0 + $0x3c] sm:$0xf]
  %v33 = vld [vmem:[%s0 + $0x40] sm:$0xf]
  %v34 = vld [vmem:[%s0 + $0x44] sm:$0xf]
  %v35 = vld [vmem:[%s0 + $0x48] sm:$0xf]
  %v36 = vld [vmem:[%s0 + $0x4c] sm:$0xf]
  %v37 = vld [vmem:[%s0 + $0x50] sm:$0xf]
  %v38 = vld [vmem:[%s0 + $0x54] sm:$0xf]
  %v39 = vld [vmem:[%s0 + $0x58] sm:$0xf]
  %v40 = vld [vmem:[%s0 + $0x5c] sm:$0xf]
  %v41 = vld [vmem:[%s0 + $0x60] sm:$0xf]
  %v42 = vld [vmem:[%s0 + $0x64] sm:$0xf]
  %v43 = vld [vmem:[%s0 + $0x68] sm:$0xf]
  %v44 = vld [vmem:[%s0 + $0x6c] sm:$0xf]
  %v45 = vld [vmem:[%s0 + $0x70] sm:$0xf]
  %v46 = vld [vmem:[%s0 + $0x74] sm:$0xf]
  %v47 = vld [vmem:[%s0 + $0x78] sm:$0xf]
  %v48 = vld [vmem:[%s0 + $0x7c] sm:$0xf]
  %v49 = vld [vmem:[%s0 + $0x80] sm:$0xf]
  %v50 = vld [vmem:[%s0 + $0x84] sm:$0xf]
  %v51 = vld [vmem:[%s0 + $0x88] sm:$0xf]
  %v52 = vld [vmem:[%s0 + $0x8c] sm:$0xf]
  %v53 = vld [vmem:[%s0 + $0x90] sm:$0xf]
  %v54 = vld [vmem:[%s0 + $0x94] sm:$0xf]
  %v55 = vld [vmem:[%s0 + $0x98] sm:$0xf]
  %v56 = vld [vmem:[%s0 + $0x9c] sm:$0xf]
  %v57 = vld [vmem:[%s0 + $0xa0] sm:$0xf]
  %v58 = vld [vmem:[%s0 + $0xa4] sm:$0xf]
  %v59 = vld [vmem:[%s0 + $0xa8] sm:$0xf]
  %v60 = vld [vmem:[%s0 + $0xac] sm:$0xf]
  %v61 = vld [vmem:[%s0 + $0xb0] sm:$0xf]
  %v62 = vld [vmem:[%s0 + $0xb4] sm:$0xf]
  %v63 = vld [vmem:[%s0 + $0xb8] sm:$0xf]
  %v64 = vld [vmem:[%s0 + $0xbc] sm:$0xf]
  %v65 = vld [vmem:[%s0 + $0xc0] sm:$0xf]
  %v66 = vld [vmem:[%s0 + $0xc4] sm:$0xf]
  %v67 = vld [vmem:[%s0 + $0xc8] sm:$0xf]
  %v68 = vld [vmem:[%s0 + $0xcc] sm:$0xf]
  %v69 = vld [vmem:[%s0 + $0xd0] sm:$0xf]
  %v70 = vld [vmem:[%s0 + $0xd4] sm:$0xf]
  %v71 = vld [vmem:[%s0 + $0xd8] sm:$0xf]
  %v72 = vld [vmem:[%s0 + $0xdc] sm:$0xf]
  %v73 = vld [vmem:[%s0 + $0xe0] sm:$0xf]
  %v74 = vld [vmem:[%s0 + $0xe4] sm:$0xf]
  %v75 = vld [vmem:[%s0 + $0xe8] sm:$0xf]
  %v76 = vld [vmem:[%s0 + $0xec] sm:$0xf]
  %v77 = vld [vmem:[%s0 + $0xf0] sm:$0xf]
  %v78 = vld [vmem:[%s0 + $0xf4] sm:$0xf]
  %v79 = vld [vmem:[%s0 + $0xf8] sm:$0xf]
  %v80 = vld [vmem:[%s0 + $0xfc] sm:$0xf]
  %v81 = vunpack.c.l.bf16 %v17
  %v82 = vunpack.c.l.bf16 %v18
  %v83 = vunpack.c.l.bf16 %v19
  %v84 = vunpack.c.l.bf16 %v20
  %v85 = vunpack.c.l.bf16 %v21
  %v86 = vunpack.c.l.bf16 %v22
  %v87 = vunpack.c.l.bf16 %v23
  %v88 = vunpack.c.l.bf16 %v24
  %v89 = vunpack.c.l.bf16 %v25
  %v90 = vunpack.c.l.bf16 %v26
  %v91 = vunpack.c.l.bf16 %v27
  %v92 = vunpack.c.l.bf16 %v28
  %v93 = vunpack.c.l.bf16 %v29
  %v94 = vunpack.c.l.bf16 %v30
  %v95 = vunpack.c.l.bf16 %v31
  %v96 = vunpack.c.l.bf16 %v32
  %v97 = vunpack.c.l.bf16 %v33
  %v98 = vunpack.c.l.bf16 %v34
  %v99 = vunpack.c.l.bf16 %v35
  %v100 = vunpack.c.l.bf16 %v36
  %v101 = vunpack.c.l.bf16 %v37
  %v102 = vunpack.c.l.bf16 %v38
  %v103 = vunpack.c.l.bf16 %v39
  %v104 = vunpack.c.l.bf16 %v40
  %v105 = vunpack.c.l.bf16 %v41
  %v106 = vunpack.c.l.bf16 %v42
  %v107 = vunpack.c.l.bf16 %v43
  %v108 = vunpack.c.l.bf16 %v44
  %v109 = vunpack.c.l.bf16 %v45
  %v110 = vunpack.c.l.bf16 %v46
  %v111 = vunpack.c.l.bf16 %v47
  %v112 = vunpack.c.l.bf16 %v48
  %v113 = vunpack.c.l.bf16 %v49
  %v114 = vunpack.c.l.bf16 %v50
  %v115 = vunpack.c.l.bf16 %v51
  %v116 = vunpack.c.l.bf16 %v52
  %v117 = vunpack.c.l.bf16 %v53
  %v118 = vunpack.c.l.bf16 %v54
  %v119 = vunpack.c.l.bf16 %v55
  %v120 = vunpack.c.l.bf16 %v56
  %v121 = vunpack.c.l.bf16 %v57
  %v122 = vunpack.c.l.bf16 %v58
  %v123 = vunpack.c.l.bf16 %v59
  %v124 = vunpack.c.l.bf16 %v60
  %v125 = vunpack.c.l.bf16 %v61
  %v126 = vunpack.c.l.bf16 %v62
  %v127 = vunpack.c.l.bf16 %v63
  %v128 = vunpack.c.l.bf16 %v64
  %v129 = vunpack.c.l.bf16 %v65
  %v130 = vunpack.c.l.bf16 %v66
  %v131 = vunpack.c.l.bf16 %v67
  %v132 = vunpack.c.l.bf16 %v68
  %v133 = vunpack.c.l.bf16 %v69
  %v134 = vunpack.c.l.bf16 %v70
  %v135 = vunpack.c.l.bf16 %v71
  %v136 = vunpack.c.l.bf16 %v72
  %v137 = vunpack.c.l.bf16 %v73
  %v138 = vunpack.c.l.bf16 %v74
  %v139 = vunpack.c.l.bf16 %v75
  %v140 = vunpack.c.l.bf16 %v76
  %v141 = vunpack.c.l.bf16 %v77
  %v142 = vunpack.c.l.bf16 %v78
  %v143 = vunpack.c.l.bf16 %v79
  %v144 = vunpack.c.l.bf16 %v80
  %v145 = vld [vmem:[%s1] sm:$0xf]
  %v146 = vld [vmem:[%s1 + $0x4] sm:$0xf]
  %v147 = vld [vmem:[%s1 + $0x8] sm:$0xf]
  %v148 = vld [vmem:[%s1 + $0xc] sm:$0xf]
  %v149 = vld [vmem:[%s1 + $0x10] sm:$0xf]
  %v150 = vld [vmem:[%s1 + $0x14] sm:$0xf]
  %v151 = vld [vmem:[%s1 + $0x18] sm:$0xf]
  %v152 = vld [vmem:[%s1 + $0x1c] sm:$0xf]
  %v153 = vld [vmem:[%s1 + $0x20] sm:$0xf]
  %v154 = vld [vmem:[%s1 + $0x24] sm:$0xf]
  %v155 = vld [vmem:[%s1 + $0x28] sm:$0xf]
  %v156 = vld [vmem:[%s1 + $0x2c] sm:$0xf]
  %v157 = vld [vmem:[%s1 + $0x30] sm:$0xf]
  %v158 = vld [vmem:[%s1 + $0x34] sm:$0xf]
  %v159 = vld [vmem:[%s1 + $0x38] sm:$0xf]
  %v160 = vld [vmem:[%s1 + $0x3c] sm:$0xf]
  %v161 = vld [vmem:[%s1 + $0x40] sm:$0xf]
  %v162 = vld [vmem:[%s1 + $0x44] sm:$0xf]
  %v163 = vld [vmem:[%s1 + $0x48] sm:$0xf]
  %v164 = vld [vmem:[%s1 + $0x4c] sm:$0xf]
  %v165 = vld [vmem:[%s1 + $0x50] sm:$0xf]
  %v166 = vld [vmem:[%s1 + $0x54] sm:$0xf]
  %v167 = vld [vmem:[%s1 + $0x58] sm:$0xf]
  %v168 = vld [vmem:[%s1 + $0x5c] sm:$0xf]
  %v169 = vld [vmem:[%s1 + $0x60] sm:$0xf]
  %v170 = vld [vmem:[%s1 + $0x64] sm:$0xf]
  %v171 = vld [vmem:[%s1 + $0x68] sm:$0xf]
  %v172 = vld [vmem:[%s1 + $0x6c] sm:$0xf]
  %v173 = vld [vmem:[%s1 + $0x70] sm:$0xf]
  %v174 = vld [vmem:[%s1 + $0x74] sm:$0xf]
  %v175 = vld [vmem:[%s1 + $0x78] sm:$0xf]
  %v176 = vld [vmem:[%s1 + $0x7c] sm:$0xf]
  %v177 = vld [vmem:[%s1 + $0x80] sm:$0xf]
  %v178 = vld [vmem:[%s1 + $0x84] sm:$0xf]
  %v179 = vld [vmem:[%s1 + $0x88] sm:$0xf]
  %v180 = vld [vmem:[%s1 + $0x8c] sm:$0xf]
  %v181 = vld [vmem:[%s1 + $0x90] sm:$0xf]
  %v182 = vld [vmem:[%s1 + $0x94] sm:$0xf]
  %v183 = vld [vmem:[%s1 + $0x98] sm:$0xf]
  %v184 = vld [vmem:[%s1 + $0x9c] sm:$0xf]
  %v185 = vld [vmem:[%s1 + $0xa0] sm:$0xf]
  %v186 = vld [vmem:[%s1 + $0xa4] sm:$0xf]
  %v187 = vld [vmem:[%s1 + $0xa8] sm:$0xf]
  %v188 = vld [vmem:[%s1 + $0xac] sm:$0xf]
  %v189 = vld [vmem:[%s1 + $0xb0] sm:$0xf]
  %v190 = vld [vmem:[%s1 + $0xb4] sm:$0xf]
  %v191 = vld [vmem:[%s1 + $0xb8] sm:$0xf]
  %v192 = vld [vmem:[%s1 + $0xbc] sm:$0xf]
  %v193 = vld [vmem:[%s1 + $0xc0] sm:$0xf]
  %v194 = vld [vmem:[%s1 + $0xc4] sm:$0xf]
  %v195 = vld [vmem:[%s1 + $0xc8] sm:$0xf]
  %v196 = vld [vmem:[%s1 + $0xcc] sm:$0xf]
  %v197 = vld [vmem:[%s1 + $0xd0] sm:$0xf]
  %v198 = vld [vmem:[%s1 + $0xd4] sm:$0xf]
  %v199 = vld [vmem:[%s1 + $0xd8] sm:$0xf]
  %v200 = vld [vmem:[%s1 + $0xdc] sm:$0xf]
  %v201 = vld [vmem:[%s1 + $0xe0] sm:$0xf]
  %v202 = vld [vmem:[%s1 + $0xe4] sm:$0xf]
  %v203 = vld [vmem:[%s1 + $0xe8] sm:$0xf]
  %v204 = vld [vmem:[%s1 + $0xec] sm:$0xf]
  %v205 = vld [vmem:[%s1 + $0xf0] sm:$0xf]
  %v206 = vld [vmem:[%s1 + $0xf4] sm:$0xf]
  %v207 = vld [vmem:[%s1 + $0xf8] sm:$0xf]
  %v208 = vld [vmem:[%s1 + $0xfc] sm:$0xf]
  %v209 = vunpack.c.l.bf16 %v145
  %v210 = vunpack.c.l.bf16 %v146
  %v211 = vunpack.c.l.bf16 %v147
  %v212 = vunpack.c.l.bf16 %v148
  %v213 = vunpack.c.l.bf16 %v149
  %v214 = vunpack.c.l.bf16 %v150
  %v215 = vunpack.c.l.bf16 %v151
  %v216 = vunpack.c.l.bf16 %v152
  %v217 = vunpack.c.l.bf16 %v153
  %v218 = vunpack.c.l.bf16 %v154
  %v219 = vunpack.c.l.bf16 %v155
  %v220 = vunpack.c.l.bf16 %v156
  %v221 = vunpack.c.l.bf16 %v157
  %v222 = vunpack.c.l.bf16 %v158
  %v223 = vunpack.c.l.bf16 %v159
  %v224 = vunpack.c.l.bf16 %v160
  %v225 = vunpack.c.l.bf16 %v161
  %v226 = vunpack.c.l.bf16 %v162
  %v227 = vunpack.c.l.bf16 %v163
  %v228 = vunpack.c.l.bf16 %v164
  %v229 = vunpack.c.l.bf16 %v165
  %v230 = vunpack.c.l.bf16 %v166
  %v231 = vunpack.c.l.bf16 %v167
  %v232 = vunpack.c.l.bf16 %v168
  %v233 = vunpack.c.l.bf16 %v169
  %v234 = vunpack.c.l.bf16 %v170
  %v235 = vunpack.c.l.bf16 %v171
  %v236 = vunpack.c.l.bf16 %v172
  %v237 = vunpack.c.l.bf16 %v173
  %v238 = vunpack.c.l.bf16 %v174
  %v239 = vunpack.c.l.bf16 %v175
  %v240 = vunpack.c.l.bf16 %v176
  %v241 = vunpack.c.l.bf16 %v177
  %v242 = vunpack.c.l.bf16 %v178
  %v243 = vunpack.c.l.bf16 %v179
  %v244 = vunpack.c.l.bf16 %v180
  %v245 = vunpack.c.l.bf16 %v181
  %v246 = vunpack.c.l.bf16 %v182
  %v247 = vunpack.c.l.bf16 %v183
  %v248 = vunpack.c.l.bf16 %v184
  %v249 = vunpack.c.l.bf16 %v185
  %v250 = vunpack.c.l.bf16 %v186
  %v251 = vunpack.c.l.bf16 %v187
  %v252 = vunpack.c.l.bf16 %v188
  %v253 = vunpack.c.l.bf16 %v189
  %v254 = vunpack.c.l.bf16 %v190
  %v255 = vunpack.c.l.bf16 %v191
  %v256 = vunpack.c.l.bf16 %v192
  %v257 = vunpack.c.l.bf16 %v193
  %v258 = vunpack.c.l.bf16 %v194
  %v259 = vunpack.c.l.bf16 %v195
  %v260 = vunpack.c.l.bf16 %v196
  %v261 = vunpack.c.l.bf16 %v197
  %v262 = vunpack.c.l.bf16 %v198
  %v263 = vunpack.c.l.bf16 %v199
  %v264 = vunpack.c.l.bf16 %v200
  %v265 = vunpack.c.l.bf16 %v201
  %v266 = vunpack.c.l.bf16 %v202
  %v267 = vunpack.c.l.bf16 %v203
  %v268 = vunpack.c.l.bf16 %v204
  %v269 = vunpack.c.l.bf16 %v205
  %v270 = vunpack.c.l.bf16 %v206
  %v271 = vunpack.c.l.bf16 %v207
  %v272 = vunpack.c.l.bf16 %v208
  %v273 = vmul.f32 %v81, %v209
  %v274 = vmul.f32 %v82, %v210
  %v275 = vmul.f32 %v83, %v211
  %v276 = vmul.f32 %v84, %v212
  %v277 = vmul.f32 %v85, %v213
  %v278 = vmul.f32 %v86, %v214
  %v279 = vmul.f32 %v87, %v215
  %v280 = vmul.f32 %v88, %v216
  %v281 = vmul.f32 %v89, %v217
  %v282 = vmul.f32 %v90, %v218
  %v283 = vmul.f32 %v91, %v219
  %v284 = vmul.f32 %v92, %v220
  %v285 = vmul.f32 %v93, %v221
  %v286 = vmul.f32 %v94, %v222
  %v287 = vmul.f32 %v95, %v223
  %v288 = vmul.f32 %v96, %v224
  %v289 = vmul.f32 %v97, %v225
  %v290 = vmul.f32 %v98, %v226
  %v291 = vmul.f32 %v99, %v227
  %v292 = vmul.f32 %v100, %v228
  %v293 = vmul.f32 %v101, %v229
  %v294 = vmul.f32 %v102, %v230
  %v295 = vmul.f32 %v103, %v231
  %v296 = vmul.f32 %v104, %v232
  %v297 = vmul.f32 %v105, %v233
  %v298 = vmul.f32 %v106, %v234
  %v299 = vmul.f32 %v107, %v235
  %v300 = vmul.f32 %v108, %v236
  %v301 = vmul.f32 %v109, %v237
  %v302 = vmul.f32 %v110, %v238
  %v303 = vmul.f32 %v111, %v239
  %v304 = vmul.f32 %v112, %v240
  %v305 = vmul.f32 %v113, %v241
  %v306 = vmul.f32 %v114, %v242
  %v307 = vmul.f32 %v115, %v243
  %v308 = vmul.f32 %v116, %v244
  %v309 = vmul.f32 %v117, %v245
  %v310 = vmul.f32 %v118, %v246
  %v311 = vmul.f32 %v119, %v247
  %v312 = vmul.f32 %v120, %v248
  %v313 = vmul.f32 %v121, %v249
  %v314 = vmul.f32 %v122, %v250
  %v315 = vmul.f32 %v123, %v251
  %v316 = vmul.f32 %v124, %v252
  %v317 = vmul.f32 %v125, %v253
  %v318 = vmul.f32 %v126, %v254
  %v319 = vmul.f32 %v127, %v255
  %v320 = vmul.f32 %v128, %v256
  %v321 = vmul.f32 %v129, %v257
  %v322 = vmul.f32 %v130, %v258
  %v323 = vmul.f32 %v131, %v259
  %v324 = vmul.f32 %v132, %v260
  %v325 = vmul.f32 %v133, %v261
  %v326 = vmul.f32 %v134, %v262
  %v327 = vmul.f32 %v135, %v263
  %v328 = vmul.f32 %v136, %v264
  %v329 = vmul.f32 %v137, %v265
  %v330 = vmul.f32 %v138, %v266
  %v331 = vmul.f32 %v139, %v267
  %v332 = vmul.f32 %v140, %v268
  %v333 = vmul.f32 %v141, %v269
  %v334 = vmul.f32 %v142, %v270
  %v335 = vmul.f32 %v143, %v271
  %v336 = vmul.f32 %v144, %v272
  %v337 = vld [vmem:[%s2] sm:$0xff]
  %v338 = vld [vmem:[%s2 + $0x8] sm:$0xff]
  %v339 = vld [vmem:[%s2 + $0x10] sm:$0xff]
  %v340 = vld [vmem:[%s2 + $0x18] sm:$0xff]
  %v341 = vld [vmem:[%s2 + $0x20] sm:$0xff]
  %v342 = vld [vmem:[%s2 + $0x28] sm:$0xff]
  %v343 = vld [vmem:[%s2 + $0x30] sm:$0xff]
  %v344 = vld [vmem:[%s2 + $0x38] sm:$0xff]
  %v345 = vld [vmem:[%s2 + $0x40] sm:$0xff]
  %v346 = vld [vmem:[%s2 + $0x48] sm:$0xff]
  %v347 = vld [vmem:[%s2 + $0x50] sm:$0xff]
  %v348 = vld [vmem:[%s2 + $0x58] sm:$0xff]
  %v349 = vld [vmem:[%s2 + $0x60] sm:$0xff]
  %v350 = vld [vmem:[%s2 + $0x68] sm:$0xff]
  %v351 = vld [vmem:[%s2 + $0x70] sm:$0xff]
  %v352 = vld [vmem:[%s2 + $0x78] sm:$0xff]
  %v353 = vld [vmem:[%s3] sm:$0x1]
  %v355 = vperm.slane %v353, 0
  %357 = vmatpush.msra.mxu0 %v352
  %358 = vmatpush.msra.mxu0 %v351
  %359 = vmatpush.msra.mxu0 %v350
  %360 = vmatpush.msra.mxu0 %v349
  %361 = vmatpush.msra.mxu0 %v348
  %362 = vmatpush.msra.mxu0 %v347
  %363 = vmatpush.msra.mxu0 %v346
  %364 = vmatpush.msra.mxu0 %v345
  %365 = vmatpush.msra.mxu0 %v344
  %366 = vmatpush.msra.mxu0 %v343
  %367 = vmatpush.msra.mxu0 %v342
  %368 = vmatpush.msra.mxu0 %v341
  %369 = vmatpush.msra.mxu0 %v340
  %370 = vmatpush.msra.mxu0 %v339
  %371 = vmatpush.msra.mxu0 %v338
  %372 = vmatpush.msra.mxu0 %v337
  %373 = vmatmul.f32.gmra.mxu0 %v273
  %v374 = vpop.f32.mrf.mxu0
  %v375 = vadd.f32 %v355, %v374
  %376 = vmatmul.f32.gmra.mxu0 %v274
  %v377 = vpop.f32.mrf.mxu0
  %v378 = vadd.f32 %v355, %v377
  %379 = vmatmul.f32.gmra.mxu0 %v275
  %v380 = vpop.f32.mrf.mxu0
  %v381 = vadd.f32 %v355, %v380
  %382 = vmatmul.f32.gmra.mxu0 %v276
  %v383 = vpop.f32.mrf.mxu0
  %v384 = vadd.f32 %v355, %v383
  %385 = vmatmul.f32.gmra.mxu0 %v277
  %v386 = vpop.f32.mrf.mxu0
  %v387 = vadd.f32 %v355, %v386
  %388 = vmatmul.f32.gmra.mxu0 %v278
  %v389 = vpop.f32.mrf.mxu0
  %v390 = vadd.f32 %v355, %v389
  %391 = vmatmul.f32.gmra.mxu0 %v279
  %v392 = vpop.f32.mrf.mxu0
  %v393 = vadd.f32 %v355, %v392
  %394 = vmatmul.f32.gmra.mxu0 %v280
  %v395 = vpop.f32.mrf.mxu0
  %v396 = vadd.f32 %v355, %v395
  %397 = vmatmul.f32.gmra.mxu0 %v281
  %v398 = vpop.f32.mrf.mxu0
  %v399 = vadd.f32 %v355, %v398
  %400 = vmatmul.f32.gmra.mxu0 %v282
  %v401 = vpop.f32.mrf.mxu0
  %v402 = vadd.f32 %v355, %v401
  %403 = vmatmul.f32.gmra.mxu0 %v283
  %v404 = vpop.f32.mrf.mxu0
  %v405 = vadd.f32 %v355, %v404
  %406 = vmatmul.f32.gmra.mxu0 %v284
  %v407 = vpop.f32.mrf.mxu0
  %v408 = vadd.f32 %v355, %v407
  %409 = vmatmul.f32.gmra.mxu0 %v285
  %v410 = vpop.f32.mrf.mxu0
  %v411 = vadd.f32 %v355, %v410
  %412 = vmatmul.f32.gmra.mxu0 %v286
  %v413 = vpop.f32.mrf.mxu0
  %v414 = vadd.f32 %v355, %v413
  %415 = vmatmul.f32.gmra.mxu0 %v287
  %v416 = vpop.f32.mrf.mxu0
  %v417 = vadd.f32 %v355, %v416
  %418 = vmatmul.f32.gmra.mxu0 %v288
  %v419 = vpop.f32.mrf.mxu0
  %v420 = vadd.f32 %v355, %v419
  %421 = vmatmul.f32.gmra.mxu0 %v289
  %v422 = vpop.f32.mrf.mxu0
  %v423 = vadd.f32 %v355, %v422
  %424 = vmatmul.f32.gmra.mxu0 %v290
  %v425 = vpop.f32.mrf.mxu0
  %v426 = vadd.f32 %v355, %v425
  %427 = vmatmul.f32.gmra.mxu0 %v291
  %v428 = vpop.f32.mrf.mxu0
  %v429 = vadd.f32 %v355, %v428
  %430 = vmatmul.f32.gmra.mxu0 %v292
  %v431 = vpop.f32.mrf.mxu0
  %v432 = vadd.f32 %v355, %v431
  %433 = vmatmul.f32.gmra.mxu0 %v293
  %v434 = vpop.f32.mrf.mxu0
  %v435 = vadd.f32 %v355, %v434
  %436 = vmatmul.f32.gmra.mxu0 %v294
  %v437 = vpop.f32.mrf.mxu0
  %v438 = vadd.f32 %v355, %v437
  %439 = vmatmul.f32.gmra.mxu0 %v295
  %v440 = vpop.f32.mrf.mxu0
  %v441 = vadd.f32 %v355, %v440
  %442 = vmatmul.f32.gmra.mxu0 %v296
  %v443 = vpop.f32.mrf.mxu0
  %v444 = vadd.f32 %v355, %v443
  %445 = vmatmul.f32.gmra.mxu0 %v297
  %v446 = vpop.f32.mrf.mxu0
  %v447 = vadd.f32 %v355, %v446
  %448 = vmatmul.f32.gmra.mxu0 %v298
  %v449 = vpop.f32.mrf.mxu0
  %v450 = vadd.f32 %v355, %v449
  %451 = vmatmul.f32.gmra.mxu0 %v299
  %v452 = vpop.f32.mrf.mxu0
  %v453 = vadd.f32 %v355, %v452
  %454 = vmatmul.f32.gmra.mxu0 %v300
  %v455 = vpop.f32.mrf.mxu0
  %v456 = vadd.f32 %v355, %v455
  %457 = vmatmul.f32.gmra.mxu0 %v301
  %v458 = vpop.f32.mrf.mxu0
  %v459 = vadd.f32 %v355, %v458
  %460 = vmatmul.f32.gmra.mxu0 %v302
  %v461 = vpop.f32.mrf.mxu0
  %v462 = vadd.f32 %v355, %v461
  %463 = vmatmul.f32.gmra.mxu0 %v303
  %v464 = vpop.f32.mrf.mxu0
  %v465 = vadd.f32 %v355, %v464
  %466 = vmatmul.f32.gmra.mxu0 %v304
  %v467 = vpop.f32.mrf.mxu0
  %v468 = vadd.f32 %v355, %v467
  %469 = vmatmul.f32.gmra.mxu0 %v305
  %v470 = vpop.f32.mrf.mxu0
  %v471 = vadd.f32 %v355, %v470
  %472 = vmatmul.f32.gmra.mxu0 %v306
  %v473 = vpop.f32.mrf.mxu0
  %v474 = vadd.f32 %v355, %v473
  %475 = vmatmul.f32.gmra.mxu0 %v307
  %v476 = vpop.f32.mrf.mxu0
  %v477 = vadd.f32 %v355, %v476
  %478 = vmatmul.f32.gmra.mxu0 %v308
  %v479 = vpop.f32.mrf.mxu0
  %v480 = vadd.f32 %v355, %v479
  %481 = vmatmul.f32.gmra.mxu0 %v309
  %v482 = vpop.f32.mrf.mxu0
  %v483 = vadd.f32 %v355, %v482
  %484 = vmatmul.f32.gmra.mxu0 %v310
  %v485 = vpop.f32.mrf.mxu0
  %v486 = vadd.f32 %v355, %v485
  %487 = vmatmul.f32.gmra.mxu0 %v311
  %v488 = vpop.f32.mrf.mxu0
  %v489 = vadd.f32 %v355, %v488
  %490 = vmatmul.f32.gmra.mxu0 %v312
  %v491 = vpop.f32.mrf.mxu0
  %v492 = vadd.f32 %v355, %v491
  %493 = vmatmul.f32.gmra.mxu0 %v313
  %v494 = vpop.f32.mrf.mxu0
  %v495 = vadd.f32 %v355, %v494
  %496 = vmatmul.f32.gmra.mxu0 %v314
  %v497 = vpop.f32.mrf.mxu0
  %v498 = vadd.f32 %v355, %v497
  %499 = vmatmul.f32.gmra.mxu0 %v315
  %v500 = vpop.f32.mrf.mxu0
  %v501 = vadd.f32 %v355, %v500
  %502 = vmatmul.f32.gmra.mxu0 %v316
  %v503 = vpop.f32.mrf.mxu0
  %v504 = vadd.f32 %v355, %v503
  %505 = vmatmul.f32.gmra.mxu0 %v317
  %v506 = vpop.f32.mrf.mxu0
  %v507 = vadd.f32 %v355, %v506
  %508 = vmatmul.f32.gmra.mxu0 %v318
  %v509 = vpop.f32.mrf.mxu0
  %v510 = vadd.f32 %v355, %v509
  %511 = vmatmul.f32.gmra.mxu0 %v319
  %v512 = vpop.f32.mrf.mxu0
  %v513 = vadd.f32 %v355, %v512
  %514 = vmatmul.f32.gmra.mxu0 %v320
  %v515 = vpop.f32.mrf.mxu0
  %v516 = vadd.f32 %v355, %v515
  %517 = vmatmul.f32.gmra.mxu0 %v321
  %v518 = vpop.f32.mrf.mxu0
  %v519 = vadd.f32 %v355, %v518
  %520 = vmatmul.f32.gmra.mxu0 %v322
  %v521 = vpop.f32.mrf.mxu0
  %v522 = vadd.f32 %v355, %v521
  %523 = vmatmul.f32.gmra.mxu0 %v323
  %v524 = vpop.f32.mrf.mxu0
  %v525 = vadd.f32 %v355, %v524
  %526 = vmatmul.f32.gmra.mxu0 %v324
  %v527 = vpop.f32.mrf.mxu0
  %v528 = vadd.f32 %v355, %v527
  %529 = vmatmul.f32.gmra.mxu0 %v325
  %v530 = vpop.f32.mrf.mxu0
  %v531 = vadd.f32 %v355, %v530
  %532 = vmatmul.f32.gmra.mxu0 %v326
  %v533 = vpop.f32.mrf.mxu0
  %v534 = vadd.f32 %v355, %v533
  %535 = vmatmul.f32.gmra.mxu0 %v327
  %v536 = vpop.f32.mrf.mxu0
  %v537 = vadd.f32 %v355, %v536
  %538 = vmatmul.f32.gmra.mxu0 %v328
  %v539 = vpop.f32.mrf.mxu0
  %v540 = vadd.f32 %v355, %v539
  %541 = vmatmul.f32.gmra.mxu0 %v329
  %v542 = vpop.f32.mrf.mxu0
  %v543 = vadd.f32 %v355, %v542
  %544 = vmatmul.f32.gmra.mxu0 %v330
  %v545 = vpop.f32.mrf.mxu0
  %v546 = vadd.f32 %v355, %v545
  %547 = vmatmul.f32.gmra.mxu0 %v331
  %v548 = vpop.f32.mrf.mxu0
  %v549 = vadd.f32 %v355, %v548
  %550 = vmatmul.f32.gmra.mxu0 %v332
  %v551 = vpop.f32.mrf.mxu0
  %v552 = vadd.f32 %v355, %v551
  %553 = vmatmul.f32.gmra.mxu0 %v333
  %v554 = vpop.f32.mrf.mxu0
  %v555 = vadd.f32 %v355, %v554
  %556 = vmatmul.f32.gmra.mxu0 %v334
  %v557 = vpop.f32.mrf.mxu0
  %v558 = vadd.f32 %v355, %v557
  %559 = vmatmul.f32.gmra.mxu0 %v335
  %v560 = vpop.f32.mrf.mxu0
  %v561 = vadd.f32 %v355, %v560
  %562 = vmatmul.f32.gmra.mxu0 %v336
  %v563 = vpop.f32.mrf.mxu0
  %v564 = vadd.f32 %v355, %v563
  %565 = vdwg.mxu0
  %v566 = vmax.f32 %v375, 0.0
  %v567 = vmax.f32 %v378, 0.0
  %v568 = vmax.f32 %v381, 0.0
  %v569 = vmax.f32 %v384, 0.0
  %v570 = vmax.f32 %v387, 0.0
  %v571 = vmax.f32 %v390, 0.0
  %v572 = vmax.f32 %v393, 0.0
  %v573 = vmax.f32 %v396, 0.0
  %v574 = vmax.f32 %v399, 0.0
  %v575 = vmax.f32 %v402, 0.0
  %v576 = vmax.f32 %v405, 0.0
  %v577 = vmax.f32 %v408, 0.0
  %v578 = vmax.f32 %v411, 0.0
  %v579 = vmax.f32 %v414, 0.0
  %v580 = vmax.f32 %v417, 0.0
  %v581 = vmax.f32 %v420, 0.0
  %v582 = vmax.f32 %v423, 0.0
  %v583 = vmax.f32 %v426, 0.0
  %v584 = vmax.f32 %v429, 0.0
  %v585 = vmax.f32 %v432, 0.0
  %v586 = vmax.f32 %v435, 0.0
  %v587 = vmax.f32 %v438, 0.0
  %v588 = vmax.f32 %v441, 0.0
  %v589 = vmax.f32 %v444, 0.0
  %v590 = vmax.f32 %v447, 0.0
  %v591 = vmax.f32 %v450, 0.0
  %v592 = vmax.f32 %v453, 0.0
  %v593 = vmax.f32 %v456, 0.0
  %v594 = vmax.f32 %v459, 0.0
  %v595 = vmax.f32 %v462, 0.0
  %v596 = vmax.f32 %v465, 0.0
  %v597 = vmax.f32 %v468, 0.0
  %v598 = vmax.f32 %v471, 0.0
  %v599 = vmax.f32 %v474, 0.0
  %v600 = vmax.f32 %v477, 0.0
  %v601 = vmax.f32 %v480, 0.0
  %v602 = vmax.f32 %v483, 0.0
  %v603 = vmax.f32 %v486, 0.0
  %v604 = vmax.f32 %v489, 0.0
  %v605 = vmax.f32 %v492, 0.0
  %v606 = vmax.f32 %v495, 0.0
  %v607 = vmax.f32 %v498, 0.0
  %v608 = vmax.f32 %v501, 0.0
  %v609 = vmax.f32 %v504, 0.0
  %v610 = vmax.f32 %v507, 0.0
  %v611 = vmax.f32 %v510, 0.0
  %v612 = vmax.f32 %v513, 0.0
  %v613 = vmax.f32 %v516, 0.0
  %v614 = vmax.f32 %v519, 0.0
  %v615 = vmax.f32 %v522, 0.0
  %v616 = vmax.f32 %v525, 0.0
  %v617 = vmax.f32 %v528, 0.0
  %v618 = vmax.f32 %v531, 0.0
  %v619 = vmax.f32 %v534, 0.0
  %v620 = vmax.f32 %v537, 0.0
  %v621 = vmax.f32 %v540, 0.0
  %v622 = vmax.f32 %v543, 0.0
  %v623 = vmax.f32 %v546, 0.0
  %v624 = vmax.f32 %v549, 0.0
  %v625 = vmax.f32 %v552, 0.0
  %v626 = vmax.f32 %v555, 0.0
  %v627 = vmax.f32 %v558, 0.0
  %v628 = vmax.f32 %v561, 0.0
  %v629 = vmax.f32 %v564, 0.0
  %vm630 = vcmask 64512
  %631 = vst.msk [vmem:[%s4] sm:$0xff] %vm630, %v566
  %632 = vst.msk [vmem:[%s4 + $0x8] sm:$0xff] %vm630, %v567
  %633 = vst.msk [vmem:[%s4 + $0x10] sm:$0xff] %vm630, %v568
  %634 = vst.msk [vmem:[%s4 + $0x18] sm:$0xff] %vm630, %v569
  %635 = vst.msk [vmem:[%s4 + $0x20] sm:$0xff] %vm630, %v570
  %636 = vst.msk [vmem:[%s4 + $0x28] sm:$0xff] %vm630, %v571
  %637 = vst.msk [vmem:[%s4 + $0x30] sm:$0xff] %vm630, %v572
  %638 = vst.msk [vmem:[%s4 + $0x38] sm:$0xff] %vm630, %v573
  %639 = vst.msk [vmem:[%s4 + $0x40] sm:$0xff] %vm630, %v574
  %640 = vst.msk [vmem:[%s4 + $0x48] sm:$0xff] %vm630, %v575
  %641 = vst.msk [vmem:[%s4 + $0x50] sm:$0xff] %vm630, %v576
  %642 = vst.msk [vmem:[%s4 + $0x58] sm:$0xff] %vm630, %v577
  %643 = vst.msk [vmem:[%s4 + $0x60] sm:$0xff] %vm630, %v578
  %644 = vst.msk [vmem:[%s4 + $0x68] sm:$0xff] %vm630, %v579
  %645 = vst.msk [vmem:[%s4 + $0x70] sm:$0xff] %vm630, %v580
  %646 = vst.msk [vmem:[%s4 + $0x78] sm:$0xff] %vm630, %v581
  %647 = vst.msk [vmem:[%s4 + $0x80] sm:$0xff] %vm630, %v582
  %648 = vst.msk [vmem:[%s4 + $0x88] sm:$0xff] %vm630, %v583
  %649 = vst.msk [vmem:[%s4 + $0x90] sm:$0xff] %vm630, %v584
  %650 = vst.msk [vmem:[%s4 + $0x98] sm:$0xff] %vm630, %v585
  %651 = vst.msk [vmem:[%s4 + $0xa0] sm:$0xff] %vm630, %v586
  %652 = vst.msk [vmem:[%s4 + $0xa8] sm:$0xff] %vm630, %v587
  %653 = vst.msk [vmem:[%s4 + $0xb0] sm:$0xff] %vm630, %v588
  %654 = vst.msk [vmem:[%s4 + $0xb8] sm:$0xff] %vm630, %v589
  %655 = vst.msk [vmem:[%s4 + $0xc0] sm:$0xff] %vm630, %v590
  %656 = vst.msk [vmem:[%s4 + $0xc8] sm:$0xff] %vm630, %v591
  %657 = vst.msk [vmem:[%s4 + $0xd0] sm:$0xff] %vm630, %v592
  %658 = vst.msk [vmem:[%s4 + $0xd8] sm:$0xff] %vm630, %v593
  %659 = vst.msk [vmem:[%s4 + $0xe0] sm:$0xff] %vm630, %v594
  %660 = vst.msk [vmem:[%s4 + $0xe8] sm:$0xff] %vm630, %v595
  %661 = vst.msk [vmem:[%s4 + $0xf0] sm:$0xff] %vm630, %v596
  %662 = vst.msk [vmem:[%s4 + $0xf8] sm:$0xff] %vm630, %v597
  %663 = vst.msk [vmem:[%s4 + $0x100] sm:$0xff] %vm630, %v598
  %664 = vst.msk [vmem:[%s4 + $0x108] sm:$0xff] %vm630, %v599
  %665 = vst.msk [vmem:[%s4 + $0x110] sm:$0xff] %vm630, %v600
  %666 = vst.msk [vmem:[%s4 + $0x118] sm:$0xff] %vm630, %v601
  %667 = vst.msk [vmem:[%s4 + $0x120] sm:$0xff] %vm630, %v602
  %668 = vst.msk [vmem:[%s4 + $0x128] sm:$0xff] %vm630, %v603
  %669 = vst.msk [vmem:[%s4 + $0x130] sm:$0xff] %vm630, %v604
  %670 = vst.msk [vmem:[%s4 + $0x138] sm:$0xff] %vm630, %v605
  %671 = vst.msk [vmem:[%s4 + $0x140] sm:$0xff] %vm630, %v606
  %672 = vst.msk [vmem:[%s4 + $0x148] sm:$0xff] %vm630, %v607
  %673 = vst.msk [vmem:[%s4 + $0x150] sm:$0xff] %vm630, %v608
  %674 = vst.msk [vmem:[%s4 + $0x158] sm:$0xff] %vm630, %v609
  %675 = vst.msk [vmem:[%s4 + $0x160] sm:$0xff] %vm630, %v610
  %676 = vst.msk [vmem:[%s4 + $0x168] sm:$0xff] %vm630, %v611
  %677 = vst.msk [vmem:[%s4 + $0x170] sm:$0xff] %vm630, %v612
  %678 = vst.msk [vmem:[%s4 + $0x178] sm:$0xff] %vm630, %v613
  %679 = vst.msk [vmem:[%s4 + $0x180] sm:$0xff] %vm630, %v614
  %680 = vst.msk [vmem:[%s4 + $0x188] sm:$0xff] %vm630, %v615
  %681 = vst.msk [vmem:[%s4 + $0x190] sm:$0xff] %vm630, %v616
  %682 = vst.msk [vmem:[%s4 + $0x198] sm:$0xff] %vm630, %v617
  %683 = vst.msk [vmem:[%s4 + $0x1a0] sm:$0xff] %vm630, %v618
  %684 = vst.msk [vmem:[%s4 + $0x1a8] sm:$0xff] %vm630, %v619
  %685 = vst.msk [vmem:[%s4 + $0x1b0] sm:$0xff] %vm630, %v620
  %686 = vst.msk [vmem:[%s4 + $0x1b8] sm:$0xff] %vm630, %v621
  %687 = vst.msk [vmem:[%s4 + $0x1c0] sm:$0xff] %vm630, %v622
  %688 = vst.msk [vmem:[%s4 + $0x1c8] sm:$0xff] %vm630, %v623
  %689 = vst.msk [vmem:[%s4 + $0x1d0] sm:$0xff] %vm630, %v624
  %690 = vst.msk [vmem:[%s4 + $0x1d8] sm:$0xff] %vm630, %v625
  %691 = vst.msk [vmem:[%s4 + $0x1e0] sm:$0xff] %vm630, %v626
  %692 = vst.msk [vmem:[%s4 + $0x1e8] sm:$0xff] %vm630, %v627
  %693 = vst.msk [vmem:[%s4 + $0x1f0] sm:$0xff] %vm630, %v628
  %694 = vst.msk [vmem:[%s4 + $0x1f8] sm:$0xff] %vm630, %v629
  // Predicated region
  $region18: #{dual_block_forward.18} parent=0 // pred_check
    _
  $region19: #{dual_block_forward.18} parent=0 // pred_check_branch
    %696 = sbr.rel (0) target = $region21
  $region20: #{dual_block_forward.18} parent=0 // pred_region
    _
  $region21: #{dual_block_forward.18} parent=0 // pred_fallthru
    _
  // Predicated region
  $region22: #{dual_block_forward.18} parent=0 // pred_check
    _
  $region23: #{dual_block_forward.18} parent=0 // pred_check_branch
    %698 = sbr.rel (0) target = $region25
  $region24: #{dual_block_forward.18} parent=0 // pred_region
    _
  $region25: #{dual_block_forward.18} parent=0 // pred_fallthru
    _

// kernel: dual_block_forward.13
$region0: #{dual_block_forward.13}
  #allocation0 [shape = 'u32[]', space=smem, size = 0x4, offset = 0x4, fixed_abs, tag = 'smem constant byte address 0x4 - core index']
  #allocation1 [shape = 'u32[72,128]{1,0:T(1,128)}', space=vmem, size = 0x9000, scoped, tag = 'internal scratch']
  %s0 = inlined_call_operand.vmem [shape: f32[512,12], index: 0, kind: input, shape index: {}]
  %s1 = inlined_call_operand.vmem [shape: f32[12,16], index: 1, kind: input, shape index: {}]
  %s2 = inlined_call_operand.vmem [shape: f32[1,16], index: 2, kind: input, shape index: {}]
  %s3 = inlined_call_operand.vmem [shape: f32[512,16], index: 3, kind: output, shape index: {}]
  %s4 = sld [smem:[#allocation0]]
  $region22: #{dual_block_forward.13} parent=0
    _
  %s6 = ssub.s32 1, %s4
  %s7 = scalar_select 0, %s6, %s4
  // Predicated region
  $region2: #{dual_block_forward.13} parent=0 // pred_check
    _
  $region3: #{dual_block_forward.13} parent=0 // pred_check_branch
    %9 = sbr.rel (0) target = $region5
  $region4: #{dual_block_forward.13} parent=0 // pred_region
    _
  $region5: #{dual_block_forward.13} parent=0 // pred_fallthru
    _
  // Predicated region
  $region6: #{dual_block_forward.13} parent=0 // pred_check
    _
  $region7: #{dual_block_forward.13} parent=0 // pred_check_branch
    %11 = sbr.rel (0) target = $region9
  $region8: #{dual_block_forward.13} parent=0 // pred_region
    _
  $region9: #{dual_block_forward.13} parent=0 // pred_fallthru
    _
  // Predicated region
  $region10: #{dual_block_forward.13} parent=0 // pred_check
    _
  $region11: #{dual_block_forward.13} parent=0 // pred_check_branch
    %13 = sbr.rel (0) target = $region13
  $region12: #{dual_block_forward.13} parent=0 // pred_region
    _
  $region13: #{dual_block_forward.13} parent=0 // pred_fallthru
    _
  %v14 = vld [vmem:[%s0] sm:$0xff]
  %v15 = vld [vmem:[%s0 + $0x8] sm:$0xff]
  %v16 = vld [vmem:[%s0 + $0x10] sm:$0xff]
  %v17 = vld [vmem:[%s0 + $0x18] sm:$0xff]
  %v18 = vld [vmem:[%s0 + $0x20] sm:$0xff]
  %v19 = vld [vmem:[%s0 + $0x28] sm:$0xff]
  %v20 = vld [vmem:[%s0 + $0x30] sm:$0xff]
  %v21 = vld [vmem:[%s0 + $0x38] sm:$0xff]
  %v22 = vld [vmem:[%s0 + $0x40] sm:$0xff]
  %v23 = vld [vmem:[%s0 + $0x48] sm:$0xff]
  %v24 = vld [vmem:[%s0 + $0x50] sm:$0xff]
  %v25 = vld [vmem:[%s0 + $0x58] sm:$0xff]
  %v26 = vld [vmem:[%s0 + $0x60] sm:$0xff]
  %v27 = vld [vmem:[%s0 + $0x68] sm:$0xff]
  %v28 = vld [vmem:[%s0 + $0x70] sm:$0xff]
  %v29 = vld [vmem:[%s0 + $0x78] sm:$0xff]
  %v30 = vld [vmem:[%s0 + $0x80] sm:$0xff]
  %v31 = vld [vmem:[%s0 + $0x88] sm:$0xff]
  %v32 = vld [vmem:[%s0 + $0x90] sm:$0xff]
  %v33 = vld [vmem:[%s0 + $0x98] sm:$0xff]
  %v34 = vld [vmem:[%s0 + $0xa0] sm:$0xff]
  %v35 = vld [vmem:[%s0 + $0xa8] sm:$0xff]
  %v36 = vld [vmem:[%s0 + $0xb0] sm:$0xff]
  %v37 = vld [vmem:[%s0 + $0xb8] sm:$0xff]
  %v38 = vld [vmem:[%s0 + $0xc0] sm:$0xff]
  %v39 = vld [vmem:[%s0 + $0xc8] sm:$0xff]
  %v40 = vld [vmem:[%s0 + $0xd0] sm:$0xff]
  %v41 = vld [vmem:[%s0 + $0xd8] sm:$0xff]
  %v42 = vld [vmem:[%s0 + $0xe0] sm:$0xff]
  %v43 = vld [vmem:[%s0 + $0xe8] sm:$0xff]
  %v44 = vld [vmem:[%s0 + $0xf0] sm:$0xff]
  %v45 = vld [vmem:[%s0 + $0xf8] sm:$0xff]
  %v46 = vld [vmem:[%s0 + $0x100] sm:$0xff]
  %v47 = vld [vmem:[%s0 + $0x108] sm:$0xff]
  %v48 = vld [vmem:[%s0 + $0x110] sm:$0xff]
  %v49 = vld [vmem:[%s0 + $0x118] sm:$0xff]
  %v50 = vld [vmem:[%s0 + $0x120] sm:$0xff]
  %v51 = vld [vmem:[%s0 + $0x128] sm:$0xff]
  %v52 = vld [vmem:[%s0 + $0x130] sm:$0xff]
  %v53 = vld [vmem:[%s0 + $0x138] sm:$0xff]
  %v54 = vld [vmem:[%s0 + $0x140] sm:$0xff]
  %v55 = vld [vmem:[%s0 + $0x148] sm:$0xff]
  %v56 = vld [vmem:[%s0 + $0x150] sm:$0xff]
  %v57 = vld [vmem:[%s0 + $0x158] sm:$0xff]
  %v58 = vld [vmem:[%s0 + $0x160] sm:$0xff]
  %v59 = vld [vmem:[%s0 + $0x168] sm:$0xff]
  %v60 = vld [vmem:[%s0 + $0x170] sm:$0xff]
  %v61 = vld [vmem:[%s0 + $0x178] sm:$0xff]
  %v62 = vld [vmem:[%s0 + $0x180] sm:$0xff]
  %v63 = vld [vmem:[%s0 + $0x188] sm:$0xff]
  %v64 = vld [vmem:[%s0 + $0x190] sm:$0xff]
  %v65 = vld [vmem:[%s0 + $0x198] sm:$0xff]
  %v66 = vld [vmem:[%s0 + $0x1a0] sm:$0xff]
  %v67 = vld [vmem:[%s0 + $0x1a8] sm:$0xff]
  %v68 = vld [vmem:[%s0 + $0x1b0] sm:$0xff]
  %v69 = vld [vmem:[%s0 + $0x1b8] sm:$0xff]
  %v70 = vld [vmem:[%s0 + $0x1c0] sm:$0xff]
  %v71 = vld [vmem:[%s0 + $0x1c8] sm:$0xff]
  %v72 = vld [vmem:[%s0 + $0x1d0] sm:$0xff]
  %v73 = vld [vmem:[%s0 + $0x1d8] sm:$0xff]
  %v74 = vld [vmem:[%s0 + $0x1e0] sm:$0xff]
  %v75 = vld [vmem:[%s0 + $0x1e8] sm:$0xff]
  %v76 = vld [vmem:[%s0 + $0x1f0] sm:$0xff]
  %v77 = vld [vmem:[%s0 + $0x1f8] sm:$0xff]
  %v78 = vld [vmem:[%s1] sm:$0xff]
  %v79 = vld [vmem:[%s1 + $0x8] sm:$0xf]
  %v80 = vld [vmem:[%s2] sm:$0x1]
  %v82 = vperm.slane %v80, 0
  %vm84 = vcmask 97280
  %v86 = vsel %vm84, %v14, 0
  %v89 = vsel %vm84, %v15, 0
  %v92 = vsel %vm84, %v16, 0
  %v95 = vsel %vm84, %v17, 0
  %v98 = vsel %vm84, %v18, 0
  %v101 = vsel %vm84, %v19, 0
  %v104 = vsel %vm84, %v20, 0
  %v107 = vsel %vm84, %v21, 0
  %v110 = vsel %vm84, %v22, 0
  %v113 = vsel %vm84, %v23, 0
  %v116 = vsel %vm84, %v24, 0
  %v119 = vsel %vm84, %v25, 0
  %v122 = vsel %vm84, %v26, 0
  %v125 = vsel %vm84, %v27, 0
  %v128 = vsel %vm84, %v28, 0
  %v131 = vsel %vm84, %v29, 0
  %v134 = vsel %vm84, %v30, 0
  %v137 = vsel %vm84, %v31, 0
  %v140 = vsel %vm84, %v32, 0
  %v143 = vsel %vm84, %v33, 0
  %v146 = vsel %vm84, %v34, 0
  %v149 = vsel %vm84, %v35, 0
  %v152 = vsel %vm84, %v36, 0
  %v155 = vsel %vm84, %v37, 0
  %v158 = vsel %vm84, %v38, 0
  %v161 = vsel %vm84, %v39, 0
  %v164 = vsel %vm84, %v40, 0
  %v167 = vsel %vm84, %v41, 0
  %v170 = vsel %vm84, %v42, 0
  %v173 = vsel %vm84, %v43, 0
  %v176 = vsel %vm84, %v44, 0
  %v179 = vsel %vm84, %v45, 0
  %v182 = vsel %vm84, %v46, 0
  %v185 = vsel %vm84, %v47, 0
  %v188 = vsel %vm84, %v48, 0
  %v191 = vsel %vm84, %v49, 0
  %v194 = vsel %vm84, %v50, 0
  %v197 = vsel %vm84, %v51, 0
  %v200 = vsel %vm84, %v52, 0
  %v203 = vsel %vm84, %v53, 0
  %v206 = vsel %vm84, %v54, 0
  %v209 = vsel %vm84, %v55, 0
  %v212 = vsel %vm84, %v56, 0
  %v215 = vsel %vm84, %v57, 0
  %v218 = vsel %vm84, %v58, 0
  %v221 = vsel %vm84, %v59, 0
  %v224 = vsel %vm84, %v60, 0
  %v227 = vsel %vm84, %v61, 0
  %v230 = vsel %vm84, %v62, 0
  %v233 = vsel %vm84, %v63, 0
  %v236 = vsel %vm84, %v64, 0
  %v239 = vsel %vm84, %v65, 0
  %v242 = vsel %vm84, %v66, 0
  %v245 = vsel %vm84, %v67, 0
  %v248 = vsel %vm84, %v68, 0
  %v251 = vsel %vm84, %v69, 0
  %v254 = vsel %vm84, %v70, 0
  %v257 = vsel %vm84, %v71, 0
  %v260 = vsel %vm84, %v72, 0
  %v263 = vsel %vm84, %v73, 0
  %v266 = vsel %vm84, %v74, 0
  %v269 = vsel %vm84, %v75, 0
  %v272 = vsel %vm84, %v76, 0
  %v275 = vsel %vm84, %v77, 0
  %vm277 = vcmask 1043456
  %v279 = vsel %vm277, %v79, 0
  %281 = vmatpush.msra.mxu0 0.0
  %282 = vmatpush.msra.mxu0 0.0
  %283 = vmatpush.msra.mxu0 0.0
  %284 = vmatpush.msra.mxu0 0.0
  %285 = vmatpush.msra.mxu0 0.0
  %286 = vmatpush.msra.mxu0 0.0
  %287 = vmatpush.msra.mxu0 0.0
  %288 = vmatpush.msra.mxu0 0.0
  %289 = vmatpush.msra.mxu0 0.0
  %290 = vmatpush.msra.mxu0 0.0
  %291 = vmatpush.msra.mxu0 0.0
  %292 = vmatpush.msra.mxu0 0.0
  %293 = vmatpush.msra.mxu0 0.0
  %294 = vmatpush.msra.mxu0 0.0
  %295 = vmatpush.msra.mxu0 %v279
  %296 = vmatpush.msra.mxu0 %v78
  %297 = vmatmul.f32.gmra.mxu0 %v86
  %v298 = vpop.f32.mrf.mxu0
  %v299 = vadd.f32 %v82, %v298
  %300 = vmatmul.f32.gmra.mxu0 %v89
  %v301 = vpop.f32.mrf.mxu0
  %v302 = vadd.f32 %v82, %v301
  %303 = vmatmul.f32.gmra.mxu0 %v92
  %v304 = vpop.f32.mrf.mxu0
  %v305 = vadd.f32 %v82, %v304
  %306 = vmatmul.f32.gmra.mxu0 %v95
  %v307 = vpop.f32.mrf.mxu0
  %v308 = vadd.f32 %v82, %v307
  %309 = vmatmul.f32.gmra.mxu0 %v98
  %v310 = vpop.f32.mrf.mxu0
  %v311 = vadd.f32 %v82, %v310
  %312 = vmatmul.f32.gmra.mxu0 %v101
  %v313 = vpop.f32.mrf.mxu0
  %v314 = vadd.f32 %v82, %v313
  %315 = vmatmul.f32.gmra.mxu0 %v104
  %v316 = vpop.f32.mrf.mxu0
  %v317 = vadd.f32 %v82, %v316
  %318 = vmatmul.f32.gmra.mxu0 %v107
  %v319 = vpop.f32.mrf.mxu0
  %v320 = vadd.f32 %v82, %v319
  %321 = vmatmul.f32.gmra.mxu0 %v110
  %v322 = vpop.f32.mrf.mxu0
  %v323 = vadd.f32 %v82, %v322
  %324 = vmatmul.f32.gmra.mxu0 %v113
  %v325 = vpop.f32.mrf.mxu0
  %v326 = vadd.f32 %v82, %v325
  %327 = vmatmul.f32.gmra.mxu0 %v116
  %v328 = vpop.f32.mrf.mxu0
  %v329 = vadd.f32 %v82, %v328
  %330 = vmatmul.f32.gmra.mxu0 %v119
  %v331 = vpop.f32.mrf.mxu0
  %v332 = vadd.f32 %v82, %v331
  %333 = vmatmul.f32.gmra.mxu0 %v122
  %v334 = vpop.f32.mrf.mxu0
  %v335 = vadd.f32 %v82, %v334
  %336 = vmatmul.f32.gmra.mxu0 %v125
  %v337 = vpop.f32.mrf.mxu0
  %v338 = vadd.f32 %v82, %v337
  %339 = vmatmul.f32.gmra.mxu0 %v128
  %v340 = vpop.f32.mrf.mxu0
  %v341 = vadd.f32 %v82, %v340
  %342 = vmatmul.f32.gmra.mxu0 %v131
  %v343 = vpop.f32.mrf.mxu0
  %v344 = vadd.f32 %v82, %v343
  %345 = vmatmul.f32.gmra.mxu0 %v134
  %v346 = vpop.f32.mrf.mxu0
  %v347 = vadd.f32 %v82, %v346
  %348 = vmatmul.f32.gmra.mxu0 %v137
  %v349 = vpop.f32.mrf.mxu0
  %v350 = vadd.f32 %v82, %v349
  %351 = vmatmul.f32.gmra.mxu0 %v140
  %v352 = vpop.f32.mrf.mxu0
  %v353 = vadd.f32 %v82, %v352
  %354 = vmatmul.f32.gmra.mxu0 %v143
  %v355 = vpop.f32.mrf.mxu0
  %v356 = vadd.f32 %v82, %v355
  %357 = vmatmul.f32.gmra.mxu0 %v146
  %v358 = vpop.f32.mrf.mxu0
  %v359 = vadd.f32 %v82, %v358
  %360 = vmatmul.f32.gmra.mxu0 %v149
  %v361 = vpop.f32.mrf.mxu0
  %v362 = vadd.f32 %v82, %v361
  %363 = vmatmul.f32.gmra.mxu0 %v152
  %v364 = vpop.f32.mrf.mxu0
  %v365 = vadd.f32 %v82, %v364
  %366 = vmatmul.f32.gmra.mxu0 %v155
  %v367 = vpop.f32.mrf.mxu0
  %v368 = vadd.f32 %v82, %v367
  %369 = vmatmul.f32.gmra.mxu0 %v158
  %v370 = vpop.f32.mrf.mxu0
  %v371 = vadd.f32 %v82, %v370
  %372 = vmatmul.f32.gmra.mxu0 %v161
  %v373 = vpop.f32.mrf.mxu0
  %v374 = vadd.f32 %v82, %v373
  %375 = vmatmul.f32.gmra.mxu0 %v164
  %v376 = vpop.f32.mrf.mxu0
  %v377 = vadd.f32 %v82, %v376
  %378 = vmatmul.f32.gmra.mxu0 %v167
  %v379 = vpop.f32.mrf.mxu0
  %v380 = vadd.f32 %v82, %v379
  %381 = vmatmul.f32.gmra.mxu0 %v170
  %v382 = vpop.f32.mrf.mxu0
  %v383 = vadd.f32 %v82, %v382
  %384 = vmatmul.f32.gmra.mxu0 %v173
  %v385 = vpop.f32.mrf.mxu0
  %v386 = vadd.f32 %v82, %v385
  %387 = vmatmul.f32.gmra.mxu0 %v176
  %v388 = vpop.f32.mrf.mxu0
  %v389 = vadd.f32 %v82, %v388
  %390 = vmatmul.f32.gmra.mxu0 %v179
  %v391 = vpop.f32.mrf.mxu0
  %v392 = vadd.f32 %v82, %v391
  %393 = vmatmul.f32.gmra.mxu0 %v182
  %v394 = vpop.f32.mrf.mxu0
  %v395 = vadd.f32 %v82, %v394
  %396 = vmatmul.f32.gmra.mxu0 %v185
  %v397 = vpop.f32.mrf.mxu0
  %v398 = vadd.f32 %v82, %v397
  %399 = vmatmul.f32.gmra.mxu0 %v188
  %v400 = vpop.f32.mrf.mxu0
  %v401 = vadd.f32 %v82, %v400
  %402 = vmatmul.f32.gmra.mxu0 %v191
  %v403 = vpop.f32.mrf.mxu0
  %v404 = vadd.f32 %v82, %v403
  %405 = vmatmul.f32.gmra.mxu0 %v194
  %v406 = vpop.f32.mrf.mxu0
  %v407 = vadd.f32 %v82, %v406
  %408 = vmatmul.f32.gmra.mxu0 %v197
  %v409 = vpop.f32.mrf.mxu0
  %v410 = vadd.f32 %v82, %v409
  %411 = vmatmul.f32.gmra.mxu0 %v200
  %v412 = vpop.f32.mrf.mxu0
  %v413 = vadd.f32 %v82, %v412
  %414 = vmatmul.f32.gmra.mxu0 %v203
  %v415 = vpop.f32.mrf.mxu0
  %v416 = vadd.f32 %v82, %v415
  %417 = vmatmul.f32.gmra.mxu0 %v206
  %v418 = vpop.f32.mrf.mxu0
  %v419 = vadd.f32 %v82, %v418
  %420 = vmatmul.f32.gmra.mxu0 %v209
  %v421 = vpop.f32.mrf.mxu0
  %v422 = vadd.f32 %v82, %v421
  %423 = vmatmul.f32.gmra.mxu0 %v212
  %v424 = vpop.f32.mrf.mxu0
  %v425 = vadd.f32 %v82, %v424
  %426 = vmatmul.f32.gmra.mxu0 %v215
  %v427 = vpop.f32.mrf.mxu0
  %v428 = vadd.f32 %v82, %v427
  %429 = vmatmul.f32.gmra.mxu0 %v218
  %v430 = vpop.f32.mrf.mxu0
  %v431 = vadd.f32 %v82, %v430
  %432 = vmatmul.f32.gmra.mxu0 %v221
  %v433 = vpop.f32.mrf.mxu0
  %v434 = vadd.f32 %v82, %v433
  %435 = vmatmul.f32.gmra.mxu0 %v224
  %v436 = vpop.f32.mrf.mxu0
  %v437 = vadd.f32 %v82, %v436
  %438 = vmatmul.f32.gmra.mxu0 %v227
  %v439 = vpop.f32.mrf.mxu0
  %v440 = vadd.f32 %v82, %v439
  %441 = vmatmul.f32.gmra.mxu0 %v230
  %v442 = vpop.f32.mrf.mxu0
  %v443 = vadd.f32 %v82, %v442
  %444 = vmatmul.f32.gmra.mxu0 %v233
  %v445 = vpop.f32.mrf.mxu0
  %v446 = vadd.f32 %v82, %v445
  %447 = vmatmul.f32.gmra.mxu0 %v236
  %v448 = vpop.f32.mrf.mxu0
  %v449 = vadd.f32 %v82, %v448
  %450 = vmatmul.f32.gmra.mxu0 %v239
  %v451 = vpop.f32.mrf.mxu0
  %v452 = vadd.f32 %v82, %v451
  %453 = vmatmul.f32.gmra.mxu0 %v242
  %v454 = vpop.f32.mrf.mxu0
  %v455 = vadd.f32 %v82, %v454
  %456 = vmatmul.f32.gmra.mxu0 %v245
  %v457 = vpop.f32.mrf.mxu0
  %v458 = vadd.f32 %v82, %v457
  %459 = vmatmul.f32.gmra.mxu0 %v248
  %v460 = vpop.f32.mrf.mxu0
  %v461 = vadd.f32 %v82, %v460
  %462 = vmatmul.f32.gmra.mxu0 %v251
  %v463 = vpop.f32.mrf.mxu0
  %v464 = vadd.f32 %v82, %v463
  %465 = vmatmul.f32.gmra.mxu0 %v254
  %v466 = vpop.f32.mrf.mxu0
  %v467 = vadd.f32 %v82, %v466
  %468 = vmatmul.f32.gmra.mxu0 %v257
  %v469 = vpop.f32.mrf.mxu0
  %v470 = vadd.f32 %v82, %v469
  %471 = vmatmul.f32.gmra.mxu0 %v260
  %v472 = vpop.f32.mrf.mxu0
  %v473 = vadd.f32 %v82, %v472
  %474 = vmatmul.f32.gmra.mxu0 %v263
  %v475 = vpop.f32.mrf.mxu0
  %v476 = vadd.f32 %v82, %v475
  %477 = vmatmul.f32.gmra.mxu0 %v266
  %v478 = vpop.f32.mrf.mxu0
  %v479 = vadd.f32 %v82, %v478
  %480 = vmatmul.f32.gmra.mxu0 %v269
  %v481 = vpop.f32.mrf.mxu0
  %v482 = vadd.f32 %v82, %v481
  %483 = vmatmul.f32.gmra.mxu0 %v272
  %v484 = vpop.f32.mrf.mxu0
  %v485 = vadd.f32 %v82, %v484
  %486 = vmatmul.f32.gmra.mxu0 %v275
  %v487 = vpop.f32.mrf.mxu0
  %v488 = vadd.f32 %v82, %v487
  %489 = vdwg.mxu0
  %v490 = vmax.f32 %v299, 0.0
  %v491 = vmax.f32 %v302, 0.0
  %v492 = vmax.f32 %v305, 0.0
  %v493 = vmax.f32 %v308, 0.0
  %v494 = vmax.f32 %v311, 0.0
  %v495 = vmax.f32 %v314, 0.0
  %v496 = vmax.f32 %v317, 0.0
  %v497 = vmax.f32 %v320, 0.0
  %v498 = vmax.f32 %v323, 0.0
  %v499 = vmax.f32 %v326, 0.0
  %v500 = vmax.f32 %v329, 0.0
  %v501 = vmax.f32 %v332, 0.0
  %v502 = vmax.f32 %v335, 0.0
  %v503 = vmax.f32 %v338, 0.0
  %v504 = vmax.f32 %v341, 0.0
  %v505 = vmax.f32 %v344, 0.0
  %v506 = vmax.f32 %v347, 0.0
  %v507 = vmax.f32 %v350, 0.0
  %v508 = vmax.f32 %v353, 0.0
  %v509 = vmax.f32 %v356, 0.0
  %v510 = vmax.f32 %v359, 0.0
  %v511 = vmax.f32 %v362, 0.0
  %v512 = vmax.f32 %v365, 0.0
  %v513 = vmax.f32 %v368, 0.0
  %v514 = vmax.f32 %v371, 0.0
  %v515 = vmax.f32 %v374, 0.0
  %v516 = vmax.f32 %v377, 0.0
  %v517 = vmax.f32 %v380, 0.0
  %v518 = vmax.f32 %v383, 0.0
  %v519 = vmax.f32 %v386, 0.0
  %v520 = vmax.f32 %v389, 0.0
  %v521 = vmax.f32 %v392, 0.0
  %v522 = vmax.f32 %v395, 0.0
  %v523 = vmax.f32 %v398, 0.0
  %v524 = vmax.f32 %v401, 0.0
  %v525 = vmax.f32 %v404, 0.0
  %v526 = vmax.f32 %v407, 0.0
  %v527 = vmax.f32 %v410, 0.0
  %v528 = vmax.f32 %v413, 0.0
  %v529 = vmax.f32 %v416, 0.0
  %v530 = vmax.f32 %v419, 0.0
  %v531 = vmax.f32 %v422, 0.0
  %v532 = vmax.f32 %v425, 0.0
  %v533 = vmax.f32 %v428, 0.0
  %v534 = vmax.f32 %v431, 0.0
  %v535 = vmax.f32 %v434, 0.0
  %v536 = vmax.f32 %v437, 0.0
  %v537 = vmax.f32 %v440, 0.0
  %v538 = vmax.f32 %v443, 0.0
  %v539 = vmax.f32 %v446, 0.0
  %v540 = vmax.f32 %v449, 0.0
  %v541 = vmax.f32 %v452, 0.0
  %v542 = vmax.f32 %v455, 0.0
  %v543 = vmax.f32 %v458, 0.0
  %v544 = vmax.f32 %v461, 0.0
  %v545 = vmax.f32 %v464, 0.0
  %v546 = vmax.f32 %v467, 0.0
  %v547 = vmax.f32 %v470, 0.0
  %v548 = vmax.f32 %v473, 0.0
  %v549 = vmax.f32 %v476, 0.0
  %v550 = vmax.f32 %v479, 0.0
  %v551 = vmax.f32 %v482, 0.0
  %v552 = vmax.f32 %v485, 0.0
  %v553 = vmax.f32 %v488, 0.0
  %vm554 = vcmask 130048
  %555 = vst.msk [vmem:[%s3] sm:$0xff] %vm554, %v490
  %556 = vst.msk [vmem:[%s3 + $0x8] sm:$0xff] %vm554, %v491
  %557 = vst.msk [vmem:[%s3 + $0x10] sm:$0xff] %vm554, %v492
  %558 = vst.msk [vmem:[%s3 + $0x18] sm:$0xff] %vm554, %v493
  %559 = vst.msk [vmem:[%s3 + $0x20] sm:$0xff] %vm554, %v494
  %560 = vst.msk [vmem:[%s3 + $0x28] sm:$0xff] %vm554, %v495
  %561 = vst.msk [vmem:[%s3 + $0x30] sm:$0xff] %vm554, %v496
  %562 = vst.msk [vmem:[%s3 + $0x38] sm:$0xff] %vm554, %v497
  %563 = vst.msk [vmem:[%s3 + $0x40] sm:$0xff] %vm554, %v498
  %564 = vst.msk [vmem:[%s3 + $0x48] sm:$0xff] %vm554, %v499
  %565 = vst.msk [vmem:[%s3 + $0x50] sm:$0xff] %vm554, %v500
  %566 = vst.msk [vmem:[%s3 + $0x58] sm:$0xff] %vm554, %v501
  %567 = vst.msk [vmem:[%s3 + $0x60] sm:$0xff] %vm554, %v502
  %568 = vst.msk [vmem:[%s3 + $0x68] sm:$0xff] %vm554, %v503
  %569 = vst.msk [vmem:[%s3 + $0x70] sm:$0xff] %vm554, %v504
  %570 = vst.msk [vmem:[%s3 + $0x78] sm:$0xff] %vm554, %v505
  %571 = vst.msk [vmem:[%s3 + $0x80] sm:$0xff] %vm554, %v506
  %572 = vst.msk [vmem:[%s3 + $0x88] sm:$0xff] %vm554, %v507
  %573 = vst.msk [vmem:[%s3 + $0x90] sm:$0xff] %vm554, %v508
  %574 = vst.msk [vmem:[%s3 + $0x98] sm:$0xff] %vm554, %v509
  %575 = vst.msk [vmem:[%s3 + $0xa0] sm:$0xff] %vm554, %v510
  %576 = vst.msk [vmem:[%s3 + $0xa8] sm:$0xff] %vm554, %v511
  %577 = vst.msk [vmem:[%s3 + $0xb0] sm:$0xff] %vm554, %v512
  %578 = vst.msk [vmem:[%s3 + $0xb8] sm:$0xff] %vm554, %v513
  %579 = vst.msk [vmem:[%s3 + $0xc0] sm:$0xff] %vm554, %v514
  %580 = vst.msk [vmem:[%s3 + $0xc8] sm:$0xff] %vm554, %v515
  %581 = vst.msk [vmem:[%s3 + $0xd0] sm:$0xff] %vm554, %v516
  %582 = vst.msk [vmem:[%s3 + $0xd8] sm:$0xff] %vm554, %v517
  %583 = vst.msk [vmem:[%s3 + $0xe0] sm:$0xff] %vm554, %v518
  %584 = vst.msk [vmem:[%s3 + $0xe8] sm:$0xff] %vm554, %v519
  %585 = vst.msk [vmem:[%s3 + $0xf0] sm:$0xff] %vm554, %v520
  %586 = vst.msk [vmem:[%s3 + $0xf8] sm:$0xff] %vm554, %v521
  %587 = vst.msk [vmem:[%s3 + $0x100] sm:$0xff] %vm554, %v522
  %588 = vst.msk [vmem:[%s3 + $0x108] sm:$0xff] %vm554, %v523
  %589 = vst.msk [vmem:[%s3 + $0x110] sm:$0xff] %vm554, %v524
  %590 = vst.msk [vmem:[%s3 + $0x118] sm:$0xff] %vm554, %v525
  %591 = vst.msk [vmem:[%s3 + $0x120] sm:$0xff] %vm554, %v526
  %592 = vst.msk [vmem:[%s3 + $0x128] sm:$0xff] %vm554, %v527
  %593 = vst.msk [vmem:[%s3 + $0x130] sm:$0xff] %vm554, %v528
  %594 = vst.msk [vmem:[%s3 + $0x138] sm:$0xff] %vm554, %v529
  %595 = vst.msk [vmem:[%s3 + $0x140] sm:$0xff] %vm554, %v530
  %596 = vst.msk [vmem:[%s3 + $0x148] sm:$0xff] %vm554, %v531
  %597 = vst.msk [vmem:[%s3 + $0x150] sm:$0xff] %vm554, %v532
  %598 = vst.msk [vmem:[%s3 + $0x158] sm:$0xff] %vm554, %v533
  %599 = vst.msk [vmem:[%s3 + $0x160] sm:$0xff] %vm554, %v534
  %600 = vst.msk [vmem:[%s3 + $0x168] sm:$0xff] %vm554, %v535
  %601 = vst.msk [vmem:[%s3 + $0x170] sm:$0xff] %vm554, %v536
  %602 = vst.msk [vmem:[%s3 + $0x178] sm:$0xff] %vm554, %v537
  %603 = vst.msk [vmem:[%s3 + $0x180] sm:$0xff] %vm554, %v538
  %604 = vst.msk [vmem:[%s3 + $0x188] sm:$0xff] %vm554, %v539
  %605 = vst.msk [vmem:[%s3 + $0x190] sm:$0xff] %vm554, %v540
  %606 = vst.msk [vmem:[%s3 + $0x198] sm:$0xff] %vm554, %v541
  %607 = vst.msk [vmem:[%s3 + $0x1a0] sm:$0xff] %vm554, %v542
  %608 = vst.msk [vmem:[%s3 + $0x1a8] sm:$0xff] %vm554, %v543
  %609 = vst.msk [vmem:[%s3 + $0x1b0] sm:$0xff] %vm554, %v544
  %610 = vst.msk [vmem:[%s3 + $0x1b8] sm:$0xff] %vm554, %v545
  %611 = vst.msk [vmem:[%s3 + $0x1c0] sm:$0xff] %vm554, %v546
  %612 = vst.msk [vmem:[%s3 + $0x1c8] sm:$0xff] %vm554, %v547
  %613 = vst.msk [vmem:[%s3 + $0x1d0] sm:$0xff] %vm554, %v548
  %614 = vst.msk [vmem:[%s3 + $0x1d8] sm:$0xff] %vm554, %v549
  %615 = vst.msk [vmem:[%s3 + $0x1e0] sm:$0xff] %vm554, %v550
  %616 = vst.msk [vmem:[%s3 + $0x1e8] sm:$0xff] %vm554, %v551
  %617 = vst.msk [vmem:[%s3 + $0x1f0] sm:$0xff] %vm554, %v552
  %618 = vst.msk [vmem:[%s3 + $0x1f8] sm:$0xff] %vm554, %v553
  // Predicated region
  $region14: #{dual_block_forward.13} parent=0 // pred_check
    _
  $region15: #{dual_block_forward.13} parent=0 // pred_check_branch
    %620 = sbr.rel (0) target = $region17
  $region16: #{dual_block_forward.13} parent=0 // pred_region
    _
  $region17: #{dual_block_forward.13} parent=0 // pred_fallthru
    _
  // Predicated region
  $region18: #{dual_block_forward.13} parent=0 // pred_check
    _
  $region19: #{dual_block_forward.13} parent=0 // pred_check_branch
    %622 = sbr.rel (0) target = $region21
  $region20: #{dual_block_forward.13} parent=0 // pred_region
    _
  $region21: #{dual_block_forward.13} parent=0 // pred_fallthru
    _

// kernel: dual_block_forward.14
$region0: #{dual_block_forward.14}
  #allocation0 [shape = 'u32[]', space=smem, size = 0x4, offset = 0x4, fixed_abs, tag = 'smem constant byte address 0x4 - core index']
  #allocation1 [shape = 'u32[72,128]{1,0:T(1,128)}', space=vmem, size = 0x9000, scoped, tag = 'internal scratch']
  %s0 = inlined_call_operand.vmem [shape: bf16[512,256], index: 0, kind: input, shape index: {}]
  %s1 = inlined_call_operand.vmem [shape: bf16[512,256], index: 1, kind: input, shape index: {}]
  %s2 = inlined_call_operand.vmem [shape: f32[256,16], index: 2, kind: input, shape index: {}]
  %s3 = inlined_call_operand.vmem [shape: f32[1,16], index: 3, kind: input, shape index: {}]
  %s4 = inlined_call_operand.vmem [shape: f32[512,16], index: 4, kind: output, shape index: {}]
  %s5 = sld [smem:[#allocation0]]
  $region26: #{dual_block_forward.14} parent=0
    _
  %s7 = ssub.s32 1, %s5
  %s8 = scalar_select 0, %s7, %s5
  // Predicated region
  $region2: #{dual_block_forward.14} parent=0 // pred_check
    _
  $region3: #{dual_block_forward.14} parent=0 // pred_check_branch
    %10 = sbr.rel (0) target = $region5
  $region4: #{dual_block_forward.14} parent=0 // pred_region
    _
  $region5: #{dual_block_forward.14} parent=0 // pred_fallthru
    _
  // Predicated region
  $region6: #{dual_block_forward.14} parent=0 // pred_check
    _
  $region7: #{dual_block_forward.14} parent=0 // pred_check_branch
    %12 = sbr.rel (0) target = $region9
  $region8: #{dual_block_forward.14} parent=0 // pred_region
    _
  $region9: #{dual_block_forward.14} parent=0 // pred_fallthru
    _
  // Predicated region
  $region10: #{dual_block_forward.14} parent=0 // pred_check
    _
  $region11: #{dual_block_forward.14} parent=0 // pred_check_branch
    %14 = sbr.rel (0) target = $region13
  $region12: #{dual_block_forward.14} parent=0 // pred_region
    _
  $region13: #{dual_block_forward.14} parent=0 // pred_fallthru
    _
  // Predicated region
  $region14: #{dual_block_forward.14} parent=0 // pred_check
    _
  $region15: #{dual_block_forward.14} parent=0 // pred_check_branch
    %16 = sbr.rel (0) target = $region17
  $region16: #{dual_block_forward.14} parent=0 // pred_region
    _
  $region17: #{dual_block_forward.14} parent=0 // pred_fallthru
    _
  %v17 = vld [vmem:[%s0] sm:$0xff]
  %v18 = vld [vmem:[%s0 + $0x8] sm:$0xff]
  %v19 = vld [vmem:[%s0 + $0x10] sm:$0xff]
  %v20 = vld [vmem:[%s0 + $0x18] sm:$0xff]
  %v21 = vld [vmem:[%s0 + $0x20] sm:$0xff]
  %v22 = vld [vmem:[%s0 + $0x28] sm:$0xff]
  %v23 = vld [vmem:[%s0 + $0x30] sm:$0xff]
  %v24 = vld [vmem:[%s0 + $0x38] sm:$0xff]
  %v25 = vld [vmem:[%s0 + $0x40] sm:$0xff]
  %v26 = vld [vmem:[%s0 + $0x48] sm:$0xff]
  %v27 = vld [vmem:[%s0 + $0x50] sm:$0xff]
  %v28 = vld [vmem:[%s0 + $0x58] sm:$0xff]
  %v29 = vld [vmem:[%s0 + $0x60] sm:$0xff]
  %v30 = vld [vmem:[%s0 + $0x68] sm:$0xff]
  %v31 = vld [vmem:[%s0 + $0x70] sm:$0xff]
  %v32 = vld [vmem:[%s0 + $0x78] sm:$0xff]
  %v33 = vld [vmem:[%s0 + $0x80] sm:$0xff]
  %v34 = vld [vmem:[%s0 + $0x88] sm:$0xff]
  %v35 = vld [vmem:[%s0 + $0x90] sm:$0xff]
  %v36 = vld [vmem:[%s0 + $0x98] sm:$0xff]
  %v37 = vld [vmem:[%s0 + $0xa0] sm:$0xff]
  %v38 = vld [vmem:[%s0 + $0xa8] sm:$0xff]
  %v39 = vld [vmem:[%s0 + $0xb0] sm:$0xff]
  %v40 = vld [vmem:[%s0 + $0xb8] sm:$0xff]
  %v41 = vld [vmem:[%s0 + $0xc0] sm:$0xff]
  %v42 = vld [vmem:[%s0 + $0xc8] sm:$0xff]
  %v43 = vld [vmem:[%s0 + $0xd0] sm:$0xff]
  %v44 = vld [vmem:[%s0 + $0xd8] sm:$0xff]
  %v45 = vld [vmem:[%s0 + $0xe0] sm:$0xff]
  %v46 = vld [vmem:[%s0 + $0xe8] sm:$0xff]
  %v47 = vld [vmem:[%s0 + $0xf0] sm:$0xff]
  %v48 = vld [vmem:[%s0 + $0xf8] sm:$0xff]
  %v49 = vld [vmem:[%s0 + $0x100] sm:$0xff]
  %v50 = vld [vmem:[%s0 + $0x108] sm:$0xff]
  %v51 = vld [vmem:[%s0 + $0x110] sm:$0xff]
  %v52 = vld [vmem:[%s0 + $0x118] sm:$0xff]
  %v53 = vld [vmem:[%s0 + $0x120] sm:$0xff]
  %v54 = vld [vmem:[%s0 + $0x128] sm:$0xff]
  %v55 = vld [vmem:[%s0 + $0x130] sm:$0xff]
  %v56 = vld [vmem:[%s0 + $0x138] sm:$0xff]
  %v57 = vld [vmem:[%s0 + $0x140] sm:$0xff]
  %v58 = vld [vmem:[%s0 + $0x148] sm:$0xff]
  %v59 = vld [vmem:[%s0 + $0x150] sm:$0xff]
  %v60 = vld [vmem:[%s0 + $0x158] sm:$0xff]
  %v61 = vld [vmem:[%s0 + $0x160] sm:$0xff]
  %v62 = vld [vmem:[%s0 + $0x168] sm:$0xff]
  %v63 = vld [vmem:[%s0 + $0x170] sm:$0xff]
  %v64 = vld [vmem:[%s0 + $0x178] sm:$0xff]
  %v65 = vld [vmem:[%s0 + $0x180] sm:$0xff]
  %v66 = vld [vmem:[%s0 + $0x188] sm:$0xff]
  %v67 = vld [vmem:[%s0 + $0x190] sm:$0xff]
  %v68 = vld [vmem:[%s0 + $0x198] sm:$0xff]
  %v69 = vld [vmem:[%s0 + $0x1a0] sm:$0xff]
  %v70 = vld [vmem:[%s0 + $0x1a8] sm:$0xff]
  %v71 = vld [vmem:[%s0 + $0x1b0] sm:$0xff]
  %v72 = vld [vmem:[%s0 + $0x1b8] sm:$0xff]
  %v73 = vld [vmem:[%s0 + $0x1c0] sm:$0xff]
  %v74 = vld [vmem:[%s0 + $0x1c8] sm:$0xff]
  %v75 = vld [vmem:[%s0 + $0x1d0] sm:$0xff]
  %v76 = vld [vmem:[%s0 + $0x1d8] sm:$0xff]
  %v77 = vld [vmem:[%s0 + $0x1e0] sm:$0xff]
  %v78 = vld [vmem:[%s0 + $0x1e8] sm:$0xff]
  %v79 = vld [vmem:[%s0 + $0x1f0] sm:$0xff]
  %v80 = vld [vmem:[%s0 + $0x1f8] sm:$0xff]
  %v81 = vunpack.c.l.bf16 %v17
  %v82 = vunpack.c.h.bf16 %v17
  %v83 = vunpack.c.l.bf16 %v18
  %v84 = vunpack.c.h.bf16 %v18
  %v85 = vunpack.c.l.bf16 %v19
  %v86 = vunpack.c.h.bf16 %v19
  %v87 = vunpack.c.l.bf16 %v20
  %v88 = vunpack.c.h.bf16 %v20
  %v89 = vunpack.c.l.bf16 %v21
  %v90 = vunpack.c.h.bf16 %v21
  %v91 = vunpack.c.l.bf16 %v22
  %v92 = vunpack.c.h.bf16 %v22
  %v93 = vunpack.c.l.bf16 %v23
  %v94 = vunpack.c.h.bf16 %v23
  %v95 = vunpack.c.l.bf16 %v24
  %v96 = vunpack.c.h.bf16 %v24
  %v97 = vunpack.c.l.bf16 %v25
  %v98 = vunpack.c.h.bf16 %v25
  %v99 = vunpack.c.l.bf16 %v26
  %v100 = vunpack.c.h.bf16 %v26
  %v101 = vunpack.c.l.bf16 %v27
  %v102 = vunpack.c.h.bf16 %v27
  %v103 = vunpack.c.l.bf16 %v28
  %v104 = vunpack.c.h.bf16 %v28
  %v105 = vunpack.c.l.bf16 %v29
  %v106 = vunpack.c.h.bf16 %v29
  %v107 = vunpack.c.l.bf16 %v30
  %v108 = vunpack.c.h.bf16 %v30
  %v109 = vunpack.c.l.bf16 %v31
  %v110 = vunpack.c.h.bf16 %v31
  %v111 = vunpack.c.l.bf16 %v32
  %v112 = vunpack.c.h.bf16 %v32
  %v113 = vunpack.c.l.bf16 %v33
  %v114 = vunpack.c.h.bf16 %v33
  %v115 = vunpack.c.l.bf16 %v34
  %v116 = vunpack.c.h.bf16 %v34
  %v117 = vunpack.c.l.bf16 %v35
  %v118 = vunpack.c.h.bf16 %v35
  %v119 = vunpack.c.l.bf16 %v36
  %v120 = vunpack.c.h.bf16 %v36
  %v121 = vunpack.c.l.bf16 %v37
  %v122 = vunpack.c.h.bf16 %v37
  %v123 = vunpack.c.l.bf16 %v38
  %v124 = vunpack.c.h.bf16 %v38
  %v125 = vunpack.c.l.bf16 %v39
  %v126 = vunpack.c.h.bf16 %v39
  %v127 = vunpack.c.l.bf16 %v40
  %v128 = vunpack.c.h.bf16 %v40
  %v129 = vunpack.c.l.bf16 %v41
  %v130 = vunpack.c.h.bf16 %v41
  %v131 = vunpack.c.l.bf16 %v42
  %v132 = vunpack.c.h.bf16 %v42
  %v133 = vunpack.c.l.bf16 %v43
  %v134 = vunpack.c.h.bf16 %v43
  %v135 = vunpack.c.l.bf16 %v44
  %v136 = vunpack.c.h.bf16 %v44
  %v137 = vunpack.c.l.bf16 %v45
  %v138 = vunpack.c.h.bf16 %v45
  %v139 = vunpack.c.l.bf16 %v46
  %v140 = vunpack.c.h.bf16 %v46
  %v141 = vunpack.c.l.bf16 %v47
  %v142 = vunpack.c.h.bf16 %v47
  %v143 = vunpack.c.l.bf16 %v48
  %v144 = vunpack.c.h.bf16 %v48
  %v145 = vunpack.c.l.bf16 %v49
  %v146 = vunpack.c.h.bf16 %v49
  %v147 = vunpack.c.l.bf16 %v50
  %v148 = vunpack.c.h.bf16 %v50
  %v149 = vunpack.c.l.bf16 %v51
  %v150 = vunpack.c.h.bf16 %v51
  %v151 = vunpack.c.l.bf16 %v52
  %v152 = vunpack.c.h.bf16 %v52
  %v153 = vunpack.c.l.bf16 %v53
  %v154 = vunpack.c.h.bf16 %v53
  %v155 = vunpack.c.l.bf16 %v54
  %v156 = vunpack.c.h.bf16 %v54
  %v157 = vunpack.c.l.bf16 %v55
  %v158 = vunpack.c.h.bf16 %v55
  %v159 = vunpack.c.l.bf16 %v56
  %v160 = vunpack.c.h.bf16 %v56
  %v161 = vunpack.c.l.bf16 %v57
  %v162 = vunpack.c.h.bf16 %v57
  %v163 = vunpack.c.l.bf16 %v58
  %v164 = vunpack.c.h.bf16 %v58
  %v165 = vunpack.c.l.bf16 %v59
  %v166 = vunpack.c.h.bf16 %v59
  %v167 = vunpack.c.l.bf16 %v60
  %v168 = vunpack.c.h.bf16 %v60
  %v169 = vunpack.c.l.bf16 %v61
  %v170 = vunpack.c.h.bf16 %v61
  %v171 = vunpack.c.l.bf16 %v62
  %v172 = vunpack.c.h.bf16 %v62
  %v173 = vunpack.c.l.bf16 %v63
  %v174 = vunpack.c.h.bf16 %v63
  %v175 = vunpack.c.l.bf16 %v64
  %v176 = vunpack.c.h.bf16 %v64
  %v177 = vunpack.c.l.bf16 %v65
  %v178 = vunpack.c.h.bf16 %v65
  %v179 = vunpack.c.l.bf16 %v66
  %v180 = vunpack.c.h.bf16 %v66
  %v181 = vunpack.c.l.bf16 %v67
  %v182 = vunpack.c.h.bf16 %v67
  %v183 = vunpack.c.l.bf16 %v68
  %v184 = vunpack.c.h.bf16 %v68
  %v185 = vunpack.c.l.bf16 %v69
  %v186 = vunpack.c.h.bf16 %v69
  %v187 = vunpack.c.l.bf16 %v70
  %v188 = vunpack.c.h.bf16 %v70
  %v189 = vunpack.c.l.bf16 %v71
  %v190 = vunpack.c.h.bf16 %v71
  %v191 = vunpack.c.l.bf16 %v72
  %v192 = vunpack.c.h.bf16 %v72
  %v193 = vunpack.c.l.bf16 %v73
  %v194 = vunpack.c.h.bf16 %v73
  %v195 = vunpack.c.l.bf16 %v74
  %v196 = vunpack.c.h.bf16 %v74
  %v197 = vunpack.c.l.bf16 %v75
  %v198 = vunpack.c.h.bf16 %v75
  %v199 = vunpack.c.l.bf16 %v76
  %v200 = vunpack.c.h.bf16 %v76
  %v201 = vunpack.c.l.bf16 %v77
  %v202 = vunpack.c.h.bf16 %v77
  %v203 = vunpack.c.l.bf16 %v78
  %v204 = vunpack.c.h.bf16 %v78
  %v205 = vunpack.c.l.bf16 %v79
  %v206 = vunpack.c.h.bf16 %v79
  %v207 = vunpack.c.l.bf16 %v80
  %v208 = vunpack.c.h.bf16 %v80
  %v209 = vld [vmem:[%s1] sm:$0xff]
  %v210 = vld [vmem:[%s1 + $0x8] sm:$0xff]
  %v211 = vld [vmem:[%s1 + $0x10] sm:$0xff]
  %v212 = vld [vmem:[%s1 + $0x18] sm:$0xff]
  %v213 = vld [vmem:[%s1 + $0x20] sm:$0xff]
  %v214 = vld [vmem:[%s1 + $0x28] sm:$0xff]
  %v215 = vld [vmem:[%s1 + $0x30] sm:$0xff]
  %v216 = vld [vmem:[%s1 + $0x38] sm:$0xff]
  %v217 = vld [vmem:[%s1 + $0x40] sm:$0xff]
  %v218 = vld [vmem:[%s1 + $0x48] sm:$0xff]
  %v219 = vld [vmem:[%s1 + $0x50] sm:$0xff]
  %v220 = vld [vmem:[%s1 + $0x58] sm:$0xff]
  %v221 = vld [vmem:[%s1 + $0x60] sm:$0xff]
  %v222 = vld [vmem:[%s1 + $0x68] sm:$0xff]
  %v223 = vld [vmem:[%s1 + $0x70] sm:$0xff]
  %v224 = vld [vmem:[%s1 + $0x78] sm:$0xff]
  %v225 = vld [vmem:[%s1 + $0x80] sm:$0xff]
  %v226 = vld [vmem:[%s1 + $0x88] sm:$0xff]
  %v227 = vld [vmem:[%s1 + $0x90] sm:$0xff]
  %v228 = vld [vmem:[%s1 + $0x98] sm:$0xff]
  %v229 = vld [vmem:[%s1 + $0xa0] sm:$0xff]
  %v230 = vld [vmem:[%s1 + $0xa8] sm:$0xff]
  %v231 = vld [vmem:[%s1 + $0xb0] sm:$0xff]
  %v232 = vld [vmem:[%s1 + $0xb8] sm:$0xff]
  %v233 = vld [vmem:[%s1 + $0xc0] sm:$0xff]
  %v234 = vld [vmem:[%s1 + $0xc8] sm:$0xff]
  %v235 = vld [vmem:[%s1 + $0xd0] sm:$0xff]
  %v236 = vld [vmem:[%s1 + $0xd8] sm:$0xff]
  %v237 = vld [vmem:[%s1 + $0xe0] sm:$0xff]
  %v238 = vld [vmem:[%s1 + $0xe8] sm:$0xff]
  %v239 = vld [vmem:[%s1 + $0xf0] sm:$0xff]
  %v240 = vld [vmem:[%s1 + $0xf8] sm:$0xff]
  %v241 = vld [vmem:[%s1 + $0x100] sm:$0xff]
  %v242 = vld [vmem:[%s1 + $0x108] sm:$0xff]
  %v243 = vld [vmem:[%s1 + $0x110] sm:$0xff]
  %v244 = vld [vmem:[%s1 + $0x118] sm:$0xff]
  %v245 = vld [vmem:[%s1 + $0x120] sm:$0xff]
  %v246 = vld [vmem:[%s1 + $0x128] sm:$0xff]
  %v247 = vld [vmem:[%s1 + $0x130] sm:$0xff]
  %v248 = vld [vmem:[%s1 + $0x138] sm:$0xff]
  %v249 = vld [vmem:[%s1 + $0x140] sm:$0xff]
  %v250 = vld [vmem:[%s1 + $0x148] sm:$0xff]
  %v251 = vld [vmem:[%s1 + $0x150] sm:$0xff]
  %v252 = vld [vmem:[%s1 + $0x158] sm:$0xff]
  %v253 = vld [vmem:[%s1 + $0x160] sm:$0xff]
  %v254 = vld [vmem:[%s1 + $0x168] sm:$0xff]
  %v255 = vld [vmem:[%s1 + $0x170] sm:$0xff]
  %v256 = vld [vmem:[%s1 + $0x178] sm:$0xff]
  %v257 = vld [vmem:[%s1 + $0x180] sm:$0xff]
  %v258 = vld [vmem:[%s1 + $0x188] sm:$0xff]
  %v259 = vld [vmem:[%s1 + $0x190] sm:$0xff]
  %v260 = vld [vmem:[%s1 + $0x198] sm:$0xff]
  %v261 = vld [vmem:[%s1 + $0x1a0] sm:$0xff]
  %v262 = vld [vmem:[%s1 + $0x1a8] sm:$0xff]
  %v263 = vld [vmem:[%s1 + $0x1b0] sm:$0xff]
  %v264 = vld [vmem:[%s1 + $0x1b8] sm:$0xff]
  %v265 = vld [vmem:[%s1 + $0x1c0] sm:$0xff]
  %v266 = vld [vmem:[%s1 + $0x1c8] sm:$0xff]
  %v267 = vld [vmem:[%s1 + $0x1d0] sm:$0xff]
  %v268 = vld [vmem:[%s1 + $0x1d8] sm:$0xff]
  %v269 = vld [vmem:[%s1 + $0x1e0] sm:$0xff]
  %v270 = vld [vmem:[%s1 + $0x1e8] sm:$0xff]
  %v271 = vld [vmem:[%s1 + $0x1f0] sm:$0xff]
  %v272 = vld [vmem:[%s1 + $0x1f8] sm:$0xff]
  %v273 = vunpack.c.l.bf16 %v209
  %v274 = vunpack.c.h.bf16 %v209
  %v275 = vunpack.c.l.bf16 %v210
  %v276 = vunpack.c.h.bf16 %v210
  %v277 = vunpack.c.l.bf16 %v211
  %v278 = vunpack.c.h.bf16 %v211
  %v279 = vunpack.c.l.bf16 %v212
  %v280 = vunpack.c.h.bf16 %v212
  %v281 = vunpack.c.l.bf16 %v213
  %v282 = vunpack.c.h.bf16 %v213
  %v283 = vunpack.c.l.bf16 %v214
  %v284 = vunpack.c.h.bf16 %v214
  %v285 = vunpack.c.l.bf16 %v215
  %v286 = vunpack.c.h.bf16 %v215
  %v287 = vunpack.c.l.bf16 %v216
  %v288 = vunpack.c.h.bf16 %v216
  %v289 = vunpack.c.l.bf16 %v217
  %v290 = vunpack.c.h.bf16 %v217
  %v291 = vunpack.c.l.bf16 %v218
  %v292 = vunpack.c.h.bf16 %v218
  %v293 = vunpack.c.l.bf16 %v219
  %v294 = vunpack.c.h.bf16 %v219
  %v295 = vunpack.c.l.bf16 %v220
  %v296 = vunpack.c.h.bf16 %v220
  %v297 = vunpack.c.l.bf16 %v221
  %v298 = vunpack.c.h.bf16 %v221
  %v299 = vunpack.c.l.bf16 %v222
  %v300 = vunpack.c.h.bf16 %v222
  %v301 = vunpack.c.l.bf16 %v223
  %v302 = vunpack.c.h.bf16 %v223
  %v303 = vunpack.c.l.bf16 %v224
  %v304 = vunpack.c.h.bf16 %v224
  %v305 = vunpack.c.l.bf16 %v225
  %v306 = vunpack.c.h.bf16 %v225
  %v307 = vunpack.c.l.bf16 %v226
  %v308 = vunpack.c.h.bf16 %v226
  %v309 = vunpack.c.l.bf16 %v227
  %v310 = vunpack.c.h.bf16 %v227
  %v311 = vunpack.c.l.bf16 %v228
  %v312 = vunpack.c.h.bf16 %v228
  %v313 = vunpack.c.l.bf16 %v229
  %v314 = vunpack.c.h.bf16 %v229
  %v315 = vunpack.c.l.bf16 %v230
  %v316 = vunpack.c.h.bf16 %v230
  %v317 = vunpack.c.l.bf16 %v231
  %v318 = vunpack.c.h.bf16 %v231
  %v319 = vunpack.c.l.bf16 %v232
  %v320 = vunpack.c.h.bf16 %v232
  %v321 = vunpack.c.l.bf16 %v233
  %v322 = vunpack.c.h.bf16 %v233
  %v323 = vunpack.c.l.bf16 %v234
  %v324 = vunpack.c.h.bf16 %v234
  %v325 = vunpack.c.l.bf16 %v235
  %v326 = vunpack.c.h.bf16 %v235
  %v327 = vunpack.c.l.bf16 %v236
  %v328 = vunpack.c.h.bf16 %v236
  %v329 = vunpack.c.l.bf16 %v237
  %v330 = vunpack.c.h.bf16 %v237
  %v331 = vunpack.c.l.bf16 %v238
  %v332 = vunpack.c.h.bf16 %v238
  %v333 = vunpack.c.l.bf16 %v239
  %v334 = vunpack.c.h.bf16 %v239
  %v335 = vunpack.c.l.bf16 %v240
  %v336 = vunpack.c.h.bf16 %v240
  %v337 = vunpack.c.l.bf16 %v241
  %v338 = vunpack.c.h.bf16 %v241
  %v339 = vunpack.c.l.bf16 %v242
  %v340 = vunpack.c.h.bf16 %v242
  %v341 = vunpack.c.l.bf16 %v243
  %v342 = vunpack.c.h.bf16 %v243
  %v343 = vunpack.c.l.bf16 %v244
  %v344 = vunpack.c.h.bf16 %v244
  %v345 = vunpack.c.l.bf16 %v245
  %v346 = vunpack.c.h.bf16 %v245
  %v347 = vunpack.c.l.bf16 %v246
  %v348 = vunpack.c.h.bf16 %v246
  %v349 = vunpack.c.l.bf16 %v247
  %v350 = vunpack.c.h.bf16 %v247
  %v351 = vunpack.c.l.bf16 %v248
  %v352 = vunpack.c.h.bf16 %v248
  %v353 = vunpack.c.l.bf16 %v249
  %v354 = vunpack.c.h.bf16 %v249
  %v355 = vunpack.c.l.bf16 %v250
  %v356 = vunpack.c.h.bf16 %v250
  %v357 = vunpack.c.l.bf16 %v251
  %v358 = vunpack.c.h.bf16 %v251
  %v359 = vunpack.c.l.bf16 %v252
  %v360 = vunpack.c.h.bf16 %v252
  %v361 = vunpack.c.l.bf16 %v253
  %v362 = vunpack.c.h.bf16 %v253
  %v363 = vunpack.c.l.bf16 %v254
  %v364 = vunpack.c.h.bf16 %v254
  %v365 = vunpack.c.l.bf16 %v255
  %v366 = vunpack.c.h.bf16 %v255
  %v367 = vunpack.c.l.bf16 %v256
  %v368 = vunpack.c.h.bf16 %v256
  %v369 = vunpack.c.l.bf16 %v257
  %v370 = vunpack.c.h.bf16 %v257
  %v371 = vunpack.c.l.bf16 %v258
  %v372 = vunpack.c.h.bf16 %v258
  %v373 = vunpack.c.l.bf16 %v259
  %v374 = vunpack.c.h.bf16 %v259
  %v375 = vunpack.c.l.bf16 %v260
  %v376 = vunpack.c.h.bf16 %v260
  %v377 = vunpack.c.l.bf16 %v261
  %v378 = vunpack.c.h.bf16 %v261
  %v379 = vunpack.c.l.bf16 %v262
  %v380 = vunpack.c.h.bf16 %v262
  %v381 = vunpack.c.l.bf16 %v263
  %v382 = vunpack.c.h.bf16 %v263
  %v383 = vunpack.c.l.bf16 %v264
  %v384 = vunpack.c.h.bf16 %v264
  %v385 = vunpack.c.l.bf16 %v265
  %v386 = vunpack.c.h.bf16 %v265
  %v387 = vunpack.c.l.bf16 %v266
  %v388 = vunpack.c.h.bf16 %v266
  %v389 = vunpack.c.l.bf16 %v267
  %v390 = vunpack.c.h.bf16 %v267
  %v391 = vunpack.c.l.bf16 %v268
  %v392 = vunpack.c.h.bf16 %v268
  %v393 = vunpack.c.l.bf16 %v269
  %v394 = vunpack.c.h.bf16 %v269
  %v395 = vunpack.c.l.bf16 %v270
  %v396 = vunpack.c.h.bf16 %v270
  %v397 = vunpack.c.l.bf16 %v271
  %v398 = vunpack.c.h.bf16 %v271
  %v399 = vunpack.c.l.bf16 %v272
  %v400 = vunpack.c.h.bf16 %v272
  %v401 = vmul.f32 %v81, %v273
  %v402 = vmul.f32 %v82, %v274
  %v403 = vmul.f32 %v83, %v275
  %v404 = vmul.f32 %v84, %v276
  %v405 = vmul.f32 %v85, %v277
  %v406 = vmul.f32 %v86, %v278
  %v407 = vmul.f32 %v87, %v279
  %v408 = vmul.f32 %v88, %v280
  %v409 = vmul.f32 %v89, %v281
  %v410 = vmul.f32 %v90, %v282
  %v411 = vmul.f32 %v91, %v283
  %v412 = vmul.f32 %v92, %v284
  %v413 = vmul.f32 %v93, %v285
  %v414 = vmul.f32 %v94, %v286
  %v415 = vmul.f32 %v95, %v287
  %v416 = vmul.f32 %v96, %v288
  %v417 = vmul.f32 %v97, %v289
  %v418 = vmul.f32 %v98, %v290
  %v419 = vmul.f32 %v99, %v291
  %v420 = vmul.f32 %v100, %v292
  %v421 = vmul.f32 %v101, %v293
  %v422 = vmul.f32 %v102, %v294
  %v423 = vmul.f32 %v103, %v295
  %v424 = vmul.f32 %v104, %v296
  %v425 = vmul.f32 %v105, %v297
  %v426 = vmul.f32 %v106, %v298
  %v427 = vmul.f32 %v107, %v299
  %v428 = vmul.f32 %v108, %v300
  %v429 = vmul.f32 %v109, %v301
  %v430 = vmul.f32 %v110, %v302
  %v431 = vmul.f32 %v111, %v303
  %v432 = vmul.f32 %v112, %v304
  %v433 = vmul.f32 %v113, %v305
  %v434 = vmul.f32 %v114, %v306
  %v435 = vmul.f32 %v115, %v307
  %v436 = vmul.f32 %v116, %v308
  %v437 = vmul.f32 %v117, %v309
  %v438 = vmul.f32 %v118, %v310
  %v439 = vmul.f32 %v119, %v311
  %v440 = vmul.f32 %v120, %v312
  %v441 = vmul.f32 %v121, %v313
  %v442 = vmul.f32 %v122, %v314
  %v443 = vmul.f32 %v123, %v315
  %v444 = vmul.f32 %v124, %v316
  %v445 = vmul.f32 %v125, %v317
  %v446 = vmul.f32 %v126, %v318
  %v447 = vmul.f32 %v127, %v319
  %v448 = vmul.f32 %v128, %v320
  %v449 = vmul.f32 %v129, %v321
  %v450 = vmul.f32 %v130, %v322
  %v451 = vmul.f32 %v131, %v323
  %v452 = vmul.f32 %v132, %v324
  %v453 = vmul.f32 %v133, %v325
  %v454 = vmul.f32 %v134, %v326
  %v455 = vmul.f32 %v135, %v327
  %v456 = vmul.f32 %v136, %v328
  %v457 = vmul.f32 %v137, %v329
  %v458 = vmul.f32 %v138, %v330
  %v459 = vmul.f32 %v139, %v331
  %v460 = vmul.f32 %v140, %v332
  %v461 = vmul.f32 %v141, %v333
  %v462 = vmul.f32 %v142, %v334
  %v463 = vmul.f32 %v143, %v335
  %v464 = vmul.f32 %v144, %v336
  %v465 = vmul.f32 %v145, %v337
  %v466 = vmul.f32 %v146, %v338
  %v467 = vmul.f32 %v147, %v339
  %v468 = vmul.f32 %v148, %v340
  %v469 = vmul.f32 %v149, %v341
  %v470 = vmul.f32 %v150, %v342
  %v471 = vmul.f32 %v151, %v343
  %v472 = vmul.f32 %v152, %v344
  %v473 = vmul.f32 %v153, %v345
  %v474 = vmul.f32 %v154, %v346
  %v475 = vmul.f32 %v155, %v347
  %v476 = vmul.f32 %v156, %v348
  %v477 = vmul.f32 %v157, %v349
  %v478 = vmul.f32 %v158, %v350
  %v479 = vmul.f32 %v159, %v351
  %v480 = vmul.f32 %v160, %v352
  %v481 = vmul.f32 %v161, %v353
  %v482 = vmul.f32 %v162, %v354
  %v483 = vmul.f32 %v163, %v355
  %v484 = vmul.f32 %v164, %v356
  %v485 = vmul.f32 %v165, %v357
  %v486 = vmul.f32 %v166, %v358
  %v487 = vmul.f32 %v167, %v359
  %v488 = vmul.f32 %v168, %v360
  %v489 = vmul.f32 %v169, %v361
  %v490 = vmul.f32 %v170, %v362
  %v491 = vmul.f32 %v171, %v363
  %v492 = vmul.f32 %v172, %v364
  %v493 = vmul.f32 %v173, %v365
  %v494 = vmul.f32 %v174, %v366
  %v495 = vmul.f32 %v175, %v367
  %v496 = vmul.f32 %v176, %v368
  %v497 = vmul.f32 %v177, %v369
  %v498 = vmul.f32 %v178, %v370
  %v499 = vmul.f32 %v179, %v371
  %v500 = vmul.f32 %v180, %v372
  %v501 = vmul.f32 %v181, %v373
  %v502 = vmul.f32 %v182, %v374
  %v503 = vmul.f32 %v183, %v375
  %v504 = vmul.f32 %v184, %v376
  %v505 = vmul.f32 %v185, %v377
  %v506 = vmul.f32 %v186, %v378
  %v507 = vmul.f32 %v187, %v379
  %v508 = vmul.f32 %v188, %v380
  %v509 = vmul.f32 %v189, %v381
  %v510 = vmul.f32 %v190, %v382
  %v511 = vmul.f32 %v191, %v383
  %v512 = vmul.f32 %v192, %v384
  %v513 = vmul.f32 %v193, %v385
  %v514 = vmul.f32 %v194, %v386
  %v515 = vmul.f32 %v195, %v387
  %v516 = vmul.f32 %v196, %v388
  %v517 = vmul.f32 %v197, %v389
  %v518 = vmul.f32 %v198, %v390
  %v519 = vmul.f32 %v199, %v391
  %v520 = vmul.f32 %v200, %v392
  %v521 = vmul.f32 %v201, %v393
  %v522 = vmul.f32 %v202, %v394
  %v523 = vmul.f32 %v203, %v395
  %v524 = vmul.f32 %v204, %v396
  %v525 = vmul.f32 %v205, %v397
  %v526 = vmul.f32 %v206, %v398
  %v527 = vmul.f32 %v207, %v399
  %v528 = vmul.f32 %v208, %v400
  %v529 = vld [vmem:[%s2] sm:$0xff]
  %v530 = vld [vmem:[%s2 + $0x8] sm:$0xff]
  %v531 = vld [vmem:[%s2 + $0x10] sm:$0xff]
  %v532 = vld [vmem:[%s2 + $0x18] sm:$0xff]
  %v533 = vld [vmem:[%s2 + $0x20] sm:$0xff]
  %v534 = vld [vmem:[%s2 + $0x28] sm:$0xff]
  %v535 = vld [vmem:[%s2 + $0x30] sm:$0xff]
  %v536 = vld [vmem:[%s2 + $0x38] sm:$0xff]
  %v537 = vld [vmem:[%s2 + $0x40] sm:$0xff]
  %v538 = vld [vmem:[%s2 + $0x48] sm:$0xff]
  %v539 = vld [vmem:[%s2 + $0x50] sm:$0xff]
  %v540 = vld [vmem:[%s2 + $0x58] sm:$0xff]
  %v541 = vld [vmem:[%s2 + $0x60] sm:$0xff]
  %v542 = vld [vmem:[%s2 + $0x68] sm:$0xff]
  %v543 = vld [vmem:[%s2 + $0x70] sm:$0xff]
  %v544 = vld [vmem:[%s2 + $0x78] sm:$0xff]
  %v545 = vld [vmem:[%s2 + $0x80] sm:$0xff]
  %v546 = vld [vmem:[%s2 + $0x88] sm:$0xff]
  %v547 = vld [vmem:[%s2 + $0x90] sm:$0xff]
  %v548 = vld [vmem:[%s2 + $0x98] sm:$0xff]
  %v549 = vld [vmem:[%s2 + $0xa0] sm:$0xff]
  %v550 = vld [vmem:[%s2 + $0xa8] sm:$0xff]
  %v551 = vld [vmem:[%s2 + $0xb0] sm:$0xff]
  %v552 = vld [vmem:[%s2 + $0xb8] sm:$0xff]
  %v553 = vld [vmem:[%s2 + $0xc0] sm:$0xff]
  %v554 = vld [vmem:[%s2 + $0xc8] sm:$0xff]
  %v555 = vld [vmem:[%s2 + $0xd0] sm:$0xff]
  %v556 = vld [vmem:[%s2 + $0xd8] sm:$0xff]
  %v557 = vld [vmem:[%s2 + $0xe0] sm:$0xff]
  %v558 = vld [vmem:[%s2 + $0xe8] sm:$0xff]
  %v559 = vld [vmem:[%s2 + $0xf0] sm:$0xff]
  %v560 = vld [vmem:[%s2 + $0xf8] sm:$0xff]
  %v561 = vld [vmem:[%s3] sm:$0x1]
  %v563 = vperm.slane %v561, 0
  %565 = vmatpush.msra.mxu0 %v544
  %566 = vmatpush.msra.mxu0 %v543
  %567 = vmatpush.msra.mxu0 %v542
  %568 = vmatpush.msra.mxu0 %v541
  %569 = vmatpush.msra.mxu0 %v540
  %570 = vmatpush.msra.mxu0 %v539
  %571 = vmatpush.msra.mxu0 %v538
  %572 = vmatpush.msra.mxu0 %v537
  %573 = vmatpush.msra.mxu0 %v536
  %574 = vmatpush.msra.mxu0 %v535
  %575 = vmatpush.msra.mxu0 %v534
  %576 = vmatpush.msra.mxu0 %v533
  %577 = vmatpush.msra.mxu0 %v532
  %578 = vmatpush.msra.mxu0 %v531
  %579 = vmatpush.msra.mxu0 %v530
  %580 = vmatpush.msra.mxu0 %v529
  %581 = vmatmul.f32.gmra.mxu0 %v401
  %v582 = vpop.f32.mrf.mxu0
  %v583 = vadd.f32 %v563, %v582
  %584 = vmatmul.f32.gmra.mxu0 %v403
  %v585 = vpop.f32.mrf.mxu0
  %v586 = vadd.f32 %v563, %v585
  %587 = vmatmul.f32.gmra.mxu0 %v405
  %v588 = vpop.f32.mrf.mxu0
  %v589 = vadd.f32 %v563, %v588
  %590 = vmatmul.f32.gmra.mxu0 %v407
  %v591 = vpop.f32.mrf.mxu0
  %v592 = vadd.f32 %v563, %v591
  %593 = vmatmul.f32.gmra.mxu0 %v409
  %v594 = vpop.f32.mrf.mxu0
  %v595 = vadd.f32 %v563, %v594
  %596 = vmatmul.f32.gmra.mxu0 %v411
  %v597 = vpop.f32.mrf.mxu0
  %v598 = vadd.f32 %v563, %v597
  %599 = vmatmul.f32.gmra.mxu0 %v413
  %v600 = vpop.f32.mrf.mxu0
  %v601 = vadd.f32 %v563, %v600
  %602 = vmatmul.f32.gmra.mxu0 %v415
  %v603 = vpop.f32.mrf.mxu0
  %v604 = vadd.f32 %v563, %v603
  %605 = vmatmul.f32.gmra.mxu0 %v417
  %v606 = vpop.f32.mrf.mxu0
  %v607 = vadd.f32 %v563, %v606
  %608 = vmatmul.f32.gmra.mxu0 %v419
  %v609 = vpop.f32.mrf.mxu0
  %v610 = vadd.f32 %v563, %v609
  %611 = vmatmul.f32.gmra.mxu0 %v421
  %v612 = vpop.f32.mrf.mxu0
  %v613 = vadd.f32 %v563, %v612
  %614 = vmatmul.f32.gmra.mxu0 %v423
  %v615 = vpop.f32.mrf.mxu0
  %v616 = vadd.f32 %v563, %v615
  %617 = vmatmul.f32.gmra.mxu0 %v425
  %v618 = vpop.f32.mrf.mxu0
  %v619 = vadd.f32 %v563, %v618
  %620 = vmatmul.f32.gmra.mxu0 %v427
  %v621 = vpop.f32.mrf.mxu0
  %v622 = vadd.f32 %v563, %v621
  %623 = vmatmul.f32.gmra.mxu0 %v429
  %v624 = vpop.f32.mrf.mxu0
  %v625 = vadd.f32 %v563, %v624
  %626 = vmatmul.f32.gmra.mxu0 %v431
  %v627 = vpop.f32.mrf.mxu0
  %v628 = vadd.f32 %v563, %v627
  %629 = vmatmul.f32.gmra.mxu0 %v433
  %v630 = vpop.f32.mrf.mxu0
  %v631 = vadd.f32 %v563, %v630
  %632 = vmatmul.f32.gmra.mxu0 %v435
  %v633 = vpop.f32.mrf.mxu0
  %v634 = vadd.f32 %v563, %v633
  %635 = vmatmul.f32.gmra.mxu0 %v437
  %v636 = vpop.f32.mrf.mxu0
  %v637 = vadd.f32 %v563, %v636
  %638 = vmatmul.f32.gmra.mxu0 %v439
  %v639 = vpop.f32.mrf.mxu0
  %v640 = vadd.f32 %v563, %v639
  %641 = vmatmul.f32.gmra.mxu0 %v441
  %v642 = vpop.f32.mrf.mxu0
  %v643 = vadd.f32 %v563, %v642
  %644 = vmatmul.f32.gmra.mxu0 %v443
  %v645 = vpop.f32.mrf.mxu0
  %v646 = vadd.f32 %v563, %v645
  %647 = vmatmul.f32.gmra.mxu0 %v445
  %v648 = vpop.f32.mrf.mxu0
  %v649 = vadd.f32 %v563, %v648
  %650 = vmatmul.f32.gmra.mxu0 %v447
  %v651 = vpop.f32.mrf.mxu0
  %v652 = vadd.f32 %v563, %v651
  %653 = vmatmul.f32.gmra.mxu0 %v449
  %v654 = vpop.f32.mrf.mxu0
  %v655 = vadd.f32 %v563, %v654
  %656 = vmatmul.f32.gmra.mxu0 %v451
  %v657 = vpop.f32.mrf.mxu0
  %v658 = vadd.f32 %v563, %v657
  %659 = vmatmul.f32.gmra.mxu0 %v453
  %v660 = vpop.f32.mrf.mxu0
  %v661 = vadd.f32 %v563, %v660
  %662 = vmatmul.f32.gmra.mxu0 %v455
  %v663 = vpop.f32.mrf.mxu0
  %v664 = vadd.f32 %v563, %v663
  %665 = vmatmul.f32.gmra.mxu0 %v457
  %v666 = vpop.f32.mrf.mxu0
  %v667 = vadd.f32 %v563, %v666
  %668 = vmatmul.f32.gmra.mxu0 %v459
  %v669 = vpop.f32.mrf.mxu0
  %v670 = vadd.f32 %v563, %v669
  %671 = vmatmul.f32.gmra.mxu0 %v461
  %v672 = vpop.f32.mrf.mxu0
  %v673 = vadd.f32 %v563, %v672
  %674 = vmatmul.f32.gmra.mxu0 %v463
  %v675 = vpop.f32.mrf.mxu0
  %v676 = vadd.f32 %v563, %v675
  %677 = vmatmul.f32.gmra.mxu0 %v465
  %v678 = vpop.f32.mrf.mxu0
  %v679 = vadd.f32 %v563, %v678
  %680 = vmatmul.f32.gmra.mxu0 %v467
  %v681 = vpop.f32.mrf.mxu0
  %v682 = vadd.f32 %v563, %v681
  %683 = vmatmul.f32.gmra.mxu0 %v469
  %v684 = vpop.f32.mrf.mxu0
  %v685 = vadd.f32 %v563, %v684
  %686 = vmatmul.f32.gmra.mxu0 %v471
  %v687 = vpop.f32.mrf.mxu0
  %v688 = vadd.f32 %v563, %v687
  %689 = vmatmul.f32.gmra.mxu0 %v473
  %v690 = vpop.f32.mrf.mxu0
  %v691 = vadd.f32 %v563, %v690
  %692 = vmatmul.f32.gmra.mxu0 %v475
  %v693 = vpop.f32.mrf.mxu0
  %v694 = vadd.f32 %v563, %v693
  %695 = vmatmul.f32.gmra.mxu0 %v477
  %v696 = vpop.f32.mrf.mxu0
  %v697 = vadd.f32 %v563, %v696
  %698 = vmatmul.f32.gmra.mxu0 %v479
  %v699 = vpop.f32.mrf.mxu0
  %v700 = vadd.f32 %v563, %v699
  %701 = vmatmul.f32.gmra.mxu0 %v481
  %v702 = vpop.f32.mrf.mxu0
  %v703 = vadd.f32 %v563, %v702
  %704 = vmatmul.f32.gmra.mxu0 %v483
  %v705 = vpop.f32.mrf.mxu0
  %v706 = vadd.f32 %v563, %v705
  %707 = vmatmul.f32.gmra.mxu0 %v485
  %v708 = vpop.f32.mrf.mxu0
  %v709 = vadd.f32 %v563, %v708
  %710 = vmatmul.f32.gmra.mxu0 %v487
  %v711 = vpop.f32.mrf.mxu0
  %v712 = vadd.f32 %v563, %v711
  %713 = vmatmul.f32.gmra.mxu0 %v489
  %v714 = vpop.f32.mrf.mxu0
  %v715 = vadd.f32 %v563, %v714
  %716 = vmatmul.f32.gmra.mxu0 %v491
  %v717 = vpop.f32.mrf.mxu0
  %v718 = vadd.f32 %v563, %v717
  %719 = vmatmul.f32.gmra.mxu0 %v493
  %v720 = vpop.f32.mrf.mxu0
  %v721 = vadd.f32 %v563, %v720
  %722 = vmatmul.f32.gmra.mxu0 %v495
  %v723 = vpop.f32.mrf.mxu0
  %v724 = vadd.f32 %v563, %v723
  %725 = vmatmul.f32.gmra.mxu0 %v497
  %v726 = vpop.f32.mrf.mxu0
  %v727 = vadd.f32 %v563, %v726
  %728 = vmatmul.f32.gmra.mxu0 %v499
  %v729 = vpop.f32.mrf.mxu0
  %v730 = vadd.f32 %v563, %v729
  %731 = vmatmul.f32.gmra.mxu0 %v501
  %v732 = vpop.f32.mrf.mxu0
  %v733 = vadd.f32 %v563, %v732
  %734 = vmatmul.f32.gmra.mxu0 %v503
  %v735 = vpop.f32.mrf.mxu0
  %v736 = vadd.f32 %v563, %v735
  %737 = vmatmul.f32.gmra.mxu0 %v505
  %v738 = vpop.f32.mrf.mxu0
  %v739 = vadd.f32 %v563, %v738
  %740 = vmatmul.f32.gmra.mxu0 %v507
  %v741 = vpop.f32.mrf.mxu0
  %v742 = vadd.f32 %v563, %v741
  %743 = vmatmul.f32.gmra.mxu0 %v509
  %v744 = vpop.f32.mrf.mxu0
  %v745 = vadd.f32 %v563, %v744
  %746 = vmatmul.f32.gmra.mxu0 %v511
  %v747 = vpop.f32.mrf.mxu0
  %v748 = vadd.f32 %v563, %v747
  %749 = vmatmul.f32.gmra.mxu0 %v513
  %v750 = vpop.f32.mrf.mxu0
  %v751 = vadd.f32 %v563, %v750
  %752 = vmatmul.f32.gmra.mxu0 %v515
  %v753 = vpop.f32.mrf.mxu0
  %v754 = vadd.f32 %v563, %v753
  %755 = vmatmul.f32.gmra.mxu0 %v517
  %v756 = vpop.f32.mrf.mxu0
  %v757 = vadd.f32 %v563, %v756
  %758 = vmatmul.f32.gmra.mxu0 %v519
  %v759 = vpop.f32.mrf.mxu0
  %v760 = vadd.f32 %v563, %v759
  %761 = vmatmul.f32.gmra.mxu0 %v521
  %v762 = vpop.f32.mrf.mxu0
  %v763 = vadd.f32 %v563, %v762
  %764 = vmatmul.f32.gmra.mxu0 %v523
  %v765 = vpop.f32.mrf.mxu0
  %v766 = vadd.f32 %v563, %v765
  %767 = vmatmul.f32.gmra.mxu0 %v525
  %v768 = vpop.f32.mrf.mxu0
  %v769 = vadd.f32 %v563, %v768
  %770 = vmatmul.f32.gmra.mxu0 %v527
  %v771 = vpop.f32.mrf.mxu0
  %v772 = vadd.f32 %v563, %v771
  %773 = vdwg.mxu0
  %774 = vmatpush.msra.mxu0 %v560
  %775 = vmatpush.msra.mxu0 %v559
  %776 = vmatpush.msra.mxu0 %v558
  %777 = vmatpush.msra.mxu0 %v557
  %778 = vmatpush.msra.mxu0 %v556
  %779 = vmatpush.msra.mxu0 %v555
  %780 = vmatpush.msra.mxu0 %v554
  %781 = vmatpush.msra.mxu0 %v553
  %782 = vmatpush.msra.mxu0 %v552
  %783 = vmatpush.msra.mxu0 %v551
  %784 = vmatpush.msra.mxu0 %v550
  %785 = vmatpush.msra.mxu0 %v549
  %786 = vmatpush.msra.mxu0 %v548
  %787 = vmatpush.msra.mxu0 %v547
  %788 = vmatpush.msra.mxu0 %v546
  %789 = vmatpush.msra.mxu0 %v545
  %790 = vmatmul.f32.gmra.mxu0 %v402
  %v791 = vpop.f32.mrf.mxu0
  %v792 = vadd.f32 %v583, %v791
  %793 = vmatmul.f32.gmra.mxu0 %v404
  %v794 = vpop.f32.mrf.mxu0
  %v795 = vadd.f32 %v586, %v794
  %796 = vmatmul.f32.gmra.mxu0 %v406
  %v797 = vpop.f32.mrf.mxu0
  %v798 = vadd.f32 %v589, %v797
  %799 = vmatmul.f32.gmra.mxu0 %v408
  %v800 = vpop.f32.mrf.mxu0
  %v801 = vadd.f32 %v592, %v800
  %802 = vmatmul.f32.gmra.mxu0 %v410
  %v803 = vpop.f32.mrf.mxu0
  %v804 = vadd.f32 %v595, %v803
  %805 = vmatmul.f32.gmra.mxu0 %v412
  %v806 = vpop.f32.mrf.mxu0
  %v807 = vadd.f32 %v598, %v806
  %808 = vmatmul.f32.gmra.mxu0 %v414
  %v809 = vpop.f32.mrf.mxu0
  %v810 = vadd.f32 %v601, %v809
  %811 = vmatmul.f32.gmra.mxu0 %v416
  %v812 = vpop.f32.mrf.mxu0
  %v813 = vadd.f32 %v604, %v812
  %814 = vmatmul.f32.gmra.mxu0 %v418
  %v815 = vpop.f32.mrf.mxu0
  %v816 = vadd.f32 %v607, %v815
  %817 = vmatmul.f32.gmra.mxu0 %v420
  %v818 = vpop.f32.mrf.mxu0
  %v819 = vadd.f32 %v610, %v818
  %820 = vmatmul.f32.gmra.mxu0 %v422
  %v821 = vpop.f32.mrf.mxu0
  %v822 = vadd.f32 %v613, %v821
  %823 = vmatmul.f32.gmra.mxu0 %v424
  %v824 = vpop.f32.mrf.mxu0
  %v825 = vadd.f32 %v616, %v824
  %826 = vmatmul.f32.gmra.mxu0 %v426
  %v827 = vpop.f32.mrf.mxu0
  %v828 = vadd.f32 %v619, %v827
  %829 = vmatmul.f32.gmra.mxu0 %v428
  %v830 = vpop.f32.mrf.mxu0
  %v831 = vadd.f32 %v622, %v830
  %832 = vmatmul.f32.gmra.mxu0 %v430
  %v833 = vpop.f32.mrf.mxu0
  %v834 = vadd.f32 %v625, %v833
  %835 = vmatmul.f32.gmra.mxu0 %v432
  %v836 = vpop.f32.mrf.mxu0
  %v837 = vadd.f32 %v628, %v836
  %838 = vmatmul.f32.gmra.mxu0 %v434
  %v839 = vpop.f32.mrf.mxu0
  %v840 = vadd.f32 %v631, %v839
  %841 = vmatmul.f32.gmra.mxu0 %v436
  %v842 = vpop.f32.mrf.mxu0
  %v843 = vadd.f32 %v634, %v842
  %844 = vmatmul.f32.gmra.mxu0 %v438
  %v845 = vpop.f32.mrf.mxu0
  %v846 = vadd.f32 %v637, %v845
  %847 = vmatmul.f32.gmra.mxu0 %v440
  %v848 = vpop.f32.mrf.mxu0
  %v849 = vadd.f32 %v640, %v848
  %850 = vmatmul.f32.gmra.mxu0 %v442
  %v851 = vpop.f32.mrf.mxu0
  %v852 = vadd.f32 %v643, %v851
  %853 = vmatmul.f32.gmra.mxu0 %v444
  %v854 = vpop.f32.mrf.mxu0
  %v855 = vadd.f32 %v646, %v854
  %856 = vmatmul.f32.gmra.mxu0 %v446
  %v857 = vpop.f32.mrf.mxu0
  %v858 = vadd.f32 %v649, %v857
  %859 = vmatmul.f32.gmra.mxu0 %v448
  %v860 = vpop.f32.mrf.mxu0
  %v861 = vadd.f32 %v652, %v860
  %862 = vmatmul.f32.gmra.mxu0 %v450
  %v863 = vpop.f32.mrf.mxu0
  %v864 = vadd.f32 %v655, %v863
  %865 = vmatmul.f32.gmra.mxu0 %v452
  %v866 = vpop.f32.mrf.mxu0
  %v867 = vadd.f32 %v658, %v866
  %868 = vmatmul.f32.gmra.mxu0 %v454
  %v869 = vpop.f32.mrf.mxu0
  %v870 = vadd.f32 %v661, %v869
  %871 = vmatmul.f32.gmra.mxu0 %v456
  %v872 = vpop.f32.mrf.mxu0
  %v873 = vadd.f32 %v664, %v872
  %874 = vmatmul.f32.gmra.mxu0 %v458
  %v875 = vpop.f32.mrf.mxu0
  %v876 = vadd.f32 %v667, %v875
  %877 = vmatmul.f32.gmra.mxu0 %v460
  %v878 = vpop.f32.mrf.mxu0
  %v879 = vadd.f32 %v670, %v878
  %880 = vmatmul.f32.gmra.mxu0 %v462
  %v881 = vpop.f32.mrf.mxu0
  %v882 = vadd.f32 %v673, %v881
  %883 = vmatmul.f32.gmra.mxu0 %v464
  %v884 = vpop.f32.mrf.mxu0
  %v885 = vadd.f32 %v676, %v884
  %886 = vmatmul.f32.gmra.mxu0 %v466
  %v887 = vpop.f32.mrf.mxu0
  %v888 = vadd.f32 %v679, %v887
  %889 = vmatmul.f32.gmra.mxu0 %v468
  %v890 = vpop.f32.mrf.mxu0
  %v891 = vadd.f32 %v682, %v890
  %892 = vmatmul.f32.gmra.mxu0 %v470
  %v893 = vpop.f32.mrf.mxu0
  %v894 = vadd.f32 %v685, %v893
  %895 = vmatmul.f32.gmra.mxu0 %v472
  %v896 = vpop.f32.mrf.mxu0
  %v897 = vadd.f32 %v688, %v896
  %898 = vmatmul.f32.gmra.mxu0 %v474
  %v899 = vpop.f32.mrf.mxu0
  %v900 = vadd.f32 %v691, %v899
  %901 = vmatmul.f32.gmra.mxu0 %v476
  %v902 = vpop.f32.mrf.mxu0
  %v903 = vadd.f32 %v694, %v902
  %904 = vmatmul.f32.gmra.mxu0 %v478
  %v905 = vpop.f32.mrf.mxu0
  %v906 = vadd.f32 %v697, %v905
  %907 = vmatmul.f32.gmra.mxu0 %v480
  %v908 = vpop.f32.mrf.mxu0
  %v909 = vadd.f32 %v700, %v908
  %910 = vmatmul.f32.gmra.mxu0 %v482
  %v911 = vpop.f32.mrf.mxu0
  %v912 = vadd.f32 %v703, %v911
  %913 = vmatmul.f32.gmra.mxu0 %v484
  %v914 = vpop.f32.mrf.mxu0
  %v915 = vadd.f32 %v706, %v914
  %916 = vmatmul.f32.gmra.mxu0 %v486
  %v917 = vpop.f32.mrf.mxu0
  %v918 = vadd.f32 %v709, %v917
  %919 = vmatmul.f32.gmra.mxu0 %v488
  %v920 = vpop.f32.mrf.mxu0
  %v921 = vadd.f32 %v712, %v920
  %922 = vmatmul.f32.gmra.mxu0 %v490
  %v923 = vpop.f32.mrf.mxu0
  %v924 = vadd.f32 %v715, %v923
  %925 = vmatmul.f32.gmra.mxu0 %v492
  %v926 = vpop.f32.mrf.mxu0
  %v927 = vadd.f32 %v718, %v926
  %928 = vmatmul.f32.gmra.mxu0 %v494
  %v929 = vpop.f32.mrf.mxu0
  %v930 = vadd.f32 %v721, %v929
  %931 = vmatmul.f32.gmra.mxu0 %v496
  %v932 = vpop.f32.mrf.mxu0
  %v933 = vadd.f32 %v724, %v932
  %934 = vmatmul.f32.gmra.mxu0 %v498
  %v935 = vpop.f32.mrf.mxu0
  %v936 = vadd.f32 %v727, %v935
  %937 = vmatmul.f32.gmra.mxu0 %v500
  %v938 = vpop.f32.mrf.mxu0
  %v939 = vadd.f32 %v730, %v938
  %940 = vmatmul.f32.gmra.mxu0 %v502
  %v941 = vpop.f32.mrf.mxu0
  %v942 = vadd.f32 %v733, %v941
  %943 = vmatmul.f32.gmra.mxu0 %v504
  %v944 = vpop.f32.mrf.mxu0
  %v945 = vadd.f32 %v736, %v944
  %946 = vmatmul.f32.gmra.mxu0 %v506
  %v947 = vpop.f32.mrf.mxu0
  %v948 = vadd.f32 %v739, %v947
  %949 = vmatmul.f32.gmra.mxu0 %v508
  %v950 = vpop.f32.mrf.mxu0
  %v951 = vadd.f32 %v742, %v950
  %952 = vmatmul.f32.gmra.mxu0 %v510
  %v953 = vpop.f32.mrf.mxu0
  %v954 = vadd.f32 %v745, %v953
  %955 = vmatmul.f32.gmra.mxu0 %v512
  %v956 = vpop.f32.mrf.mxu0
  %v957 = vadd.f32 %v748, %v956
  %958 = vmatmul.f32.gmra.mxu0 %v514
  %v959 = vpop.f32.mrf.mxu0
  %v960 = vadd.f32 %v751, %v959
  %961 = vmatmul.f32.gmra.mxu0 %v516
  %v962 = vpop.f32.mrf.mxu0
  %v963 = vadd.f32 %v754, %v962
  %964 = vmatmul.f32.gmra.mxu0 %v518
  %v965 = vpop.f32.mrf.mxu0
  %v966 = vadd.f32 %v757, %v965
  %967 = vmatmul.f32.gmra.mxu0 %v520
  %v968 = vpop.f32.mrf.mxu0
  %v969 = vadd.f32 %v760, %v968
  %970 = vmatmul.f32.gmra.mxu0 %v522
  %v971 = vpop.f32.mrf.mxu0
  %v972 = vadd.f32 %v763, %v971
  %973 = vmatmul.f32.gmra.mxu0 %v524
  %v974 = vpop.f32.mrf.mxu0
  %v975 = vadd.f32 %v766, %v974
  %976 = vmatmul.f32.gmra.mxu0 %v526
  %v977 = vpop.f32.mrf.mxu0
  %v978 = vadd.f32 %v769, %v977
  %979 = vmatmul.f32.gmra.mxu0 %v528
  %v980 = vpop.f32.mrf.mxu0
  %v981 = vadd.f32 %v772, %v980
  %982 = vdwg.mxu0
  %v983 = vmax.f32 %v792, 0.0
  %v984 = vmax.f32 %v795, 0.0
  %v985 = vmax.f32 %v798, 0.0
  %v986 = vmax.f32 %v801, 0.0
  %v987 = vmax.f32 %v804, 0.0
  %v988 = vmax.f32 %v807, 0.0
  %v989 = vmax.f32 %v810, 0.0
  %v990 = vmax.f32 %v813, 0.0
  %v991 = vmax.f32 %v816, 0.0
  %v992 = vmax.f32 %v819, 0.0
  %v993 = vmax.f32 %v822, 0.0
  %v994 = vmax.f32 %v825, 0.0
  %v995 = vmax.f32 %v828, 0.0
  %v996 = vmax.f32 %v831, 0.0
  %v997 = vmax.f32 %v834, 0.0
  %v998 = vmax.f32 %v837, 0.0
  %v999 = vmax.f32 %v840, 0.0
  %v1000 = vmax.f32 %v843, 0.0
  %v1001 = vmax.f32 %v846, 0.0
  %v1002 = vmax.f32 %v849, 0.0
  %v1003 = vmax.f32 %v852, 0.0
  %v1004 = vmax.f32 %v855, 0.0
  %v1005 = vmax.f32 %v858, 0.0
  %v1006 = vmax.f32 %v861, 0.0
  %v1007 = vmax.f32 %v864, 0.0
  %v1008 = vmax.f32 %v867, 0.0
  %v1009 = vmax.f32 %v870, 0.0
  %v1010 = vmax.f32 %v873, 0.0
  %v1011 = vmax.f32 %v876, 0.0
  %v1012 = vmax.f32 %v879, 0.0
  %v1013 = vmax.f32 %v882, 0.0
  %v1014 = vmax.f32 %v885, 0.0
  %v1015 = vmax.f32 %v888, 0.0
  %v1016 = vmax.f32 %v891, 0.0
  %v1017 = vmax.f32 %v894, 0.0
  %v1018 = vmax.f32 %v897, 0.0
  %v1019 = vmax.f32 %v900, 0.0
  %v1020 = vmax.f32 %v903, 0.0
  %v1021 = vmax.f32 %v906, 0.0
  %v1022 = vmax.f32 %v909, 0.0
  %v1023 = vmax.f32 %v912, 0.0
  %v1024 = vmax.f32 %v915, 0.0
  %v1025 = vmax.f32 %v918, 0.0
  %v1026 = vmax.f32 %v921, 0.0
  %v1027 = vmax.f32 %v924, 0.0
  %v1028 = vmax.f32 %v927, 0.0
  %v1029 = vmax.f32 %v930, 0.0
  %v1030 = vmax.f32 %v933, 0.0
  %v1031 = vmax.f32 %v936, 0.0
  %v1032 = vmax.f32 %v939, 0.0
  %v1033 = vmax.f32 %v942, 0.0
  %v1034 = vmax.f32 %v945, 0.0
  %v1035 = vmax.f32 %v948, 0.0
  %v1036 = vmax.f32 %v951, 0.0
  %v1037 = vmax.f32 %v954, 0.0
  %v1038 = vmax.f32 %v957, 0.0
  %v1039 = vmax.f32 %v960, 0.0
  %v1040 = vmax.f32 %v963, 0.0
  %v1041 = vmax.f32 %v966, 0.0
  %v1042 = vmax.f32 %v969, 0.0
  %v1043 = vmax.f32 %v972, 0.0
  %v1044 = vmax.f32 %v975, 0.0
  %v1045 = vmax.f32 %v978, 0.0
  %v1046 = vmax.f32 %v981, 0.0
  %vm1047 = vcmask 130048
  %1048 = vst.msk [vmem:[%s4] sm:$0xff] %vm1047, %v983
  %1049 = vst.msk [vmem:[%s4 + $0x8] sm:$0xff] %vm1047, %v984
  %1050 = vst.msk [vmem:[%s4 + $0x10] sm:$0xff] %vm1047, %v985
  %1051 = vst.msk [vmem:[%s4 + $0x18] sm:$0xff] %vm1047, %v986
  %1052 = vst.msk [vmem:[%s4 + $0x20] sm:$0xff] %vm1047, %v987
  %1053 = vst.msk [vmem:[%s4 + $0x28] sm:$0xff] %vm1047, %v988
  %1054 = vst.msk [vmem:[%s4 + $0x30] sm:$0xff] %vm1047, %v989
  %1055 = vst.msk [vmem:[%s4 + $0x38] sm:$0xff] %vm1047, %v990
  %1056 = vst.msk [vmem:[%s4 + $0x40] sm:$0xff] %vm1047, %v991
  %1057 = vst.msk [vmem:[%s4 + $0x48] sm:$0xff] %vm1047, %v992
  %1058 = vst.msk [vmem:[%s4 + $0x50] sm:$0xff] %vm1047, %v993
  %1059 = vst.msk [vmem:[%s4 + $0x58] sm:$0xff] %vm1047, %v994
  %1060 = vst.msk [vmem:[%s4 + $0x60] sm:$0xff] %vm1047, %v995
  %1061 = vst.msk [vmem:[%s4 + $0x68] sm:$0xff] %vm1047, %v996
  %1062 = vst.msk [vmem:[%s4 + $0x70] sm:$0xff] %vm1047, %v997
  %1063 = vst.msk [vmem:[%s4 + $0x78] sm:$0xff] %vm1047, %v998
  %1064 = vst.msk [vmem:[%s4 + $0x80] sm:$0xff] %vm1047, %v999
  %1065 = vst.msk [vmem:[%s4 + $0x88] sm:$0xff] %vm1047, %v1000
  %1066 = vst.msk [vmem:[%s4 + $0x90] sm:$0xff] %vm1047, %v1001
  %1067 = vst.msk [vmem:[%s4 + $0x98] sm:$0xff] %vm1047, %v1002
  %1068 = vst.msk [vmem:[%s4 + $0xa0] sm:$0xff] %vm1047, %v1003
  %1069 = vst.msk [vmem:[%s4 + $0xa8] sm:$0xff] %vm1047, %v1004
  %1070 = vst.msk [vmem:[%s4 + $0xb0] sm:$0xff] %vm1047, %v1005
  %1071 = vst.msk [vmem:[%s4 + $0xb8] sm:$0xff] %vm1047, %v1006
  %1072 = vst.msk [vmem:[%s4 + $0xc0] sm:$0xff] %vm1047, %v1007
  %1073 = vst.msk [vmem:[%s4 + $0xc8] sm:$0xff] %vm1047, %v1008
  %1074 = vst.msk [vmem:[%s4 + $0xd0] sm:$0xff] %vm1047, %v1009
  %1075 = vst.msk [vmem:[%s4 + $0xd8] sm:$0xff] %vm1047, %v1010
  %1076 = vst.msk [vmem:[%s4 + $0xe0] sm:$0xff] %vm1047, %v1011
  %1077 = vst.msk [vmem:[%s4 + $0xe8] sm:$0xff] %vm1047, %v1012
  %1078 = vst.msk [vmem:[%s4 + $0xf0] sm:$0xff] %vm1047, %v1013
  %1079 = vst.msk [vmem:[%s4 + $0xf8] sm:$0xff] %vm1047, %v1014
  %1080 = vst.msk [vmem:[%s4 + $0x100] sm:$0xff] %vm1047, %v1015
  %1081 = vst.msk [vmem:[%s4 + $0x108] sm:$0xff] %vm1047, %v1016
  %1082 = vst.msk [vmem:[%s4 + $0x110] sm:$0xff] %vm1047, %v1017
  %1083 = vst.msk [vmem:[%s4 + $0x118] sm:$0xff] %vm1047, %v1018
  %1084 = vst.msk [vmem:[%s4 + $0x120] sm:$0xff] %vm1047, %v1019
  %1085 = vst.msk [vmem:[%s4 + $0x128] sm:$0xff] %vm1047, %v1020
  %1086 = vst.msk [vmem:[%s4 + $0x130] sm:$0xff] %vm1047, %v1021
  %1087 = vst.msk [vmem:[%s4 + $0x138] sm:$0xff] %vm1047, %v1022
  %1088 = vst.msk [vmem:[%s4 + $0x140] sm:$0xff] %vm1047, %v1023
  %1089 = vst.msk [vmem:[%s4 + $0x148] sm:$0xff] %vm1047, %v1024
  %1090 = vst.msk [vmem:[%s4 + $0x150] sm:$0xff] %vm1047, %v1025
  %1091 = vst.msk [vmem:[%s4 + $0x158] sm:$0xff] %vm1047, %v1026
  %1092 = vst.msk [vmem:[%s4 + $0x160] sm:$0xff] %vm1047, %v1027
  %1093 = vst.msk [vmem:[%s4 + $0x168] sm:$0xff] %vm1047, %v1028
  %1094 = vst.msk [vmem:[%s4 + $0x170] sm:$0xff] %vm1047, %v1029
  %1095 = vst.msk [vmem:[%s4 + $0x178] sm:$0xff] %vm1047, %v1030
  %1096 = vst.msk [vmem:[%s4 + $0x180] sm:$0xff] %vm1047, %v1031
  %1097 = vst.msk [vmem:[%s4 + $0x188] sm:$0xff] %vm1047, %v1032
  %1098 = vst.msk [vmem:[%s4 + $0x190] sm:$0xff] %vm1047, %v1033
  %1099 = vst.msk [vmem:[%s4 + $0x198] sm:$0xff] %vm1047, %v1034
  %1100 = vst.msk [vmem:[%s4 + $0x1a0] sm:$0xff] %vm1047, %v1035
  %1101 = vst.msk [vmem:[%s4 + $0x1a8] sm:$0xff] %vm1047, %v1036
  %1102 = vst.msk [vmem:[%s4 + $0x1b0] sm:$0xff] %vm1047, %v1037
  %1103 = vst.msk [vmem:[%s4 + $0x1b8] sm:$0xff] %vm1047, %v1038
  %1104 = vst.msk [vmem:[%s4 + $0x1c0] sm:$0xff] %vm1047, %v1039
  %1105 = vst.msk [vmem:[%s4 + $0x1c8] sm:$0xff] %vm1047, %v1040
  %1106 = vst.msk [vmem:[%s4 + $0x1d0] sm:$0xff] %vm1047, %v1041
  %1107 = vst.msk [vmem:[%s4 + $0x1d8] sm:$0xff] %vm1047, %v1042
  %1108 = vst.msk [vmem:[%s4 + $0x1e0] sm:$0xff] %vm1047, %v1043
  %1109 = vst.msk [vmem:[%s4 + $0x1e8] sm:$0xff] %vm1047, %v1044
  %1110 = vst.msk [vmem:[%s4 + $0x1f0] sm:$0xff] %vm1047, %v1045
  %1111 = vst.msk [vmem:[%s4 + $0x1f8] sm:$0xff] %vm1047, %v1046
  // Predicated region
  $region18: #{dual_block_forward.14} parent=0 // pred_check
    _
  $region19: #{dual_block_forward.14} parent=0 // pred_check_branch
    %1113 = sbr.rel (0) target = $region21
  $region20: #{dual_block_forward.14} parent=0 // pred_region
    _
  $region21: #{dual_block_forward.14} parent=0 // pred_fallthru
    _
  // Predicated region
  $region22: #{dual_block_forward.14} parent=0 // pred_check
    _
  $region23: #{dual_block_forward.14} parent=0 // pred_check_branch
    %1115 = sbr.rel (0) target = $region25
  $region24: #{dual_block_forward.14} parent=0 // pred_region
    _
  $region25: #{dual_block_forward.14} parent=0 // pred_fallthru
    _

// kernel: dual_block_forward.15
$region0: #{dual_block_forward.15}
  #allocation0 [shape = 'u32[]', space=smem, size = 0x4, offset = 0x4, fixed_abs, tag = 'smem constant byte address 0x4 - core index']
  #allocation1 [shape = 'u32[72,128]{1,0:T(1,128)}', space=vmem, size = 0x9000, scoped, tag = 'internal scratch']
  %s0 = inlined_call_operand.vmem [shape: f32[512,48], index: 0, kind: input, shape index: {}]
  %s1 = inlined_call_operand.vmem [shape: f32[48,16], index: 1, kind: input, shape index: {}]
  %s2 = inlined_call_operand.vmem [shape: f32[1,16], index: 2, kind: input, shape index: {}]
  %s3 = inlined_call_operand.vmem [shape: f32[512,16], index: 3, kind: output, shape index: {}]
  %s4 = sld [smem:[#allocation0]]
  $region22: #{dual_block_forward.15} parent=0
    _
  %s6 = ssub.s32 1, %s4
  %s7 = scalar_select 0, %s6, %s4
  // Predicated region
  $region2: #{dual_block_forward.15} parent=0 // pred_check
    _
  $region3: #{dual_block_forward.15} parent=0 // pred_check_branch
    %9 = sbr.rel (0) target = $region5
  $region4: #{dual_block_forward.15} parent=0 // pred_region
    _
  $region5: #{dual_block_forward.15} parent=0 // pred_fallthru
    _
  // Predicated region
  $region6: #{dual_block_forward.15} parent=0 // pred_check
    _
  $region7: #{dual_block_forward.15} parent=0 // pred_check_branch
    %11 = sbr.rel (0) target = $region9
  $region8: #{dual_block_forward.15} parent=0 // pred_region
    _
  $region9: #{dual_block_forward.15} parent=0 // pred_fallthru
    _
  // Predicated region
  $region10: #{dual_block_forward.15} parent=0 // pred_check
    _
  $region11: #{dual_block_forward.15} parent=0 // pred_check_branch
    %13 = sbr.rel (0) target = $region13
  $region12: #{dual_block_forward.15} parent=0 // pred_region
    _
  $region13: #{dual_block_forward.15} parent=0 // pred_fallthru
    _
  %v14 = vld [vmem:[%s0] sm:$0xff]
  %v15 = vld [vmem:[%s0 + $0x8] sm:$0xff]
  %v16 = vld [vmem:[%s0 + $0x10] sm:$0xff]
  %v17 = vld [vmem:[%s0 + $0x18] sm:$0xff]
  %v18 = vld [vmem:[%s0 + $0x20] sm:$0xff]
  %v19 = vld [vmem:[%s0 + $0x28] sm:$0xff]
  %v20 = vld [vmem:[%s0 + $0x30] sm:$0xff]
  %v21 = vld [vmem:[%s0 + $0x38] sm:$0xff]
  %v22 = vld [vmem:[%s0 + $0x40] sm:$0xff]
  %v23 = vld [vmem:[%s0 + $0x48] sm:$0xff]
  %v24 = vld [vmem:[%s0 + $0x50] sm:$0xff]
  %v25 = vld [vmem:[%s0 + $0x58] sm:$0xff]
  %v26 = vld [vmem:[%s0 + $0x60] sm:$0xff]
  %v27 = vld [vmem:[%s0 + $0x68] sm:$0xff]
  %v28 = vld [vmem:[%s0 + $0x70] sm:$0xff]
  %v29 = vld [vmem:[%s0 + $0x78] sm:$0xff]
  %v30 = vld [vmem:[%s0 + $0x80] sm:$0xff]
  %v31 = vld [vmem:[%s0 + $0x88] sm:$0xff]
  %v32 = vld [vmem:[%s0 + $0x90] sm:$0xff]
  %v33 = vld [vmem:[%s0 + $0x98] sm:$0xff]
  %v34 = vld [vmem:[%s0 + $0xa0] sm:$0xff]
  %v35 = vld [vmem:[%s0 + $0xa8] sm:$0xff]
  %v36 = vld [vmem:[%s0 + $0xb0] sm:$0xff]
  %v37 = vld [vmem:[%s0 + $0xb8] sm:$0xff]
  %v38 = vld [vmem:[%s0 + $0xc0] sm:$0xff]
  %v39 = vld [vmem:[%s0 + $0xc8] sm:$0xff]
  %v40 = vld [vmem:[%s0 + $0xd0] sm:$0xff]
  %v41 = vld [vmem:[%s0 + $0xd8] sm:$0xff]
  %v42 = vld [vmem:[%s0 + $0xe0] sm:$0xff]
  %v43 = vld [vmem:[%s0 + $0xe8] sm:$0xff]
  %v44 = vld [vmem:[%s0 + $0xf0] sm:$0xff]
  %v45 = vld [vmem:[%s0 + $0xf8] sm:$0xff]
  %v46 = vld [vmem:[%s0 + $0x100] sm:$0xff]
  %v47 = vld [vmem:[%s0 + $0x108] sm:$0xff]
  %v48 = vld [vmem:[%s0 + $0x110] sm:$0xff]
  %v49 = vld [vmem:[%s0 + $0x118] sm:$0xff]
  %v50 = vld [vmem:[%s0 + $0x120] sm:$0xff]
  %v51 = vld [vmem:[%s0 + $0x128] sm:$0xff]
  %v52 = vld [vmem:[%s0 + $0x130] sm:$0xff]
  %v53 = vld [vmem:[%s0 + $0x138] sm:$0xff]
  %v54 = vld [vmem:[%s0 + $0x140] sm:$0xff]
  %v55 = vld [vmem:[%s0 + $0x148] sm:$0xff]
  %v56 = vld [vmem:[%s0 + $0x150] sm:$0xff]
  %v57 = vld [vmem:[%s0 + $0x158] sm:$0xff]
  %v58 = vld [vmem:[%s0 + $0x160] sm:$0xff]
  %v59 = vld [vmem:[%s0 + $0x168] sm:$0xff]
  %v60 = vld [vmem:[%s0 + $0x170] sm:$0xff]
  %v61 = vld [vmem:[%s0 + $0x178] sm:$0xff]
  %v62 = vld [vmem:[%s0 + $0x180] sm:$0xff]
  %v63 = vld [vmem:[%s0 + $0x188] sm:$0xff]
  %v64 = vld [vmem:[%s0 + $0x190] sm:$0xff]
  %v65 = vld [vmem:[%s0 + $0x198] sm:$0xff]
  %v66 = vld [vmem:[%s0 + $0x1a0] sm:$0xff]
  %v67 = vld [vmem:[%s0 + $0x1a8] sm:$0xff]
  %v68 = vld [vmem:[%s0 + $0x1b0] sm:$0xff]
  %v69 = vld [vmem:[%s0 + $0x1b8] sm:$0xff]
  %v70 = vld [vmem:[%s0 + $0x1c0] sm:$0xff]
  %v71 = vld [vmem:[%s0 + $0x1c8] sm:$0xff]
  %v72 = vld [vmem:[%s0 + $0x1d0] sm:$0xff]
  %v73 = vld [vmem:[%s0 + $0x1d8] sm:$0xff]
  %v74 = vld [vmem:[%s0 + $0x1e0] sm:$0xff]
  %v75 = vld [vmem:[%s0 + $0x1e8] sm:$0xff]
  %v76 = vld [vmem:[%s0 + $0x1f0] sm:$0xff]
  %v77 = vld [vmem:[%s0 + $0x1f8] sm:$0xff]
  %v78 = vld [vmem:[%s1] sm:$0xff]
  %v79 = vld [vmem:[%s1 + $0x8] sm:$0xff]
  %v80 = vld [vmem:[%s1 + $0x10] sm:$0xff]
  %v81 = vld [vmem:[%s1 + $0x18] sm:$0xff]
  %v82 = vld [vmem:[%s1 + $0x20] sm:$0xff]
  %v83 = vld [vmem:[%s1 + $0x28] sm:$0xff]
  %v84 = vld [vmem:[%s2] sm:$0x1]
  %v86 = vperm.slane %v84, 0
  %vm88 = vcmask 392192
  %v90 = vsel %vm88, %v14, 0
  %v93 = vsel %vm88, %v15, 0
  %v96 = vsel %vm88, %v16, 0
  %v99 = vsel %vm88, %v17, 0
  %v102 = vsel %vm88, %v18, 0
  %v105 = vsel %vm88, %v19, 0
  %v108 = vsel %vm88, %v20, 0
  %v111 = vsel %vm88, %v21, 0
  %v114 = vsel %vm88, %v22, 0
  %v117 = vsel %vm88, %v23, 0
  %v120 = vsel %vm88, %v24, 0
  %v123 = vsel %vm88, %v25, 0
  %v126 = vsel %vm88, %v26, 0
  %v129 = vsel %vm88, %v27, 0
  %v132 = vsel %vm88, %v28, 0
  %v135 = vsel %vm88, %v29, 0
  %v138 = vsel %vm88, %v30, 0
  %v141 = vsel %vm88, %v31, 0
  %v144 = vsel %vm88, %v32, 0
  %v147 = vsel %vm88, %v33, 0
  %v150 = vsel %vm88, %v34, 0
  %v153 = vsel %vm88, %v35, 0
  %v156 = vsel %vm88, %v36, 0
  %v159 = vsel %vm88, %v37, 0
  %v162 = vsel %vm88, %v38, 0
  %v165 = vsel %vm88, %v39, 0
  %v168 = vsel %vm88, %v40, 0
  %v171 = vsel %vm88, %v41, 0
  %v174 = vsel %vm88, %v42, 0
  %v177 = vsel %vm88, %v43, 0
  %v180 = vsel %vm88, %v44, 0
  %v183 = vsel %vm88, %v45, 0
  %v186 = vsel %vm88, %v46, 0
  %v189 = vsel %vm88, %v47, 0
  %v192 = vsel %vm88, %v48, 0
  %v195 = vsel %vm88, %v49, 0
  %v198 = vsel %vm88, %v50, 0
  %v201 = vsel %vm88, %v51, 0
  %v204 = vsel %vm88, %v52, 0
  %v207 = vsel %vm88, %v53, 0
  %v210 = vsel %vm88, %v54, 0
  %v213 = vsel %vm88, %v55, 0
  %v216 = vsel %vm88, %v56, 0
  %v219 = vsel %vm88, %v57, 0
  %v222 = vsel %vm88, %v58, 0
  %v225 = vsel %vm88, %v59, 0
  %v228 = vsel %vm88, %v60, 0
  %v231 = vsel %vm88, %v61, 0
  %v234 = vsel %vm88, %v62, 0
  %v237 = vsel %vm88, %v63, 0
  %v240 = vsel %vm88, %v64, 0
  %v243 = vsel %vm88, %v65, 0
  %v246 = vsel %vm88, %v66, 0
  %v249 = vsel %vm88, %v67, 0
  %v252 = vsel %vm88, %v68, 0
  %v255 = vsel %vm88, %v69, 0
  %v258 = vsel %vm88, %v70, 0
  %v261 = vsel %vm88, %v71, 0
  %v264 = vsel %vm88, %v72, 0
  %v267 = vsel %vm88, %v73, 0
  %v270 = vsel %vm88, %v74, 0
  %v273 = vsel %vm88, %v75, 0
  %v276 = vsel %vm88, %v76, 0
  %v279 = vsel %vm88, %v77, 0
  %281 = vmatpush.msra.mxu0 0.0
  %282 = vmatpush.msra.mxu0 0.0
  %283 = vmatpush.msra.mxu0 0.0
  %284 = vmatpush.msra.mxu0 0.0
  %285 = vmatpush.msra.mxu0 0.0
  %286 = vmatpush.msra.mxu0 0.0
  %287 = vmatpush.msra.mxu0 0.0
  %288 = vmatpush.msra.mxu0 0.0
  %289 = vmatpush.msra.mxu0 0.0
  %290 = vmatpush.msra.mxu0 0.0
  %291 = vmatpush.msra.mxu0 %v83
  %292 = vmatpush.msra.mxu0 %v82
  %293 = vmatpush.msra.mxu0 %v81
  %294 = vmatpush.msra.mxu0 %v80
  %295 = vmatpush.msra.mxu0 %v79
  %296 = vmatpush.msra.mxu0 %v78
  %297 = vmatmul.f32.gmra.mxu0 %v90
  %v298 = vpop.f32.mrf.mxu0
  %v299 = vadd.f32 %v86, %v298
  %300 = vmatmul.f32.gmra.mxu0 %v93
  %v301 = vpop.f32.mrf.mxu0
  %v302 = vadd.f32 %v86, %v301
  %303 = vmatmul.f32.gmra.mxu0 %v96
  %v304 = vpop.f32.mrf.mxu0
  %v305 = vadd.f32 %v86, %v304
  %306 = vmatmul.f32.gmra.mxu0 %v99
  %v307 = vpop.f32.mrf.mxu0
  %v308 = vadd.f32 %v86, %v307
  %309 = vmatmul.f32.gmra.mxu0 %v102
  %v310 = vpop.f32.mrf.mxu0
  %v311 = vadd.f32 %v86, %v310
  %312 = vmatmul.f32.gmra.mxu0 %v105
  %v313 = vpop.f32.mrf.mxu0
  %v314 = vadd.f32 %v86, %v313
  %315 = vmatmul.f32.gmra.mxu0 %v108
  %v316 = vpop.f32.mrf.mxu0
  %v317 = vadd.f32 %v86, %v316
  %318 = vmatmul.f32.gmra.mxu0 %v111
  %v319 = vpop.f32.mrf.mxu0
  %v320 = vadd.f32 %v86, %v319
  %321 = vmatmul.f32.gmra.mxu0 %v114
  %v322 = vpop.f32.mrf.mxu0
  %v323 = vadd.f32 %v86, %v322
  %324 = vmatmul.f32.gmra.mxu0 %v117
  %v325 = vpop.f32.mrf.mxu0
  %v326 = vadd.f32 %v86, %v325
  %327 = vmatmul.f32.gmra.mxu0 %v120
  %v328 = vpop.f32.mrf.mxu0
  %v329 = vadd.f32 %v86, %v328
  %330 = vmatmul.f32.gmra.mxu0 %v123
  %v331 = vpop.f32.mrf.mxu0
  %v332 = vadd.f32 %v86, %v331
  %333 = vmatmul.f32.gmra.mxu0 %v126
  %v334 = vpop.f32.mrf.mxu0
  %v335 = vadd.f32 %v86, %v334
  %336 = vmatmul.f32.gmra.mxu0 %v129
  %v337 = vpop.f32.mrf.mxu0
  %v338 = vadd.f32 %v86, %v337
  %339 = vmatmul.f32.gmra.mxu0 %v132
  %v340 = vpop.f32.mrf.mxu0
  %v341 = vadd.f32 %v86, %v340
  %342 = vmatmul.f32.gmra.mxu0 %v135
  %v343 = vpop.f32.mrf.mxu0
  %v344 = vadd.f32 %v86, %v343
  %345 = vmatmul.f32.gmra.mxu0 %v138
  %v346 = vpop.f32.mrf.mxu0
  %v347 = vadd.f32 %v86, %v346
  %348 = vmatmul.f32.gmra.mxu0 %v141
  %v349 = vpop.f32.mrf.mxu0
  %v350 = vadd.f32 %v86, %v349
  %351 = vmatmul.f32.gmra.mxu0 %v144
  %v352 = vpop.f32.mrf.mxu0
  %v353 = vadd.f32 %v86, %v352
  %354 = vmatmul.f32.gmra.mxu0 %v147
  %v355 = vpop.f32.mrf.mxu0
  %v356 = vadd.f32 %v86, %v355
  %357 = vmatmul.f32.gmra.mxu0 %v150
  %v358 = vpop.f32.mrf.mxu0
  %v359 = vadd.f32 %v86, %v358
  %360 = vmatmul.f32.gmra.mxu0 %v153
  %v361 = vpop.f32.mrf.mxu0
  %v362 = vadd.f32 %v86, %v361
  %363 = vmatmul.f32.gmra.mxu0 %v156
  %v364 = vpop.f32.mrf.mxu0
  %v365 = vadd.f32 %v86, %v364
  %366 = vmatmul.f32.gmra.mxu0 %v159
  %v367 = vpop.f32.mrf.mxu0
  %v368 = vadd.f32 %v86, %v367
  %369 = vmatmul.f32.gmra.mxu0 %v162
  %v370 = vpop.f32.mrf.mxu0
  %v371 = vadd.f32 %v86, %v370
  %372 = vmatmul.f32.gmra.mxu0 %v165
  %v373 = vpop.f32.mrf.mxu0
  %v374 = vadd.f32 %v86, %v373
  %375 = vmatmul.f32.gmra.mxu0 %v168
  %v376 = vpop.f32.mrf.mxu0
  %v377 = vadd.f32 %v86, %v376
  %378 = vmatmul.f32.gmra.mxu0 %v171
  %v379 = vpop.f32.mrf.mxu0
  %v380 = vadd.f32 %v86, %v379
  %381 = vmatmul.f32.gmra.mxu0 %v174
  %v382 = vpop.f32.mrf.mxu0
  %v383 = vadd.f32 %v86, %v382
  %384 = vmatmul.f32.gmra.mxu0 %v177
  %v385 = vpop.f32.mrf.mxu0
  %v386 = vadd.f32 %v86, %v385
  %387 = vmatmul.f32.gmra.mxu0 %v180
  %v388 = vpop.f32.mrf.mxu0
  %v389 = vadd.f32 %v86, %v388
  %390 = vmatmul.f32.gmra.mxu0 %v183
  %v391 = vpop.f32.mrf.mxu0
  %v392 = vadd.f32 %v86, %v391
  %393 = vmatmul.f32.gmra.mxu0 %v186
  %v394 = vpop.f32.mrf.mxu0
  %v395 = vadd.f32 %v86, %v394
  %396 = vmatmul.f32.gmra.mxu0 %v189
  %v397 = vpop.f32.mrf.mxu0
  %v398 = vadd.f32 %v86, %v397
  %399 = vmatmul.f32.gmra.mxu0 %v192
  %v400 = vpop.f32.mrf.mxu0
  %v401 = vadd.f32 %v86, %v400
  %402 = vmatmul.f32.gmra.mxu0 %v195
  %v403 = vpop.f32.mrf.mxu0
  %v404 = vadd.f32 %v86, %v403
  %405 = vmatmul.f32.gmra.mxu0 %v198
  %v406 = vpop.f32.mrf.mxu0
  %v407 = vadd.f32 %v86, %v406
  %408 = vmatmul.f32.gmra.mxu0 %v201
  %v409 = vpop.f32.mrf.mxu0
  %v410 = vadd.f32 %v86, %v409
  %411 = vmatmul.f32.gmra.mxu0 %v204
  %v412 = vpop.f32.mrf.mxu0
  %v413 = vadd.f32 %v86, %v412
  %414 = vmatmul.f32.gmra.mxu0 %v207
  %v415 = vpop.f32.mrf.mxu0
  %v416 = vadd.f32 %v86, %v415
  %417 = vmatmul.f32.gmra.mxu0 %v210
  %v418 = vpop.f32.mrf.mxu0
  %v419 = vadd.f32 %v86, %v418
  %420 = vmatmul.f32.gmra.mxu0 %v213
  %v421 = vpop.f32.mrf.mxu0
  %v422 = vadd.f32 %v86, %v421
  %423 = vmatmul.f32.gmra.mxu0 %v216
  %v424 = vpop.f32.mrf.mxu0
  %v425 = vadd.f32 %v86, %v424
  %426 = vmatmul.f32.gmra.mxu0 %v219
  %v427 = vpop.f32.mrf.mxu0
  %v428 = vadd.f32 %v86, %v427
  %429 = vmatmul.f32.gmra.mxu0 %v222
  %v430 = vpop.f32.mrf.mxu0
  %v431 = vadd.f32 %v86, %v430
  %432 = vmatmul.f32.gmra.mxu0 %v225
  %v433 = vpop.f32.mrf.mxu0
  %v434 = vadd.f32 %v86, %v433
  %435 = vmatmul.f32.gmra.mxu0 %v228
  %v436 = vpop.f32.mrf.mxu0
  %v437 = vadd.f32 %v86, %v436
  %438 = vmatmul.f32.gmra.mxu0 %v231
  %v439 = vpop.f32.mrf.mxu0
  %v440 = vadd.f32 %v86, %v439
  %441 = vmatmul.f32.gmra.mxu0 %v234
  %v442 = vpop.f32.mrf.mxu0
  %v443 = vadd.f32 %v86, %v442
  %444 = vmatmul.f32.gmra.mxu0 %v237
  %v445 = vpop.f32.mrf.mxu0
  %v446 = vadd.f32 %v86, %v445
  %447 = vmatmul.f32.gmra.mxu0 %v240
  %v448 = vpop.f32.mrf.mxu0
  %v449 = vadd.f32 %v86, %v448
  %450 = vmatmul.f32.gmra.mxu0 %v243
  %v451 = vpop.f32.mrf.mxu0
  %v452 = vadd.f32 %v86, %v451
  %453 = vmatmul.f32.gmra.mxu0 %v246
  %v454 = vpop.f32.mrf.mxu0
  %v455 = vadd.f32 %v86, %v454
  %456 = vmatmul.f32.gmra.mxu0 %v249
  %v457 = vpop.f32.mrf.mxu0
  %v458 = vadd.f32 %v86, %v457
  %459 = vmatmul.f32.gmra.mxu0 %v252
  %v460 = vpop.f32.mrf.mxu0
  %v461 = vadd.f32 %v86, %v460
  %462 = vmatmul.f32.gmra.mxu0 %v255
  %v463 = vpop.f32.mrf.mxu0
  %v464 = vadd.f32 %v86, %v463
  %465 = vmatmul.f32.gmra.mxu0 %v258
  %v466 = vpop.f32.mrf.mxu0
  %v467 = vadd.f32 %v86, %v466
  %468 = vmatmul.f32.gmra.mxu0 %v261
  %v469 = vpop.f32.mrf.mxu0
  %v470 = vadd.f32 %v86, %v469
  %471 = vmatmul.f32.gmra.mxu0 %v264
  %v472 = vpop.f32.mrf.mxu0
  %v473 = vadd.f32 %v86, %v472
  %474 = vmatmul.f32.gmra.mxu0 %v267
  %v475 = vpop.f32.mrf.mxu0
  %v476 = vadd.f32 %v86, %v475
  %477 = vmatmul.f32.gmra.mxu0 %v270
  %v478 = vpop.f32.mrf.mxu0
  %v479 = vadd.f32 %v86, %v478
  %480 = vmatmul.f32.gmra.mxu0 %v273
  %v481 = vpop.f32.mrf.mxu0
  %v482 = vadd.f32 %v86, %v481
  %483 = vmatmul.f32.gmra.mxu0 %v276
  %v484 = vpop.f32.mrf.mxu0
  %v485 = vadd.f32 %v86, %v484
  %486 = vmatmul.f32.gmra.mxu0 %v279
  %v487 = vpop.f32.mrf.mxu0
  %v488 = vadd.f32 %v86, %v487
  %489 = vdwg.mxu0
  %v490 = vmax.f32 %v299, 0.0
  %v491 = vmax.f32 %v302, 0.0
  %v492 = vmax.f32 %v305, 0.0
  %v493 = vmax.f32 %v308, 0.0
  %v494 = vmax.f32 %v311, 0.0
  %v495 = vmax.f32 %v314, 0.0
  %v496 = vmax.f32 %v317, 0.0
  %v497 = vmax.f32 %v320, 0.0
  %v498 = vmax.f32 %v323, 0.0
  %v499 = vmax.f32 %v326, 0.0
  %v500 = vmax.f32 %v329, 0.0
  %v501 = vmax.f32 %v332, 0.0
  %v502 = vmax.f32 %v335, 0.0
  %v503 = vmax.f32 %v338, 0.0
  %v504 = vmax.f32 %v341, 0.0
  %v505 = vmax.f32 %v344, 0.0
  %v506 = vmax.f32 %v347, 0.0
  %v507 = vmax.f32 %v350, 0.0
  %v508 = vmax.f32 %v353, 0.0
  %v509 = vmax.f32 %v356, 0.0
  %v510 = vmax.f32 %v359, 0.0
  %v511 = vmax.f32 %v362, 0.0
  %v512 = vmax.f32 %v365, 0.0
  %v513 = vmax.f32 %v368, 0.0
  %v514 = vmax.f32 %v371, 0.0
  %v515 = vmax.f32 %v374, 0.0
  %v516 = vmax.f32 %v377, 0.0
  %v517 = vmax.f32 %v380, 0.0
  %v518 = vmax.f32 %v383, 0.0
  %v519 = vmax.f32 %v386, 0.0
  %v520 = vmax.f32 %v389, 0.0
  %v521 = vmax.f32 %v392, 0.0
  %v522 = vmax.f32 %v395, 0.0
  %v523 = vmax.f32 %v398, 0.0
  %v524 = vmax.f32 %v401, 0.0
  %v525 = vmax.f32 %v404, 0.0
  %v526 = vmax.f32 %v407, 0.0
  %v527 = vmax.f32 %v410, 0.0
  %v528 = vmax.f32 %v413, 0.0
  %v529 = vmax.f32 %v416, 0.0
  %v530 = vmax.f32 %v419, 0.0
  %v531 = vmax.f32 %v422, 0.0
  %v532 = vmax.f32 %v425, 0.0
  %v533 = vmax.f32 %v428, 0.0
  %v534 = vmax.f32 %v431, 0.0
  %v535 = vmax.f32 %v434, 0.0
  %v536 = vmax.f32 %v437, 0.0
  %v537 = vmax.f32 %v440, 0.0
  %v538 = vmax.f32 %v443, 0.0
  %v539 = vmax.f32 %v446, 0.0
  %v540 = vmax.f32 %v449, 0.0
  %v541 = vmax.f32 %v452, 0.0
  %v542 = vmax.f32 %v455, 0.0
  %v543 = vmax.f32 %v458, 0.0
  %v544 = vmax.f32 %v461, 0.0
  %v545 = vmax.f32 %v464, 0.0
  %v546 = vmax.f32 %v467, 0.0
  %v547 = vmax.f32 %v470, 0.0
  %v548 = vmax.f32 %v473, 0.0
  %v549 = vmax.f32 %v476, 0.0
  %v550 = vmax.f32 %v479, 0.0
  %v551 = vmax.f32 %v482, 0.0
  %v552 = vmax.f32 %v485, 0.0
  %v553 = vmax.f32 %v488, 0.0
  %vm554 = vcmask 130048
  %555 = vst.msk [vmem:[%s3] sm:$0xff] %vm554, %v490
  %556 = vst.msk [vmem:[%s3 + $0x8] sm:$0xff] %vm554, %v491
  %557 = vst.msk [vmem:[%s3 + $0x10] sm:$0xff] %vm554, %v492
  %558 = vst.msk [vmem:[%s3 + $0x18] sm:$0xff] %vm554, %v493
  %559 = vst.msk [vmem:[%s3 + $0x20] sm:$0xff] %vm554, %v494
  %560 = vst.msk [vmem:[%s3 + $0x28] sm:$0xff] %vm554, %v495
  %561 = vst.msk [vmem:[%s3 + $0x30] sm:$0xff] %vm554, %v496
  %562 = vst.msk [vmem:[%s3 + $0x38] sm:$0xff] %vm554, %v497
  %563 = vst.msk [vmem:[%s3 + $0x40] sm:$0xff] %vm554, %v498
  %564 = vst.msk [vmem:[%s3 + $0x48] sm:$0xff] %vm554, %v499
  %565 = vst.msk [vmem:[%s3 + $0x50] sm:$0xff] %vm554, %v500
  %566 = vst.msk [vmem:[%s3 + $0x58] sm:$0xff] %vm554, %v501
  %567 = vst.msk [vmem:[%s3 + $0x60] sm:$0xff] %vm554, %v502
  %568 = vst.msk [vmem:[%s3 + $0x68] sm:$0xff] %vm554, %v503
  %569 = vst.msk [vmem:[%s3 + $0x70] sm:$0xff] %vm554, %v504
  %570 = vst.msk [vmem:[%s3 + $0x78] sm:$0xff] %vm554, %v505
  %571 = vst.msk [vmem:[%s3 + $0x80] sm:$0xff] %vm554, %v506
  %572 = vst.msk [vmem:[%s3 + $0x88] sm:$0xff] %vm554, %v507
  %573 = vst.msk [vmem:[%s3 + $0x90] sm:$0xff] %vm554, %v508
  %574 = vst.msk [vmem:[%s3 + $0x98] sm:$0xff] %vm554, %v509
  %575 = vst.msk [vmem:[%s3 + $0xa0] sm:$0xff] %vm554, %v510
  %576 = vst.msk [vmem:[%s3 + $0xa8] sm:$0xff] %vm554, %v511
  %577 = vst.msk [vmem:[%s3 + $0xb0] sm:$0xff] %vm554, %v512
  %578 = vst.msk [vmem:[%s3 + $0xb8] sm:$0xff] %vm554, %v513
  %579 = vst.msk [vmem:[%s3 + $0xc0] sm:$0xff] %vm554, %v514
  %580 = vst.msk [vmem:[%s3 + $0xc8] sm:$0xff] %vm554, %v515
  %581 = vst.msk [vmem:[%s3 + $0xd0] sm:$0xff] %vm554, %v516
  %582 = vst.msk [vmem:[%s3 + $0xd8] sm:$0xff] %vm554, %v517
  %583 = vst.msk [vmem:[%s3 + $0xe0] sm:$0xff] %vm554, %v518
  %584 = vst.msk [vmem:[%s3 + $0xe8] sm:$0xff] %vm554, %v519
  %585 = vst.msk [vmem:[%s3 + $0xf0] sm:$0xff] %vm554, %v520
  %586 = vst.msk [vmem:[%s3 + $0xf8] sm:$0xff] %vm554, %v521
  %587 = vst.msk [vmem:[%s3 + $0x100] sm:$0xff] %vm554, %v522
  %588 = vst.msk [vmem:[%s3 + $0x108] sm:$0xff] %vm554, %v523
  %589 = vst.msk [vmem:[%s3 + $0x110] sm:$0xff] %vm554, %v524
  %590 = vst.msk [vmem:[%s3 + $0x118] sm:$0xff] %vm554, %v525
  %591 = vst.msk [vmem:[%s3 + $0x120] sm:$0xff] %vm554, %v526
  %592 = vst.msk [vmem:[%s3 + $0x128] sm:$0xff] %vm554, %v527
  %593 = vst.msk [vmem:[%s3 + $0x130] sm:$0xff] %vm554, %v528
  %594 = vst.msk [vmem:[%s3 + $0x138] sm:$0xff] %vm554, %v529
  %595 = vst.msk [vmem:[%s3 + $0x140] sm:$0xff] %vm554, %v530
  %596 = vst.msk [vmem:[%s3 + $0x148] sm:$0xff] %vm554, %v531
  %597 = vst.msk [vmem:[%s3 + $0x150] sm:$0xff] %vm554, %v532
  %598 = vst.msk [vmem:[%s3 + $0x158] sm:$0xff] %vm554, %v533
  %599 = vst.msk [vmem:[%s3 + $0x160] sm:$0xff] %vm554, %v534
  %600 = vst.msk [vmem:[%s3 + $0x168] sm:$0xff] %vm554, %v535
  %601 = vst.msk [vmem:[%s3 + $0x170] sm:$0xff] %vm554, %v536
  %602 = vst.msk [vmem:[%s3 + $0x178] sm:$0xff] %vm554, %v537
  %603 = vst.msk [vmem:[%s3 + $0x180] sm:$0xff] %vm554, %v538
  %604 = vst.msk [vmem:[%s3 + $0x188] sm:$0xff] %vm554, %v539
  %605 = vst.msk [vmem:[%s3 + $0x190] sm:$0xff] %vm554, %v540
  %606 = vst.msk [vmem:[%s3 + $0x198] sm:$0xff] %vm554, %v541
  %607 = vst.msk [vmem:[%s3 + $0x1a0] sm:$0xff] %vm554, %v542
  %608 = vst.msk [vmem:[%s3 + $0x1a8] sm:$0xff] %vm554, %v543
  %609 = vst.msk [vmem:[%s3 + $0x1b0] sm:$0xff] %vm554, %v544
  %610 = vst.msk [vmem:[%s3 + $0x1b8] sm:$0xff] %vm554, %v545
  %611 = vst.msk [vmem:[%s3 + $0x1c0] sm:$0xff] %vm554, %v546
  %612 = vst.msk [vmem:[%s3 + $0x1c8] sm:$0xff] %vm554, %v547
  %613 = vst.msk [vmem:[%s3 + $0x1d0] sm:$0xff] %vm554, %v548
  %614 = vst.msk [vmem:[%s3 + $0x1d8] sm:$0xff] %vm554, %v549
  %615 = vst.msk [vmem:[%s3 + $0x1e0] sm:$0xff] %vm554, %v550
  %616 = vst.msk [vmem:[%s3 + $0x1e8] sm:$0xff] %vm554, %v551
  %617 = vst.msk [vmem:[%s3 + $0x1f0] sm:$0xff] %vm554, %v552
  %618 = vst.msk [vmem:[%s3 + $0x1f8] sm:$0xff] %vm554, %v553
  // Predicated region
  $region14: #{dual_block_forward.15} parent=0 // pred_check
    _
  $region15: #{dual_block_forward.15} parent=0 // pred_check_branch
    %620 = sbr.rel (0) target = $region17
  $region16: #{dual_block_forward.15} parent=0 // pred_region
    _
  $region17: #{dual_block_forward.15} parent=0 // pred_fallthru
    _
  // Predicated region
  $region18: #{dual_block_forward.15} parent=0 // pred_check
    _
  $region19: #{dual_block_forward.15} parent=0 // pred_check_branch
    %622 = sbr.rel (0) target = $region21
  $region20: #{dual_block_forward.15} parent=0 // pred_region
    _
  $region21: #{dual_block_forward.15} parent=0 // pred_fallthru
    _

// kernel: dual_block_forward.16
$region0: #{dual_block_forward.16}
  #allocation0 [shape = 'u32[]', space=smem, size = 0x4, offset = 0x4, fixed_abs, tag = 'smem constant byte address 0x4 - core index']
  #allocation1 [shape = 'u32[72,128]{1,0:T(1,128)}', space=vmem, size = 0x9000, scoped, tag = 'internal scratch']
  %s0 = inlined_call_operand.vmem [shape: bf16[512,256], index: 0, kind: input, shape index: {}]
  %s1 = inlined_call_operand.vmem [shape: bf16[512,256], index: 1, kind: input, shape index: {}]
  %s2 = inlined_call_operand.vmem [shape: f32[256,8], index: 2, kind: input, shape index: {}]
  %s3 = inlined_call_operand.vmem [shape: f32[1,8], index: 3, kind: input, shape index: {}]
  %s4 = inlined_call_operand.vmem [shape: f32[512,8], index: 4, kind: output, shape index: {}]
  %s5 = sld [smem:[#allocation0]]
  $region26: #{dual_block_forward.16} parent=0
    _
  %s7 = ssub.s32 1, %s5
  %s8 = scalar_select 0, %s7, %s5
  // Predicated region
  $region2: #{dual_block_forward.16} parent=0 // pred_check
    _
  $region3: #{dual_block_forward.16} parent=0 // pred_check_branch
    %10 = sbr.rel (0) target = $region5
  $region4: #{dual_block_forward.16} parent=0 // pred_region
    _
  $region5: #{dual_block_forward.16} parent=0 // pred_fallthru
    _
  // Predicated region
  $region6: #{dual_block_forward.16} parent=0 // pred_check
    _
  $region7: #{dual_block_forward.16} parent=0 // pred_check_branch
    %12 = sbr.rel (0) target = $region9
  $region8: #{dual_block_forward.16} parent=0 // pred_region
    _
  $region9: #{dual_block_forward.16} parent=0 // pred_fallthru
    _
  // Predicated region
  $region10: #{dual_block_forward.16} parent=0 // pred_check
    _
  $region11: #{dual_block_forward.16} parent=0 // pred_check_branch
    %14 = sbr.rel (0) target = $region13
  $region12: #{dual_block_forward.16} parent=0 // pred_region
    _
  $region13: #{dual_block_forward.16} parent=0 // pred_fallthru
    _
  // Predicated region
  $region14: #{dual_block_forward.16} parent=0 // pred_check
    _
  $region15: #{dual_block_forward.16} parent=0 // pred_check_branch
    %16 = sbr.rel (0) target = $region17
  $region16: #{dual_block_forward.16} parent=0 // pred_region
    _
  $region17: #{dual_block_forward.16} parent=0 // pred_fallthru
    _
  %v17 = vld [vmem:[%s0] sm:$0xff]
  %v18 = vld [vmem:[%s0 + $0x8] sm:$0xff]
  %v19 = vld [vmem:[%s0 + $0x10] sm:$0xff]
  %v20 = vld [vmem:[%s0 + $0x18] sm:$0xff]
  %v21 = vld [vmem:[%s0 + $0x20] sm:$0xff]
  %v22 = vld [vmem:[%s0 + $0x28] sm:$0xff]
  %v23 = vld [vmem:[%s0 + $0x30] sm:$0xff]
  %v24 = vld [vmem:[%s0 + $0x38] sm:$0xff]
  %v25 = vld [vmem:[%s0 + $0x40] sm:$0xff]
  %v26 = vld [vmem:[%s0 + $0x48] sm:$0xff]
  %v27 = vld [vmem:[%s0 + $0x50] sm:$0xff]
  %v28 = vld [vmem:[%s0 + $0x58] sm:$0xff]
  %v29 = vld [vmem:[%s0 + $0x60] sm:$0xff]
  %v30 = vld [vmem:[%s0 + $0x68] sm:$0xff]
  %v31 = vld [vmem:[%s0 + $0x70] sm:$0xff]
  %v32 = vld [vmem:[%s0 + $0x78] sm:$0xff]
  %v33 = vld [vmem:[%s0 + $0x80] sm:$0xff]
  %v34 = vld [vmem:[%s0 + $0x88] sm:$0xff]
  %v35 = vld [vmem:[%s0 + $0x90] sm:$0xff]
  %v36 = vld [vmem:[%s0 + $0x98] sm:$0xff]
  %v37 = vld [vmem:[%s0 + $0xa0] sm:$0xff]
  %v38 = vld [vmem:[%s0 + $0xa8] sm:$0xff]
  %v39 = vld [vmem:[%s0 + $0xb0] sm:$0xff]
  %v40 = vld [vmem:[%s0 + $0xb8] sm:$0xff]
  %v41 = vld [vmem:[%s0 + $0xc0] sm:$0xff]
  %v42 = vld [vmem:[%s0 + $0xc8] sm:$0xff]
  %v43 = vld [vmem:[%s0 + $0xd0] sm:$0xff]
  %v44 = vld [vmem:[%s0 + $0xd8] sm:$0xff]
  %v45 = vld [vmem:[%s0 + $0xe0] sm:$0xff]
  %v46 = vld [vmem:[%s0 + $0xe8] sm:$0xff]
  %v47 = vld [vmem:[%s0 + $0xf0] sm:$0xff]
  %v48 = vld [vmem:[%s0 + $0xf8] sm:$0xff]
  %v49 = vld [vmem:[%s0 + $0x100] sm:$0xff]
  %v50 = vld [vmem:[%s0 + $0x108] sm:$0xff]
  %v51 = vld [vmem:[%s0 + $0x110] sm:$0xff]
  %v52 = vld [vmem:[%s0 + $0x118] sm:$0xff]
  %v53 = vld [vmem:[%s0 + $0x120] sm:$0xff]
  %v54 = vld [vmem:[%s0 + $0x128] sm:$0xff]
  %v55 = vld [vmem:[%s0 + $0x130] sm:$0xff]
  %v56 = vld [vmem:[%s0 + $0x138] sm:$0xff]
  %v57 = vld [vmem:[%s0 + $0x140] sm:$0xff]
  %v58 = vld [vmem:[%s0 + $0x148] sm:$0xff]
  %v59 = vld [vmem:[%s0 + $0x150] sm:$0xff]
  %v60 = vld [vmem:[%s0 + $0x158] sm:$0xff]
  %v61 = vld [vmem:[%s0 + $0x160] sm:$0xff]
  %v62 = vld [vmem:[%s0 + $0x168] sm:$0xff]
  %v63 = vld [vmem:[%s0 + $0x170] sm:$0xff]
  %v64 = vld [vmem:[%s0 + $0x178] sm:$0xff]
  %v65 = vld [vmem:[%s0 + $0x180] sm:$0xff]
  %v66 = vld [vmem:[%s0 + $0x188] sm:$0xff]
  %v67 = vld [vmem:[%s0 + $0x190] sm:$0xff]
  %v68 = vld [vmem:[%s0 + $0x198] sm:$0xff]
  %v69 = vld [vmem:[%s0 + $0x1a0] sm:$0xff]
  %v70 = vld [vmem:[%s0 + $0x1a8] sm:$0xff]
  %v71 = vld [vmem:[%s0 + $0x1b0] sm:$0xff]
  %v72 = vld [vmem:[%s0 + $0x1b8] sm:$0xff]
  %v73 = vld [vmem:[%s0 + $0x1c0] sm:$0xff]
  %v74 = vld [vmem:[%s0 + $0x1c8] sm:$0xff]
  %v75 = vld [vmem:[%s0 + $0x1d0] sm:$0xff]
  %v76 = vld [vmem:[%s0 + $0x1d8] sm:$0xff]
  %v77 = vld [vmem:[%s0 + $0x1e0] sm:$0xff]
  %v78 = vld [vmem:[%s0 + $0x1e8] sm:$0xff]
  %v79 = vld [vmem:[%s0 + $0x1f0] sm:$0xff]
  %v80 = vld [vmem:[%s0 + $0x1f8] sm:$0xff]
  %v81 = vunpack.c.l.bf16 %v17
  %v82 = vunpack.c.h.bf16 %v17
  %v83 = vunpack.c.l.bf16 %v18
  %v84 = vunpack.c.h.bf16 %v18
  %v85 = vunpack.c.l.bf16 %v19
  %v86 = vunpack.c.h.bf16 %v19
  %v87 = vunpack.c.l.bf16 %v20
  %v88 = vunpack.c.h.bf16 %v20
  %v89 = vunpack.c.l.bf16 %v21
  %v90 = vunpack.c.h.bf16 %v21
  %v91 = vunpack.c.l.bf16 %v22
  %v92 = vunpack.c.h.bf16 %v22
  %v93 = vunpack.c.l.bf16 %v23
  %v94 = vunpack.c.h.bf16 %v23
  %v95 = vunpack.c.l.bf16 %v24
  %v96 = vunpack.c.h.bf16 %v24
  %v97 = vunpack.c.l.bf16 %v25
  %v98 = vunpack.c.h.bf16 %v25
  %v99 = vunpack.c.l.bf16 %v26
  %v100 = vunpack.c.h.bf16 %v26
  %v101 = vunpack.c.l.bf16 %v27
  %v102 = vunpack.c.h.bf16 %v27
  %v103 = vunpack.c.l.bf16 %v28
  %v104 = vunpack.c.h.bf16 %v28
  %v105 = vunpack.c.l.bf16 %v29
  %v106 = vunpack.c.h.bf16 %v29
  %v107 = vunpack.c.l.bf16 %v30
  %v108 = vunpack.c.h.bf16 %v30
  %v109 = vunpack.c.l.bf16 %v31
  %v110 = vunpack.c.h.bf16 %v31
  %v111 = vunpack.c.l.bf16 %v32
  %v112 = vunpack.c.h.bf16 %v32
  %v113 = vunpack.c.l.bf16 %v33
  %v114 = vunpack.c.h.bf16 %v33
  %v115 = vunpack.c.l.bf16 %v34
  %v116 = vunpack.c.h.bf16 %v34
  %v117 = vunpack.c.l.bf16 %v35
  %v118 = vunpack.c.h.bf16 %v35
  %v119 = vunpack.c.l.bf16 %v36
  %v120 = vunpack.c.h.bf16 %v36
  %v121 = vunpack.c.l.bf16 %v37
  %v122 = vunpack.c.h.bf16 %v37
  %v123 = vunpack.c.l.bf16 %v38
  %v124 = vunpack.c.h.bf16 %v38
  %v125 = vunpack.c.l.bf16 %v39
  %v126 = vunpack.c.h.bf16 %v39
  %v127 = vunpack.c.l.bf16 %v40
  %v128 = vunpack.c.h.bf16 %v40
  %v129 = vunpack.c.l.bf16 %v41
  %v130 = vunpack.c.h.bf16 %v41
  %v131 = vunpack.c.l.bf16 %v42
  %v132 = vunpack.c.h.bf16 %v42
  %v133 = vunpack.c.l.bf16 %v43
  %v134 = vunpack.c.h.bf16 %v43
  %v135 = vunpack.c.l.bf16 %v44
  %v136 = vunpack.c.h.bf16 %v44
  %v137 = vunpack.c.l.bf16 %v45
  %v138 = vunpack.c.h.bf16 %v45
  %v139 = vunpack.c.l.bf16 %v46
  %v140 = vunpack.c.h.bf16 %v46
  %v141 = vunpack.c.l.bf16 %v47
  %v142 = vunpack.c.h.bf16 %v47
  %v143 = vunpack.c.l.bf16 %v48
  %v144 = vunpack.c.h.bf16 %v48
  %v145 = vunpack.c.l.bf16 %v49
  %v146 = vunpack.c.h.bf16 %v49
  %v147 = vunpack.c.l.bf16 %v50
  %v148 = vunpack.c.h.bf16 %v50
  %v149 = vunpack.c.l.bf16 %v51
  %v150 = vunpack.c.h.bf16 %v51
  %v151 = vunpack.c.l.bf16 %v52
  %v152 = vunpack.c.h.bf16 %v52
  %v153 = vunpack.c.l.bf16 %v53
  %v154 = vunpack.c.h.bf16 %v53
  %v155 = vunpack.c.l.bf16 %v54
  %v156 = vunpack.c.h.bf16 %v54
  %v157 = vunpack.c.l.bf16 %v55
  %v158 = vunpack.c.h.bf16 %v55
  %v159 = vunpack.c.l.bf16 %v56
  %v160 = vunpack.c.h.bf16 %v56
  %v161 = vunpack.c.l.bf16 %v57
  %v162 = vunpack.c.h.bf16 %v57
  %v163 = vunpack.c.l.bf16 %v58
  %v164 = vunpack.c.h.bf16 %v58
  %v165 = vunpack.c.l.bf16 %v59
  %v166 = vunpack.c.h.bf16 %v59
  %v167 = vunpack.c.l.bf16 %v60
  %v168 = vunpack.c.h.bf16 %v60
  %v169 = vunpack.c.l.bf16 %v61
  %v170 = vunpack.c.h.bf16 %v61
  %v171 = vunpack.c.l.bf16 %v62
  %v172 = vunpack.c.h.bf16 %v62
  %v173 = vunpack.c.l.bf16 %v63
  %v174 = vunpack.c.h.bf16 %v63
  %v175 = vunpack.c.l.bf16 %v64
  %v176 = vunpack.c.h.bf16 %v64
  %v177 = vunpack.c.l.bf16 %v65
  %v178 = vunpack.c.h.bf16 %v65
  %v179 = vunpack.c.l.bf16 %v66
  %v180 = vunpack.c.h.bf16 %v66
  %v181 = vunpack.c.l.bf16 %v67
  %v182 = vunpack.c.h.bf16 %v67
  %v183 = vunpack.c.l.bf16 %v68
  %v184 = vunpack.c.h.bf16 %v68
  %v185 = vunpack.c.l.bf16 %v69
  %v186 = vunpack.c.h.bf16 %v69
  %v187 = vunpack.c.l.bf16 %v70
  %v188 = vunpack.c.h.bf16 %v70
  %v189 = vunpack.c.l.bf16 %v71
  %v190 = vunpack.c.h.bf16 %v71
  %v191 = vunpack.c.l.bf16 %v72
  %v192 = vunpack.c.h.bf16 %v72
  %v193 = vunpack.c.l.bf16 %v73
  %v194 = vunpack.c.h.bf16 %v73
  %v195 = vunpack.c.l.bf16 %v74
  %v196 = vunpack.c.h.bf16 %v74
  %v197 = vunpack.c.l.bf16 %v75
  %v198 = vunpack.c.h.bf16 %v75
  %v199 = vunpack.c.l.bf16 %v76
  %v200 = vunpack.c.h.bf16 %v76
  %v201 = vunpack.c.l.bf16 %v77
  %v202 = vunpack.c.h.bf16 %v77
  %v203 = vunpack.c.l.bf16 %v78
  %v204 = vunpack.c.h.bf16 %v78
  %v205 = vunpack.c.l.bf16 %v79
  %v206 = vunpack.c.h.bf16 %v79
  %v207 = vunpack.c.l.bf16 %v80
  %v208 = vunpack.c.h.bf16 %v80
  %v209 = vld [vmem:[%s1] sm:$0xff]
  %v210 = vld [vmem:[%s1 + $0x8] sm:$0xff]
  %v211 = vld [vmem:[%s1 + $0x10] sm:$0xff]
  %v212 = vld [vmem:[%s1 + $0x18] sm:$0xff]
  %v213 = vld [vmem:[%s1 + $0x20] sm:$0xff]
  %v214 = vld [vmem:[%s1 + $0x28] sm:$0xff]
  %v215 = vld [vmem:[%s1 + $0x30] sm:$0xff]
  %v216 = vld [vmem:[%s1 + $0x38] sm:$0xff]
  %v217 = vld [vmem:[%s1 + $0x40] sm:$0xff]
  %v218 = vld [vmem:[%s1 + $0x48] sm:$0xff]
  %v219 = vld [vmem:[%s1 + $0x50] sm:$0xff]
  %v220 = vld [vmem:[%s1 + $0x58] sm:$0xff]
  %v221 = vld [vmem:[%s1 + $0x60] sm:$0xff]
  %v222 = vld [vmem:[%s1 + $0x68] sm:$0xff]
  %v223 = vld [vmem:[%s1 + $0x70] sm:$0xff]
  %v224 = vld [vmem:[%s1 + $0x78] sm:$0xff]
  %v225 = vld [vmem:[%s1 + $0x80] sm:$0xff]
  %v226 = vld [vmem:[%s1 + $0x88] sm:$0xff]
  %v227 = vld [vmem:[%s1 + $0x90] sm:$0xff]
  %v228 = vld [vmem:[%s1 + $0x98] sm:$0xff]
  %v229 = vld [vmem:[%s1 + $0xa0] sm:$0xff]
  %v230 = vld [vmem:[%s1 + $0xa8] sm:$0xff]
  %v231 = vld [vmem:[%s1 + $0xb0] sm:$0xff]
  %v232 = vld [vmem:[%s1 + $0xb8] sm:$0xff]
  %v233 = vld [vmem:[%s1 + $0xc0] sm:$0xff]
  %v234 = vld [vmem:[%s1 + $0xc8] sm:$0xff]
  %v235 = vld [vmem:[%s1 + $0xd0] sm:$0xff]
  %v236 = vld [vmem:[%s1 + $0xd8] sm:$0xff]
  %v237 = vld [vmem:[%s1 + $0xe0] sm:$0xff]
  %v238 = vld [vmem:[%s1 + $0xe8] sm:$0xff]
  %v239 = vld [vmem:[%s1 + $0xf0] sm:$0xff]
  %v240 = vld [vmem:[%s1 + $0xf8] sm:$0xff]
  %v241 = vld [vmem:[%s1 + $0x100] sm:$0xff]
  %v242 = vld [vmem:[%s1 + $0x108] sm:$0xff]
  %v243 = vld [vmem:[%s1 + $0x110] sm:$0xff]
  %v244 = vld [vmem:[%s1 + $0x118] sm:$0xff]
  %v245 = vld [vmem:[%s1 + $0x120] sm:$0xff]
  %v246 = vld [vmem:[%s1 + $0x128] sm:$0xff]
  %v247 = vld [vmem:[%s1 + $0x130] sm:$0xff]
  %v248 = vld [vmem:[%s1 + $0x138] sm:$0xff]
  %v249 = vld [vmem:[%s1 + $0x140] sm:$0xff]
  %v250 = vld [vmem:[%s1 + $0x148] sm:$0xff]
  %v251 = vld [vmem:[%s1 + $0x150] sm:$0xff]
  %v252 = vld [vmem:[%s1 + $0x158] sm:$0xff]
  %v253 = vld [vmem:[%s1 + $0x160] sm:$0xff]
  %v254 = vld [vmem:[%s1 + $0x168] sm:$0xff]
  %v255 = vld [vmem:[%s1 + $0x170] sm:$0xff]
  %v256 = vld [vmem:[%s1 + $0x178] sm:$0xff]
  %v257 = vld [vmem:[%s1 + $0x180] sm:$0xff]
  %v258 = vld [vmem:[%s1 + $0x188] sm:$0xff]
  %v259 = vld [vmem:[%s1 + $0x190] sm:$0xff]
  %v260 = vld [vmem:[%s1 + $0x198] sm:$0xff]
  %v261 = vld [vmem:[%s1 + $0x1a0] sm:$0xff]
  %v262 = vld [vmem:[%s1 + $0x1a8] sm:$0xff]
  %v263 = vld [vmem:[%s1 + $0x1b0] sm:$0xff]
  %v264 = vld [vmem:[%s1 + $0x1b8] sm:$0xff]
  %v265 = vld [vmem:[%s1 + $0x1c0] sm:$0xff]
  %v266 = vld [vmem:[%s1 + $0x1c8] sm:$0xff]
  %v267 = vld [vmem:[%s1 + $0x1d0] sm:$0xff]
  %v268 = vld [vmem:[%s1 + $0x1d8] sm:$0xff]
  %v269 = vld [vmem:[%s1 + $0x1e0] sm:$0xff]
  %v270 = vld [vmem:[%s1 + $0x1e8] sm:$0xff]
  %v271 = vld [vmem:[%s1 + $0x1f0] sm:$0xff]
  %v272 = vld [vmem:[%s1 + $0x1f8] sm:$0xff]
  %v273 = vunpack.c.l.bf16 %v209
  %v274 = vunpack.c.h.bf16 %v209
  %v275 = vunpack.c.l.bf16 %v210
  %v276 = vunpack.c.h.bf16 %v210
  %v277 = vunpack.c.l.bf16 %v211
  %v278 = vunpack.c.h.bf16 %v211
  %v279 = vunpack.c.l.bf16 %v212
  %v280 = vunpack.c.h.bf16 %v212
  %v281 = vunpack.c.l.bf16 %v213
  %v282 = vunpack.c.h.bf16 %v213
  %v283 = vunpack.c.l.bf16 %v214
  %v284 = vunpack.c.h.bf16 %v214
  %v285 = vunpack.c.l.bf16 %v215
  %v286 = vunpack.c.h.bf16 %v215
  %v287 = vunpack.c.l.bf16 %v216
  %v288 = vunpack.c.h.bf16 %v216
  %v289 = vunpack.c.l.bf16 %v217
  %v290 = vunpack.c.h.bf16 %v217
  %v291 = vunpack.c.l.bf16 %v218
  %v292 = vunpack.c.h.bf16 %v218
  %v293 = vunpack.c.l.bf16 %v219
  %v294 = vunpack.c.h.bf16 %v219
  %v295 = vunpack.c.l.bf16 %v220
  %v296 = vunpack.c.h.bf16 %v220
  %v297 = vunpack.c.l.bf16 %v221
  %v298 = vunpack.c.h.bf16 %v221
  %v299 = vunpack.c.l.bf16 %v222
  %v300 = vunpack.c.h.bf16 %v222
  %v301 = vunpack.c.l.bf16 %v223
  %v302 = vunpack.c.h.bf16 %v223
  %v303 = vunpack.c.l.bf16 %v224
  %v304 = vunpack.c.h.bf16 %v224
  %v305 = vunpack.c.l.bf16 %v225
  %v306 = vunpack.c.h.bf16 %v225
  %v307 = vunpack.c.l.bf16 %v226
  %v308 = vunpack.c.h.bf16 %v226
  %v309 = vunpack.c.l.bf16 %v227
  %v310 = vunpack.c.h.bf16 %v227
  %v311 = vunpack.c.l.bf16 %v228
  %v312 = vunpack.c.h.bf16 %v228
  %v313 = vunpack.c.l.bf16 %v229
  %v314 = vunpack.c.h.bf16 %v229
  %v315 = vunpack.c.l.bf16 %v230
  %v316 = vunpack.c.h.bf16 %v230
  %v317 = vunpack.c.l.bf16 %v231
  %v318 = vunpack.c.h.bf16 %v231
  %v319 = vunpack.c.l.bf16 %v232
  %v320 = vunpack.c.h.bf16 %v232
  %v321 = vunpack.c.l.bf16 %v233
  %v322 = vunpack.c.h.bf16 %v233
  %v323 = vunpack.c.l.bf16 %v234
  %v324 = vunpack.c.h.bf16 %v234
  %v325 = vunpack.c.l.bf16 %v235
  %v326 = vunpack.c.h.bf16 %v235
  %v327 = vunpack.c.l.bf16 %v236
  %v328 = vunpack.c.h.bf16 %v236
  %v329 = vunpack.c.l.bf16 %v237
  %v330 = vunpack.c.h.bf16 %v237
  %v331 = vunpack.c.l.bf16 %v238
  %v332 = vunpack.c.h.bf16 %v238
  %v333 = vunpack.c.l.bf16 %v239
  %v334 = vunpack.c.h.bf16 %v239
  %v335 = vunpack.c.l.bf16 %v240
  %v336 = vunpack.c.h.bf16 %v240
  %v337 = vunpack.c.l.bf16 %v241
  %v338 = vunpack.c.h.bf16 %v241
  %v339 = vunpack.c.l.bf16 %v242
  %v340 = vunpack.c.h.bf16 %v242
  %v341 = vunpack.c.l.bf16 %v243
  %v342 = vunpack.c.h.bf16 %v243
  %v343 = vunpack.c.l.bf16 %v244
  %v344 = vunpack.c.h.bf16 %v244
  %v345 = vunpack.c.l.bf16 %v245
  %v346 = vunpack.c.h.bf16 %v245
  %v347 = vunpack.c.l.bf16 %v246
  %v348 = vunpack.c.h.bf16 %v246
  %v349 = vunpack.c.l.bf16 %v247
  %v350 = vunpack.c.h.bf16 %v247
  %v351 = vunpack.c.l.bf16 %v248
  %v352 = vunpack.c.h.bf16 %v248
  %v353 = vunpack.c.l.bf16 %v249
  %v354 = vunpack.c.h.bf16 %v249
  %v355 = vunpack.c.l.bf16 %v250
  %v356 = vunpack.c.h.bf16 %v250
  %v357 = vunpack.c.l.bf16 %v251
  %v358 = vunpack.c.h.bf16 %v251
  %v359 = vunpack.c.l.bf16 %v252
  %v360 = vunpack.c.h.bf16 %v252
  %v361 = vunpack.c.l.bf16 %v253
  %v362 = vunpack.c.h.bf16 %v253
  %v363 = vunpack.c.l.bf16 %v254
  %v364 = vunpack.c.h.bf16 %v254
  %v365 = vunpack.c.l.bf16 %v255
  %v366 = vunpack.c.h.bf16 %v255
  %v367 = vunpack.c.l.bf16 %v256
  %v368 = vunpack.c.h.bf16 %v256
  %v369 = vunpack.c.l.bf16 %v257
  %v370 = vunpack.c.h.bf16 %v257
  %v371 = vunpack.c.l.bf16 %v258
  %v372 = vunpack.c.h.bf16 %v258
  %v373 = vunpack.c.l.bf16 %v259
  %v374 = vunpack.c.h.bf16 %v259
  %v375 = vunpack.c.l.bf16 %v260
  %v376 = vunpack.c.h.bf16 %v260
  %v377 = vunpack.c.l.bf16 %v261
  %v378 = vunpack.c.h.bf16 %v261
  %v379 = vunpack.c.l.bf16 %v262
  %v380 = vunpack.c.h.bf16 %v262
  %v381 = vunpack.c.l.bf16 %v263
  %v382 = vunpack.c.h.bf16 %v263
  %v383 = vunpack.c.l.bf16 %v264
  %v384 = vunpack.c.h.bf16 %v264
  %v385 = vunpack.c.l.bf16 %v265
  %v386 = vunpack.c.h.bf16 %v265
  %v387 = vunpack.c.l.bf16 %v266
  %v388 = vunpack.c.h.bf16 %v266
  %v389 = vunpack.c.l.bf16 %v267
  %v390 = vunpack.c.h.bf16 %v267
  %v391 = vunpack.c.l.bf16 %v268
  %v392 = vunpack.c.h.bf16 %v268
  %v393 = vunpack.c.l.bf16 %v269
  %v394 = vunpack.c.h.bf16 %v269
  %v395 = vunpack.c.l.bf16 %v270
  %v396 = vunpack.c.h.bf16 %v270
  %v397 = vunpack.c.l.bf16 %v271
  %v398 = vunpack.c.h.bf16 %v271
  %v399 = vunpack.c.l.bf16 %v272
  %v400 = vunpack.c.h.bf16 %v272
  %v401 = vmul.f32 %v81, %v273
  %v402 = vmul.f32 %v82, %v274
  %v403 = vmul.f32 %v83, %v275
  %v404 = vmul.f32 %v84, %v276
  %v405 = vmul.f32 %v85, %v277
  %v406 = vmul.f32 %v86, %v278
  %v407 = vmul.f32 %v87, %v279
  %v408 = vmul.f32 %v88, %v280
  %v409 = vmul.f32 %v89, %v281
  %v410 = vmul.f32 %v90, %v282
  %v411 = vmul.f32 %v91, %v283
  %v412 = vmul.f32 %v92, %v284
  %v413 = vmul.f32 %v93, %v285
  %v414 = vmul.f32 %v94, %v286
  %v415 = vmul.f32 %v95, %v287
  %v416 = vmul.f32 %v96, %v288
  %v417 = vmul.f32 %v97, %v289
  %v418 = vmul.f32 %v98, %v290
  %v419 = vmul.f32 %v99, %v291
  %v420 = vmul.f32 %v100, %v292
  %v421 = vmul.f32 %v101, %v293
  %v422 = vmul.f32 %v102, %v294
  %v423 = vmul.f32 %v103, %v295
  %v424 = vmul.f32 %v104, %v296
  %v425 = vmul.f32 %v105, %v297
  %v426 = vmul.f32 %v106, %v298
  %v427 = vmul.f32 %v107, %v299
  %v428 = vmul.f32 %v108, %v300
  %v429 = vmul.f32 %v109, %v301
  %v430 = vmul.f32 %v110, %v302
  %v431 = vmul.f32 %v111, %v303
  %v432 = vmul.f32 %v112, %v304
  %v433 = vmul.f32 %v113, %v305
  %v434 = vmul.f32 %v114, %v306
  %v435 = vmul.f32 %v115, %v307
  %v436 = vmul.f32 %v116, %v308
  %v437 = vmul.f32 %v117, %v309
  %v438 = vmul.f32 %v118, %v310
  %v439 = vmul.f32 %v119, %v311
  %v440 = vmul.f32 %v120, %v312
  %v441 = vmul.f32 %v121, %v313
  %v442 = vmul.f32 %v122, %v314
  %v443 = vmul.f32 %v123, %v315
  %v444 = vmul.f32 %v124, %v316
  %v445 = vmul.f32 %v125, %v317
  %v446 = vmul.f32 %v126, %v318
  %v447 = vmul.f32 %v127, %v319
  %v448 = vmul.f32 %v128, %v320
  %v449 = vmul.f32 %v129, %v321
  %v450 = vmul.f32 %v130, %v322
  %v451 = vmul.f32 %v131, %v323
  %v452 = vmul.f32 %v132, %v324
  %v453 = vmul.f32 %v133, %v325
  %v454 = vmul.f32 %v134, %v326
  %v455 = vmul.f32 %v135, %v327
  %v456 = vmul.f32 %v136, %v328
  %v457 = vmul.f32 %v137, %v329
  %v458 = vmul.f32 %v138, %v330
  %v459 = vmul.f32 %v139, %v331
  %v460 = vmul.f32 %v140, %v332
  %v461 = vmul.f32 %v141, %v333
  %v462 = vmul.f32 %v142, %v334
  %v463 = vmul.f32 %v143, %v335
  %v464 = vmul.f32 %v144, %v336
  %v465 = vmul.f32 %v145, %v337
  %v466 = vmul.f32 %v146, %v338
  %v467 = vmul.f32 %v147, %v339
  %v468 = vmul.f32 %v148, %v340
  %v469 = vmul.f32 %v149, %v341
  %v470 = vmul.f32 %v150, %v342
  %v471 = vmul.f32 %v151, %v343
  %v472 = vmul.f32 %v152, %v344
  %v473 = vmul.f32 %v153, %v345
  %v474 = vmul.f32 %v154, %v346
  %v475 = vmul.f32 %v155, %v347
  %v476 = vmul.f32 %v156, %v348
  %v477 = vmul.f32 %v157, %v349
  %v478 = vmul.f32 %v158, %v350
  %v479 = vmul.f32 %v159, %v351
  %v480 = vmul.f32 %v160, %v352
  %v481 = vmul.f32 %v161, %v353
  %v482 = vmul.f32 %v162, %v354
  %v483 = vmul.f32 %v163, %v355
  %v484 = vmul.f32 %v164, %v356
  %v485 = vmul.f32 %v165, %v357
  %v486 = vmul.f32 %v166, %v358
  %v487 = vmul.f32 %v167, %v359
  %v488 = vmul.f32 %v168, %v360
  %v489 = vmul.f32 %v169, %v361
  %v490 = vmul.f32 %v170, %v362
  %v491 = vmul.f32 %v171, %v363
  %v492 = vmul.f32 %v172, %v364
  %v493 = vmul.f32 %v173, %v365
  %v494 = vmul.f32 %v174, %v366
  %v495 = vmul.f32 %v175, %v367
  %v496 = vmul.f32 %v176, %v368
  %v497 = vmul.f32 %v177, %v369
  %v498 = vmul.f32 %v178, %v370
  %v499 = vmul.f32 %v179, %v371
  %v500 = vmul.f32 %v180, %v372
  %v501 = vmul.f32 %v181, %v373
  %v502 = vmul.f32 %v182, %v374
  %v503 = vmul.f32 %v183, %v375
  %v504 = vmul.f32 %v184, %v376
  %v505 = vmul.f32 %v185, %v377
  %v506 = vmul.f32 %v186, %v378
  %v507 = vmul.f32 %v187, %v379
  %v508 = vmul.f32 %v188, %v380
  %v509 = vmul.f32 %v189, %v381
  %v510 = vmul.f32 %v190, %v382
  %v511 = vmul.f32 %v191, %v383
  %v512 = vmul.f32 %v192, %v384
  %v513 = vmul.f32 %v193, %v385
  %v514 = vmul.f32 %v194, %v386
  %v515 = vmul.f32 %v195, %v387
  %v516 = vmul.f32 %v196, %v388
  %v517 = vmul.f32 %v197, %v389
  %v518 = vmul.f32 %v198, %v390
  %v519 = vmul.f32 %v199, %v391
  %v520 = vmul.f32 %v200, %v392
  %v521 = vmul.f32 %v201, %v393
  %v522 = vmul.f32 %v202, %v394
  %v523 = vmul.f32 %v203, %v395
  %v524 = vmul.f32 %v204, %v396
  %v525 = vmul.f32 %v205, %v397
  %v526 = vmul.f32 %v206, %v398
  %v527 = vmul.f32 %v207, %v399
  %v528 = vmul.f32 %v208, %v400
  %v529 = vld [vmem:[%s2] sm:$0xff]
  %v530 = vld [vmem:[%s2 + $0x8] sm:$0xff]
  %v531 = vld [vmem:[%s2 + $0x10] sm:$0xff]
  %v532 = vld [vmem:[%s2 + $0x18] sm:$0xff]
  %v533 = vld [vmem:[%s2 + $0x20] sm:$0xff]
  %v534 = vld [vmem:[%s2 + $0x28] sm:$0xff]
  %v535 = vld [vmem:[%s2 + $0x30] sm:$0xff]
  %v536 = vld [vmem:[%s2 + $0x38] sm:$0xff]
  %v537 = vld [vmem:[%s2 + $0x40] sm:$0xff]
  %v538 = vld [vmem:[%s2 + $0x48] sm:$0xff]
  %v539 = vld [vmem:[%s2 + $0x50] sm:$0xff]
  %v540 = vld [vmem:[%s2 + $0x58] sm:$0xff]
  %v541 = vld [vmem:[%s2 + $0x60] sm:$0xff]
  %v542 = vld [vmem:[%s2 + $0x68] sm:$0xff]
  %v543 = vld [vmem:[%s2 + $0x70] sm:$0xff]
  %v544 = vld [vmem:[%s2 + $0x78] sm:$0xff]
  %v545 = vld [vmem:[%s2 + $0x80] sm:$0xff]
  %v546 = vld [vmem:[%s2 + $0x88] sm:$0xff]
  %v547 = vld [vmem:[%s2 + $0x90] sm:$0xff]
  %v548 = vld [vmem:[%s2 + $0x98] sm:$0xff]
  %v549 = vld [vmem:[%s2 + $0xa0] sm:$0xff]
  %v550 = vld [vmem:[%s2 + $0xa8] sm:$0xff]
  %v551 = vld [vmem:[%s2 + $0xb0] sm:$0xff]
  %v552 = vld [vmem:[%s2 + $0xb8] sm:$0xff]
  %v553 = vld [vmem:[%s2 + $0xc0] sm:$0xff]
  %v554 = vld [vmem:[%s2 + $0xc8] sm:$0xff]
  %v555 = vld [vmem:[%s2 + $0xd0] sm:$0xff]
  %v556 = vld [vmem:[%s2 + $0xd8] sm:$0xff]
  %v557 = vld [vmem:[%s2 + $0xe0] sm:$0xff]
  %v558 = vld [vmem:[%s2 + $0xe8] sm:$0xff]
  %v559 = vld [vmem:[%s2 + $0xf0] sm:$0xff]
  %v560 = vld [vmem:[%s2 + $0xf8] sm:$0xff]
  %v561 = vld [vmem:[%s3] sm:$0x1]
  %v563 = vperm.slane %v561, 0
  %565 = vmatpush.msra.mxu0 %v544
  %566 = vmatpush.msra.mxu0 %v543
  %567 = vmatpush.msra.mxu0 %v542
  %568 = vmatpush.msra.mxu0 %v541
  %569 = vmatpush.msra.mxu0 %v540
  %570 = vmatpush.msra.mxu0 %v539
  %571 = vmatpush.msra.mxu0 %v538
  %572 = vmatpush.msra.mxu0 %v537
  %573 = vmatpush.msra.mxu0 %v536
  %574 = vmatpush.msra.mxu0 %v535
  %575 = vmatpush.msra.mxu0 %v534
  %576 = vmatpush.msra.mxu0 %v533
  %577 = vmatpush.msra.mxu0 %v532
  %578 = vmatpush.msra.mxu0 %v531
  %579 = vmatpush.msra.mxu0 %v530
  %580 = vmatpush.msra.mxu0 %v529
  %581 = vmatmul.f32.gmra.mxu0 %v401
  %v582 = vpop.f32.mrf.mxu0
  %v583 = vadd.f32 %v563, %v582
  %584 = vmatmul.f32.gmra.mxu0 %v403
  %v585 = vpop.f32.mrf.mxu0
  %v586 = vadd.f32 %v563, %v585
  %587 = vmatmul.f32.gmra.mxu0 %v405
  %v588 = vpop.f32.mrf.mxu0
  %v589 = vadd.f32 %v563, %v588
  %590 = vmatmul.f32.gmra.mxu0 %v407
  %v591 = vpop.f32.mrf.mxu0
  %v592 = vadd.f32 %v563, %v591
  %593 = vmatmul.f32.gmra.mxu0 %v409
  %v594 = vpop.f32.mrf.mxu0
  %v595 = vadd.f32 %v563, %v594
  %596 = vmatmul.f32.gmra.mxu0 %v411
  %v597 = vpop.f32.mrf.mxu0
  %v598 = vadd.f32 %v563, %v597
  %599 = vmatmul.f32.gmra.mxu0 %v413
  %v600 = vpop.f32.mrf.mxu0
  %v601 = vadd.f32 %v563, %v600
  %602 = vmatmul.f32.gmra.mxu0 %v415
  %v603 = vpop.f32.mrf.mxu0
  %v604 = vadd.f32 %v563, %v603
  %605 = vmatmul.f32.gmra.mxu0 %v417
  %v606 = vpop.f32.mrf.mxu0
  %v607 = vadd.f32 %v563, %v606
  %608 = vmatmul.f32.gmra.mxu0 %v419
  %v609 = vpop.f32.mrf.mxu0
  %v610 = vadd.f32 %v563, %v609
  %611 = vmatmul.f32.gmra.mxu0 %v421
  %v612 = vpop.f32.mrf.mxu0
  %v613 = vadd.f32 %v563, %v612
  %614 = vmatmul.f32.gmra.mxu0 %v423
  %v615 = vpop.f32.mrf.mxu0
  %v616 = vadd.f32 %v563, %v615
  %617 = vmatmul.f32.gmra.mxu0 %v425
  %v618 = vpop.f32.mrf.mxu0
  %v619 = vadd.f32 %v563, %v618
  %620 = vmatmul.f32.gmra.mxu0 %v427
  %v621 = vpop.f32.mrf.mxu0
  %v622 = vadd.f32 %v563, %v621
  %623 = vmatmul.f32.gmra.mxu0 %v429
  %v624 = vpop.f32.mrf.mxu0
  %v625 = vadd.f32 %v563, %v624
  %626 = vmatmul.f32.gmra.mxu0 %v431
  %v627 = vpop.f32.mrf.mxu0
  %v628 = vadd.f32 %v563, %v627
  %629 = vmatmul.f32.gmra.mxu0 %v433
  %v630 = vpop.f32.mrf.mxu0
  %v631 = vadd.f32 %v563, %v630
  %632 = vmatmul.f32.gmra.mxu0 %v435
  %v633 = vpop.f32.mrf.mxu0
  %v634 = vadd.f32 %v563, %v633
  %635 = vmatmul.f32.gmra.mxu0 %v437
  %v636 = vpop.f32.mrf.mxu0
  %v637 = vadd.f32 %v563, %v636
  %638 = vmatmul.f32.gmra.mxu0 %v439
  %v639 = vpop.f32.mrf.mxu0
  %v640 = vadd.f32 %v563, %v639
  %641 = vmatmul.f32.gmra.mxu0 %v441
  %v642 = vpop.f32.mrf.mxu0
  %v643 = vadd.f32 %v563, %v642
  %644 = vmatmul.f32.gmra.mxu0 %v443
  %v645 = vpop.f32.mrf.mxu0
  %v646 = vadd.f32 %v563, %v645
  %647 = vmatmul.f32.gmra.mxu0 %v445
  %v648 = vpop.f32.mrf.mxu0
  %v649 = vadd.f32 %v563, %v648
  %650 = vmatmul.f32.gmra.mxu0 %v447
  %v651 = vpop.f32.mrf.mxu0
  %v652 = vadd.f32 %v563, %v651
  %653 = vmatmul.f32.gmra.mxu0 %v449
  %v654 = vpop.f32.mrf.mxu0
  %v655 = vadd.f32 %v563, %v654
  %656 = vmatmul.f32.gmra.mxu0 %v451
  %v657 = vpop.f32.mrf.mxu0
  %v658 = vadd.f32 %v563, %v657
  %659 = vmatmul.f32.gmra.mxu0 %v453
  %v660 = vpop.f32.mrf.mxu0
  %v661 = vadd.f32 %v563, %v660
  %662 = vmatmul.f32.gmra.mxu0 %v455
  %v663 = vpop.f32.mrf.mxu0
  %v664 = vadd.f32 %v563, %v663
  %665 = vmatmul.f32.gmra.mxu0 %v457
  %v666 = vpop.f32.mrf.mxu0
  %v667 = vadd.f32 %v563, %v666
  %668 = vmatmul.f32.gmra.mxu0 %v459
  %v669 = vpop.f32.mrf.mxu0
  %v670 = vadd.f32 %v563, %v669
  %671 = vmatmul.f32.gmra.mxu0 %v461
  %v672 = vpop.f32.mrf.mxu0
  %v673 = vadd.f32 %v563, %v672
  %674 = vmatmul.f32.gmra.mxu0 %v463
  %v675 = vpop.f32.mrf.mxu0
  %v676 = vadd.f32 %v563, %v675
  %677 = vmatmul.f32.gmra.mxu0 %v465
  %v678 = vpop.f32.mrf.mxu0
  %v679 = vadd.f32 %v563, %v678
  %680 = vmatmul.f32.gmra.mxu0 %v467
  %v681 = vpop.f32.mrf.mxu0
  %v682 = vadd.f32 %v563, %v681
  %683 = vmatmul.f32.gmra.mxu0 %v469
  %v684 = vpop.f32.mrf.mxu0
  %v685 = vadd.f32 %v563, %v684
  %686 = vmatmul.f32.gmra.mxu0 %v471
  %v687 = vpop.f32.mrf.mxu0
  %v688 = vadd.f32 %v563, %v687
  %689 = vmatmul.f32.gmra.mxu0 %v473
  %v690 = vpop.f32.mrf.mxu0
  %v691 = vadd.f32 %v563, %v690
  %692 = vmatmul.f32.gmra.mxu0 %v475
  %v693 = vpop.f32.mrf.mxu0
  %v694 = vadd.f32 %v563, %v693
  %695 = vmatmul.f32.gmra.mxu0 %v477
  %v696 = vpop.f32.mrf.mxu0
  %v697 = vadd.f32 %v563, %v696
  %698 = vmatmul.f32.gmra.mxu0 %v479
  %v699 = vpop.f32.mrf.mxu0
  %v700 = vadd.f32 %v563, %v699
  %701 = vmatmul.f32.gmra.mxu0 %v481
  %v702 = vpop.f32.mrf.mxu0
  %v703 = vadd.f32 %v563, %v702
  %704 = vmatmul.f32.gmra.mxu0 %v483
  %v705 = vpop.f32.mrf.mxu0
  %v706 = vadd.f32 %v563, %v705
  %707 = vmatmul.f32.gmra.mxu0 %v485
  %v708 = vpop.f32.mrf.mxu0
  %v709 = vadd.f32 %v563, %v708
  %710 = vmatmul.f32.gmra.mxu0 %v487
  %v711 = vpop.f32.mrf.mxu0
  %v712 = vadd.f32 %v563, %v711
  %713 = vmatmul.f32.gmra.mxu0 %v489
  %v714 = vpop.f32.mrf.mxu0
  %v715 = vadd.f32 %v563, %v714
  %716 = vmatmul.f32.gmra.mxu0 %v491
  %v717 = vpop.f32.mrf.mxu0
  %v718 = vadd.f32 %v563, %v717
  %719 = vmatmul.f32.gmra.mxu0 %v493
  %v720 = vpop.f32.mrf.mxu0
  %v721 = vadd.f32 %v563, %v720
  %722 = vmatmul.f32.gmra.mxu0 %v495
  %v723 = vpop.f32.mrf.mxu0
  %v724 = vadd.f32 %v563, %v723
  %725 = vmatmul.f32.gmra.mxu0 %v497
  %v726 = vpop.f32.mrf.mxu0
  %v727 = vadd.f32 %v563, %v726
  %728 = vmatmul.f32.gmra.mxu0 %v499
  %v729 = vpop.f32.mrf.mxu0
  %v730 = vadd.f32 %v563, %v729
  %731 = vmatmul.f32.gmra.mxu0 %v501
  %v732 = vpop.f32.mrf.mxu0
  %v733 = vadd.f32 %v563, %v732
  %734 = vmatmul.f32.gmra.mxu0 %v503
  %v735 = vpop.f32.mrf.mxu0
  %v736 = vadd.f32 %v563, %v735
  %737 = vmatmul.f32.gmra.mxu0 %v505
  %v738 = vpop.f32.mrf.mxu0
  %v739 = vadd.f32 %v563, %v738
  %740 = vmatmul.f32.gmra.mxu0 %v507
  %v741 = vpop.f32.mrf.mxu0
  %v742 = vadd.f32 %v563, %v741
  %743 = vmatmul.f32.gmra.mxu0 %v509
  %v744 = vpop.f32.mrf.mxu0
  %v745 = vadd.f32 %v563, %v744
  %746 = vmatmul.f32.gmra.mxu0 %v511
  %v747 = vpop.f32.mrf.mxu0
  %v748 = vadd.f32 %v563, %v747
  %749 = vmatmul.f32.gmra.mxu0 %v513
  %v750 = vpop.f32.mrf.mxu0
  %v751 = vadd.f32 %v563, %v750
  %752 = vmatmul.f32.gmra.mxu0 %v515
  %v753 = vpop.f32.mrf.mxu0
  %v754 = vadd.f32 %v563, %v753
  %755 = vmatmul.f32.gmra.mxu0 %v517
  %v756 = vpop.f32.mrf.mxu0
  %v757 = vadd.f32 %v563, %v756
  %758 = vmatmul.f32.gmra.mxu0 %v519
  %v759 = vpop.f32.mrf.mxu0
  %v760 = vadd.f32 %v563, %v759
  %761 = vmatmul.f32.gmra.mxu0 %v521
  %v762 = vpop.f32.mrf.mxu0
  %v763 = vadd.f32 %v563, %v762
  %764 = vmatmul.f32.gmra.mxu0 %v523
  %v765 = vpop.f32.mrf.mxu0
  %v766 = vadd.f32 %v563, %v765
  %767 = vmatmul.f32.gmra.mxu0 %v525
  %v768 = vpop.f32.mrf.mxu0
  %v769 = vadd.f32 %v563, %v768
  %770 = vmatmul.f32.gmra.mxu0 %v527
  %v771 = vpop.f32.mrf.mxu0
  %v772 = vadd.f32 %v563, %v771
  %773 = vdwg.mxu0
  %774 = vmatpush.msra.mxu0 %v560
  %775 = vmatpush.msra.mxu0 %v559
  %776 = vmatpush.msra.mxu0 %v558
  %777 = vmatpush.msra.mxu0 %v557
  %778 = vmatpush.msra.mxu0 %v556
  %779 = vmatpush.msra.mxu0 %v555
  %780 = vmatpush.msra.mxu0 %v554
  %781 = vmatpush.msra.mxu0 %v553
  %782 = vmatpush.msra.mxu0 %v552
  %783 = vmatpush.msra.mxu0 %v551
  %784 = vmatpush.msra.mxu0 %v550
  %785 = vmatpush.msra.mxu0 %v549
  %786 = vmatpush.msra.mxu0 %v548
  %787 = vmatpush.msra.mxu0 %v547
  %788 = vmatpush.msra.mxu0 %v546
  %789 = vmatpush.msra.mxu0 %v545
  %790 = vmatmul.f32.gmra.mxu0 %v402
  %v791 = vpop.f32.mrf.mxu0
  %v792 = vadd.f32 %v583, %v791
  %793 = vmatmul.f32.gmra.mxu0 %v404
  %v794 = vpop.f32.mrf.mxu0
  %v795 = vadd.f32 %v586, %v794
  %796 = vmatmul.f32.gmra.mxu0 %v406
  %v797 = vpop.f32.mrf.mxu0
  %v798 = vadd.f32 %v589, %v797
  %799 = vmatmul.f32.gmra.mxu0 %v408
  %v800 = vpop.f32.mrf.mxu0
  %v801 = vadd.f32 %v592, %v800
  %802 = vmatmul.f32.gmra.mxu0 %v410
  %v803 = vpop.f32.mrf.mxu0
  %v804 = vadd.f32 %v595, %v803
  %805 = vmatmul.f32.gmra.mxu0 %v412
  %v806 = vpop.f32.mrf.mxu0
  %v807 = vadd.f32 %v598, %v806
  %808 = vmatmul.f32.gmra.mxu0 %v414
  %v809 = vpop.f32.mrf.mxu0
  %v810 = vadd.f32 %v601, %v809
  %811 = vmatmul.f32.gmra.mxu0 %v416
  %v812 = vpop.f32.mrf.mxu0
  %v813 = vadd.f32 %v604, %v812
  %814 = vmatmul.f32.gmra.mxu0 %v418
  %v815 = vpop.f32.mrf.mxu0
  %v816 = vadd.f32 %v607, %v815
  %817 = vmatmul.f32.gmra.mxu0 %v420
  %v818 = vpop.f32.mrf.mxu0
  %v819 = vadd.f32 %v610, %v818
  %820 = vmatmul.f32.gmra.mxu0 %v422
  %v821 = vpop.f32.mrf.mxu0
  %v822 = vadd.f32 %v613, %v821
  %823 = vmatmul.f32.gmra.mxu0 %v424
  %v824 = vpop.f32.mrf.mxu0
  %v825 = vadd.f32 %v616, %v824
  %826 = vmatmul.f32.gmra.mxu0 %v426
  %v827 = vpop.f32.mrf.mxu0
  %v828 = vadd.f32 %v619, %v827
  %829 = vmatmul.f32.gmra.mxu0 %v428
  %v830 = vpop.f32.mrf.mxu0
  %v831 = vadd.f32 %v622, %v830
  %832 = vmatmul.f32.gmra.mxu0 %v430
  %v833 = vpop.f32.mrf.mxu0
  %v834 = vadd.f32 %v625, %v833
  %835 = vmatmul.f32.gmra.mxu0 %v432
  %v836 = vpop.f32.mrf.mxu0
  %v837 = vadd.f32 %v628, %v836
  %838 = vmatmul.f32.gmra.mxu0 %v434
  %v839 = vpop.f32.mrf.mxu0
  %v840 = vadd.f32 %v631, %v839
  %841 = vmatmul.f32.gmra.mxu0 %v436
  %v842 = vpop.f32.mrf.mxu0
  %v843 = vadd.f32 %v634, %v842
  %844 = vmatmul.f32.gmra.mxu0 %v438
  %v845 = vpop.f32.mrf.mxu0
  %v846 = vadd.f32 %v637, %v845
  %847 = vmatmul.f32.gmra.mxu0 %v440
  %v848 = vpop.f32.mrf.mxu0
  %v849 = vadd.f32 %v640, %v848
  %850 = vmatmul.f32.gmra.mxu0 %v442
  %v851 = vpop.f32.mrf.mxu0
  %v852 = vadd.f32 %v643, %v851
  %853 = vmatmul.f32.gmra.mxu0 %v444
  %v854 = vpop.f32.mrf.mxu0
  %v855 = vadd.f32 %v646, %v854
  %856 = vmatmul.f32.gmra.mxu0 %v446
  %v857 = vpop.f32.mrf.mxu0
  %v858 = vadd.f32 %v649, %v857
  %859 = vmatmul.f32.gmra.mxu0 %v448
  %v860 = vpop.f32.mrf.mxu0
  %v861 = vadd.f32 %v652, %v860
  %862 = vmatmul.f32.gmra.mxu0 %v450
  %v863 = vpop.f32.mrf.mxu0
  %v864 = vadd.f32 %v655, %v863
  %865 = vmatmul.f32.gmra.mxu0 %v452
  %v866 = vpop.f32.mrf.mxu0
  %v867 = vadd.f32 %v658, %v866
  %868 = vmatmul.f32.gmra.mxu0 %v454
  %v869 = vpop.f32.mrf.mxu0
  %v870 = vadd.f32 %v661, %v869
  %871 = vmatmul.f32.gmra.mxu0 %v456
  %v872 = vpop.f32.mrf.mxu0
  %v873 = vadd.f32 %v664, %v872
  %874 = vmatmul.f32.gmra.mxu0 %v458
  %v875 = vpop.f32.mrf.mxu0
  %v876 = vadd.f32 %v667, %v875
  %877 = vmatmul.f32.gmra.mxu0 %v460
  %v878 = vpop.f32.mrf.mxu0
  %v879 = vadd.f32 %v670, %v878
  %880 = vmatmul.f32.gmra.mxu0 %v462
  %v881 = vpop.f32.mrf.mxu0
  %v882 = vadd.f32 %v673, %v881
  %883 = vmatmul.f32.gmra.mxu0 %v464
  %v884 = vpop.f32.mrf.mxu0
  %v885 = vadd.f32 %v676, %v884
  %886 = vmatmul.f32.gmra.mxu0 %v466
  %v887 = vpop.f32.mrf.mxu0
  %v888 = vadd.f32 %v679, %v887
  %889 = vmatmul.f32.gmra.mxu0 %v468
  %v890 = vpop.f32.mrf.mxu0
  %v891 = vadd.f32 %v682, %v890
  %892 = vmatmul.f32.gmra.mxu0 %v470
  %v893 = vpop.f32.mrf.mxu0
  %v894 = vadd.f32 %v685, %v893
  %895 = vmatmul.f32.gmra.mxu0 %v472
  %v896 = vpop.f32.mrf.mxu0
  %v897 = vadd.f32 %v688, %v896
  %898 = vmatmul.f32.gmra.mxu0 %v474
  %v899 = vpop.f32.mrf.mxu0
  %v900 = vadd.f32 %v691, %v899
  %901 = vmatmul.f32.gmra.mxu0 %v476
  %v902 = vpop.f32.mrf.mxu0
  %v903 = vadd.f32 %v694, %v902
  %904 = vmatmul.f32.gmra.mxu0 %v478
  %v905 = vpop.f32.mrf.mxu0
  %v906 = vadd.f32 %v697, %v905
  %907 = vmatmul.f32.gmra.mxu0 %v480
  %v908 = vpop.f32.mrf.mxu0
  %v909 = vadd.f32 %v700, %v908
  %910 = vmatmul.f32.gmra.mxu0 %v482
  %v911 = vpop.f32.mrf.mxu0
  %v912 = vadd.f32 %v703, %v911
  %913 = vmatmul.f32.gmra.mxu0 %v484
  %v914 = vpop.f32.mrf.mxu0
  %v915 = vadd.f32 %v706, %v914
  %916 = vmatmul.f32.gmra.mxu0 %v486
  %v917 = vpop.f32.mrf.mxu0
  %v918 = vadd.f32 %v709, %v917
  %919 = vmatmul.f32.gmra.mxu0 %v488
  %v920 = vpop.f32.mrf.mxu0
  %v921 = vadd.f32 %v712, %v920
  %922 = vmatmul.f32.gmra.mxu0 %v490
  %v923 = vpop.f32.mrf.mxu0
  %v924 = vadd.f32 %v715, %v923
  %925 = vmatmul.f32.gmra.mxu0 %v492
  %v926 = vpop.f32.mrf.mxu0
  %v927 = vadd.f32 %v718, %v926
  %928 = vmatmul.f32.gmra.mxu0 %v494
  %v929 = vpop.f32.mrf.mxu0
  %v930 = vadd.f32 %v721, %v929
  %931 = vmatmul.f32.gmra.mxu0 %v496
  %v932 = vpop.f32.mrf.mxu0
  %v933 = vadd.f32 %v724, %v932
  %934 = vmatmul.f32.gmra.mxu0 %v498
  %v935 = vpop.f32.mrf.mxu0
  %v936 = vadd.f32 %v727, %v935
  %937 = vmatmul.f32.gmra.mxu0 %v500
  %v938 = vpop.f32.mrf.mxu0
  %v939 = vadd.f32 %v730, %v938
  %940 = vmatmul.f32.gmra.mxu0 %v502
  %v941 = vpop.f32.mrf.mxu0
  %v942 = vadd.f32 %v733, %v941
  %943 = vmatmul.f32.gmra.mxu0 %v504
  %v944 = vpop.f32.mrf.mxu0
  %v945 = vadd.f32 %v736, %v944
  %946 = vmatmul.f32.gmra.mxu0 %v506
  %v947 = vpop.f32.mrf.mxu0
  %v948 = vadd.f32 %v739, %v947
  %949 = vmatmul.f32.gmra.mxu0 %v508
  %v950 = vpop.f32.mrf.mxu0
  %v951 = vadd.f32 %v742, %v950
  %952 = vmatmul.f32.gmra.mxu0 %v510
  %v953 = vpop.f32.mrf.mxu0
  %v954 = vadd.f32 %v745, %v953
  %955 = vmatmul.f32.gmra.mxu0 %v512
  %v956 = vpop.f32.mrf.mxu0
  %v957 = vadd.f32 %v748, %v956
  %958 = vmatmul.f32.gmra.mxu0 %v514
  %v959 = vpop.f32.mrf.mxu0
  %v960 = vadd.f32 %v751, %v959
  %961 = vmatmul.f32.gmra.mxu0 %v516
  %v962 = vpop.f32.mrf.mxu0
  %v963 = vadd.f32 %v754, %v962
  %964 = vmatmul.f32.gmra.mxu0 %v518
  %v965 = vpop.f32.mrf.mxu0
  %v966 = vadd.f32 %v757, %v965
  %967 = vmatmul.f32.gmra.mxu0 %v520
  %v968 = vpop.f32.mrf.mxu0
  %v969 = vadd.f32 %v760, %v968
  %970 = vmatmul.f32.gmra.mxu0 %v522
  %v971 = vpop.f32.mrf.mxu0
  %v972 = vadd.f32 %v763, %v971
  %973 = vmatmul.f32.gmra.mxu0 %v524
  %v974 = vpop.f32.mrf.mxu0
  %v975 = vadd.f32 %v766, %v974
  %976 = vmatmul.f32.gmra.mxu0 %v526
  %v977 = vpop.f32.mrf.mxu0
  %v978 = vadd.f32 %v769, %v977
  %979 = vmatmul.f32.gmra.mxu0 %v528
  %v980 = vpop.f32.mrf.mxu0
  %v981 = vadd.f32 %v772, %v980
  %982 = vdwg.mxu0
  %v983 = vmax.f32 %v792, 0.0
  %v984 = vmax.f32 %v795, 0.0
  %v985 = vmax.f32 %v798, 0.0
  %v986 = vmax.f32 %v801, 0.0
  %v987 = vmax.f32 %v804, 0.0
  %v988 = vmax.f32 %v807, 0.0
  %v989 = vmax.f32 %v810, 0.0
  %v990 = vmax.f32 %v813, 0.0
  %v991 = vmax.f32 %v816, 0.0
  %v992 = vmax.f32 %v819, 0.0
  %v993 = vmax.f32 %v822, 0.0
  %v994 = vmax.f32 %v825, 0.0
  %v995 = vmax.f32 %v828, 0.0
  %v996 = vmax.f32 %v831, 0.0
  %v997 = vmax.f32 %v834, 0.0
  %v998 = vmax.f32 %v837, 0.0
  %v999 = vmax.f32 %v840, 0.0
  %v1000 = vmax.f32 %v843, 0.0
  %v1001 = vmax.f32 %v846, 0.0
  %v1002 = vmax.f32 %v849, 0.0
  %v1003 = vmax.f32 %v852, 0.0
  %v1004 = vmax.f32 %v855, 0.0
  %v1005 = vmax.f32 %v858, 0.0
  %v1006 = vmax.f32 %v861, 0.0
  %v1007 = vmax.f32 %v864, 0.0
  %v1008 = vmax.f32 %v867, 0.0
  %v1009 = vmax.f32 %v870, 0.0
  %v1010 = vmax.f32 %v873, 0.0
  %v1011 = vmax.f32 %v876, 0.0
  %v1012 = vmax.f32 %v879, 0.0
  %v1013 = vmax.f32 %v882, 0.0
  %v1014 = vmax.f32 %v885, 0.0
  %v1015 = vmax.f32 %v888, 0.0
  %v1016 = vmax.f32 %v891, 0.0
  %v1017 = vmax.f32 %v894, 0.0
  %v1018 = vmax.f32 %v897, 0.0
  %v1019 = vmax.f32 %v900, 0.0
  %v1020 = vmax.f32 %v903, 0.0
  %v1021 = vmax.f32 %v906, 0.0
  %v1022 = vmax.f32 %v909, 0.0
  %v1023 = vmax.f32 %v912, 0.0
  %v1024 = vmax.f32 %v915, 0.0
  %v1025 = vmax.f32 %v918, 0.0
  %v1026 = vmax.f32 %v921, 0.0
  %v1027 = vmax.f32 %v924, 0.0
  %v1028 = vmax.f32 %v927, 0.0
  %v1029 = vmax.f32 %v930, 0.0
  %v1030 = vmax.f32 %v933, 0.0
  %v1031 = vmax.f32 %v936, 0.0
  %v1032 = vmax.f32 %v939, 0.0
  %v1033 = vmax.f32 %v942, 0.0
  %v1034 = vmax.f32 %v945, 0.0
  %v1035 = vmax.f32 %v948, 0.0
  %v1036 = vmax.f32 %v951, 0.0
  %v1037 = vmax.f32 %v954, 0.0
  %v1038 = vmax.f32 %v957, 0.0
  %v1039 = vmax.f32 %v960, 0.0
  %v1040 = vmax.f32 %v963, 0.0
  %v1041 = vmax.f32 %v966, 0.0
  %v1042 = vmax.f32 %v969, 0.0
  %v1043 = vmax.f32 %v972, 0.0
  %v1044 = vmax.f32 %v975, 0.0
  %v1045 = vmax.f32 %v978, 0.0
  %v1046 = vmax.f32 %v981, 0.0
  %vm1047 = vcmask 64512
  %1048 = vst.msk [vmem:[%s4] sm:$0xff] %vm1047, %v983
  %1049 = vst.msk [vmem:[%s4 + $0x8] sm:$0xff] %vm1047, %v984
  %1050 = vst.msk [vmem:[%s4 + $0x10] sm:$0xff] %vm1047, %v985
  %1051 = vst.msk [vmem:[%s4 + $0x18] sm:$0xff] %vm1047, %v986
  %1052 = vst.msk [vmem:[%s4 + $0x20] sm:$0xff] %vm1047, %v987
  %1053 = vst.msk [vmem:[%s4 + $0x28] sm:$0xff] %vm1047, %v988
  %1054 = vst.msk [vmem:[%s4 + $0x30] sm:$0xff] %vm1047, %v989
  %1055 = vst.msk [vmem:[%s4 + $0x38] sm:$0xff] %vm1047, %v990
  %1056 = vst.msk [vmem:[%s4 + $0x40] sm:$0xff] %vm1047, %v991
  %1057 = vst.msk [vmem:[%s4 + $0x48] sm:$0xff] %vm1047, %v992
  %1058 = vst.msk [vmem:[%s4 + $0x50] sm:$0xff] %vm1047, %v993
  %1059 = vst.msk [vmem:[%s4 + $0x58] sm:$0xff] %vm1047, %v994
  %1060 = vst.msk [vmem:[%s4 + $0x60] sm:$0xff] %vm1047, %v995
  %1061 = vst.msk [vmem:[%s4 + $0x68] sm:$0xff] %vm1047, %v996
  %1062 = vst.msk [vmem:[%s4 + $0x70] sm:$0xff] %vm1047, %v997
  %1063 = vst.msk [vmem:[%s4 + $0x78] sm:$0xff] %vm1047, %v998
  %1064 = vst.msk [vmem:[%s4 + $0x80] sm:$0xff] %vm1047, %v999
  %1065 = vst.msk [vmem:[%s4 + $0x88] sm:$0xff] %vm1047, %v1000
  %1066 = vst.msk [vmem:[%s4 + $0x90] sm:$0xff] %vm1047, %v1001
  %1067 = vst.msk [vmem:[%s4 + $0x98] sm:$0xff] %vm1047, %v1002
  %1068 = vst.msk [vmem:[%s4 + $0xa0] sm:$0xff] %vm1047, %v1003
  %1069 = vst.msk [vmem:[%s4 + $0xa8] sm:$0xff] %vm1047, %v1004
  %1070 = vst.msk [vmem:[%s4 + $0xb0] sm:$0xff] %vm1047, %v1005
  %1071 = vst.msk [vmem:[%s4 + $0xb8] sm:$0xff] %vm1047, %v1006
  %1072 = vst.msk [vmem:[%s4 + $0xc0] sm:$0xff] %vm1047, %v1007
  %1073 = vst.msk [vmem:[%s4 + $0xc8] sm:$0xff] %vm1047, %v1008
  %1074 = vst.msk [vmem:[%s4 + $0xd0] sm:$0xff] %vm1047, %v1009
  %1075 = vst.msk [vmem:[%s4 + $0xd8] sm:$0xff] %vm1047, %v1010
  %1076 = vst.msk [vmem:[%s4 + $0xe0] sm:$0xff] %vm1047, %v1011
  %1077 = vst.msk [vmem:[%s4 + $0xe8] sm:$0xff] %vm1047, %v1012
  %1078 = vst.msk [vmem:[%s4 + $0xf0] sm:$0xff] %vm1047, %v1013
  %1079 = vst.msk [vmem:[%s4 + $0xf8] sm:$0xff] %vm1047, %v1014
  %1080 = vst.msk [vmem:[%s4 + $0x100] sm:$0xff] %vm1047, %v1015
  %1081 = vst.msk [vmem:[%s4 + $0x108] sm:$0xff] %vm1047, %v1016
  %1082 = vst.msk [vmem:[%s4 + $0x110] sm:$0xff] %vm1047, %v1017
  %1083 = vst.msk [vmem:[%s4 + $0x118] sm:$0xff] %vm1047, %v1018
  %1084 = vst.msk [vmem:[%s4 + $0x120] sm:$0xff] %vm1047, %v1019
  %1085 = vst.msk [vmem:[%s4 + $0x128] sm:$0xff] %vm1047, %v1020
  %1086 = vst.msk [vmem:[%s4 + $0x130] sm:$0xff] %vm1047, %v1021
  %1087 = vst.msk [vmem:[%s4 + $0x138] sm:$0xff] %vm1047, %v1022
  %1088 = vst.msk [vmem:[%s4 + $0x140] sm:$0xff] %vm1047, %v1023
  %1089 = vst.msk [vmem:[%s4 + $0x148] sm:$0xff] %vm1047, %v1024
  %1090 = vst.msk [vmem:[%s4 + $0x150] sm:$0xff] %vm1047, %v1025
  %1091 = vst.msk [vmem:[%s4 + $0x158] sm:$0xff] %vm1047, %v1026
  %1092 = vst.msk [vmem:[%s4 + $0x160] sm:$0xff] %vm1047, %v1027
  %1093 = vst.msk [vmem:[%s4 + $0x168] sm:$0xff] %vm1047, %v1028
  %1094 = vst.msk [vmem:[%s4 + $0x170] sm:$0xff] %vm1047, %v1029
  %1095 = vst.msk [vmem:[%s4 + $0x178] sm:$0xff] %vm1047, %v1030
  %1096 = vst.msk [vmem:[%s4 + $0x180] sm:$0xff] %vm1047, %v1031
  %1097 = vst.msk [vmem:[%s4 + $0x188] sm:$0xff] %vm1047, %v1032
  %1098 = vst.msk [vmem:[%s4 + $0x190] sm:$0xff] %vm1047, %v1033
  %1099 = vst.msk [vmem:[%s4 + $0x198] sm:$0xff] %vm1047, %v1034
  %1100 = vst.msk [vmem:[%s4 + $0x1a0] sm:$0xff] %vm1047, %v1035
  %1101 = vst.msk [vmem:[%s4 + $0x1a8] sm:$0xff] %vm1047, %v1036
  %1102 = vst.msk [vmem:[%s4 + $0x1b0] sm:$0xff] %vm1047, %v1037
  %1103 = vst.msk [vmem:[%s4 + $0x1b8] sm:$0xff] %vm1047, %v1038
  %1104 = vst.msk [vmem:[%s4 + $0x1c0] sm:$0xff] %vm1047, %v1039
  %1105 = vst.msk [vmem:[%s4 + $0x1c8] sm:$0xff] %vm1047, %v1040
  %1106 = vst.msk [vmem:[%s4 + $0x1d0] sm:$0xff] %vm1047, %v1041
  %1107 = vst.msk [vmem:[%s4 + $0x1d8] sm:$0xff] %vm1047, %v1042
  %1108 = vst.msk [vmem:[%s4 + $0x1e0] sm:$0xff] %vm1047, %v1043
  %1109 = vst.msk [vmem:[%s4 + $0x1e8] sm:$0xff] %vm1047, %v1044
  %1110 = vst.msk [vmem:[%s4 + $0x1f0] sm:$0xff] %vm1047, %v1045
  %1111 = vst.msk [vmem:[%s4 + $0x1f8] sm:$0xff] %vm1047, %v1046
  // Predicated region
  $region18: #{dual_block_forward.16} parent=0 // pred_check
    _
  $region19: #{dual_block_forward.16} parent=0 // pred_check_branch
    %1113 = sbr.rel (0) target = $region21
  $region20: #{dual_block_forward.16} parent=0 // pred_region
    _
  $region21: #{dual_block_forward.16} parent=0 // pred_fallthru
    _
  // Predicated region
  $region22: #{dual_block_forward.16} parent=0 // pred_check
    _
  $region23: #{dual_block_forward.16} parent=0 // pred_check_branch
    %1115 = sbr.rel (0) target = $region25
  $region24: #{dual_block_forward.16} parent=0 // pred_region
    _
  $region25: #{dual_block_forward.16} parent=0 // pred_fallthru
    _

// kernel: dual_block_forward.23
$region0: #{dual_block_forward.23}
  #allocation0 [shape = 'u32[]', space=smem, size = 0x4, offset = 0x4, fixed_abs, tag = 'smem constant byte address 0x4 - core index']
  #allocation1 [shape = 'u32[72,128]{1,0:T(1,128)}', space=vmem, size = 0x9000, scoped, tag = 'internal scratch']
  %s0 = inlined_call_operand.vmem [shape: f32[512,20], index: 0, kind: input, shape index: {}]
  %s1 = inlined_call_operand.vmem [shape: f32[20,16], index: 1, kind: input, shape index: {}]
  %s2 = inlined_call_operand.vmem [shape: f32[1,16], index: 2, kind: input, shape index: {}]
  %s3 = inlined_call_operand.vmem [shape: f32[512,16], index: 3, kind: output, shape index: {}]
  %s4 = sld [smem:[#allocation0]]
  $region22: #{dual_block_forward.23} parent=0
    _
  %s6 = ssub.s32 1, %s4
  %s7 = scalar_select 0, %s6, %s4
  // Predicated region
  $region2: #{dual_block_forward.23} parent=0 // pred_check
    _
  $region3: #{dual_block_forward.23} parent=0 // pred_check_branch
    %9 = sbr.rel (0) target = $region5
  $region4: #{dual_block_forward.23} parent=0 // pred_region
    _
  $region5: #{dual_block_forward.23} parent=0 // pred_fallthru
    _
  // Predicated region
  $region6: #{dual_block_forward.23} parent=0 // pred_check
    _
  $region7: #{dual_block_forward.23} parent=0 // pred_check_branch
    %11 = sbr.rel (0) target = $region9
  $region8: #{dual_block_forward.23} parent=0 // pred_region
    _
  $region9: #{dual_block_forward.23} parent=0 // pred_fallthru
    _
  // Predicated region
  $region10: #{dual_block_forward.23} parent=0 // pred_check
    _
  $region11: #{dual_block_forward.23} parent=0 // pred_check_branch
    %13 = sbr.rel (0) target = $region13
  $region12: #{dual_block_forward.23} parent=0 // pred_region
    _
  $region13: #{dual_block_forward.23} parent=0 // pred_fallthru
    _
  %v14 = vld [vmem:[%s0] sm:$0xff]
  %v15 = vld [vmem:[%s0 + $0x8] sm:$0xff]
  %v16 = vld [vmem:[%s0 + $0x10] sm:$0xff]
  %v17 = vld [vmem:[%s0 + $0x18] sm:$0xff]
  %v18 = vld [vmem:[%s0 + $0x20] sm:$0xff]
  %v19 = vld [vmem:[%s0 + $0x28] sm:$0xff]
  %v20 = vld [vmem:[%s0 + $0x30] sm:$0xff]
  %v21 = vld [vmem:[%s0 + $0x38] sm:$0xff]
  %v22 = vld [vmem:[%s0 + $0x40] sm:$0xff]
  %v23 = vld [vmem:[%s0 + $0x48] sm:$0xff]
  %v24 = vld [vmem:[%s0 + $0x50] sm:$0xff]
  %v25 = vld [vmem:[%s0 + $0x58] sm:$0xff]
  %v26 = vld [vmem:[%s0 + $0x60] sm:$0xff]
  %v27 = vld [vmem:[%s0 + $0x68] sm:$0xff]
  %v28 = vld [vmem:[%s0 + $0x70] sm:$0xff]
  %v29 = vld [vmem:[%s0 + $0x78] sm:$0xff]
  %v30 = vld [vmem:[%s0 + $0x80] sm:$0xff]
  %v31 = vld [vmem:[%s0 + $0x88] sm:$0xff]
  %v32 = vld [vmem:[%s0 + $0x90] sm:$0xff]
  %v33 = vld [vmem:[%s0 + $0x98] sm:$0xff]
  %v34 = vld [vmem:[%s0 + $0xa0] sm:$0xff]
  %v35 = vld [vmem:[%s0 + $0xa8] sm:$0xff]
  %v36 = vld [vmem:[%s0 + $0xb0] sm:$0xff]
  %v37 = vld [vmem:[%s0 + $0xb8] sm:$0xff]
  %v38 = vld [vmem:[%s0 + $0xc0] sm:$0xff]
  %v39 = vld [vmem:[%s0 + $0xc8] sm:$0xff]
  %v40 = vld [vmem:[%s0 + $0xd0] sm:$0xff]
  %v41 = vld [vmem:[%s0 + $0xd8] sm:$0xff]
  %v42 = vld [vmem:[%s0 + $0xe0] sm:$0xff]
  %v43 = vld [vmem:[%s0 + $0xe8] sm:$0xff]
  %v44 = vld [vmem:[%s0 + $0xf0] sm:$0xff]
  %v45 = vld [vmem:[%s0 + $0xf8] sm:$0xff]
  %v46 = vld [vmem:[%s0 + $0x100] sm:$0xff]
  %v47 = vld [vmem:[%s0 + $0x108] sm:$0xff]
  %v48 = vld [vmem:[%s0 + $0x110] sm:$0xff]
  %v49 = vld [vmem:[%s0 + $0x118] sm:$0xff]
  %v50 = vld [vmem:[%s0 + $0x120] sm:$0xff]
  %v51 = vld [vmem:[%s0 + $0x128] sm:$0xff]
  %v52 = vld [vmem:[%s0 + $0x130] sm:$0xff]
  %v53 = vld [vmem:[%s0 + $0x138] sm:$0xff]
  %v54 = vld [vmem:[%s0 + $0x140] sm:$0xff]
  %v55 = vld [vmem:[%s0 + $0x148] sm:$0xff]
  %v56 = vld [vmem:[%s0 + $0x150] sm:$0xff]
  %v57 = vld [vmem:[%s0 + $0x158] sm:$0xff]
  %v58 = vld [vmem:[%s0 + $0x160] sm:$0xff]
  %v59 = vld [vmem:[%s0 + $0x168] sm:$0xff]
  %v60 = vld [vmem:[%s0 + $0x170] sm:$0xff]
  %v61 = vld [vmem:[%s0 + $0x178] sm:$0xff]
  %v62 = vld [vmem:[%s0 + $0x180] sm:$0xff]
  %v63 = vld [vmem:[%s0 + $0x188] sm:$0xff]
  %v64 = vld [vmem:[%s0 + $0x190] sm:$0xff]
  %v65 = vld [vmem:[%s0 + $0x198] sm:$0xff]
  %v66 = vld [vmem:[%s0 + $0x1a0] sm:$0xff]
  %v67 = vld [vmem:[%s0 + $0x1a8] sm:$0xff]
  %v68 = vld [vmem:[%s0 + $0x1b0] sm:$0xff]
  %v69 = vld [vmem:[%s0 + $0x1b8] sm:$0xff]
  %v70 = vld [vmem:[%s0 + $0x1c0] sm:$0xff]
  %v71 = vld [vmem:[%s0 + $0x1c8] sm:$0xff]
  %v72 = vld [vmem:[%s0 + $0x1d0] sm:$0xff]
  %v73 = vld [vmem:[%s0 + $0x1d8] sm:$0xff]
  %v74 = vld [vmem:[%s0 + $0x1e0] sm:$0xff]
  %v75 = vld [vmem:[%s0 + $0x1e8] sm:$0xff]
  %v76 = vld [vmem:[%s0 + $0x1f0] sm:$0xff]
  %v77 = vld [vmem:[%s0 + $0x1f8] sm:$0xff]
  %v78 = vld [vmem:[%s1] sm:$0xff]
  %v79 = vld [vmem:[%s1 + $0x8] sm:$0xff]
  %v80 = vld [vmem:[%s1 + $0x10] sm:$0xf]
  %v81 = vld [vmem:[%s2] sm:$0x1]
  %v83 = vperm.slane %v81, 0
  %vm85 = vcmask 162816
  %v87 = vsel %vm85, %v14, 0
  %v90 = vsel %vm85, %v15, 0
  %v93 = vsel %vm85, %v16, 0
  %v96 = vsel %vm85, %v17, 0
  %v99 = vsel %vm85, %v18, 0
  %v102 = vsel %vm85, %v19, 0
  %v105 = vsel %vm85, %v20, 0
  %v108 = vsel %vm85, %v21, 0
  %v111 = vsel %vm85, %v22, 0
  %v114 = vsel %vm85, %v23, 0
  %v117 = vsel %vm85, %v24, 0
  %v120 = vsel %vm85, %v25, 0
  %v123 = vsel %vm85, %v26, 0
  %v126 = vsel %vm85, %v27, 0
  %v129 = vsel %vm85, %v28, 0
  %v132 = vsel %vm85, %v29, 0
  %v135 = vsel %vm85, %v30, 0
  %v138 = vsel %vm85, %v31, 0
  %v141 = vsel %vm85, %v32, 0
  %v144 = vsel %vm85, %v33, 0
  %v147 = vsel %vm85, %v34, 0
  %v150 = vsel %vm85, %v35, 0
  %v153 = vsel %vm85, %v36, 0
  %v156 = vsel %vm85, %v37, 0
  %v159 = vsel %vm85, %v38, 0
  %v162 = vsel %vm85, %v39, 0
  %v165 = vsel %vm85, %v40, 0
  %v168 = vsel %vm85, %v41, 0
  %v171 = vsel %vm85, %v42, 0
  %v174 = vsel %vm85, %v43, 0
  %v177 = vsel %vm85, %v44, 0
  %v180 = vsel %vm85, %v45, 0
  %v183 = vsel %vm85, %v46, 0
  %v186 = vsel %vm85, %v47, 0
  %v189 = vsel %vm85, %v48, 0
  %v192 = vsel %vm85, %v49, 0
  %v195 = vsel %vm85, %v50, 0
  %v198 = vsel %vm85, %v51, 0
  %v201 = vsel %vm85, %v52, 0
  %v204 = vsel %vm85, %v53, 0
  %v207 = vsel %vm85, %v54, 0
  %v210 = vsel %vm85, %v55, 0
  %v213 = vsel %vm85, %v56, 0
  %v216 = vsel %vm85, %v57, 0
  %v219 = vsel %vm85, %v58, 0
  %v222 = vsel %vm85, %v59, 0
  %v225 = vsel %vm85, %v60, 0
  %v228 = vsel %vm85, %v61, 0
  %v231 = vsel %vm85, %v62, 0
  %v234 = vsel %vm85, %v63, 0
  %v237 = vsel %vm85, %v64, 0
  %v240 = vsel %vm85, %v65, 0
  %v243 = vsel %vm85, %v66, 0
  %v246 = vsel %vm85, %v67, 0
  %v249 = vsel %vm85, %v68, 0
  %v252 = vsel %vm85, %v69, 0
  %v255 = vsel %vm85, %v70, 0
  %v258 = vsel %vm85, %v71, 0
  %v261 = vsel %vm85, %v72, 0
  %v264 = vsel %vm85, %v73, 0
  %v267 = vsel %vm85, %v74, 0
  %v270 = vsel %vm85, %v75, 0
  %v273 = vsel %vm85, %v76, 0
  %v276 = vsel %vm85, %v77, 0
  %vm278 = vcmask 1043456
  %v280 = vsel %vm278, %v80, 0
  %282 = vmatpush.msra.mxu0 0.0
  %283 = vmatpush.msra.mxu0 0.0
  %284 = vmatpush.msra.mxu0 0.0
  %285 = vmatpush.msra.mxu0 0.0
  %286 = vmatpush.msra.mxu0 0.0
  %287 = vmatpush.msra.mxu0 0.0
  %288 = vmatpush.msra.mxu0 0.0
  %289 = vmatpush.msra.mxu0 0.0
  %290 = vmatpush.msra.mxu0 0.0
  %291 = vmatpush.msra.mxu0 0.0
  %292 = vmatpush.msra.mxu0 0.0
  %293 = vmatpush.msra.mxu0 0.0
  %294 = vmatpush.msra.mxu0 0.0
  %295 = vmatpush.msra.mxu0 %v280
  %296 = vmatpush.msra.mxu0 %v79
  %297 = vmatpush.msra.mxu0 %v78
  %298 = vmatmul.f32.gmra.mxu0 %v87
  %v299 = vpop.f32.mrf.mxu0
  %v300 = vadd.f32 %v83, %v299
  %301 = vmatmul.f32.gmra.mxu0 %v90
  %v302 = vpop.f32.mrf.mxu0
  %v303 = vadd.f32 %v83, %v302
  %304 = vmatmul.f32.gmra.mxu0 %v93
  %v305 = vpop.f32.mrf.mxu0
  %v306 = vadd.f32 %v83, %v305
  %307 = vmatmul.f32.gmra.mxu0 %v96
  %v308 = vpop.f32.mrf.mxu0
  %v309 = vadd.f32 %v83, %v308
  %310 = vmatmul.f32.gmra.mxu0 %v99
  %v311 = vpop.f32.mrf.mxu0
  %v312 = vadd.f32 %v83, %v311
  %313 = vmatmul.f32.gmra.mxu0 %v102
  %v314 = vpop.f32.mrf.mxu0
  %v315 = vadd.f32 %v83, %v314
  %316 = vmatmul.f32.gmra.mxu0 %v105
  %v317 = vpop.f32.mrf.mxu0
  %v318 = vadd.f32 %v83, %v317
  %319 = vmatmul.f32.gmra.mxu0 %v108
  %v320 = vpop.f32.mrf.mxu0
  %v321 = vadd.f32 %v83, %v320
  %322 = vmatmul.f32.gmra.mxu0 %v111
  %v323 = vpop.f32.mrf.mxu0
  %v324 = vadd.f32 %v83, %v323
  %325 = vmatmul.f32.gmra.mxu0 %v114
  %v326 = vpop.f32.mrf.mxu0
  %v327 = vadd.f32 %v83, %v326
  %328 = vmatmul.f32.gmra.mxu0 %v117
  %v329 = vpop.f32.mrf.mxu0
  %v330 = vadd.f32 %v83, %v329
  %331 = vmatmul.f32.gmra.mxu0 %v120
  %v332 = vpop.f32.mrf.mxu0
  %v333 = vadd.f32 %v83, %v332
  %334 = vmatmul.f32.gmra.mxu0 %v123
  %v335 = vpop.f32.mrf.mxu0
  %v336 = vadd.f32 %v83, %v335
  %337 = vmatmul.f32.gmra.mxu0 %v126
  %v338 = vpop.f32.mrf.mxu0
  %v339 = vadd.f32 %v83, %v338
  %340 = vmatmul.f32.gmra.mxu0 %v129
  %v341 = vpop.f32.mrf.mxu0
  %v342 = vadd.f32 %v83, %v341
  %343 = vmatmul.f32.gmra.mxu0 %v132
  %v344 = vpop.f32.mrf.mxu0
  %v345 = vadd.f32 %v83, %v344
  %346 = vmatmul.f32.gmra.mxu0 %v135
  %v347 = vpop.f32.mrf.mxu0
  %v348 = vadd.f32 %v83, %v347
  %349 = vmatmul.f32.gmra.mxu0 %v138
  %v350 = vpop.f32.mrf.mxu0
  %v351 = vadd.f32 %v83, %v350
  %352 = vmatmul.f32.gmra.mxu0 %v141
  %v353 = vpop.f32.mrf.mxu0
  %v354 = vadd.f32 %v83, %v353
  %355 = vmatmul.f32.gmra.mxu0 %v144
  %v356 = vpop.f32.mrf.mxu0
  %v357 = vadd.f32 %v83, %v356
  %358 = vmatmul.f32.gmra.mxu0 %v147
  %v359 = vpop.f32.mrf.mxu0
  %v360 = vadd.f32 %v83, %v359
  %361 = vmatmul.f32.gmra.mxu0 %v150
  %v362 = vpop.f32.mrf.mxu0
  %v363 = vadd.f32 %v83, %v362
  %364 = vmatmul.f32.gmra.mxu0 %v153
  %v365 = vpop.f32.mrf.mxu0
  %v366 = vadd.f32 %v83, %v365
  %367 = vmatmul.f32.gmra.mxu0 %v156
  %v368 = vpop.f32.mrf.mxu0
  %v369 = vadd.f32 %v83, %v368
  %370 = vmatmul.f32.gmra.mxu0 %v159
  %v371 = vpop.f32.mrf.mxu0
  %v372 = vadd.f32 %v83, %v371
  %373 = vmatmul.f32.gmra.mxu0 %v162
  %v374 = vpop.f32.mrf.mxu0
  %v375 = vadd.f32 %v83, %v374
  %376 = vmatmul.f32.gmra.mxu0 %v165
  %v377 = vpop.f32.mrf.mxu0
  %v378 = vadd.f32 %v83, %v377
  %379 = vmatmul.f32.gmra.mxu0 %v168
  %v380 = vpop.f32.mrf.mxu0
  %v381 = vadd.f32 %v83, %v380
  %382 = vmatmul.f32.gmra.mxu0 %v171
  %v383 = vpop.f32.mrf.mxu0
  %v384 = vadd.f32 %v83, %v383
  %385 = vmatmul.f32.gmra.mxu0 %v174
  %v386 = vpop.f32.mrf.mxu0
  %v387 = vadd.f32 %v83, %v386
  %388 = vmatmul.f32.gmra.mxu0 %v177
  %v389 = vpop.f32.mrf.mxu0
  %v390 = vadd.f32 %v83, %v389
  %391 = vmatmul.f32.gmra.mxu0 %v180
  %v392 = vpop.f32.mrf.mxu0
  %v393 = vadd.f32 %v83, %v392
  %394 = vmatmul.f32.gmra.mxu0 %v183
  %v395 = vpop.f32.mrf.mxu0
  %v396 = vadd.f32 %v83, %v395
  %397 = vmatmul.f32.gmra.mxu0 %v186
  %v398 = vpop.f32.mrf.mxu0
  %v399 = vadd.f32 %v83, %v398
  %400 = vmatmul.f32.gmra.mxu0 %v189
  %v401 = vpop.f32.mrf.mxu0
  %v402 = vadd.f32 %v83, %v401
  %403 = vmatmul.f32.gmra.mxu0 %v192
  %v404 = vpop.f32.mrf.mxu0
  %v405 = vadd.f32 %v83, %v404
  %406 = vmatmul.f32.gmra.mxu0 %v195
  %v407 = vpop.f32.mrf.mxu0
  %v408 = vadd.f32 %v83, %v407
  %409 = vmatmul.f32.gmra.mxu0 %v198
  %v410 = vpop.f32.mrf.mxu0
  %v411 = vadd.f32 %v83, %v410
  %412 = vmatmul.f32.gmra.mxu0 %v201
  %v413 = vpop.f32.mrf.mxu0
  %v414 = vadd.f32 %v83, %v413
  %415 = vmatmul.f32.gmra.mxu0 %v204
  %v416 = vpop.f32.mrf.mxu0
  %v417 = vadd.f32 %v83, %v416
  %418 = vmatmul.f32.gmra.mxu0 %v207
  %v419 = vpop.f32.mrf.mxu0
  %v420 = vadd.f32 %v83, %v419
  %421 = vmatmul.f32.gmra.mxu0 %v210
  %v422 = vpop.f32.mrf.mxu0
  %v423 = vadd.f32 %v83, %v422
  %424 = vmatmul.f32.gmra.mxu0 %v213
  %v425 = vpop.f32.mrf.mxu0
  %v426 = vadd.f32 %v83, %v425
  %427 = vmatmul.f32.gmra.mxu0 %v216
  %v428 = vpop.f32.mrf.mxu0
  %v429 = vadd.f32 %v83, %v428
  %430 = vmatmul.f32.gmra.mxu0 %v219
  %v431 = vpop.f32.mrf.mxu0
  %v432 = vadd.f32 %v83, %v431
  %433 = vmatmul.f32.gmra.mxu0 %v222
  %v434 = vpop.f32.mrf.mxu0
  %v435 = vadd.f32 %v83, %v434
  %436 = vmatmul.f32.gmra.mxu0 %v225
  %v437 = vpop.f32.mrf.mxu0
  %v438 = vadd.f32 %v83, %v437
  %439 = vmatmul.f32.gmra.mxu0 %v228
  %v440 = vpop.f32.mrf.mxu0
  %v441 = vadd.f32 %v83, %v440
  %442 = vmatmul.f32.gmra.mxu0 %v231
  %v443 = vpop.f32.mrf.mxu0
  %v444 = vadd.f32 %v83, %v443
  %445 = vmatmul.f32.gmra.mxu0 %v234
  %v446 = vpop.f32.mrf.mxu0
  %v447 = vadd.f32 %v83, %v446
  %448 = vmatmul.f32.gmra.mxu0 %v237
  %v449 = vpop.f32.mrf.mxu0
  %v450 = vadd.f32 %v83, %v449
  %451 = vmatmul.f32.gmra.mxu0 %v240
  %v452 = vpop.f32.mrf.mxu0
  %v453 = vadd.f32 %v83, %v452
  %454 = vmatmul.f32.gmra.mxu0 %v243
  %v455 = vpop.f32.mrf.mxu0
  %v456 = vadd.f32 %v83, %v455
  %457 = vmatmul.f32.gmra.mxu0 %v246
  %v458 = vpop.f32.mrf.mxu0
  %v459 = vadd.f32 %v83, %v458
  %460 = vmatmul.f32.gmra.mxu0 %v249
  %v461 = vpop.f32.mrf.mxu0
  %v462 = vadd.f32 %v83, %v461
  %463 = vmatmul.f32.gmra.mxu0 %v252
  %v464 = vpop.f32.mrf.mxu0
  %v465 = vadd.f32 %v83, %v464
  %466 = vmatmul.f32.gmra.mxu0 %v255
  %v467 = vpop.f32.mrf.mxu0
  %v468 = vadd.f32 %v83, %v467
  %469 = vmatmul.f32.gmra.mxu0 %v258
  %v470 = vpop.f32.mrf.mxu0
  %v471 = vadd.f32 %v83, %v470
  %472 = vmatmul.f32.gmra.mxu0 %v261
  %v473 = vpop.f32.mrf.mxu0
  %v474 = vadd.f32 %v83, %v473
  %475 = vmatmul.f32.gmra.mxu0 %v264
  %v476 = vpop.f32.mrf.mxu0
  %v477 = vadd.f32 %v83, %v476
  %478 = vmatmul.f32.gmra.mxu0 %v267
  %v479 = vpop.f32.mrf.mxu0
  %v480 = vadd.f32 %v83, %v479
  %481 = vmatmul.f32.gmra.mxu0 %v270
  %v482 = vpop.f32.mrf.mxu0
  %v483 = vadd.f32 %v83, %v482
  %484 = vmatmul.f32.gmra.mxu0 %v273
  %v485 = vpop.f32.mrf.mxu0
  %v486 = vadd.f32 %v83, %v485
  %487 = vmatmul.f32.gmra.mxu0 %v276
  %v488 = vpop.f32.mrf.mxu0
  %v489 = vadd.f32 %v83, %v488
  %490 = vdwg.mxu0
  %v491 = vmax.f32 %v300, 0.0
  %v492 = vmax.f32 %v303, 0.0
  %v493 = vmax.f32 %v306, 0.0
  %v494 = vmax.f32 %v309, 0.0
  %v495 = vmax.f32 %v312, 0.0
  %v496 = vmax.f32 %v315, 0.0
  %v497 = vmax.f32 %v318, 0.0
  %v498 = vmax.f32 %v321, 0.0
  %v499 = vmax.f32 %v324, 0.0
  %v500 = vmax.f32 %v327, 0.0
  %v501 = vmax.f32 %v330, 0.0
  %v502 = vmax.f32 %v333, 0.0
  %v503 = vmax.f32 %v336, 0.0
  %v504 = vmax.f32 %v339, 0.0
  %v505 = vmax.f32 %v342, 0.0
  %v506 = vmax.f32 %v345, 0.0
  %v507 = vmax.f32 %v348, 0.0
  %v508 = vmax.f32 %v351, 0.0
  %v509 = vmax.f32 %v354, 0.0
  %v510 = vmax.f32 %v357, 0.0
  %v511 = vmax.f32 %v360, 0.0
  %v512 = vmax.f32 %v363, 0.0
  %v513 = vmax.f32 %v366, 0.0
  %v514 = vmax.f32 %v369, 0.0
  %v515 = vmax.f32 %v372, 0.0
  %v516 = vmax.f32 %v375, 0.0
  %v517 = vmax.f32 %v378, 0.0
  %v518 = vmax.f32 %v381, 0.0
  %v519 = vmax.f32 %v384, 0.0
  %v520 = vmax.f32 %v387, 0.0
  %v521 = vmax.f32 %v390, 0.0
  %v522 = vmax.f32 %v393, 0.0
  %v523 = vmax.f32 %v396, 0.0
  %v524 = vmax.f32 %v399, 0.0
  %v525 = vmax.f32 %v402, 0.0
  %v526 = vmax.f32 %v405, 0.0
  %v527 = vmax.f32 %v408, 0.0
  %v528 = vmax.f32 %v411, 0.0
  %v529 = vmax.f32 %v414, 0.0
  %v530 = vmax.f32 %v417, 0.0
  %v531 = vmax.f32 %v420, 0.0
  %v532 = vmax.f32 %v423, 0.0
  %v533 = vmax.f32 %v426, 0.0
  %v534 = vmax.f32 %v429, 0.0
  %v535 = vmax.f32 %v432, 0.0
  %v536 = vmax.f32 %v435, 0.0
  %v537 = vmax.f32 %v438, 0.0
  %v538 = vmax.f32 %v441, 0.0
  %v539 = vmax.f32 %v444, 0.0
  %v540 = vmax.f32 %v447, 0.0
  %v541 = vmax.f32 %v450, 0.0
  %v542 = vmax.f32 %v453, 0.0
  %v543 = vmax.f32 %v456, 0.0
  %v544 = vmax.f32 %v459, 0.0
  %v545 = vmax.f32 %v462, 0.0
  %v546 = vmax.f32 %v465, 0.0
  %v547 = vmax.f32 %v468, 0.0
  %v548 = vmax.f32 %v471, 0.0
  %v549 = vmax.f32 %v474, 0.0
  %v550 = vmax.f32 %v477, 0.0
  %v551 = vmax.f32 %v480, 0.0
  %v552 = vmax.f32 %v483, 0.0
  %v553 = vmax.f32 %v486, 0.0
  %v554 = vmax.f32 %v489, 0.0
  %vm555 = vcmask 130048
  %556 = vst.msk [vmem:[%s3] sm:$0xff] %vm555, %v491
  %557 = vst.msk [vmem:[%s3 + $0x8] sm:$0xff] %vm555, %v492
  %558 = vst.msk [vmem:[%s3 + $0x10] sm:$0xff] %vm555, %v493
  %559 = vst.msk [vmem:[%s3 + $0x18] sm:$0xff] %vm555, %v494
  %560 = vst.msk [vmem:[%s3 + $0x20] sm:$0xff] %vm555, %v495
  %561 = vst.msk [vmem:[%s3 + $0x28] sm:$0xff] %vm555, %v496
  %562 = vst.msk [vmem:[%s3 + $0x30] sm:$0xff] %vm555, %v497
  %563 = vst.msk [vmem:[%s3 + $0x38] sm:$0xff] %vm555, %v498
  %564 = vst.msk [vmem:[%s3 + $0x40] sm:$0xff] %vm555, %v499
  %565 = vst.msk [vmem:[%s3 + $0x48] sm:$0xff] %vm555, %v500
  %566 = vst.msk [vmem:[%s3 + $0x50] sm:$0xff] %vm555, %v501
  %567 = vst.msk [vmem:[%s3 + $0x58] sm:$0xff] %vm555, %v502
  %568 = vst.msk [vmem:[%s3 + $0x60] sm:$0xff] %vm555, %v503
  %569 = vst.msk [vmem:[%s3 + $0x68] sm:$0xff] %vm555, %v504
  %570 = vst.msk [vmem:[%s3 + $0x70] sm:$0xff] %vm555, %v505
  %571 = vst.msk [vmem:[%s3 + $0x78] sm:$0xff] %vm555, %v506
  %572 = vst.msk [vmem:[%s3 + $0x80] sm:$0xff] %vm555, %v507
  %573 = vst.msk [vmem:[%s3 + $0x88] sm:$0xff] %vm555, %v508
  %574 = vst.msk [vmem:[%s3 + $0x90] sm:$0xff] %vm555, %v509
  %575 = vst.msk [vmem:[%s3 + $0x98] sm:$0xff] %vm555, %v510
  %576 = vst.msk [vmem:[%s3 + $0xa0] sm:$0xff] %vm555, %v511
  %577 = vst.msk [vmem:[%s3 + $0xa8] sm:$0xff] %vm555, %v512
  %578 = vst.msk [vmem:[%s3 + $0xb0] sm:$0xff] %vm555, %v513
  %579 = vst.msk [vmem:[%s3 + $0xb8] sm:$0xff] %vm555, %v514
  %580 = vst.msk [vmem:[%s3 + $0xc0] sm:$0xff] %vm555, %v515
  %581 = vst.msk [vmem:[%s3 + $0xc8] sm:$0xff] %vm555, %v516
  %582 = vst.msk [vmem:[%s3 + $0xd0] sm:$0xff] %vm555, %v517
  %583 = vst.msk [vmem:[%s3 + $0xd8] sm:$0xff] %vm555, %v518
  %584 = vst.msk [vmem:[%s3 + $0xe0] sm:$0xff] %vm555, %v519
  %585 = vst.msk [vmem:[%s3 + $0xe8] sm:$0xff] %vm555, %v520
  %586 = vst.msk [vmem:[%s3 + $0xf0] sm:$0xff] %vm555, %v521
  %587 = vst.msk [vmem:[%s3 + $0xf8] sm:$0xff] %vm555, %v522
  %588 = vst.msk [vmem:[%s3 + $0x100] sm:$0xff] %vm555, %v523
  %589 = vst.msk [vmem:[%s3 + $0x108] sm:$0xff] %vm555, %v524
  %590 = vst.msk [vmem:[%s3 + $0x110] sm:$0xff] %vm555, %v525
  %591 = vst.msk [vmem:[%s3 + $0x118] sm:$0xff] %vm555, %v526
  %592 = vst.msk [vmem:[%s3 + $0x120] sm:$0xff] %vm555, %v527
  %593 = vst.msk [vmem:[%s3 + $0x128] sm:$0xff] %vm555, %v528
  %594 = vst.msk [vmem:[%s3 + $0x130] sm:$0xff] %vm555, %v529
  %595 = vst.msk [vmem:[%s3 + $0x138] sm:$0xff] %vm555, %v530
  %596 = vst.msk [vmem:[%s3 + $0x140] sm:$0xff] %vm555, %v531
  %597 = vst.msk [vmem:[%s3 + $0x148] sm:$0xff] %vm555, %v532
  %598 = vst.msk [vmem:[%s3 + $0x150] sm:$0xff] %vm555, %v533
  %599 = vst.msk [vmem:[%s3 + $0x158] sm:$0xff] %vm555, %v534
  %600 = vst.msk [vmem:[%s3 + $0x160] sm:$0xff] %vm555, %v535
  %601 = vst.msk [vmem:[%s3 + $0x168] sm:$0xff] %vm555, %v536
  %602 = vst.msk [vmem:[%s3 + $0x170] sm:$0xff] %vm555, %v537
  %603 = vst.msk [vmem:[%s3 + $0x178] sm:$0xff] %vm555, %v538
  %604 = vst.msk [vmem:[%s3 + $0x180] sm:$0xff] %vm555, %v539
  %605 = vst.msk [vmem:[%s3 + $0x188] sm:$0xff] %vm555, %v540
  %606 = vst.msk [vmem:[%s3 + $0x190] sm:$0xff] %vm555, %v541
  %607 = vst.msk [vmem:[%s3 + $0x198] sm:$0xff] %vm555, %v542
  %608 = vst.msk [vmem:[%s3 + $0x1a0] sm:$0xff] %vm555, %v543
  %609 = vst.msk [vmem:[%s3 + $0x1a8] sm:$0xff] %vm555, %v544
  %610 = vst.msk [vmem:[%s3 + $0x1b0] sm:$0xff] %vm555, %v545
  %611 = vst.msk [vmem:[%s3 + $0x1b8] sm:$0xff] %vm555, %v546
  %612 = vst.msk [vmem:[%s3 + $0x1c0] sm:$0xff] %vm555, %v547
  %613 = vst.msk [vmem:[%s3 + $0x1c8] sm:$0xff] %vm555, %v548
  %614 = vst.msk [vmem:[%s3 + $0x1d0] sm:$0xff] %vm555, %v549
  %615 = vst.msk [vmem:[%s3 + $0x1d8] sm:$0xff] %vm555, %v550
  %616 = vst.msk [vmem:[%s3 + $0x1e0] sm:$0xff] %vm555, %v551
  %617 = vst.msk [vmem:[%s3 + $0x1e8] sm:$0xff] %vm555, %v552
  %618 = vst.msk [vmem:[%s3 + $0x1f0] sm:$0xff] %vm555, %v553
  %619 = vst.msk [vmem:[%s3 + $0x1f8] sm:$0xff] %vm555, %v554
  // Predicated region
  $region14: #{dual_block_forward.23} parent=0 // pred_check
    _
  $region15: #{dual_block_forward.23} parent=0 // pred_check_branch
    %621 = sbr.rel (0) target = $region17
  $region16: #{dual_block_forward.23} parent=0 // pred_region
    _
  $region17: #{dual_block_forward.23} parent=0 // pred_fallthru
    _
  // Predicated region
  $region18: #{dual_block_forward.23} parent=0 // pred_check
    _
  $region19: #{dual_block_forward.23} parent=0 // pred_check_branch
    %623 = sbr.rel (0) target = $region21
  $region20: #{dual_block_forward.23} parent=0 // pred_region
    _
  $region21: #{dual_block_forward.23} parent=0 // pred_fallthru
    _

// kernel: dual_block_forward.25
$region0: #{dual_block_forward.25}
  #allocation0 [shape = 'u32[]', space=smem, size = 0x4, offset = 0x4, fixed_abs, tag = 'smem constant byte address 0x4 - core index']
  #allocation1 [shape = 'u32[72,128]{1,0:T(1,128)}', space=vmem, size = 0x9000, scoped, tag = 'internal scratch']
  %s0 = inlined_call_operand.vmem [shape: f32[512,36], index: 0, kind: input, shape index: {}]
  %s1 = inlined_call_operand.vmem [shape: f32[36,32], index: 1, kind: input, shape index: {}]
  %s2 = inlined_call_operand.vmem [shape: f32[1,32], index: 2, kind: input, shape index: {}]
  %s3 = inlined_call_operand.vmem [shape: f32[512,32], index: 3, kind: output, shape index: {}]
  %s4 = sld [smem:[#allocation0]]
  $region22: #{dual_block_forward.25} parent=0
    _
  %s6 = ssub.s32 1, %s4
  %s7 = scalar_select 0, %s6, %s4
  // Predicated region
  $region2: #{dual_block_forward.25} parent=0 // pred_check
    _
  $region3: #{dual_block_forward.25} parent=0 // pred_check_branch
    %9 = sbr.rel (0) target = $region5
  $region4: #{dual_block_forward.25} parent=0 // pred_region
    _
  $region5: #{dual_block_forward.25} parent=0 // pred_fallthru
    _
  // Predicated region
  $region6: #{dual_block_forward.25} parent=0 // pred_check
    _
  $region7: #{dual_block_forward.25} parent=0 // pred_check_branch
    %11 = sbr.rel (0) target = $region9
  $region8: #{dual_block_forward.25} parent=0 // pred_region
    _
  $region9: #{dual_block_forward.25} parent=0 // pred_fallthru
    _
  // Predicated region
  $region10: #{dual_block_forward.25} parent=0 // pred_check
    _
  $region11: #{dual_block_forward.25} parent=0 // pred_check_branch
    %13 = sbr.rel (0) target = $region13
  $region12: #{dual_block_forward.25} parent=0 // pred_region
    _
  $region13: #{dual_block_forward.25} parent=0 // pred_fallthru
    _
  %v14 = vld [vmem:[%s0] sm:$0xff]
  %v15 = vld [vmem:[%s0 + $0x8] sm:$0xff]
  %v16 = vld [vmem:[%s0 + $0x10] sm:$0xff]
  %v17 = vld [vmem:[%s0 + $0x18] sm:$0xff]
  %v18 = vld [vmem:[%s0 + $0x20] sm:$0xff]
  %v19 = vld [vmem:[%s0 + $0x28] sm:$0xff]
  %v20 = vld [vmem:[%s0 + $0x30] sm:$0xff]
  %v21 = vld [vmem:[%s0 + $0x38] sm:$0xff]
  %v22 = vld [vmem:[%s0 + $0x40] sm:$0xff]
  %v23 = vld [vmem:[%s0 + $0x48] sm:$0xff]
  %v24 = vld [vmem:[%s0 + $0x50] sm:$0xff]
  %v25 = vld [vmem:[%s0 + $0x58] sm:$0xff]
  %v26 = vld [vmem:[%s0 + $0x60] sm:$0xff]
  %v27 = vld [vmem:[%s0 + $0x68] sm:$0xff]
  %v28 = vld [vmem:[%s0 + $0x70] sm:$0xff]
  %v29 = vld [vmem:[%s0 + $0x78] sm:$0xff]
  %v30 = vld [vmem:[%s0 + $0x80] sm:$0xff]
  %v31 = vld [vmem:[%s0 + $0x88] sm:$0xff]
  %v32 = vld [vmem:[%s0 + $0x90] sm:$0xff]
  %v33 = vld [vmem:[%s0 + $0x98] sm:$0xff]
  %v34 = vld [vmem:[%s0 + $0xa0] sm:$0xff]
  %v35 = vld [vmem:[%s0 + $0xa8] sm:$0xff]
  %v36 = vld [vmem:[%s0 + $0xb0] sm:$0xff]
  %v37 = vld [vmem:[%s0 + $0xb8] sm:$0xff]
  %v38 = vld [vmem:[%s0 + $0xc0] sm:$0xff]
  %v39 = vld [vmem:[%s0 + $0xc8] sm:$0xff]
  %v40 = vld [vmem:[%s0 + $0xd0] sm:$0xff]
  %v41 = vld [vmem:[%s0 + $0xd8] sm:$0xff]
  %v42 = vld [vmem:[%s0 + $0xe0] sm:$0xff]
  %v43 = vld [vmem:[%s0 + $0xe8] sm:$0xff]
  %v44 = vld [vmem:[%s0 + $0xf0] sm:$0xff]
  %v45 = vld [vmem:[%s0 + $0xf8] sm:$0xff]
  %v46 = vld [vmem:[%s0 + $0x100] sm:$0xff]
  %v47 = vld [vmem:[%s0 + $0x108] sm:$0xff]
  %v48 = vld [vmem:[%s0 + $0x110] sm:$0xff]
  %v49 = vld [vmem:[%s0 + $0x118] sm:$0xff]
  %v50 = vld [vmem:[%s0 + $0x120] sm:$0xff]
  %v51 = vld [vmem:[%s0 + $0x128] sm:$0xff]
  %v52 = vld [vmem:[%s0 + $0x130] sm:$0xff]
  %v53 = vld [vmem:[%s0 + $0x138] sm:$0xff]
  %v54 = vld [vmem:[%s0 + $0x140] sm:$0xff]
  %v55 = vld [vmem:[%s0 + $0x148] sm:$0xff]
  %v56 = vld [vmem:[%s0 + $0x150] sm:$0xff]
  %v57 = vld [vmem:[%s0 + $0x158] sm:$0xff]
  %v58 = vld [vmem:[%s0 + $0x160] sm:$0xff]
  %v59 = vld [vmem:[%s0 + $0x168] sm:$0xff]
  %v60 = vld [vmem:[%s0 + $0x170] sm:$0xff]
  %v61 = vld [vmem:[%s0 + $0x178] sm:$0xff]
  %v62 = vld [vmem:[%s0 + $0x180] sm:$0xff]
  %v63 = vld [vmem:[%s0 + $0x188] sm:$0xff]
  %v64 = vld [vmem:[%s0 + $0x190] sm:$0xff]
  %v65 = vld [vmem:[%s0 + $0x198] sm:$0xff]
  %v66 = vld [vmem:[%s0 + $0x1a0] sm:$0xff]
  %v67 = vld [vmem:[%s0 + $0x1a8] sm:$0xff]
  %v68 = vld [vmem:[%s0 + $0x1b0] sm:$0xff]
  %v69 = vld [vmem:[%s0 + $0x1b8] sm:$0xff]
  %v70 = vld [vmem:[%s0 + $0x1c0] sm:$0xff]
  %v71 = vld [vmem:[%s0 + $0x1c8] sm:$0xff]
  %v72 = vld [vmem:[%s0 + $0x1d0] sm:$0xff]
  %v73 = vld [vmem:[%s0 + $0x1d8] sm:$0xff]
  %v74 = vld [vmem:[%s0 + $0x1e0] sm:$0xff]
  %v75 = vld [vmem:[%s0 + $0x1e8] sm:$0xff]
  %v76 = vld [vmem:[%s0 + $0x1f0] sm:$0xff]
  %v77 = vld [vmem:[%s0 + $0x1f8] sm:$0xff]
  %v78 = vld [vmem:[%s1] sm:$0xff]
  %v79 = vld [vmem:[%s1 + $0x8] sm:$0xff]
  %v80 = vld [vmem:[%s1 + $0x10] sm:$0xff]
  %v81 = vld [vmem:[%s1 + $0x18] sm:$0xff]
  %v82 = vld [vmem:[%s1 + $0x20] sm:$0xf]
  %v83 = vld [vmem:[%s2] sm:$0x1]
  %v85 = vperm.slane %v83, 0
  %vm87 = vcmask 293888
  %v89 = vsel %vm87, %v14, 0
  %v92 = vsel %vm87, %v15, 0
  %v95 = vsel %vm87, %v16, 0
  %v98 = vsel %vm87, %v17, 0
  %v101 = vsel %vm87, %v18, 0
  %v104 = vsel %vm87, %v19, 0
  %v107 = vsel %vm87, %v20, 0
  %v110 = vsel %vm87, %v21, 0
  %v113 = vsel %vm87, %v22, 0
  %v116 = vsel %vm87, %v23, 0
  %v119 = vsel %vm87, %v24, 0
  %v122 = vsel %vm87, %v25, 0
  %v125 = vsel %vm87, %v26, 0
  %v128 = vsel %vm87, %v27, 0
  %v131 = vsel %vm87, %v28, 0
  %v134 = vsel %vm87, %v29, 0
  %v137 = vsel %vm87, %v30, 0
  %v140 = vsel %vm87, %v31, 0
  %v143 = vsel %vm87, %v32, 0
  %v146 = vsel %vm87, %v33, 0
  %v149 = vsel %vm87, %v34, 0
  %v152 = vsel %vm87, %v35, 0
  %v155 = vsel %vm87, %v36, 0
  %v158 = vsel %vm87, %v37, 0
  %v161 = vsel %vm87, %v38, 0
  %v164 = vsel %vm87, %v39, 0
  %v167 = vsel %vm87, %v40, 0
  %v170 = vsel %vm87, %v41, 0
  %v173 = vsel %vm87, %v42, 0
  %v176 = vsel %vm87, %v43, 0
  %v179 = vsel %vm87, %v44, 0
  %v182 = vsel %vm87, %v45, 0
  %v185 = vsel %vm87, %v46, 0
  %v188 = vsel %vm87, %v47, 0
  %v191 = vsel %vm87, %v48, 0
  %v194 = vsel %vm87, %v49, 0
  %v197 = vsel %vm87, %v50, 0
  %v200 = vsel %vm87, %v51, 0
  %v203 = vsel %vm87, %v52, 0
  %v206 = vsel %vm87, %v53, 0
  %v209 = vsel %vm87, %v54, 0
  %v212 = vsel %vm87, %v55, 0
  %v215 = vsel %vm87, %v56, 0
  %v218 = vsel %vm87, %v57, 0
  %v221 = vsel %vm87, %v58, 0
  %v224 = vsel %vm87, %v59, 0
  %v227 = vsel %vm87, %v60, 0
  %v230 = vsel %vm87, %v61, 0
  %v233 = vsel %vm87, %v62, 0
  %v236 = vsel %vm87, %v63, 0
  %v239 = vsel %vm87, %v64, 0
  %v242 = vsel %vm87, %v65, 0
  %v245 = vsel %vm87, %v66, 0
  %v248 = vsel %vm87, %v67, 0
  %v251 = vsel %vm87, %v68, 0
  %v254 = vsel %vm87, %v69, 0
  %v257 = vsel %vm87, %v70, 0
  %v260 = vsel %vm87, %v71, 0
  %v263 = vsel %vm87, %v72, 0
  %v266 = vsel %vm87, %v73, 0
  %v269 = vsel %vm87, %v74, 0
  %v272 = vsel %vm87, %v75, 0
  %v275 = vsel %vm87, %v76, 0
  %v278 = vsel %vm87, %v77, 0
  %vm280 = vcmask 1043456
  %v282 = vsel %vm280, %v82, 0
  %284 = vmatpush.msra.mxu0 0.0
  %285 = vmatpush.msra.mxu0 0.0
  %286 = vmatpush.msra.mxu0 0.0
  %287 = vmatpush.msra.mxu0 0.0
  %288 = vmatpush.msra.mxu0 0.0
  %289 = vmatpush.msra.mxu0 0.0
  %290 = vmatpush.msra.mxu0 0.0
  %291 = vmatpush.msra.mxu0 0.0
  %292 = vmatpush.msra.mxu0 0.0
  %293 = vmatpush.msra.mxu0 0.0
  %294 = vmatpush.msra.mxu0 0.0
  %295 = vmatpush.msra.mxu0 %v282
  %296 = vmatpush.msra.mxu0 %v81
  %297 = vmatpush.msra.mxu0 %v80
  %298 = vmatpush.msra.mxu0 %v79
  %299 = vmatpush.msra.mxu0 %v78
  %300 = vmatmul.f32.gmra.mxu0 %v89
  %v301 = vpop.f32.mrf.mxu0
  %v302 = vadd.f32 %v85, %v301
  %303 = vmatmul.f32.gmra.mxu0 %v92
  %v304 = vpop.f32.mrf.mxu0
  %v305 = vadd.f32 %v85, %v304
  %306 = vmatmul.f32.gmra.mxu0 %v95
  %v307 = vpop.f32.mrf.mxu0
  %v308 = vadd.f32 %v85, %v307
  %309 = vmatmul.f32.gmra.mxu0 %v98
  %v310 = vpop.f32.mrf.mxu0
  %v311 = vadd.f32 %v85, %v310
  %312 = vmatmul.f32.gmra.mxu0 %v101
  %v313 = vpop.f32.mrf.mxu0
  %v314 = vadd.f32 %v85, %v313
  %315 = vmatmul.f32.gmra.mxu0 %v104
  %v316 = vpop.f32.mrf.mxu0
  %v317 = vadd.f32 %v85, %v316
  %318 = vmatmul.f32.gmra.mxu0 %v107
  %v319 = vpop.f32.mrf.mxu0
  %v320 = vadd.f32 %v85, %v319
  %321 = vmatmul.f32.gmra.mxu0 %v110
  %v322 = vpop.f32.mrf.mxu0
  %v323 = vadd.f32 %v85, %v322
  %324 = vmatmul.f32.gmra.mxu0 %v113
  %v325 = vpop.f32.mrf.mxu0
  %v326 = vadd.f32 %v85, %v325
  %327 = vmatmul.f32.gmra.mxu0 %v116
  %v328 = vpop.f32.mrf.mxu0
  %v329 = vadd.f32 %v85, %v328
  %330 = vmatmul.f32.gmra.mxu0 %v119
  %v331 = vpop.f32.mrf.mxu0
  %v332 = vadd.f32 %v85, %v331
  %333 = vmatmul.f32.gmra.mxu0 %v122
  %v334 = vpop.f32.mrf.mxu0
  %v335 = vadd.f32 %v85, %v334
  %336 = vmatmul.f32.gmra.mxu0 %v125
  %v337 = vpop.f32.mrf.mxu0
  %v338 = vadd.f32 %v85, %v337
  %339 = vmatmul.f32.gmra.mxu0 %v128
  %v340 = vpop.f32.mrf.mxu0
  %v341 = vadd.f32 %v85, %v340
  %342 = vmatmul.f32.gmra.mxu0 %v131
  %v343 = vpop.f32.mrf.mxu0
  %v344 = vadd.f32 %v85, %v343
  %345 = vmatmul.f32.gmra.mxu0 %v134
  %v346 = vpop.f32.mrf.mxu0
  %v347 = vadd.f32 %v85, %v346
  %348 = vmatmul.f32.gmra.mxu0 %v137
  %v349 = vpop.f32.mrf.mxu0
  %v350 = vadd.f32 %v85, %v349
  %351 = vmatmul.f32.gmra.mxu0 %v140
  %v352 = vpop.f32.mrf.mxu0
  %v353 = vadd.f32 %v85, %v352
  %354 = vmatmul.f32.gmra.mxu0 %v143
  %v355 = vpop.f32.mrf.mxu0
  %v356 = vadd.f32 %v85, %v355
  %357 = vmatmul.f32.gmra.mxu0 %v146
  %v358 = vpop.f32.mrf.mxu0
  %v359 = vadd.f32 %v85, %v358
  %360 = vmatmul.f32.gmra.mxu0 %v149
  %v361 = vpop.f32.mrf.mxu0
  %v362 = vadd.f32 %v85, %v361
  %363 = vmatmul.f32.gmra.mxu0 %v152
  %v364 = vpop.f32.mrf.mxu0
  %v365 = vadd.f32 %v85, %v364
  %366 = vmatmul.f32.gmra.mxu0 %v155
  %v367 = vpop.f32.mrf.mxu0
  %v368 = vadd.f32 %v85, %v367
  %369 = vmatmul.f32.gmra.mxu0 %v158
  %v370 = vpop.f32.mrf.mxu0
  %v371 = vadd.f32 %v85, %v370
  %372 = vmatmul.f32.gmra.mxu0 %v161
  %v373 = vpop.f32.mrf.mxu0
  %v374 = vadd.f32 %v85, %v373
  %375 = vmatmul.f32.gmra.mxu0 %v164
  %v376 = vpop.f32.mrf.mxu0
  %v377 = vadd.f32 %v85, %v376
  %378 = vmatmul.f32.gmra.mxu0 %v167
  %v379 = vpop.f32.mrf.mxu0
  %v380 = vadd.f32 %v85, %v379
  %381 = vmatmul.f32.gmra.mxu0 %v170
  %v382 = vpop.f32.mrf.mxu0
  %v383 = vadd.f32 %v85, %v382
  %384 = vmatmul.f32.gmra.mxu0 %v173
  %v385 = vpop.f32.mrf.mxu0
  %v386 = vadd.f32 %v85, %v385
  %387 = vmatmul.f32.gmra.mxu0 %v176
  %v388 = vpop.f32.mrf.mxu0
  %v389 = vadd.f32 %v85, %v388
  %390 = vmatmul.f32.gmra.mxu0 %v179
  %v391 = vpop.f32.mrf.mxu0
  %v392 = vadd.f32 %v85, %v391
  %393 = vmatmul.f32.gmra.mxu0 %v182
  %v394 = vpop.f32.mrf.mxu0
  %v395 = vadd.f32 %v85, %v394
  %396 = vmatmul.f32.gmra.mxu0 %v185
  %v397 = vpop.f32.mrf.mxu0
  %v398 = vadd.f32 %v85, %v397
  %399 = vmatmul.f32.gmra.mxu0 %v188
  %v400 = vpop.f32.mrf.mxu0
  %v401 = vadd.f32 %v85, %v400
  %402 = vmatmul.f32.gmra.mxu0 %v191
  %v403 = vpop.f32.mrf.mxu0
  %v404 = vadd.f32 %v85, %v403
  %405 = vmatmul.f32.gmra.mxu0 %v194
  %v406 = vpop.f32.mrf.mxu0
  %v407 = vadd.f32 %v85, %v406
  %408 = vmatmul.f32.gmra.mxu0 %v197
  %v409 = vpop.f32.mrf.mxu0
  %v410 = vadd.f32 %v85, %v409
  %411 = vmatmul.f32.gmra.mxu0 %v200
  %v412 = vpop.f32.mrf.mxu0
  %v413 = vadd.f32 %v85, %v412
  %414 = vmatmul.f32.gmra.mxu0 %v203
  %v415 = vpop.f32.mrf.mxu0
  %v416 = vadd.f32 %v85, %v415
  %417 = vmatmul.f32.gmra.mxu0 %v206
  %v418 = vpop.f32.mrf.mxu0
  %v419 = vadd.f32 %v85, %v418
  %420 = vmatmul.f32.gmra.mxu0 %v209
  %v421 = vpop.f32.mrf.mxu0
  %v422 = vadd.f32 %v85, %v421
  %423 = vmatmul.f32.gmra.mxu0 %v212
  %v424 = vpop.f32.mrf.mxu0
  %v425 = vadd.f32 %v85, %v424
  %426 = vmatmul.f32.gmra.mxu0 %v215
  %v427 = vpop.f32.mrf.mxu0
  %v428 = vadd.f32 %v85, %v427
  %429 = vmatmul.f32.gmra.mxu0 %v218
  %v430 = vpop.f32.mrf.mxu0
  %v431 = vadd.f32 %v85, %v430
  %432 = vmatmul.f32.gmra.mxu0 %v221
  %v433 = vpop.f32.mrf.mxu0
  %v434 = vadd.f32 %v85, %v433
  %435 = vmatmul.f32.gmra.mxu0 %v224
  %v436 = vpop.f32.mrf.mxu0
  %v437 = vadd.f32 %v85, %v436
  %438 = vmatmul.f32.gmra.mxu0 %v227
  %v439 = vpop.f32.mrf.mxu0
  %v440 = vadd.f32 %v85, %v439
  %441 = vmatmul.f32.gmra.mxu0 %v230
  %v442 = vpop.f32.mrf.mxu0
  %v443 = vadd.f32 %v85, %v442
  %444 = vmatmul.f32.gmra.mxu0 %v233
  %v445 = vpop.f32.mrf.mxu0
  %v446 = vadd.f32 %v85, %v445
  %447 = vmatmul.f32.gmra.mxu0 %v236
  %v448 = vpop.f32.mrf.mxu0
  %v449 = vadd.f32 %v85, %v448
  %450 = vmatmul.f32.gmra.mxu0 %v239
  %v451 = vpop.f32.mrf.mxu0
  %v452 = vadd.f32 %v85, %v451
  %453 = vmatmul.f32.gmra.mxu0 %v242
  %v454 = vpop.f32.mrf.mxu0
  %v455 = vadd.f32 %v85, %v454
  %456 = vmatmul.f32.gmra.mxu0 %v245
  %v457 = vpop.f32.mrf.mxu0
  %v458 = vadd.f32 %v85, %v457
  %459 = vmatmul.f32.gmra.mxu0 %v248
  %v460 = vpop.f32.mrf.mxu0
  %v461 = vadd.f32 %v85, %v460
  %462 = vmatmul.f32.gmra.mxu0 %v251
  %v463 = vpop.f32.mrf.mxu0
  %v464 = vadd.f32 %v85, %v463
  %465 = vmatmul.f32.gmra.mxu0 %v254
  %v466 = vpop.f32.mrf.mxu0
  %v467 = vadd.f32 %v85, %v466
  %468 = vmatmul.f32.gmra.mxu0 %v257
  %v469 = vpop.f32.mrf.mxu0
  %v470 = vadd.f32 %v85, %v469
  %471 = vmatmul.f32.gmra.mxu0 %v260
  %v472 = vpop.f32.mrf.mxu0
  %v473 = vadd.f32 %v85, %v472
  %474 = vmatmul.f32.gmra.mxu0 %v263
  %v475 = vpop.f32.mrf.mxu0
  %v476 = vadd.f32 %v85, %v475
  %477 = vmatmul.f32.gmra.mxu0 %v266
  %v478 = vpop.f32.mrf.mxu0
  %v479 = vadd.f32 %v85, %v478
  %480 = vmatmul.f32.gmra.mxu0 %v269
  %v481 = vpop.f32.mrf.mxu0
  %v482 = vadd.f32 %v85, %v481
  %483 = vmatmul.f32.gmra.mxu0 %v272
  %v484 = vpop.f32.mrf.mxu0
  %v485 = vadd.f32 %v85, %v484
  %486 = vmatmul.f32.gmra.mxu0 %v275
  %v487 = vpop.f32.mrf.mxu0
  %v488 = vadd.f32 %v85, %v487
  %489 = vmatmul.f32.gmra.mxu0 %v278
  %v490 = vpop.f32.mrf.mxu0
  %v491 = vadd.f32 %v85, %v490
  %492 = vdwg.mxu0
  %v493 = vmax.f32 %v302, 0.0
  %v494 = vmax.f32 %v305, 0.0
  %v495 = vmax.f32 %v308, 0.0
  %v496 = vmax.f32 %v311, 0.0
  %v497 = vmax.f32 %v314, 0.0
  %v498 = vmax.f32 %v317, 0.0
  %v499 = vmax.f32 %v320, 0.0
  %v500 = vmax.f32 %v323, 0.0
  %v501 = vmax.f32 %v326, 0.0
  %v502 = vmax.f32 %v329, 0.0
  %v503 = vmax.f32 %v332, 0.0
  %v504 = vmax.f32 %v335, 0.0
  %v505 = vmax.f32 %v338, 0.0
  %v506 = vmax.f32 %v341, 0.0
  %v507 = vmax.f32 %v344, 0.0
  %v508 = vmax.f32 %v347, 0.0
  %v509 = vmax.f32 %v350, 0.0
  %v510 = vmax.f32 %v353, 0.0
  %v511 = vmax.f32 %v356, 0.0
  %v512 = vmax.f32 %v359, 0.0
  %v513 = vmax.f32 %v362, 0.0
  %v514 = vmax.f32 %v365, 0.0
  %v515 = vmax.f32 %v368, 0.0
  %v516 = vmax.f32 %v371, 0.0
  %v517 = vmax.f32 %v374, 0.0
  %v518 = vmax.f32 %v377, 0.0
  %v519 = vmax.f32 %v380, 0.0
  %v520 = vmax.f32 %v383, 0.0
  %v521 = vmax.f32 %v386, 0.0
  %v522 = vmax.f32 %v389, 0.0
  %v523 = vmax.f32 %v392, 0.0
  %v524 = vmax.f32 %v395, 0.0
  %v525 = vmax.f32 %v398, 0.0
  %v526 = vmax.f32 %v401, 0.0
  %v527 = vmax.f32 %v404, 0.0
  %v528 = vmax.f32 %v407, 0.0
  %v529 = vmax.f32 %v410, 0.0
  %v530 = vmax.f32 %v413, 0.0
  %v531 = vmax.f32 %v416, 0.0
  %v532 = vmax.f32 %v419, 0.0
  %v533 = vmax.f32 %v422, 0.0
  %v534 = vmax.f32 %v425, 0.0
  %v535 = vmax.f32 %v428, 0.0
  %v536 = vmax.f32 %v431, 0.0
  %v537 = vmax.f32 %v434, 0.0
  %v538 = vmax.f32 %v437, 0.0
  %v539 = vmax.f32 %v440, 0.0
  %v540 = vmax.f32 %v443, 0.0
  %v541 = vmax.f32 %v446, 0.0
  %v542 = vmax.f32 %v449, 0.0
  %v543 = vmax.f32 %v452, 0.0
  %v544 = vmax.f32 %v455, 0.0
  %v545 = vmax.f32 %v458, 0.0
  %v546 = vmax.f32 %v461, 0.0
  %v547 = vmax.f32 %v464, 0.0
  %v548 = vmax.f32 %v467, 0.0
  %v549 = vmax.f32 %v470, 0.0
  %v550 = vmax.f32 %v473, 0.0
  %v551 = vmax.f32 %v476, 0.0
  %v552 = vmax.f32 %v479, 0.0
  %v553 = vmax.f32 %v482, 0.0
  %v554 = vmax.f32 %v485, 0.0
  %v555 = vmax.f32 %v488, 0.0
  %v556 = vmax.f32 %v491, 0.0
  %vm557 = vcmask 261120
  %558 = vst.msk [vmem:[%s3] sm:$0xff] %vm557, %v493
  %559 = vst.msk [vmem:[%s3 + $0x8] sm:$0xff] %vm557, %v494
  %560 = vst.msk [vmem:[%s3 + $0x10] sm:$0xff] %vm557, %v495
  %561 = vst.msk [vmem:[%s3 + $0x18] sm:$0xff] %vm557, %v496
  %562 = vst.msk [vmem:[%s3 + $0x20] sm:$0xff] %vm557, %v497
  %563 = vst.msk [vmem:[%s3 + $0x28] sm:$0xff] %vm557, %v498
  %564 = vst.msk [vmem:[%s3 + $0x30] sm:$0xff] %vm557, %v499
  %565 = vst.msk [vmem:[%s3 + $0x38] sm:$0xff] %vm557, %v500
  %566 = vst.msk [vmem:[%s3 + $0x40] sm:$0xff] %vm557, %v501
  %567 = vst.msk [vmem:[%s3 + $0x48] sm:$0xff] %vm557, %v502
  %568 = vst.msk [vmem:[%s3 + $0x50] sm:$0xff] %vm557, %v503
  %569 = vst.msk [vmem:[%s3 + $0x58] sm:$0xff] %vm557, %v504
  %570 = vst.msk [vmem:[%s3 + $0x60] sm:$0xff] %vm557, %v505
  %571 = vst.msk [vmem:[%s3 + $0x68] sm:$0xff] %vm557, %v506
  %572 = vst.msk [vmem:[%s3 + $0x70] sm:$0xff] %vm557, %v507
  %573 = vst.msk [vmem:[%s3 + $0x78] sm:$0xff] %vm557, %v508
  %574 = vst.msk [vmem:[%s3 + $0x80] sm:$0xff] %vm557, %v509
  %575 = vst.msk [vmem:[%s3 + $0x88] sm:$0xff] %vm557, %v510
  %576 = vst.msk [vmem:[%s3 + $0x90] sm:$0xff] %vm557, %v511
  %577 = vst.msk [vmem:[%s3 + $0x98] sm:$0xff] %vm557, %v512
  %578 = vst.msk [vmem:[%s3 + $0xa0] sm:$0xff] %vm557, %v513
  %579 = vst.msk [vmem:[%s3 + $0xa8] sm:$0xff] %vm557, %v514
  %580 = vst.msk [vmem:[%s3 + $0xb0] sm:$0xff] %vm557, %v515
  %581 = vst.msk [vmem:[%s3 + $0xb8] sm:$0xff] %vm557, %v516
  %582 = vst.msk [vmem:[%s3 + $0xc0] sm:$0xff] %vm557, %v517
  %583 = vst.msk [vmem:[%s3 + $0xc8] sm:$0xff] %vm557, %v518
  %584 = vst.msk [vmem:[%s3 + $0xd0] sm:$0xff] %vm557, %v519
  %585 = vst.msk [vmem:[%s3 + $0xd8] sm:$0xff] %vm557, %v520
  %586 = vst.msk [vmem:[%s3 + $0xe0] sm:$0xff] %vm557, %v521
  %587 = vst.msk [vmem:[%s3 + $0xe8] sm:$0xff] %vm557, %v522
  %588 = vst.msk [vmem:[%s3 + $0xf0] sm:$0xff] %vm557, %v523
  %589 = vst.msk [vmem:[%s3 + $0xf8] sm:$0xff] %vm557, %v524
  %590 = vst.msk [vmem:[%s3 + $0x100] sm:$0xff] %vm557, %v525
  %591 = vst.msk [vmem:[%s3 + $0x108] sm:$0xff] %vm557, %v526
  %592 = vst.msk [vmem:[%s3 + $0x110] sm:$0xff] %vm557, %v527
  %593 = vst.msk [vmem:[%s3 + $0x118] sm:$0xff] %vm557, %v528
  %594 = vst.msk [vmem:[%s3 + $0x120] sm:$0xff] %vm557, %v529
  %595 = vst.msk [vmem:[%s3 + $0x128] sm:$0xff] %vm557, %v530
  %596 = vst.msk [vmem:[%s3 + $0x130] sm:$0xff] %vm557, %v531
  %597 = vst.msk [vmem:[%s3 + $0x138] sm:$0xff] %vm557, %v532
  %598 = vst.msk [vmem:[%s3 + $0x140] sm:$0xff] %vm557, %v533
  %599 = vst.msk [vmem:[%s3 + $0x148] sm:$0xff] %vm557, %v534
  %600 = vst.msk [vmem:[%s3 + $0x150] sm:$0xff] %vm557, %v535
  %601 = vst.msk [vmem:[%s3 + $0x158] sm:$0xff] %vm557, %v536
  %602 = vst.msk [vmem:[%s3 + $0x160] sm:$0xff] %vm557, %v537
  %603 = vst.msk [vmem:[%s3 + $0x168] sm:$0xff] %vm557, %v538
  %604 = vst.msk [vmem:[%s3 + $0x170] sm:$0xff] %vm557, %v539
  %605 = vst.msk [vmem:[%s3 + $0x178] sm:$0xff] %vm557, %v540
  %606 = vst.msk [vmem:[%s3 + $0x180] sm:$0xff] %vm557, %v541
  %607 = vst.msk [vmem:[%s3 + $0x188] sm:$0xff] %vm557, %v542
  %608 = vst.msk [vmem:[%s3 + $0x190] sm:$0xff] %vm557, %v543
  %609 = vst.msk [vmem:[%s3 + $0x198] sm:$0xff] %vm557, %v544
  %610 = vst.msk [vmem:[%s3 + $0x1a0] sm:$0xff] %vm557, %v545
  %611 = vst.msk [vmem:[%s3 + $0x1a8] sm:$0xff] %vm557, %v546
  %612 = vst.msk [vmem:[%s3 + $0x1b0] sm:$0xff] %vm557, %v547
  %613 = vst.msk [vmem:[%s3 + $0x1b8] sm:$0xff] %vm557, %v548
  %614 = vst.msk [vmem:[%s3 + $0x1c0] sm:$0xff] %vm557, %v549
  %615 = vst.msk [vmem:[%s3 + $0x1c8] sm:$0xff] %vm557, %v550
  %616 = vst.msk [vmem:[%s3 + $0x1d0] sm:$0xff] %vm557, %v551
  %617 = vst.msk [vmem:[%s3 + $0x1d8] sm:$0xff] %vm557, %v552
  %618 = vst.msk [vmem:[%s3 + $0x1e0] sm:$0xff] %vm557, %v553
  %619 = vst.msk [vmem:[%s3 + $0x1e8] sm:$0xff] %vm557, %v554
  %620 = vst.msk [vmem:[%s3 + $0x1f0] sm:$0xff] %vm557, %v555
  %621 = vst.msk [vmem:[%s3 + $0x1f8] sm:$0xff] %vm557, %v556
  // Predicated region
  $region14: #{dual_block_forward.25} parent=0 // pred_check
    _
  $region15: #{dual_block_forward.25} parent=0 // pred_check_branch
    %623 = sbr.rel (0) target = $region17
  $region16: #{dual_block_forward.25} parent=0 // pred_region
    _
  $region17: #{dual_block_forward.25} parent=0 // pred_fallthru
    _
  // Predicated region
  $region18: #{dual_block_forward.25} parent=0 // pred_check
    _
  $region19: #{dual_block_forward.25} parent=0 // pred_check_branch
    %625 = sbr.rel (0) target = $region21
  $region20: #{dual_block_forward.25} parent=0 // pred_region
    _
  $region21: #{dual_block_forward.25} parent=0 // pred_fallthru
    _

// kernel: dual_block_forward.19
$region0: #{dual_block_forward.19}
  #allocation0 [shape = 'u32[]', space=smem, size = 0x4, offset = 0x4, fixed_abs, tag = 'smem constant byte address 0x4 - core index']
  #allocation1 [shape = 'u32[72,128]{1,0:T(1,128)}', space=vmem, size = 0x9000, scoped, tag = 'internal scratch']
  %s0 = inlined_call_operand.vmem [shape: f32[512,60], index: 0, kind: input, shape index: {}]
  %s1 = inlined_call_operand.vmem [shape: f32[60,16], index: 1, kind: input, shape index: {}]
  %s2 = inlined_call_operand.vmem [shape: f32[1,16], index: 2, kind: input, shape index: {}]
  %s3 = inlined_call_operand.vmem [shape: f32[512,16], index: 3, kind: output, shape index: {}]
  %s4 = sld [smem:[#allocation0]]
  $region22: #{dual_block_forward.19} parent=0
    _
  %s6 = ssub.s32 1, %s4
  %s7 = scalar_select 0, %s6, %s4
  // Predicated region
  $region2: #{dual_block_forward.19} parent=0 // pred_check
    _
  $region3: #{dual_block_forward.19} parent=0 // pred_check_branch
    %9 = sbr.rel (0) target = $region5
  $region4: #{dual_block_forward.19} parent=0 // pred_region
    _
  $region5: #{dual_block_forward.19} parent=0 // pred_fallthru
    _
  // Predicated region
  $region6: #{dual_block_forward.19} parent=0 // pred_check
    _
  $region7: #{dual_block_forward.19} parent=0 // pred_check_branch
    %11 = sbr.rel (0) target = $region9
  $region8: #{dual_block_forward.19} parent=0 // pred_region
    _
  $region9: #{dual_block_forward.19} parent=0 // pred_fallthru
    _
  // Predicated region
  $region10: #{dual_block_forward.19} parent=0 // pred_check
    _
  $region11: #{dual_block_forward.19} parent=0 // pred_check_branch
    %13 = sbr.rel (0) target = $region13
  $region12: #{dual_block_forward.19} parent=0 // pred_region
    _
  $region13: #{dual_block_forward.19} parent=0 // pred_fallthru
    _
  %v14 = vld [vmem:[%s0] sm:$0xff]
  %v15 = vld [vmem:[%s0 + $0x8] sm:$0xff]
  %v16 = vld [vmem:[%s0 + $0x10] sm:$0xff]
  %v17 = vld [vmem:[%s0 + $0x18] sm:$0xff]
  %v18 = vld [vmem:[%s0 + $0x20] sm:$0xff]
  %v19 = vld [vmem:[%s0 + $0x28] sm:$0xff]
  %v20 = vld [vmem:[%s0 + $0x30] sm:$0xff]
  %v21 = vld [vmem:[%s0 + $0x38] sm:$0xff]
  %v22 = vld [vmem:[%s0 + $0x40] sm:$0xff]
  %v23 = vld [vmem:[%s0 + $0x48] sm:$0xff]
  %v24 = vld [vmem:[%s0 + $0x50] sm:$0xff]
  %v25 = vld [vmem:[%s0 + $0x58] sm:$0xff]
  %v26 = vld [vmem:[%s0 + $0x60] sm:$0xff]
  %v27 = vld [vmem:[%s0 + $0x68] sm:$0xff]
  %v28 = vld [vmem:[%s0 + $0x70] sm:$0xff]
  %v29 = vld [vmem:[%s0 + $0x78] sm:$0xff]
  %v30 = vld [vmem:[%s0 + $0x80] sm:$0xff]
  %v31 = vld [vmem:[%s0 + $0x88] sm:$0xff]
  %v32 = vld [vmem:[%s0 + $0x90] sm:$0xff]
  %v33 = vld [vmem:[%s0 + $0x98] sm:$0xff]
  %v34 = vld [vmem:[%s0 + $0xa0] sm:$0xff]
  %v35 = vld [vmem:[%s0 + $0xa8] sm:$0xff]
  %v36 = vld [vmem:[%s0 + $0xb0] sm:$0xff]
  %v37 = vld [vmem:[%s0 + $0xb8] sm:$0xff]
  %v38 = vld [vmem:[%s0 + $0xc0] sm:$0xff]
  %v39 = vld [vmem:[%s0 + $0xc8] sm:$0xff]
  %v40 = vld [vmem:[%s0 + $0xd0] sm:$0xff]
  %v41 = vld [vmem:[%s0 + $0xd8] sm:$0xff]
  %v42 = vld [vmem:[%s0 + $0xe0] sm:$0xff]
  %v43 = vld [vmem:[%s0 + $0xe8] sm:$0xff]
  %v44 = vld [vmem:[%s0 + $0xf0] sm:$0xff]
  %v45 = vld [vmem:[%s0 + $0xf8] sm:$0xff]
  %v46 = vld [vmem:[%s0 + $0x100] sm:$0xff]
  %v47 = vld [vmem:[%s0 + $0x108] sm:$0xff]
  %v48 = vld [vmem:[%s0 + $0x110] sm:$0xff]
  %v49 = vld [vmem:[%s0 + $0x118] sm:$0xff]
  %v50 = vld [vmem:[%s0 + $0x120] sm:$0xff]
  %v51 = vld [vmem:[%s0 + $0x128] sm:$0xff]
  %v52 = vld [vmem:[%s0 + $0x130] sm:$0xff]
  %v53 = vld [vmem:[%s0 + $0x138] sm:$0xff]
  %v54 = vld [vmem:[%s0 + $0x140] sm:$0xff]
  %v55 = vld [vmem:[%s0 + $0x148] sm:$0xff]
  %v56 = vld [vmem:[%s0 + $0x150] sm:$0xff]
  %v57 = vld [vmem:[%s0 + $0x158] sm:$0xff]
  %v58 = vld [vmem:[%s0 + $0x160] sm:$0xff]
  %v59 = vld [vmem:[%s0 + $0x168] sm:$0xff]
  %v60 = vld [vmem:[%s0 + $0x170] sm:$0xff]
  %v61 = vld [vmem:[%s0 + $0x178] sm:$0xff]
  %v62 = vld [vmem:[%s0 + $0x180] sm:$0xff]
  %v63 = vld [vmem:[%s0 + $0x188] sm:$0xff]
  %v64 = vld [vmem:[%s0 + $0x190] sm:$0xff]
  %v65 = vld [vmem:[%s0 + $0x198] sm:$0xff]
  %v66 = vld [vmem:[%s0 + $0x1a0] sm:$0xff]
  %v67 = vld [vmem:[%s0 + $0x1a8] sm:$0xff]
  %v68 = vld [vmem:[%s0 + $0x1b0] sm:$0xff]
  %v69 = vld [vmem:[%s0 + $0x1b8] sm:$0xff]
  %v70 = vld [vmem:[%s0 + $0x1c0] sm:$0xff]
  %v71 = vld [vmem:[%s0 + $0x1c8] sm:$0xff]
  %v72 = vld [vmem:[%s0 + $0x1d0] sm:$0xff]
  %v73 = vld [vmem:[%s0 + $0x1d8] sm:$0xff]
  %v74 = vld [vmem:[%s0 + $0x1e0] sm:$0xff]
  %v75 = vld [vmem:[%s0 + $0x1e8] sm:$0xff]
  %v76 = vld [vmem:[%s0 + $0x1f0] sm:$0xff]
  %v77 = vld [vmem:[%s0 + $0x1f8] sm:$0xff]
  %v78 = vld [vmem:[%s1] sm:$0xff]
  %v79 = vld [vmem:[%s1 + $0x8] sm:$0xff]
  %v80 = vld [vmem:[%s1 + $0x10] sm:$0xff]
  %v81 = vld [vmem:[%s1 + $0x18] sm:$0xff]
  %v82 = vld [vmem:[%s1 + $0x20] sm:$0xff]
  %v83 = vld [vmem:[%s1 + $0x28] sm:$0xff]
  %v84 = vld [vmem:[%s1 + $0x30] sm:$0xff]
  %v85 = vld [vmem:[%s1 + $0x38] sm:$0xf]
  %v86 = vld [vmem:[%s2] sm:$0x1]
  %v88 = vperm.slane %v86, 0
  %vm90 = vcmask 490496
  %v92 = vsel %vm90, %v14, 0
  %v95 = vsel %vm90, %v15, 0
  %v98 = vsel %vm90, %v16, 0
  %v101 = vsel %vm90, %v17, 0
  %v104 = vsel %vm90, %v18, 0
  %v107 = vsel %vm90, %v19, 0
  %v110 = vsel %vm90, %v20, 0
  %v113 = vsel %vm90, %v21, 0
  %v116 = vsel %vm90, %v22, 0
  %v119 = vsel %vm90, %v23, 0
  %v122 = vsel %vm90, %v24, 0
  %v125 = vsel %vm90, %v25, 0
  %v128 = vsel %vm90, %v26, 0
  %v131 = vsel %vm90, %v27, 0
  %v134 = vsel %vm90, %v28, 0
  %v137 = vsel %vm90, %v29, 0
  %v140 = vsel %vm90, %v30, 0
  %v143 = vsel %vm90, %v31, 0
  %v146 = vsel %vm90, %v32, 0
  %v149 = vsel %vm90, %v33, 0
  %v152 = vsel %vm90, %v34, 0
  %v155 = vsel %vm90, %v35, 0
  %v158 = vsel %vm90, %v36, 0
  %v161 = vsel %vm90, %v37, 0
  %v164 = vsel %vm90, %v38, 0
  %v167 = vsel %vm90, %v39, 0
  %v170 = vsel %vm90, %v40, 0
  %v173 = vsel %vm90, %v41, 0
  %v176 = vsel %vm90, %v42, 0
  %v179 = vsel %vm90, %v43, 0
  %v182 = vsel %vm90, %v44, 0
  %v185 = vsel %vm90, %v45, 0
  %v188 = vsel %vm90, %v46, 0
  %v191 = vsel %vm90, %v47, 0
  %v194 = vsel %vm90, %v48, 0
  %v197 = vsel %vm90, %v49, 0
  %v200 = vsel %vm90, %v50, 0
  %v203 = vsel %vm90, %v51, 0
  %v206 = vsel %vm90, %v52, 0
  %v209 = vsel %vm90, %v53, 0
  %v212 = vsel %vm90, %v54, 0
  %v215 = vsel %vm90, %v55, 0
  %v218 = vsel %vm90, %v56, 0
  %v221 = vsel %vm90, %v57, 0
  %v224 = vsel %vm90, %v58, 0
  %v227 = vsel %vm90, %v59, 0
  %v230 = vsel %vm90, %v60, 0
  %v233 = vsel %vm90, %v61, 0
  %v236 = vsel %vm90, %v62, 0
  %v239 = vsel %vm90, %v63, 0
  %v242 = vsel %vm90, %v64, 0
  %v245 = vsel %vm90, %v65, 0
  %v248 = vsel %vm90, %v66, 0
  %v251 = vsel %vm90, %v67, 0
  %v254 = vsel %vm90, %v68, 0
  %v257 = vsel %vm90, %v69, 0
  %v260 = vsel %vm90, %v70, 0
  %v263 = vsel %vm90, %v71, 0
  %v266 = vsel %vm90, %v72, 0
  %v269 = vsel %vm90, %v73, 0
  %v272 = vsel %vm90, %v74, 0
  %v275 = vsel %vm90, %v75, 0
  %v278 = vsel %vm90, %v76, 0
  %v281 = vsel %vm90, %v77, 0
  %vm283 = vcmask 1043456
  %v285 = vsel %vm283, %v85, 0
  %287 = vmatpush.msra.mxu0 0.0
  %288 = vmatpush.msra.mxu0 0.0
  %289 = vmatpush.msra.mxu0 0.0
  %290 = vmatpush.msra.mxu0 0.0
  %291 = vmatpush.msra.mxu0 0.0
  %292 = vmatpush.msra.mxu0 0.0
  %293 = vmatpush.msra.mxu0 0.0
  %294 = vmatpush.msra.mxu0 0.0
  %295 = vmatpush.msra.mxu0 %v285
  %296 = vmatpush.msra.mxu0 %v84
  %297 = vmatpush.msra.mxu0 %v83
  %298 = vmatpush.msra.mxu0 %v82
  %299 = vmatpush.msra.mxu0 %v81
  %300 = vmatpush.msra.mxu0 %v80
  %301 = vmatpush.msra.mxu0 %v79
  %302 = vmatpush.msra.mxu0 %v78
  %303 = vmatmul.f32.gmra.mxu0 %v92
  %v304 = vpop.f32.mrf.mxu0
  %v305 = vadd.f32 %v88, %v304
  %306 = vmatmul.f32.gmra.mxu0 %v95
  %v307 = vpop.f32.mrf.mxu0
  %v308 = vadd.f32 %v88, %v307
  %309 = vmatmul.f32.gmra.mxu0 %v98
  %v310 = vpop.f32.mrf.mxu0
  %v311 = vadd.f32 %v88, %v310
  %312 = vmatmul.f32.gmra.mxu0 %v101
  %v313 = vpop.f32.mrf.mxu0
  %v314 = vadd.f32 %v88, %v313
  %315 = vmatmul.f32.gmra.mxu0 %v104
  %v316 = vpop.f32.mrf.mxu0
  %v317 = vadd.f32 %v88, %v316
  %318 = vmatmul.f32.gmra.mxu0 %v107
  %v319 = vpop.f32.mrf.mxu0
  %v320 = vadd.f32 %v88, %v319
  %321 = vmatmul.f32.gmra.mxu0 %v110
  %v322 = vpop.f32.mrf.mxu0
  %v323 = vadd.f32 %v88, %v322
  %324 = vmatmul.f32.gmra.mxu0 %v113
  %v325 = vpop.f32.mrf.mxu0
  %v326 = vadd.f32 %v88, %v325
  %327 = vmatmul.f32.gmra.mxu0 %v116
  %v328 = vpop.f32.mrf.mxu0
  %v329 = vadd.f32 %v88, %v328
  %330 = vmatmul.f32.gmra.mxu0 %v119
  %v331 = vpop.f32.mrf.mxu0
  %v332 = vadd.f32 %v88, %v331
  %333 = vmatmul.f32.gmra.mxu0 %v122
  %v334 = vpop.f32.mrf.mxu0
  %v335 = vadd.f32 %v88, %v334
  %336 = vmatmul.f32.gmra.mxu0 %v125
  %v337 = vpop.f32.mrf.mxu0
  %v338 = vadd.f32 %v88, %v337
  %339 = vmatmul.f32.gmra.mxu0 %v128
  %v340 = vpop.f32.mrf.mxu0
  %v341 = vadd.f32 %v88, %v340
  %342 = vmatmul.f32.gmra.mxu0 %v131
  %v343 = vpop.f32.mrf.mxu0
  %v344 = vadd.f32 %v88, %v343
  %345 = vmatmul.f32.gmra.mxu0 %v134
  %v346 = vpop.f32.mrf.mxu0
  %v347 = vadd.f32 %v88, %v346
  %348 = vmatmul.f32.gmra.mxu0 %v137
  %v349 = vpop.f32.mrf.mxu0
  %v350 = vadd.f32 %v88, %v349
  %351 = vmatmul.f32.gmra.mxu0 %v140
  %v352 = vpop.f32.mrf.mxu0
  %v353 = vadd.f32 %v88, %v352
  %354 = vmatmul.f32.gmra.mxu0 %v143
  %v355 = vpop.f32.mrf.mxu0
  %v356 = vadd.f32 %v88, %v355
  %357 = vmatmul.f32.gmra.mxu0 %v146
  %v358 = vpop.f32.mrf.mxu0
  %v359 = vadd.f32 %v88, %v358
  %360 = vmatmul.f32.gmra.mxu0 %v149
  %v361 = vpop.f32.mrf.mxu0
  %v362 = vadd.f32 %v88, %v361
  %363 = vmatmul.f32.gmra.mxu0 %v152
  %v364 = vpop.f32.mrf.mxu0
  %v365 = vadd.f32 %v88, %v364
  %366 = vmatmul.f32.gmra.mxu0 %v155
  %v367 = vpop.f32.mrf.mxu0
  %v368 = vadd.f32 %v88, %v367
  %369 = vmatmul.f32.gmra.mxu0 %v158
  %v370 = vpop.f32.mrf.mxu0
  %v371 = vadd.f32 %v88, %v370
  %372 = vmatmul.f32.gmra.mxu0 %v161
  %v373 = vpop.f32.mrf.mxu0
  %v374 = vadd.f32 %v88, %v373
  %375 = vmatmul.f32.gmra.mxu0 %v164
  %v376 = vpop.f32.mrf.mxu0
  %v377 = vadd.f32 %v88, %v376
  %378 = vmatmul.f32.gmra.mxu0 %v167
  %v379 = vpop.f32.mrf.mxu0
  %v380 = vadd.f32 %v88, %v379
  %381 = vmatmul.f32.gmra.mxu0 %v170
  %v382 = vpop.f32.mrf.mxu0
  %v383 = vadd.f32 %v88, %v382
  %384 = vmatmul.f32.gmra.mxu0 %v173
  %v385 = vpop.f32.mrf.mxu0
  %v386 = vadd.f32 %v88, %v385
  %387 = vmatmul.f32.gmra.mxu0 %v176
  %v388 = vpop.f32.mrf.mxu0
  %v389 = vadd.f32 %v88, %v388
  %390 = vmatmul.f32.gmra.mxu0 %v179
  %v391 = vpop.f32.mrf.mxu0
  %v392 = vadd.f32 %v88, %v391
  %393 = vmatmul.f32.gmra.mxu0 %v182
  %v394 = vpop.f32.mrf.mxu0
  %v395 = vadd.f32 %v88, %v394
  %396 = vmatmul.f32.gmra.mxu0 %v185
  %v397 = vpop.f32.mrf.mxu0
  %v398 = vadd.f32 %v88, %v397
  %399 = vmatmul.f32.gmra.mxu0 %v188
  %v400 = vpop.f32.mrf.mxu0
  %v401 = vadd.f32 %v88, %v400
  %402 = vmatmul.f32.gmra.mxu0 %v191
  %v403 = vpop.f32.mrf.mxu0
  %v404 = vadd.f32 %v88, %v403
  %405 = vmatmul.f32.gmra.mxu0 %v194
  %v406 = vpop.f32.mrf.mxu0
  %v407 = vadd.f32 %v88, %v406
  %408 = vmatmul.f32.gmra.mxu0 %v197
  %v409 = vpop.f32.mrf.mxu0
  %v410 = vadd.f32 %v88, %v409
  %411 = vmatmul.f32.gmra.mxu0 %v200
  %v412 = vpop.f32.mrf.mxu0
  %v413 = vadd.f32 %v88, %v412
  %414 = vmatmul.f32.gmra.mxu0 %v203
  %v415 = vpop.f32.mrf.mxu0
  %v416 = vadd.f32 %v88, %v415
  %417 = vmatmul.f32.gmra.mxu0 %v206
  %v418 = vpop.f32.mrf.mxu0
  %v419 = vadd.f32 %v88, %v418
  %420 = vmatmul.f32.gmra.mxu0 %v209
  %v421 = vpop.f32.mrf.mxu0
  %v422 = vadd.f32 %v88, %v421
  %423 = vmatmul.f32.gmra.mxu0 %v212
  %v424 = vpop.f32.mrf.mxu0
  %v425 = vadd.f32 %v88, %v424
  %426 = vmatmul.f32.gmra.mxu0 %v215
  %v427 = vpop.f32.mrf.mxu0
  %v428 = vadd.f32 %v88, %v427
  %429 = vmatmul.f32.gmra.mxu0 %v218
  %v430 = vpop.f32.mrf.mxu0
  %v431 = vadd.f32 %v88, %v430
  %432 = vmatmul.f32.gmra.mxu0 %v221
  %v433 = vpop.f32.mrf.mxu0
  %v434 = vadd.f32 %v88, %v433
  %435 = vmatmul.f32.gmra.mxu0 %v224
  %v436 = vpop.f32.mrf.mxu0
  %v437 = vadd.f32 %v88, %v436
  %438 = vmatmul.f32.gmra.mxu0 %v227
  %v439 = vpop.f32.mrf.mxu0
  %v440 = vadd.f32 %v88, %v439
  %441 = vmatmul.f32.gmra.mxu0 %v230
  %v442 = vpop.f32.mrf.mxu0
  %v443 = vadd.f32 %v88, %v442
  %444 = vmatmul.f32.gmra.mxu0 %v233
  %v445 = vpop.f32.mrf.mxu0
  %v446 = vadd.f32 %v88, %v445
  %447 = vmatmul.f32.gmra.mxu0 %v236
  %v448 = vpop.f32.mrf.mxu0
  %v449 = vadd.f32 %v88, %v448
  %450 = vmatmul.f32.gmra.mxu0 %v239
  %v451 = vpop.f32.mrf.mxu0
  %v452 = vadd.f32 %v88, %v451
  %453 = vmatmul.f32.gmra.mxu0 %v242
  %v454 = vpop.f32.mrf.mxu0
  %v455 = vadd.f32 %v88, %v454
  %456 = vmatmul.f32.gmra.mxu0 %v245
  %v457 = vpop.f32.mrf.mxu0
  %v458 = vadd.f32 %v88, %v457
  %459 = vmatmul.f32.gmra.mxu0 %v248
  %v460 = vpop.f32.mrf.mxu0
  %v461 = vadd.f32 %v88, %v460
  %462 = vmatmul.f32.gmra.mxu0 %v251
  %v463 = vpop.f32.mrf.mxu0
  %v464 = vadd.f32 %v88, %v463
  %465 = vmatmul.f32.gmra.mxu0 %v254
  %v466 = vpop.f32.mrf.mxu0
  %v467 = vadd.f32 %v88, %v466
  %468 = vmatmul.f32.gmra.mxu0 %v257
  %v469 = vpop.f32.mrf.mxu0
  %v470 = vadd.f32 %v88, %v469
  %471 = vmatmul.f32.gmra.mxu0 %v260
  %v472 = vpop.f32.mrf.mxu0
  %v473 = vadd.f32 %v88, %v472
  %474 = vmatmul.f32.gmra.mxu0 %v263
  %v475 = vpop.f32.mrf.mxu0
  %v476 = vadd.f32 %v88, %v475
  %477 = vmatmul.f32.gmra.mxu0 %v266
  %v478 = vpop.f32.mrf.mxu0
  %v479 = vadd.f32 %v88, %v478
  %480 = vmatmul.f32.gmra.mxu0 %v269
  %v481 = vpop.f32.mrf.mxu0
  %v482 = vadd.f32 %v88, %v481
  %483 = vmatmul.f32.gmra.mxu0 %v272
  %v484 = vpop.f32.mrf.mxu0
  %v485 = vadd.f32 %v88, %v484
  %486 = vmatmul.f32.gmra.mxu0 %v275
  %v487 = vpop.f32.mrf.mxu0
  %v488 = vadd.f32 %v88, %v487
  %489 = vmatmul.f32.gmra.mxu0 %v278
  %v490 = vpop.f32.mrf.mxu0
  %v491 = vadd.f32 %v88, %v490
  %492 = vmatmul.f32.gmra.mxu0 %v281
  %v493 = vpop.f32.mrf.mxu0
  %v494 = vadd.f32 %v88, %v493
  %495 = vdwg.mxu0
  %v496 = vmax.f32 %v305, 0.0
  %v497 = vmax.f32 %v308, 0.0
  %v498 = vmax.f32 %v311, 0.0
  %v499 = vmax.f32 %v314, 0.0
  %v500 = vmax.f32 %v317, 0.0
  %v501 = vmax.f32 %v320, 0.0
  %v502 = vmax.f32 %v323, 0.0
  %v503 = vmax.f32 %v326, 0.0
  %v504 = vmax.f32 %v329, 0.0
  %v505 = vmax.f32 %v332, 0.0
  %v506 = vmax.f32 %v335, 0.0
  %v507 = vmax.f32 %v338, 0.0
  %v508 = vmax.f32 %v341, 0.0
  %v509 = vmax.f32 %v344, 0.0
  %v510 = vmax.f32 %v347, 0.0
  %v511 = vmax.f32 %v350, 0.0
  %v512 = vmax.f32 %v353, 0.0
  %v513 = vmax.f32 %v356, 0.0
  %v514 = vmax.f32 %v359, 0.0
  %v515 = vmax.f32 %v362, 0.0
  %v516 = vmax.f32 %v365, 0.0
  %v517 = vmax.f32 %v368, 0.0
  %v518 = vmax.f32 %v371, 0.0
  %v519 = vmax.f32 %v374, 0.0
  %v520 = vmax.f32 %v377, 0.0
  %v521 = vmax.f32 %v380, 0.0
  %v522 = vmax.f32 %v383, 0.0
  %v523 = vmax.f32 %v386, 0.0
  %v524 = vmax.f32 %v389, 0.0
  %v525 = vmax.f32 %v392, 0.0
  %v526 = vmax.f32 %v395, 0.0
  %v527 = vmax.f32 %v398, 0.0
  %v528 = vmax.f32 %v401, 0.0
  %v529 = vmax.f32 %v404, 0.0
  %v530 = vmax.f32 %v407, 0.0
  %v531 = vmax.f32 %v410, 0.0
  %v532 = vmax.f32 %v413, 0.0
  %v533 = vmax.f32 %v416, 0.0
  %v534 = vmax.f32 %v419, 0.0
  %v535 = vmax.f32 %v422, 0.0
  %v536 = vmax.f32 %v425, 0.0
  %v537 = vmax.f32 %v428, 0.0
  %v538 = vmax.f32 %v431, 0.0
  %v539 = vmax.f32 %v434, 0.0
  %v540 = vmax.f32 %v437, 0.0
  %v541 = vmax.f32 %v440, 0.0
  %v542 = vmax.f32 %v443, 0.0
  %v543 = vmax.f32 %v446, 0.0
  %v544 = vmax.f32 %v449, 0.0
  %v545 = vmax.f32 %v452, 0.0
  %v546 = vmax.f32 %v455, 0.0
  %v547 = vmax.f32 %v458, 0.0
  %v548 = vmax.f32 %v461, 0.0
  %v549 = vmax.f32 %v464, 0.0
  %v550 = vmax.f32 %v467, 0.0
  %v551 = vmax.f32 %v470, 0.0
  %v552 = vmax.f32 %v473, 0.0
  %v553 = vmax.f32 %v476, 0.0
  %v554 = vmax.f32 %v479, 0.0
  %v555 = vmax.f32 %v482, 0.0
  %v556 = vmax.f32 %v485, 0.0
  %v557 = vmax.f32 %v488, 0.0
  %v558 = vmax.f32 %v491, 0.0
  %v559 = vmax.f32 %v494, 0.0
  %vm560 = vcmask 130048
  %561 = vst.msk [vmem:[%s3] sm:$0xff] %vm560, %v496
  %562 = vst.msk [vmem:[%s3 + $0x8] sm:$0xff] %vm560, %v497
  %563 = vst.msk [vmem:[%s3 + $0x10] sm:$0xff] %vm560, %v498
  %564 = vst.msk [vmem:[%s3 + $0x18] sm:$0xff] %vm560, %v499
  %565 = vst.msk [vmem:[%s3 + $0x20] sm:$0xff] %vm560, %v500
  %566 = vst.msk [vmem:[%s3 + $0x28] sm:$0xff] %vm560, %v501
  %567 = vst.msk [vmem:[%s3 + $0x30] sm:$0xff] %vm560, %v502
  %568 = vst.msk [vmem:[%s3 + $0x38] sm:$0xff] %vm560, %v503
  %569 = vst.msk [vmem:[%s3 + $0x40] sm:$0xff] %vm560, %v504
  %570 = vst.msk [vmem:[%s3 + $0x48] sm:$0xff] %vm560, %v505
  %571 = vst.msk [vmem:[%s3 + $0x50] sm:$0xff] %vm560, %v506
  %572 = vst.msk [vmem:[%s3 + $0x58] sm:$0xff] %vm560, %v507
  %573 = vst.msk [vmem:[%s3 + $0x60] sm:$0xff] %vm560, %v508
  %574 = vst.msk [vmem:[%s3 + $0x68] sm:$0xff] %vm560, %v509
  %575 = vst.msk [vmem:[%s3 + $0x70] sm:$0xff] %vm560, %v510
  %576 = vst.msk [vmem:[%s3 + $0x78] sm:$0xff] %vm560, %v511
  %577 = vst.msk [vmem:[%s3 + $0x80] sm:$0xff] %vm560, %v512
  %578 = vst.msk [vmem:[%s3 + $0x88] sm:$0xff] %vm560, %v513
  %579 = vst.msk [vmem:[%s3 + $0x90] sm:$0xff] %vm560, %v514
  %580 = vst.msk [vmem:[%s3 + $0x98] sm:$0xff] %vm560, %v515
  %581 = vst.msk [vmem:[%s3 + $0xa0] sm:$0xff] %vm560, %v516
  %582 = vst.msk [vmem:[%s3 + $0xa8] sm:$0xff] %vm560, %v517
  %583 = vst.msk [vmem:[%s3 + $0xb0] sm:$0xff] %vm560, %v518
  %584 = vst.msk [vmem:[%s3 + $0xb8] sm:$0xff] %vm560, %v519
  %585 = vst.msk [vmem:[%s3 + $0xc0] sm:$0xff] %vm560, %v520
  %586 = vst.msk [vmem:[%s3 + $0xc8] sm:$0xff] %vm560, %v521
  %587 = vst.msk [vmem:[%s3 + $0xd0] sm:$0xff] %vm560, %v522
  %588 = vst.msk [vmem:[%s3 + $0xd8] sm:$0xff] %vm560, %v523
  %589 = vst.msk [vmem:[%s3 + $0xe0] sm:$0xff] %vm560, %v524
  %590 = vst.msk [vmem:[%s3 + $0xe8] sm:$0xff] %vm560, %v525
  %591 = vst.msk [vmem:[%s3 + $0xf0] sm:$0xff] %vm560, %v526
  %592 = vst.msk [vmem:[%s3 + $0xf8] sm:$0xff] %vm560, %v527
  %593 = vst.msk [vmem:[%s3 + $0x100] sm:$0xff] %vm560, %v528
  %594 = vst.msk [vmem:[%s3 + $0x108] sm:$0xff] %vm560, %v529
  %595 = vst.msk [vmem:[%s3 + $0x110] sm:$0xff] %vm560, %v530
  %596 = vst.msk [vmem:[%s3 + $0x118] sm:$0xff] %vm560, %v531
  %597 = vst.msk [vmem:[%s3 + $0x120] sm:$0xff] %vm560, %v532
  %598 = vst.msk [vmem:[%s3 + $0x128] sm:$0xff] %vm560, %v533
  %599 = vst.msk [vmem:[%s3 + $0x130] sm:$0xff] %vm560, %v534
  %600 = vst.msk [vmem:[%s3 + $0x138] sm:$0xff] %vm560, %v535
  %601 = vst.msk [vmem:[%s3 + $0x140] sm:$0xff] %vm560, %v536
  %602 = vst.msk [vmem:[%s3 + $0x148] sm:$0xff] %vm560, %v537
  %603 = vst.msk [vmem:[%s3 + $0x150] sm:$0xff] %vm560, %v538
  %604 = vst.msk [vmem:[%s3 + $0x158] sm:$0xff] %vm560, %v539
  %605 = vst.msk [vmem:[%s3 + $0x160] sm:$0xff] %vm560, %v540
  %606 = vst.msk [vmem:[%s3 + $0x168] sm:$0xff] %vm560, %v541
  %607 = vst.msk [vmem:[%s3 + $0x170] sm:$0xff] %vm560, %v542
  %608 = vst.msk [vmem:[%s3 + $0x178] sm:$0xff] %vm560, %v543
  %609 = vst.msk [vmem:[%s3 + $0x180] sm:$0xff] %vm560, %v544
  %610 = vst.msk [vmem:[%s3 + $0x188] sm:$0xff] %vm560, %v545
  %611 = vst.msk [vmem:[%s3 + $0x190] sm:$0xff] %vm560, %v546
  %612 = vst.msk [vmem:[%s3 + $0x198] sm:$0xff] %vm560, %v547
  %613 = vst.msk [vmem:[%s3 + $0x1a0] sm:$0xff] %vm560, %v548
  %614 = vst.msk [vmem:[%s3 + $0x1a8] sm:$0xff] %vm560, %v549
  %615 = vst.msk [vmem:[%s3 + $0x1b0] sm:$0xff] %vm560, %v550
  %616 = vst.msk [vmem:[%s3 + $0x1b8] sm:$0xff] %vm560, %v551
  %617 = vst.msk [vmem:[%s3 + $0x1c0] sm:$0xff] %vm560, %v552
  %618 = vst.msk [vmem:[%s3 + $0x1c8] sm:$0xff] %vm560, %v553
  %619 = vst.msk [vmem:[%s3 + $0x1d0] sm:$0xff] %vm560, %v554
  %620 = vst.msk [vmem:[%s3 + $0x1d8] sm:$0xff] %vm560, %v555
  %621 = vst.msk [vmem:[%s3 + $0x1e0] sm:$0xff] %vm560, %v556
  %622 = vst.msk [vmem:[%s3 + $0x1e8] sm:$0xff] %vm560, %v557
  %623 = vst.msk [vmem:[%s3 + $0x1f0] sm:$0xff] %vm560, %v558
  %624 = vst.msk [vmem:[%s3 + $0x1f8] sm:$0xff] %vm560, %v559
  // Predicated region
  $region14: #{dual_block_forward.19} parent=0 // pred_check
    _
  $region15: #{dual_block_forward.19} parent=0 // pred_check_branch
    %626 = sbr.rel (0) target = $region17
  $region16: #{dual_block_forward.19} parent=0 // pred_region
    _
  $region17: #{dual_block_forward.19} parent=0 // pred_fallthru
    _
  // Predicated region
  $region18: #{dual_block_forward.19} parent=0 // pred_check
    _
  $region19: #{dual_block_forward.19} parent=0 // pred_check_branch
    %628 = sbr.rel (0) target = $region21
  $region20: #{dual_block_forward.19} parent=0 // pred_region
    _
  $region21: #{dual_block_forward.19} parent=0 // pred_fallthru
    _

</llo_original>
